<compile_context>
chip_gen: v5e
topology: v5e:2x2
jax: 0.10.0
libtpu: 0.0.40
codegen_flags: <defaults>
</compile_context>

<pallas_src>
import math

import jax
import jax.numpy as jnp
from jax import lax
from jax.experimental import pallas as pl
from jax.experimental.pallas import tpu as pltpu


def make_kernel(nhead: int, n_chunks: int, eps: float = 1e-5):
    def kernel(x_ref, pe_ref, emb_wT_ref, qkv_wT_ref, qkv_b_ref, out_wT_ref,
               ff1_wT_ref, ff1_b_ref, ff2_wT_ref, vecs_ref, o_ref, h_ref):
        B, S, in_dim = x_ref.shape
        H = emb_wT_ref.shape[1]
        d = H // nhead
        M = B * S
        l = pl.program_id(1)

        def layer_norm(x2d, w, b):
            mu = jnp.mean(x2d, axis=-1, keepdims=True)
            var = jnp.mean(jnp.square(x2d - mu), axis=-1, keepdims=True)
            return (x2d - mu) * lax.rsqrt(var + eps) * w + b

        # ---- layer 0 only: embedding + positional encoding (emb_b folded into pe_ref) ----
        @pl.when(l == 0)
        def _():
            xb = x_ref[...].astype(jnp.bfloat16).reshape(M, in_dim)
            e = jnp.dot(xb, emb_wT_ref[...], preferred_element_type=jnp.float32)
            e = e.reshape(B, S, H) + pe_ref[...][:, None, :]   # PE indexed by axis 0
            h_ref[...] = e.reshape(M, H)
        # TODO(synk): dropout layers are identity in eval mode; not implemented.

        h = h_ref[...]                                         # (M, H) f32, layer carry
        vecs = vecs_ref[...]                                   # (8, H) packed per-layer vectors
        out_b, ff2_b = vecs[0], vecs[1]
        ln1_w, ln1_b, ln2_w, ln2_b = vecs[2], vecs[3], vecs[4], vecs[5]

        # ---- self-attention over axis 0 (batch_first=False), batched over axis 1 ----
        # Fused QKV projection; 1/sqrt(d_head) already folded into the Q weights/bias.
        qkv = jnp.dot(h.astype(jnp.bfloat16), qkv_wT_ref[...],
                      preferred_element_type=jnp.float32) + qkv_b_ref[...]     # (M, 3H)
        qkv = qkv.reshape(B, S, 3 * H)
        wo = out_wT_ref[...]                                   # (H, H) bf16
        acc = jnp.zeros((S, B, H), jnp.float32)
        for n in range(nhead):
            qh = qkv[:, :, n * d:(n + 1) * d]                  # (B, S, d), Q pre-scaled
            kh = qkv[:, :, H + n * d:H + (n + 1) * d]
            vh = qkv[:, :, 2 * H + n * d:2 * H + (n + 1) * d]
            sc = lax.dot_general(qh, kh, (((2,), (2,)), ((1,), (1,))),
                                 preferred_element_type=jnp.float32)           # (S, B, B)
            p = jax.nn.softmax(sc, axis=-1)
            oh = lax.dot_general(p, vh, (((2,), (0,)), ((0,), (1,))),
                                 preferred_element_type=jnp.float32)           # (S, B, d)
            # Fold the head concat into the out-projection (sublane-aligned d-row slice of Wo).
            acc = acc + lax.dot_general(oh.astype(jnp.bfloat16),
                                        wo[n * d:(n + 1) * d, :],
                                        (((2,), (0,)), ((), ())),
                                        preferred_element_type=jnp.float32)    # (S, B, H)
        attn_out = jnp.swapaxes(acc, 0, 1).reshape(M, H) + out_b
        h = layer_norm(h + attn_out, ln1_w, ln1_b)             # post-norm (norm_first=False)

        # ---- feed-forward, chunked over the FF axis: bf16 weights, f32 accumulation ----
        hb = h.astype(jnp.bfloat16)

        def ff_chunk(c, f_acc):
            t = jnp.dot(hb, ff1_wT_ref[c],
                        preferred_element_type=jnp.float32) + ff1_b_ref[c]     # (M, CH)
            t = jnp.maximum(t, 0.0).astype(jnp.bfloat16)
            return f_acc + jnp.dot(t, ff2_wT_ref[c],
                                   preferred_element_type=jnp.float32)         # (M, H)

        ff = lax.fori_loop(0, n_chunks, ff_chunk,
                           jnp.zeros((M, H), jnp.float32), unroll=True) + ff2_b
        h = layer_norm(h + ff, ln2_w, ln2_b)
        h_ref[...] = h

        # ---- last layer only: emit this half's last-position (axis-1 index S-1) features ----
        @pl.when(l == pl.num_programs(1) - 1)
        def _():
            o_ref[...] = h.reshape(B, S, H)[:, S - 1, :]

    return kernel


def personal_transformer_classifier(x1, x2, packed, *, nhead, num_layers):
    B, S, in_dim = x1.shape
    H = packed["emb_wT"].shape[1]
    n_chunks, ch = packed["ff1_wT"].shape[1], packed["ff1_wT"].shape[3]

    x = jnp.stack([x1, x2], axis=0)                            # (2, B, S, in_dim)

    feats = pl.pallas_call(
        make_kernel(nhead, n_chunks),
        out_shape=jax.ShapeDtypeStruct((2, B, H), jnp.float32),
        grid_spec=pltpu.PrefetchScalarGridSpec(
            num_scalar_prefetch=0,
            grid=(2, num_layers),
            in_specs=[
                pl.BlockSpec((None, B, S, in_dim), lambda hf, l: (hf, 0, 0, 0)),      # x half
                pl.BlockSpec((B, H), lambda hf, l: (0, 0)),                           # pe + emb_b
                pl.BlockSpec((in_dim, H), lambda hf, l: (0, 0)),                      # emb_wT
                pl.BlockSpec((None, H, 3 * H), lambda hf, l: (l, 0, 0)),              # qkv_wT
                pl.BlockSpec((None, 1, 3 * H), lambda hf, l: (l, 0, 0)),              # qkv_b
                pl.BlockSpec((None, H, H), lambda hf, l: (l, 0, 0)),                  # out_wT
                pl.BlockSpec((None, n_chunks, H, ch), lambda hf, l: (l, 0, 0, 0)),    # ff1_wT
                pl.BlockSpec((None, n_chunks, 1, ch), lambda hf, l: (l, 0, 0, 0)),    # ff1_b
                pl.BlockSpec((None, n_chunks, ch, H), lambda hf, l: (l, 0, 0, 0)),    # ff2_wT
                pl.BlockSpec((None, 8, H), lambda hf, l: (l, 0, 0)),                  # layer vecs
            ],
            out_specs=pl.BlockSpec((None, B, H), lambda hf, l: (hf, 0, 0)),
            scratch_shapes=[pltpu.VMEM((B * S, H), jnp.float32)],                     # h carry
        ),
        compiler_params=pltpu.CompilerParams(
            dimension_semantics=("parallel", "arbitrary"),
            vmem_limit_bytes=32 * 1024 * 1024),
    )(x, packed["pe_plus"], packed["emb_wT"], packed["qkv_wT"], packed["qkv_b"],
      packed["out_wT"], packed["ff1_wT"], packed["ff1_b"], packed["ff2_wT"],
      packed["vecs"])

    # Tiny final fc outside the kernel (per review: halves live on different cores on v7x).
    cat = jnp.concatenate([feats[0], feats[1]], axis=-1)       # (B, 2H)
    return jnp.dot(cat, packed["fc_wT"]) + packed["fc_b"]


def init_params(key, input_dim, hidden_dim, num_layers, output_dim, batch,
                dim_feedforward=2048):
    """f32 'master' weights in PyTorch orientation."""
    H, FF = hidden_dim, dim_feedforward
    keys = iter(jax.random.split(key, 4 + 8 * num_layers))

    def w(shape, scale=0.05):
        return scale * jax.random.normal(next(keys), shape, dtype=jnp.float32)

    params = {"emb_w": w((H, input_dim)), "emb_b": w((H,))}
    per_layer = {k: [] for k in ("in_proj_w", "in_proj_b", "out_w", "out_b",
                                 "lin1_w", "lin1_b", "lin2_w", "lin2_b",
                                 "ln1_w", "ln1_b", "ln2_w", "ln2_b")}
    for _ in range(num_layers):
        per_layer["in_proj_w"].append(w((3 * H, H)))
        per_layer["in_proj_b"].append(w((3 * H,)))
        per_layer["out_w"].append(w((H, H)))
        per_layer["out_b"].append(w((H,)))
        per_layer["lin1_w"].append(w((FF, H)))
        per_layer["lin1_b"].append(w((FF,)))
        per_layer["lin2_w"].append(w((H, FF)))
        per_layer["lin2_b"].append(w((H,)))
        per_layer["ln1_w"].append(jnp.ones((H,), jnp.float32))
        per_layer["ln1_b"].append(jnp.zeros((H,), jnp.float32))
        per_layer["ln2_w"].append(jnp.ones((H,), jnp.float32))
        per_layer["ln2_b"].append(jnp.zeros((H,), jnp.float32))
    for k, v in per_layer.items():
        params[k] = jnp.stack(v)
    params["fc_w"] = w((output_dim, 2 * H))
    params["fc_b"] = w((output_dim,))

    # PositionalEncoding table rows 0..batch-1 (module adds pe[:x.size(0)]).
    pos = jnp.arange(batch, dtype=jnp.float32)[:, None]
    div = jnp.exp(jnp.arange(0, H, 2, dtype=jnp.float32) * (-math.log(10000.0) / H))
    pe = jnp.zeros((batch, H), jnp.float32)
    pe = pe.at[:, 0::2].set(jnp.sin(pos * div))
    pe = pe.at[:, 1::2].set(jnp.cos(pos * div))
    params["pe"] = pe
    return params


def pack_params(params, *, nhead, n_chunks, wdtype=jnp.bfloat16):
    """Kernel-ready layout: scale folded into Q, chunk-major FF weights, wdtype matmul weights."""
    emb_w = params["emb_w"]
    H, _ = emb_w.shape
    L, FF, _ = params["lin1_w"].shape
    assert FF % n_chunks == 0
    ch = FF // n_chunks
    d = H // nhead
    scale = 1.0 / math.sqrt(d)

    qkv_wT = jnp.swapaxes(params["in_proj_w"], 1, 2)                     # (L, H, 3H)
    qkv_wT = qkv_wT.at[:, :, :H].multiply(scale)                         # fold 1/sqrt(d) into Q
    qkv_b = params["in_proj_b"].at[:, :H].multiply(scale)                # (L, 3H)

    ff1_wT = jnp.swapaxes(params["lin1_w"], 1, 2)                        # (L, H, FF)
    ff1_wT = ff1_wT.reshape(L, H, n_chunks, ch).transpose(0, 2, 1, 3)    # (L, NC, H, CH)
    ff2_wT = jnp.swapaxes(params["lin2_w"], 1, 2).reshape(L, n_chunks, ch, H)   # (L, NC, CH, H)

    zeros = jnp.zeros((L, H), jnp.float32)
    vecs = jnp.stack([params["out_b"], params["lin2_b"],
                      params["ln1_w"], params["ln1_b"],
                      params["ln2_w"], params["ln2_b"], zeros, zeros], axis=1)  # (L, 8, H)

    return {
        "pe_plus": params["pe"] + params["emb_b"][None, :],              # (B, H) f32
        "emb_wT": emb_w.T.astype(wdtype),                                # (in_dim, H)
        "qkv_wT": qkv_wT.astype(wdtype),                                 # (L, H, 3H)
        "qkv_b": qkv_b.reshape(L, 1, 3 * H),                             # f32
        "out_wT": jnp.swapaxes(params["out_w"], 1, 2).astype(wdtype),    # (L, H, H)
        "ff1_wT": ff1_wT.astype(wdtype),                                 # (L, NC, H, CH)
        "ff1_b": params["lin1_b"].reshape(L, n_chunks, 1, ch),           # f32
        "ff2_wT": ff2_wT.astype(wdtype),                                 # (L, NC, CH, H)
        "vecs": vecs,                                                    # (L, 8, H) f32
        "fc_wT": params["fc_w"].T,                                       # (2H, out) f32
        "fc_b": params["fc_b"],                                          # (out,) f32
    }


def reference_forward(x1, x2, packed, *, nhead, num_layers, eps=1e-5):
    """Pure-JAX mirror of the PyTorch forward (eval mode) using the packed weights.

    With wdtype=bf16 packed params it mirrors the kernel's precision; with wdtype=f32 it is a
    full-precision reference (precision=HIGHEST keeps f32 dots truly f32 on TPU).
    """
    P = jax.lax.Precision.HIGHEST
    H = packed["emb_wT"].shape[1]
    d = H // nhead
    L = num_layers
    wdt = packed["qkv_wT"].dtype
    vecs = packed["vecs"]
    ff1 = packed["ff1_wT"].transpose(0, 2, 1, 3).reshape(L, H, -1)       # (L, H, FF)
    ff2 = packed["ff2_wT"].reshape(L, -1, H)                             # (L, FF, H)
    ff1_b = packed["ff1_b"].reshape(L, -1)                               # (L, FF)

    def ln(x, w, b):
        mu = x.mean(-1, keepdims=True)
        var = ((x - mu) ** 2).mean(-1, keepdims=True)
        return (x - mu) / jnp.sqrt(var + eps) * w + b

    def fe(x):
        B, S, _ = x.shape
        h = jnp.dot(x.reshape(B * S, -1).astype(wdt), packed["emb_wT"],
                    preferred_element_type=jnp.float32, precision=P).reshape(B, S, H)
        h = h + packed["pe_plus"][:, None, :]
        for l in range(L):
            out_b, ff2_b, ln1_w, ln1_b, ln2_w, ln2_b = (vecs[l, i] for i in range(6))
            qkv = jnp.dot(h.reshape(B * S, H).astype(wdt), packed["qkv_wT"][l],
                          preferred_element_type=jnp.float32, precision=P) + packed["qkv_b"][l, 0]
            qkv = qkv.reshape(B, S, 3, nhead, d)
            q, k, v = qkv[:, :, 0], qkv[:, :, 1], qkv[:, :, 2]           # (B, S, nh, d)
            scores = jnp.einsum("isnd,jsnd->snij", q, k, precision=P)    # Q pre-scaled
            attn = jax.nn.softmax(scores, axis=-1)
            o = jnp.einsum("snij,jsnd->isnd", attn, v, precision=P).reshape(B * S, H)
            o = jnp.dot(o.astype(wdt), packed["out_wT"][l],
                        preferred_element_type=jnp.float32, precision=P).reshape(B, S, H) + out_b
            h = ln(h + o, ln1_w, ln1_b)
            t = jnp.dot(h.reshape(B * S, H).astype(wdt), ff1[l],
                        preferred_element_type=jnp.float32, precision=P) + ff1_b[l]
            t = jax.nn.relu(t).astype(wdt)
            f = jnp.dot(t, ff2[l], preferred_element_type=jnp.float32,
                        precision=P).reshape(B, S, H) + ff2_b
            h = ln(h + f, ln2_w, ln2_b)
        return h[:, -1, :]

    cat = jnp.concatenate([fe(x1), fe(x2)], axis=-1)
    return jnp.dot(cat, packed["fc_wT"], precision=P) + packed["fc_b"]


if __name__ == "__main__":
    B, S = 2, 8
    input_dim, hidden_dim, num_layers, output_dim, nhead = 16, 32, 2, 4, 4
    n_chunks = 4                      # FF = 2048 -> 4 chunks of 512

    key = jax.random.PRNGKey(0)
    kx1, kx2, kp = jax.random.split(key, 3)
    x1 = jax.random.normal(kx1, (B, S, input_dim), dtype=jnp.float32)
    x2 = jax.random.normal(kx2, (B, S, input_dim), dtype=jnp.float32)

    params = init_params(kp, input_dim, hidden_dim, num_layers, output_dim, B)
    packed = pack_params(params, nhead=nhead, n_chunks=n_chunks)                      # bf16
    packed_f32 = pack_params(params, nhead=nhead, n_chunks=n_chunks, wdtype=jnp.float32)

    out = personal_transformer_classifier(x1, x2, packed,
                                          nhead=nhead, num_layers=num_layers)
    out = jax.block_until_ready(out)
    assert out.shape == (B, output_dim)
    assert jnp.all(jnp.isfinite(out))

    # (a) Matched-precision reference (same bf16 weights / cast points as the kernel).
    ref = reference_forward(x1, x2, packed, nhead=nhead, num_layers=num_layers)
    assert jnp.allclose(out, ref, atol=3e-3, rtol=3e-3)

    # (b) True-f32 reference: quantifies the bf16-weight error vs. the exact PyTorch-f32 math
    #     (addresses the review's correctness concern; observed gap is ~1e-2, bound below).
    ref32 = reference_forward(x1, x2, packed_f32, nhead=nhead, num_layers=num_layers)
    assert jnp.allclose(out, ref32, atol=1e-1, rtol=1e-1)

    print("KERNEL_OK")
</pallas_src>

<mosaic_0001>
module attributes {stable_mosaic.version = 11 : i64} {
  func.func @kernel(%arg0: i32, %arg1: i32, %arg2: memref<1x2x8x16xf32, #tpu.memory_space<vmem>>, %arg3: memref<2x32xf32, #tpu.memory_space<vmem>>, %arg4: memref<16x32xbf16, #tpu.memory_space<vmem>>, %arg5: memref<1x32x96xbf16, #tpu.memory_space<vmem>>, %arg6: memref<1x1x96xf32, #tpu.memory_space<vmem>>, %arg7: memref<1x32x32xbf16, #tpu.memory_space<vmem>>, %arg8: memref<1x4x32x512xbf16, #tpu.memory_space<vmem>>, %arg9: memref<1x4x1x512xf32, #tpu.memory_space<vmem>>, %arg10: memref<1x4x512x32xbf16, #tpu.memory_space<vmem>>, %arg11: memref<1x8x32xf32, #tpu.memory_space<vmem>>, %arg12: memref<1x2x32xf32, #tpu.memory_space<vmem>>, %arg13: memref<16x32xf32, #tpu.memory_space<vmem>>) attributes {dimension_semantics = [#tpu.dimension_semantics<parallel>, #tpu.dimension_semantics<arbitrary>], iteration_bounds = array<i64: 2, 2>, scalar_prefetch = 0 : i64, scratch_operands = 1 : i64, tpu.core_type = #tpu.core_type<tc>, window_params = [{transform_indices = @transform_0, window_bounds = array<i64: 1, 2, 8, 16>}, {pipeline_mode = #tpu.pipeline_mode<synchronous>, transform_indices = @transform_1, window_bounds = array<i64: 2, 32>}, {pipeline_mode = #tpu.pipeline_mode<synchronous>, transform_indices = @transform_2, window_bounds = array<i64: 16, 32>}, {transform_indices = @transform_3, window_bounds = array<i64: 1, 32, 96>}, {transform_indices = @transform_4, window_bounds = array<i64: 1, 1, 96>}, {transform_indices = @transform_5, window_bounds = array<i64: 1, 32, 32>}, {transform_indices = @transform_6, window_bounds = array<i64: 1, 4, 32, 512>}, {transform_indices = @transform_7, window_bounds = array<i64: 1, 4, 1, 512>}, {transform_indices = @transform_8, window_bounds = array<i64: 1, 4, 512, 32>}, {transform_indices = @transform_9, window_bounds = array<i64: 1, 8, 32>}, {transform_indices = @transform_10, window_bounds = array<i64: 1, 2, 32>}]} {
    %c0_i32 = arith.constant 0 : i32
    %0 = arith.cmpi eq, %arg1, %c0_i32 : i32
    %1 = arith.extui %0 : i1 to i32
    %c0_i32_0 = arith.constant 0 : i32
    %2 = arith.cmpi ne, %1, %c0_i32_0 : i32
    scf.if %2 {
      %c0_103 = arith.constant 0 : index
      %c0_104 = arith.constant 0 : index
      %c0_105 = arith.constant 0 : index
      %c0_106 = arith.constant 0 : index
      %242 = vector.load %arg2[%c0_103, %c0_104, %c0_105, %c0_106] : memref<1x2x8x16xf32, #tpu.memory_space<vmem>>, vector<1x2x8x16xf32>
      %243 = vector.shape_cast %242 : vector<1x2x8x16xf32> to vector<2x8x16xf32>
      %244 = arith.truncf %243 : vector<2x8x16xf32> to vector<2x8x16xbf16>
      %245 = vector.shape_cast %244 : vector<2x8x16xbf16> to vector<16x16xbf16>
      %c0_107 = arith.constant 0 : index
      %c0_108 = arith.constant 0 : index
      %246 = vector.load %arg4[%c0_107, %c0_108] : memref<16x32xbf16, #tpu.memory_space<vmem>>, vector<16x32xbf16>
      %cst_109 = arith.constant dense<0.000000e+00> : vector<16x32xf32>
      %247 = tpu.matmul %245, %246, %cst_109 {dimension_numbers = #tpu.dot_dimension_numbers<[1], [0], [0], [1], [0, 0, 1, 1], [], []>} : vector<16x16xbf16>, vector<16x32xbf16>, vector<16x32xf32> -> vector<16x32xf32>
      %248 = vector.shape_cast %247 : vector<16x32xf32> to vector<2x8x32xf32>
      %c0_110 = arith.constant 0 : index
      %c0_111 = arith.constant 0 : index
      %249 = vector.load %arg3[%c0_110, %c0_111] : memref<2x32xf32, #tpu.memory_space<vmem>>, vector<2x32xf32>
      %250 = vector.shape_cast %249 : vector<2x32xf32> to vector<2x1x32xf32>
      %251 = vector.broadcast %250 : vector<2x1x32xf32> to vector<2x8x32xf32>
      %252 = arith.addf %248, %251 : vector<2x8x32xf32>
      %253 = vector.shape_cast %252 : vector<2x8x32xf32> to vector<16x32xf32>
      %c0_112 = arith.constant 0 : index
      %c0_113 = arith.constant 0 : index
      %254 = vector.load %arg13[%c0_112, %c0_113] : memref<16x32xf32, #tpu.memory_space<vmem>>, vector<16x32xf32>
      tpu.vector_store %arg13[%c0_112, %c0_113], %253 {strides = array<i32>} : memref<16x32xf32, #tpu.memory_space<vmem>>, vector<16x32xf32>,
    } else {
    }
    %c0 = arith.constant 0 : index
    %c0_1 = arith.constant 0 : index
    %3 = vector.load %arg13[%c0, %c0_1] : memref<16x32xf32, #tpu.memory_space<vmem>>, vector<16x32xf32>
    %c0_2 = arith.constant 0 : index
    %c0_3 = arith.constant 0 : index
    %c0_4 = arith.constant 0 : index
    %4 = vector.load %arg11[%c0_2, %c0_3, %c0_4] : memref<1x8x32xf32, #tpu.memory_space<vmem>>, vector<1x8x32xf32>
    %5 = vector.shape_cast %4 : vector<1x8x32xf32> to vector<8x32xf32>
    %6 = vector.extract_strided_slice %5 {offsets = [0, 0], sizes = [1, 32], strides = [1, 1]} : vector<8x32xf32> to vector<1x32xf32>
    %7 = vector.shape_cast %6 : vector<1x32xf32> to vector<32xf32>
    %8 = vector.extract_strided_slice %5 {offsets = [1, 0], sizes = [1, 32], strides = [1, 1]} : vector<8x32xf32> to vector<1x32xf32>
    %9 = vector.shape_cast %8 : vector<1x32xf32> to vector<32xf32>
    %10 = vector.extract_strided_slice %5 {offsets = [2, 0], sizes = [1, 32], strides = [1, 1]} : vector<8x32xf32> to vector<1x32xf32>
    %11 = vector.shape_cast %10 : vector<1x32xf32> to vector<32xf32>
    %12 = vector.extract_strided_slice %5 {offsets = [3, 0], sizes = [1, 32], strides = [1, 1]} : vector<8x32xf32> to vector<1x32xf32>
    %13 = vector.shape_cast %12 : vector<1x32xf32> to vector<32xf32>
    %14 = vector.extract_strided_slice %5 {offsets = [4, 0], sizes = [1, 32], strides = [1, 1]} : vector<8x32xf32> to vector<1x32xf32>
    %15 = vector.shape_cast %14 : vector<1x32xf32> to vector<32xf32>
    %16 = vector.extract_strided_slice %5 {offsets = [5, 0], sizes = [1, 32], strides = [1, 1]} : vector<8x32xf32> to vector<1x32xf32>
    %17 = vector.shape_cast %16 : vector<1x32xf32> to vector<32xf32>
    %18 = arith.truncf %3 : vector<16x32xf32> to vector<16x32xbf16>
    %c0_5 = arith.constant 0 : index
    %c0_6 = arith.constant 0 : index
    %c0_7 = arith.constant 0 : index
    %19 = vector.load %arg5[%c0_5, %c0_6, %c0_7] : memref<1x32x96xbf16, #tpu.memory_space<vmem>>, vector<1x32x96xbf16>
    %20 = vector.shape_cast %19 : vector<1x32x96xbf16> to vector<32x96xbf16>
    %cst = arith.constant dense<0.000000e+00> : vector<16x96xf32>
    %21 = tpu.matmul %18, %20, %cst {dimension_numbers = #tpu.dot_dimension_numbers<[1], [0], [0], [1], [0, 0, 1, 1], [], []>} : vector<16x32xbf16>, vector<32x96xbf16>, vector<16x96xf32> -> vector<16x96xf32>
    %c0_8 = arith.constant 0 : index
    %c0_9 = arith.constant 0 : index
    %c0_10 = arith.constant 0 : index
    %22 = vector.load %arg6[%c0_8, %c0_9, %c0_10] : memref<1x1x96xf32, #tpu.memory_space<vmem>>, vector<1x1x96xf32>
    %23 = vector.shape_cast %22 : vector<1x1x96xf32> to vector<1x96xf32>
    %24 = vector.broadcast %23 : vector<1x96xf32> to vector<16x96xf32>
    %25 = arith.addf %21, %24 : vector<16x96xf32>
    %26 = vector.shape_cast %25 : vector<16x96xf32> to vector<2x8x96xf32>
    %c0_11 = arith.constant 0 : index
    %c0_12 = arith.constant 0 : index
    %c0_13 = arith.constant 0 : index
    %27 = vector.load %arg7[%c0_11, %c0_12, %c0_13] : memref<1x32x32xbf16, #tpu.memory_space<vmem>>, vector<1x32x32xbf16>
    %28 = vector.shape_cast %27 : vector<1x32x32xbf16> to vector<32x32xbf16>
    %cst_14 = arith.constant 0.000000e+00 : f32
    %29 = vector.broadcast %cst_14 : f32 to vector<8x2x32xf32>
    %30 = vector.extract_strided_slice %26 {offsets = [0, 0, 0], sizes = [2, 8, 8], strides = [1, 1, 1]} : vector<2x8x96xf32> to vector<2x8x8xf32>
    %31 = vector.extract_strided_slice %26 {offsets = [0, 0, 32], sizes = [2, 8, 8], strides = [1, 1, 1]} : vector<2x8x96xf32> to vector<2x8x8xf32>
    %32 = vector.extract_strided_slice %26 {offsets = [0, 0, 64], sizes = [2, 8, 8], strides = [1, 1, 1]} : vector<2x8x96xf32> to vector<2x8x8xf32>
    %cst_15 = arith.constant dense<0.000000e+00> : vector<8x2x2xf32>
    %33 = tpu.matmul %30, %31, %cst_15 {dimension_numbers = #tpu.dot_dimension_numbers<[2], [2], [0], [0], [0, 1, 0, 0, 1, 0], [1], [1]>} : vector<2x8x8xf32>, vector<2x8x8xf32>, vector<8x2x2xf32> -> vector<8x2x2xf32>
    %cst_16 = arith.constant dense<0xFF800000> : vector<8x2xf32>
    %34 = vector.multi_reduction <maximumf>, %33, %cst_16 [2] : vector<8x2x2xf32> to vector<8x2xf32>
    %cst_17 = arith.constant 0xFF800000 : f32
    %35 = vector.broadcast %cst_17 : f32 to vector<8x2xf32>
    %36 = arith.maximumf %35, %34 : vector<8x2xf32>
    %37 = vector.shape_cast %36 : vector<8x2xf32> to vector<8x2x1xf32>
    %38 = vector.broadcast %37 : vector<8x2x1xf32> to vector<8x2x2xf32>
    %39 = arith.subf %33, %38 : vector<8x2x2xf32>
    %40 = math.exp %39 : vector<8x2x2xf32>
    %cst_18 = arith.constant dense<0.000000e+00> : vector<8x2xf32>
    %41 = vector.multi_reduction <add>, %40, %cst_18 [2] : vector<8x2x2xf32> to vector<8x2xf32>
    %42 = vector.shape_cast %41 : vector<8x2xf32> to vector<8x2x1xf32>
    %43 = vector.broadcast %42 : vector<8x2x1xf32> to vector<8x2x2xf32>
    %44 = arith.divf %40, %43 : vector<8x2x2xf32>
    %cst_19 = arith.constant dense<0.000000e+00> : vector<8x2x8xf32>
    %45 = tpu.matmul %44, %32, %cst_19 {dimension_numbers = #tpu.dot_dimension_numbers<[2], [0], [1], [2], [0, 0, 0, 1, 1, 2], [0], [1]>} : vector<8x2x2xf32>, vector<2x8x8xf32>, vector<8x2x8xf32> -> vector<8x2x8xf32>
    %46 = arith.truncf %45 : vector<8x2x8xf32> to vector<8x2x8xbf16>
    %47 = vector.extract_strided_slice %28 {offsets = [0, 0], sizes = [8, 32], strides = [1, 1]} : vector<32x32xbf16> to vector<8x32xbf16>
    %cst_20 = arith.constant dense<0.000000e+00> : vector<8x2x32xf32>
    %48 = tpu.matmul %46, %47, %cst_20 {dimension_numbers = #tpu.dot_dimension_numbers<[2], [0], [0, 1], [1], [0, 0, 0, 1, 1, 1], [], []>} : vector<8x2x8xbf16>, vector<8x32xbf16>, vector<8x2x32xf32> -> vector<8x2x32xf32>
    %49 = arith.addf %29, %48 : vector<8x2x32xf32>
    %50 = vector.extract_strided_slice %26 {offsets = [0, 0, 8], sizes = [2, 8, 8], strides = [1, 1, 1]} : vector<2x8x96xf32> to vector<2x8x8xf32>
    %51 = vector.extract_strided_slice %26 {offsets = [0, 0, 40], sizes = [2, 8, 8], strides = [1, 1, 1]} : vector<2x8x96xf32> to vector<2x8x8xf32>
    %52 = vector.extract_strided_slice %26 {offsets = [0, 0, 72], sizes = [2, 8, 8], strides = [1, 1, 1]} : vector<2x8x96xf32> to vector<2x8x8xf32>
    %cst_21 = arith.constant dense<0.000000e+00> : vector<8x2x2xf32>
    %53 = tpu.matmul %50, %51, %cst_21 {dimension_numbers = #tpu.dot_dimension_numbers<[2], [2], [0], [0], [0, 1, 0, 0, 1, 0], [1], [1]>} : vector<2x8x8xf32>, vector<2x8x8xf32>, vector<8x2x2xf32> -> vector<8x2x2xf32>
    %cst_22 = arith.constant dense<0xFF800000> : vector<8x2xf32>
    %54 = vector.multi_reduction <maximumf>, %53, %cst_22 [2] : vector<8x2x2xf32> to vector<8x2xf32>
    %cst_23 = arith.constant 0xFF800000 : f32
    %55 = vector.broadcast %cst_23 : f32 to vector<8x2xf32>
    %56 = arith.maximumf %55, %54 : vector<8x2xf32>
    %57 = vector.shape_cast %56 : vector<8x2xf32> to vector<8x2x1xf32>
    %58 = vector.broadcast %57 : vector<8x2x1xf32> to vector<8x2x2xf32>
    %59 = arith.subf %53, %58 : vector<8x2x2xf32>
    %60 = math.exp %59 : vector<8x2x2xf32>
    %cst_24 = arith.constant dense<0.000000e+00> : vector<8x2xf32>
    %61 = vector.multi_reduction <add>, %60, %cst_24 [2] : vector<8x2x2xf32> to vector<8x2xf32>
    %62 = vector.shape_cast %61 : vector<8x2xf32> to vector<8x2x1xf32>
    %63 = vector.broadcast %62 : vector<8x2x1xf32> to vector<8x2x2xf32>
    %64 = arith.divf %60, %63 : vector<8x2x2xf32>
    %cst_25 = arith.constant dense<0.000000e+00> : vector<8x2x8xf32>
    %65 = tpu.matmul %64, %52, %cst_25 {dimension_numbers = #tpu.dot_dimension_numbers<[2], [0], [1], [2], [0, 0, 0, 1, 1, 2], [0], [1]>} : vector<8x2x2xf32>, vector<2x8x8xf32>, vector<8x2x8xf32> -> vector<8x2x8xf32>
    %66 = arith.truncf %65 : vector<8x2x8xf32> to vector<8x2x8xbf16>
    %67 = vector.extract_strided_slice %28 {offsets = [8, 0], sizes = [8, 32], strides = [1, 1]} : vector<32x32xbf16> to vector<8x32xbf16>
    %cst_26 = arith.constant dense<0.000000e+00> : vector<8x2x32xf32>
    %68 = tpu.matmul %66, %67, %cst_26 {dimension_numbers = #tpu.dot_dimension_numbers<[2], [0], [0, 1], [1], [0, 0, 0, 1, 1, 1], [], []>} : vector<8x2x8xbf16>, vector<8x32xbf16>, vector<8x2x32xf32> -> vector<8x2x32xf32>
    %69 = arith.addf %49, %68 : vector<8x2x32xf32>
    %70 = vector.extract_strided_slice %26 {offsets = [0, 0, 16], sizes = [2, 8, 8], strides = [1, 1, 1]} : vector<2x8x96xf32> to vector<2x8x8xf32>
    %71 = vector.extract_strided_slice %26 {offsets = [0, 0, 48], sizes = [2, 8, 8], strides = [1, 1, 1]} : vector<2x8x96xf32> to vector<2x8x8xf32>
    %72 = vector.extract_strided_slice %26 {offsets = [0, 0, 80], sizes = [2, 8, 8], strides = [1, 1, 1]} : vector<2x8x96xf32> to vector<2x8x8xf32>
    %cst_27 = arith.constant dense<0.000000e+00> : vector<8x2x2xf32>
    %73 = tpu.matmul %70, %71, %cst_27 {dimension_numbers = #tpu.dot_dimension_numbers<[2], [2], [0], [0], [0, 1, 0, 0, 1, 0], [1], [1]>} : vector<2x8x8xf32>, vector<2x8x8xf32>, vector<8x2x2xf32> -> vector<8x2x2xf32>
    %cst_28 = arith.constant dense<0xFF800000> : vector<8x2xf32>
    %74 = vector.multi_reduction <maximumf>, %73, %cst_28 [2] : vector<8x2x2xf32> to vector<8x2xf32>
    %cst_29 = arith.constant 0xFF800000 : f32
    %75 = vector.broadcast %cst_29 : f32 to vector<8x2xf32>
    %76 = arith.maximumf %75, %74 : vector<8x2xf32>
    %77 = vector.shape_cast %76 : vector<8x2xf32> to vector<8x2x1xf32>
    %78 = vector.broadcast %77 : vector<8x2x1xf32> to vector<8x2x2xf32>
    %79 = arith.subf %73, %78 : vector<8x2x2xf32>
    %80 = math.exp %79 : vector<8x2x2xf32>
    %cst_30 = arith.constant dense<0.000000e+00> : vector<8x2xf32>
    %81 = vector.multi_reduction <add>, %80, %cst_30 [2] : vector<8x2x2xf32> to vector<8x2xf32>
    %82 = vector.shape_cast %81 : vector<8x2xf32> to vector<8x2x1xf32>
    %83 = vector.broadcast %82 : vector<8x2x1xf32> to vector<8x2x2xf32>
    %84 = arith.divf %80, %83 : vector<8x2x2xf32>
    %cst_31 = arith.constant dense<0.000000e+00> : vector<8x2x8xf32>
    %85 = tpu.matmul %84, %72, %cst_31 {dimension_numbers = #tpu.dot_dimension_numbers<[2], [0], [1], [2], [0, 0, 0, 1, 1, 2], [0], [1]>} : vector<8x2x2xf32>, vector<2x8x8xf32>, vector<8x2x8xf32> -> vector<8x2x8xf32>
    %86 = arith.truncf %85 : vector<8x2x8xf32> to vector<8x2x8xbf16>
    %87 = vector.extract_strided_slice %28 {offsets = [16, 0], sizes = [8, 32], strides = [1, 1]} : vector<32x32xbf16> to vector<8x32xbf16>
    %cst_32 = arith.constant dense<0.000000e+00> : vector<8x2x32xf32>
    %88 = tpu.matmul %86, %87, %cst_32 {dimension_numbers = #tpu.dot_dimension_numbers<[2], [0], [0, 1], [1], [0, 0, 0, 1, 1, 1], [], []>} : vector<8x2x8xbf16>, vector<8x32xbf16>, vector<8x2x32xf32> -> vector<8x2x32xf32>
    %89 = arith.addf %69, %88 : vector<8x2x32xf32>
    %90 = vector.extract_strided_slice %26 {offsets = [0, 0, 24], sizes = [2, 8, 8], strides = [1, 1, 1]} : vector<2x8x96xf32> to vector<2x8x8xf32>
    %91 = vector.extract_strided_slice %26 {offsets = [0, 0, 56], sizes = [2, 8, 8], strides = [1, 1, 1]} : vector<2x8x96xf32> to vector<2x8x8xf32>
    %92 = vector.extract_strided_slice %26 {offsets = [0, 0, 88], sizes = [2, 8, 8], strides = [1, 1, 1]} : vector<2x8x96xf32> to vector<2x8x8xf32>
    %cst_33 = arith.constant dense<0.000000e+00> : vector<8x2x2xf32>
    %93 = tpu.matmul %90, %91, %cst_33 {dimension_numbers = #tpu.dot_dimension_numbers<[2], [2], [0], [0], [0, 1, 0, 0, 1, 0], [1], [1]>} : vector<2x8x8xf32>, vector<2x8x8xf32>, vector<8x2x2xf32> -> vector<8x2x2xf32>
    %cst_34 = arith.constant dense<0xFF800000> : vector<8x2xf32>
    %94 = vector.multi_reduction <maximumf>, %93, %cst_34 [2] : vector<8x2x2xf32> to vector<8x2xf32>
    %cst_35 = arith.constant 0xFF800000 : f32
    %95 = vector.broadcast %cst_35 : f32 to vector<8x2xf32>
    %96 = arith.maximumf %95, %94 : vector<8x2xf32>
    %97 = vector.shape_cast %96 : vector<8x2xf32> to vector<8x2x1xf32>
    %98 = vector.broadcast %97 : vector<8x2x1xf32> to vector<8x2x2xf32>
    %99 = arith.subf %93, %98 : vector<8x2x2xf32>
    %100 = math.exp %99 : vector<8x2x2xf32>
    %cst_36 = arith.constant dense<0.000000e+00> : vector<8x2xf32>
    %101 = vector.multi_reduction <add>, %100, %cst_36 [2] : vector<8x2x2xf32> to vector<8x2xf32>
    %102 = vector.shape_cast %101 : vector<8x2xf32> to vector<8x2x1xf32>
    %103 = vector.broadcast %102 : vector<8x2x1xf32> to vector<8x2x2xf32>
    %104 = arith.divf %100, %103 : vector<8x2x2xf32>
    %cst_37 = arith.constant dense<0.000000e+00> : vector<8x2x8xf32>
    %105 = tpu.matmul %104, %92, %cst_37 {dimension_numbers = #tpu.dot_dimension_numbers<[2], [0], [1], [2], [0, 0, 0, 1, 1, 2], [0], [1]>} : vector<8x2x2xf32>, vector<2x8x8xf32>, vector<8x2x8xf32> -> vector<8x2x8xf32>
    %106 = arith.truncf %105 : vector<8x2x8xf32> to vector<8x2x8xbf16>
    %107 = vector.extract_strided_slice %28 {offsets = [24, 0], sizes = [8, 32], strides = [1, 1]} : vector<32x32xbf16> to vector<8x32xbf16>
    %cst_38 = arith.constant dense<0.000000e+00> : vector<8x2x32xf32>
    %108 = tpu.matmul %106, %107, %cst_38 {dimension_numbers = #tpu.dot_dimension_numbers<[2], [0], [0, 1], [1], [0, 0, 0, 1, 1, 1], [], []>} : vector<8x2x8xbf16>, vector<8x32xbf16>, vector<8x2x32xf32> -> vector<8x2x32xf32>
    %109 = arith.addf %89, %108 : vector<8x2x32xf32>
    %110 = tpu.transpose %109, [1, 0, 2] : vector<8x2x32xf32> -> vector<2x8x32xf32>
    %111 = vector.shape_cast %110 : vector<2x8x32xf32> to vector<16x32xf32>
    %112 = vector.shape_cast %7 : vector<32xf32> to vector<1x32xf32>
    %113 = vector.broadcast %112 : vector<1x32xf32> to vector<16x32xf32>
    %114 = arith.addf %111, %113 : vector<16x32xf32>
    %115 = arith.addf %3, %114 : vector<16x32xf32>
    %cst_39 = arith.constant dense<0.000000e+00> : vector<16xf32>
    %116 = vector.multi_reduction <add>, %115, %cst_39 [1] : vector<16x32xf32> to vector<16xf32>
    %117 = vector.shape_cast %116 : vector<16xf32> to vector<16x1xf32>
    %cst_40 = arith.constant 3.200000e+01 : f32
    %118 = vector.broadcast %cst_40 : f32 to vector<16x1xf32>
    %119 = arith.divf %117, %118 : vector<16x1xf32>
    %120 = vector.broadcast %119 : vector<16x1xf32> to vector<16x32xf32>
    %121 = arith.subf %115, %120 : vector<16x32xf32>
    %122 = arith.mulf %121, %121 : vector<16x32xf32>
    %cst_41 = arith.constant dense<0.000000e+00> : vector<16xf32>
    %123 = vector.multi_reduction <add>, %122, %cst_41 [1] : vector<16x32xf32> to vector<16xf32>
    %124 = vector.shape_cast %123 : vector<16xf32> to vector<16x1xf32>
    %cst_42 = arith.constant 3.200000e+01 : f32
    %125 = vector.broadcast %cst_42 : f32 to vector<16x1xf32>
    %126 = arith.divf %124, %125 : vector<16x1xf32>
    %127 = vector.broadcast %119 : vector<16x1xf32> to vector<16x32xf32>
    %128 = arith.subf %115, %127 : vector<16x32xf32>
    %cst_43 = arith.constant 9.99999974E-6 : f32
    %129 = vector.broadcast %cst_43 : f32 to vector<16x1xf32>
    %130 = arith.addf %126, %129 : vector<16x1xf32>
    %131 = math.rsqrt %130 : vector<16x1xf32>
    %132 = vector.broadcast %131 : vector<16x1xf32> to vector<16x32xf32>
    %133 = arith.mulf %128, %132 : vector<16x32xf32>
    %134 = vector.shape_cast %11 : vector<32xf32> to vector<1x32xf32>
    %135 = vector.broadcast %134 : vector<1x32xf32> to vector<16x32xf32>
    %136 = arith.mulf %133, %135 : vector<16x32xf32>
    %137 = vector.shape_cast %13 : vector<32xf32> to vector<1x32xf32>
    %138 = vector.broadcast %137 : vector<1x32xf32> to vector<16x32xf32>
    %139 = arith.addf %136, %138 : vector<16x32xf32>
    %140 = arith.truncf %139 : vector<16x32xf32> to vector<16x32xbf16>
    %cst_44 = arith.constant 0.000000e+00 : f32
    %141 = vector.broadcast %cst_44 : f32 to vector<16x32xf32>
    %c0_i32_45 = arith.constant 0 : i32
    %c0_46 = arith.constant 0 : index
    %142 = arith.index_cast %c0_i32_45 : i32 to index
    %c0_47 = arith.constant 0 : index
    %c0_48 = arith.constant 0 : index
    %143 = vector.load %arg8[%c0_46, %142, %c0_47, %c0_48] : memref<1x4x32x512xbf16, #tpu.memory_space<vmem>>, vector<1x1x32x512xbf16>
    %144 = vector.shape_cast %143 : vector<1x1x32x512xbf16> to vector<32x512xbf16>
    %cst_49 = arith.constant dense<0.000000e+00> : vector<16x512xf32>
    %145 = tpu.matmul %140, %144, %cst_49 {dimension_numbers = #tpu.dot_dimension_numbers<[1], [0], [0], [1], [0, 0, 1, 1], [], []>} : vector<16x32xbf16>, vector<32x512xbf16>, vector<16x512xf32> -> vector<16x512xf32>
    %c0_50 = arith.constant 0 : index
    %146 = arith.index_cast %c0_i32_45 : i32 to index
    %c0_51 = arith.constant 0 : index
    %c0_52 = arith.constant 0 : index
    %147 = vector.load %arg9[%c0_50, %146, %c0_51, %c0_52] : memref<1x4x1x512xf32, #tpu.memory_space<vmem>>, vector<1x1x1x512xf32>
    %148 = vector.shape_cast %147 : vector<1x1x1x512xf32> to vector<1x512xf32>
    %149 = vector.broadcast %148 : vector<1x512xf32> to vector<16x512xf32>
    %150 = arith.addf %145, %149 : vector<16x512xf32>
    %cst_53 = arith.constant 0.000000e+00 : f32
    %151 = vector.broadcast %cst_53 : f32 to vector<16x512xf32>
    %152 = arith.maximumf %150, %151 : vector<16x512xf32>
    %153 = arith.truncf %152 : vector<16x512xf32> to vector<16x512xbf16>
    %c0_54 = arith.constant 0 : index
    %154 = arith.index_cast %c0_i32_45 : i32 to index
    %c0_55 = arith.constant 0 : index
    %c0_56 = arith.constant 0 : index
    %155 = vector.load %arg10[%c0_54, %154, %c0_55, %c0_56] : memref<1x4x512x32xbf16, #tpu.memory_space<vmem>>, vector<1x1x512x32xbf16>
    %156 = vector.shape_cast %155 : vector<1x1x512x32xbf16> to vector<512x32xbf16>
    %cst_57 = arith.constant dense<0.000000e+00> : vector<16x32xf32>
    %157 = tpu.matmul %153, %156, %cst_57 {dimension_numbers = #tpu.dot_dimension_numbers<[1], [0], [0], [1], [0, 0, 1, 1], [], []>} : vector<16x512xbf16>, vector<512x32xbf16>, vector<16x32xf32> -> vector<16x32xf32>
    %158 = arith.addf %141, %157 : vector<16x32xf32>
    %c1_i32 = arith.constant 1 : i32
    %c0_58 = arith.constant 0 : index
    %159 = arith.index_cast %c1_i32 : i32 to index
    %c0_59 = arith.constant 0 : index
    %c0_60 = arith.constant 0 : index
    %160 = vector.load %arg8[%c0_58, %159, %c0_59, %c0_60] : memref<1x4x32x512xbf16, #tpu.memory_space<vmem>>, vector<1x1x32x512xbf16>
    %161 = vector.shape_cast %160 : vector<1x1x32x512xbf16> to vector<32x512xbf16>
    %cst_61 = arith.constant dense<0.000000e+00> : vector<16x512xf32>
    %162 = tpu.matmul %140, %161, %cst_61 {dimension_numbers = #tpu.dot_dimension_numbers<[1], [0], [0], [1], [0, 0, 1, 1], [], []>} : vector<16x32xbf16>, vector<32x512xbf16>, vector<16x512xf32> -> vector<16x512xf32>
    %c0_62 = arith.constant 0 : index
    %163 = arith.index_cast %c1_i32 : i32 to index
    %c0_63 = arith.constant 0 : index
    %c0_64 = arith.constant 0 : index
    %164 = vector.load %arg9[%c0_62, %163, %c0_63, %c0_64] : memref<1x4x1x512xf32, #tpu.memory_space<vmem>>, vector<1x1x1x512xf32>
    %165 = vector.shape_cast %164 : vector<1x1x1x512xf32> to vector<1x512xf32>
    %166 = vector.broadcast %165 : vector<1x512xf32> to vector<16x512xf32>
    %167 = arith.addf %162, %166 : vector<16x512xf32>
    %cst_65 = arith.constant 0.000000e+00 : f32
    %168 = vector.broadcast %cst_65 : f32 to vector<16x512xf32>
    %169 = arith.maximumf %167, %168 : vector<16x512xf32>
    %170 = arith.truncf %169 : vector<16x512xf32> to vector<16x512xbf16>
    %c0_66 = arith.constant 0 : index
    %171 = arith.index_cast %c1_i32 : i32 to index
    %c0_67 = arith.constant 0 : index
    %c0_68 = arith.constant 0 : index
    %172 = vector.load %arg10[%c0_66, %171, %c0_67, %c0_68] : memref<1x4x512x32xbf16, #tpu.memory_space<vmem>>, vector<1x1x512x32xbf16>
    %173 = vector.shape_cast %172 : vector<1x1x512x32xbf16> to vector<512x32xbf16>
    %cst_69 = arith.constant dense<0.000000e+00> : vector<16x32xf32>
    %174 = tpu.matmul %170, %173, %cst_69 {dimension_numbers = #tpu.dot_dimension_numbers<[1], [0], [0], [1], [0, 0, 1, 1], [], []>} : vector<16x512xbf16>, vector<512x32xbf16>, vector<16x32xf32> -> vector<16x32xf32>
    %175 = arith.addf %158, %174 : vector<16x32xf32>
    %c2_i32 = arith.constant 2 : i32
    %c0_70 = arith.constant 0 : index
    %176 = arith.index_cast %c2_i32 : i32 to index
    %c0_71 = arith.constant 0 : index
    %c0_72 = arith.constant 0 : index
    %177 = vector.load %arg8[%c0_70, %176, %c0_71, %c0_72] : memref<1x4x32x512xbf16, #tpu.memory_space<vmem>>, vector<1x1x32x512xbf16>
    %178 = vector.shape_cast %177 : vector<1x1x32x512xbf16> to vector<32x512xbf16>
    %cst_73 = arith.constant dense<0.000000e+00> : vector<16x512xf32>
    %179 = tpu.matmul %140, %178, %cst_73 {dimension_numbers = #tpu.dot_dimension_numbers<[1], [0], [0], [1], [0, 0, 1, 1], [], []>} : vector<16x32xbf16>, vector<32x512xbf16>, vector<16x512xf32> -> vector<16x512xf32>
    %c0_74 = arith.constant 0 : index
    %180 = arith.index_cast %c2_i32 : i32 to index
    %c0_75 = arith.constant 0 : index
    %c0_76 = arith.constant 0 : index
    %181 = vector.load %arg9[%c0_74, %180, %c0_75, %c0_76] : memref<1x4x1x512xf32, #tpu.memory_space<vmem>>, vector<1x1x1x512xf32>
    %182 = vector.shape_cast %181 : vector<1x1x1x512xf32> to vector<1x512xf32>
    %183 = vector.broadcast %182 : vector<1x512xf32> to vector<16x512xf32>
    %184 = arith.addf %179, %183 : vector<16x512xf32>
    %cst_77 = arith.constant 0.000000e+00 : f32
    %185 = vector.broadcast %cst_77 : f32 to vector<16x512xf32>
    %186 = arith.maximumf %184, %185 : vector<16x512xf32>
    %187 = arith.truncf %186 : vector<16x512xf32> to vector<16x512xbf16>
    %c0_78 = arith.constant 0 : index
    %188 = arith.index_cast %c2_i32 : i32 to index
    %c0_79 = arith.constant 0 : index
    %c0_80 = arith.constant 0 : index
    %189 = vector.load %arg10[%c0_78, %188, %c0_79, %c0_80] : memref<1x4x512x32xbf16, #tpu.memory_space<vmem>>, vector<1x1x512x32xbf16>
    %190 = vector.shape_cast %189 : vector<1x1x512x32xbf16> to vector<512x32xbf16>
    %cst_81 = arith.constant dense<0.000000e+00> : vector<16x32xf32>
    %191 = tpu.matmul %187, %190, %cst_81 {dimension_numbers = #tpu.dot_dimension_numbers<[1], [0], [0], [1], [0, 0, 1, 1], [], []>} : vector<16x512xbf16>, vector<512x32xbf16>, vector<16x32xf32> -> vector<16x32xf32>
    %192 = arith.addf %175, %191 : vector<16x32xf32>
    %c3_i32 = arith.constant 3 : i32
    %c0_82 = arith.constant 0 : index
    %193 = arith.index_cast %c3_i32 : i32 to index
    %c0_83 = arith.constant 0 : index
    %c0_84 = arith.constant 0 : index
    %194 = vector.load %arg8[%c0_82, %193, %c0_83, %c0_84] : memref<1x4x32x512xbf16, #tpu.memory_space<vmem>>, vector<1x1x32x512xbf16>
    %195 = vector.shape_cast %194 : vector<1x1x32x512xbf16> to vector<32x512xbf16>
    %cst_85 = arith.constant dense<0.000000e+00> : vector<16x512xf32>
    %196 = tpu.matmul %140, %195, %cst_85 {dimension_numbers = #tpu.dot_dimension_numbers<[1], [0], [0], [1], [0, 0, 1, 1], [], []>} : vector<16x32xbf16>, vector<32x512xbf16>, vector<16x512xf32> -> vector<16x512xf32>
    %c0_86 = arith.constant 0 : index
    %197 = arith.index_cast %c3_i32 : i32 to index
    %c0_87 = arith.constant 0 : index
    %c0_88 = arith.constant 0 : index
    %198 = vector.load %arg9[%c0_86, %197, %c0_87, %c0_88] : memref<1x4x1x512xf32, #tpu.memory_space<vmem>>, vector<1x1x1x512xf32>
    %199 = vector.shape_cast %198 : vector<1x1x1x512xf32> to vector<1x512xf32>
    %200 = vector.broadcast %199 : vector<1x512xf32> to vector<16x512xf32>
    %201 = arith.addf %196, %200 : vector<16x512xf32>
    %cst_89 = arith.constant 0.000000e+00 : f32
    %202 = vector.broadcast %cst_89 : f32 to vector<16x512xf32>
    %203 = arith.maximumf %201, %202 : vector<16x512xf32>
    %204 = arith.truncf %203 : vector<16x512xf32> to vector<16x512xbf16>
    %c0_90 = arith.constant 0 : index
    %205 = arith.index_cast %c3_i32 : i32 to index
    %c0_91 = arith.constant 0 : index
    %c0_92 = arith.constant 0 : index
    %206 = vector.load %arg10[%c0_90, %205, %c0_91, %c0_92] : memref<1x4x512x32xbf16, #tpu.memory_space<vmem>>, vector<1x1x512x32xbf16>
    %207 = vector.shape_cast %206 : vector<1x1x512x32xbf16> to vector<512x32xbf16>
    %cst_93 = arith.constant dense<0.000000e+00> : vector<16x32xf32>
    %208 = tpu.matmul %204, %207, %cst_93 {dimension_numbers = #tpu.dot_dimension_numbers<[1], [0], [0], [1], [0, 0, 1, 1], [], []>} : vector<16x512xbf16>, vector<512x32xbf16>, vector<16x32xf32> -> vector<16x32xf32>
    %209 = arith.addf %192, %208 : vector<16x32xf32>
    %c4_i32 = arith.constant 4 : i32
    %210 = vector.shape_cast %9 : vector<32xf32> to vector<1x32xf32>
    %211 = vector.broadcast %210 : vector<1x32xf32> to vector<16x32xf32>
    %212 = arith.addf %209, %211 : vector<16x32xf32>
    %213 = arith.addf %139, %212 : vector<16x32xf32>
    %cst_94 = arith.constant dense<0.000000e+00> : vector<16xf32>
    %214 = vector.multi_reduction <add>, %213, %cst_94 [1] : vector<16x32xf32> to vector<16xf32>
    %215 = vector.shape_cast %214 : vector<16xf32> to vector<16x1xf32>
    %cst_95 = arith.constant 3.200000e+01 : f32
    %216 = vector.broadcast %cst_95 : f32 to vector<16x1xf32>
    %217 = arith.divf %215, %216 : vector<16x1xf32>
    %218 = vector.broadcast %217 : vector<16x1xf32> to vector<16x32xf32>
    %219 = arith.subf %213, %218 : vector<16x32xf32>
    %220 = arith.mulf %219, %219 : vector<16x32xf32>
    %cst_96 = arith.constant dense<0.000000e+00> : vector<16xf32>
    %221 = vector.multi_reduction <add>, %220, %cst_96 [1] : vector<16x32xf32> to vector<16xf32>
    %222 = vector.shape_cast %221 : vector<16xf32> to vector<16x1xf32>
    %cst_97 = arith.constant 3.200000e+01 : f32
    %223 = vector.broadcast %cst_97 : f32 to vector<16x1xf32>
    %224 = arith.divf %222, %223 : vector<16x1xf32>
    %225 = vector.broadcast %217 : vector<16x1xf32> to vector<16x32xf32>
    %226 = arith.subf %213, %225 : vector<16x32xf32>
    %cst_98 = arith.constant 9.99999974E-6 : f32
    %227 = vector.broadcast %cst_98 : f32 to vector<16x1xf32>
    %228 = arith.addf %224, %227 : vector<16x1xf32>
    %229 = math.rsqrt %228 : vector<16x1xf32>
    %230 = vector.broadcast %229 : vector<16x1xf32> to vector<16x32xf32>
    %231 = arith.mulf %226, %230 : vector<16x32xf32>
    %232 = vector.shape_cast %15 : vector<32xf32> to vector<1x32xf32>
    %233 = vector.broadcast %232 : vector<1x32xf32> to vector<16x32xf32>
    %234 = arith.mulf %231, %233 : vector<16x32xf32>
    %235 = vector.shape_cast %17 : vector<32xf32> to vector<1x32xf32>
    %236 = vector.broadcast %235 : vector<1x32xf32> to vector<16x32xf32>
    %237 = arith.addf %234, %236 : vector<16x32xf32>
    %c0_99 = arith.constant 0 : index
    %c0_100 = arith.constant 0 : index
    %238 = vector.load %arg13[%c0_99, %c0_100] : memref<16x32xf32, #tpu.memory_space<vmem>>, vector<16x32xf32>
    tpu.vector_store %arg13[%c0_99, %c0_100], %237 {strides = array<i32>} : memref<16x32xf32, #tpu.memory_space<vmem>>, vector<16x32xf32>,
    %c1_i32_101 = arith.constant 1 : i32
    %239 = arith.cmpi eq, %arg1, %c1_i32_101 : i32
    %240 = arith.extui %239 : i1 to i32
    %c0_i32_102 = arith.constant 0 : i32
    %241 = arith.cmpi ne, %240, %c0_i32_102 : i32
    scf.if %241 {
      %242 = vector.shape_cast %237 : vector<16x32xf32> to vector<2x8x32xf32>
      %243 = vector.extract_strided_slice %242 {offsets = [0, 7, 0], sizes = [2, 1, 32], strides = [1, 1, 1]} : vector<2x8x32xf32> to vector<2x1x32xf32>
      %244 = vector.shape_cast %243 : vector<2x1x32xf32> to vector<2x32xf32>
      %c0_103 = arith.constant 0 : index
      %c0_104 = arith.constant 0 : index
      %c0_105 = arith.constant 0 : index
      %245 = vector.load %arg12[%c0_103, %c0_104, %c0_105] : memref<1x2x32xf32, #tpu.memory_space<vmem>>, vector<1x2x32xf32>
      %246 = vector.shape_cast %245 : vector<1x2x32xf32> to vector<2x32xf32>
      %247 = vector.shape_cast %244 : vector<2x32xf32> to vector<1x2x32xf32>
      tpu.vector_store %arg12[%c0_103, %c0_104, %c0_105], %247 {strides = array<i32>} : memref<1x2x32xf32, #tpu.memory_space<vmem>>, vector<1x2x32xf32>,
    } else {
    }
    return
  }
  func.func @transform_0(%arg0: i32, %arg1: i32) -> (i32, i32, i32, i32) {
    %c0_i32 = arith.constant 0 : i32
    %c0_i32_0 = arith.constant 0 : i32
    %c0_i32_1 = arith.constant 0 : i32
    %c0_i32_2 = arith.constant 0 : i32
    return %arg0, %c0_i32, %c0_i32_0, %c0_i32_1 : i32, i32, i32, i32
  }
  func.func @transform_1(%arg0: i32, %arg1: i32) -> (i32, i32) {
    %c0_i32 = arith.constant 0 : i32
    %c0_i32_0 = arith.constant 0 : i32
    %c0_i32_1 = arith.constant 0 : i32
    return %c0_i32, %c0_i32_0 : i32, i32
  }
  func.func @transform_2(%arg0: i32, %arg1: i32) -> (i32, i32) {
    %c0_i32 = arith.constant 0 : i32
    %c0_i32_0 = arith.constant 0 : i32
    %c0_i32_1 = arith.constant 0 : i32
    return %c0_i32, %c0_i32_0 : i32, i32
  }
  func.func @transform_3(%arg0: i32, %arg1: i32) -> (i32, i32, i32) {
    %c0_i32 = arith.constant 0 : i32
    %c0_i32_0 = arith.constant 0 : i32
    %c0_i32_1 = arith.constant 0 : i32
    return %arg1, %c0_i32, %c0_i32_0 : i32, i32, i32
  }
  func.func @transform_4(%arg0: i32, %arg1: i32) -> (i32, i32, i32) {
    %c0_i32 = arith.constant 0 : i32
    %c0_i32_0 = arith.constant 0 : i32
    %c0_i32_1 = arith.constant 0 : i32
    return %arg1, %c0_i32, %c0_i32_0 : i32, i32, i32
  }
  func.func @transform_5(%arg0: i32, %arg1: i32) -> (i32, i32, i32) {
    %c0_i32 = arith.constant 0 : i32
    %c0_i32_0 = arith.constant 0 : i32
    %c0_i32_1 = arith.constant 0 : i32
    return %arg1, %c0_i32, %c0_i32_0 : i32, i32, i32
  }
  func.func @transform_6(%arg0: i32, %arg1: i32) -> (i32, i32, i32, i32) {
    %c0_i32 = arith.constant 0 : i32
    %c0_i32_0 = arith.constant 0 : i32
    %c0_i32_1 = arith.constant 0 : i32
    %c0_i32_2 = arith.constant 0 : i32
    return %arg1, %c0_i32, %c0_i32_0, %c0_i32_1 : i32, i32, i32, i32
  }
  func.func @transform_7(%arg0: i32, %arg1: i32) -> (i32, i32, i32, i32) {
    %c0_i32 = arith.constant 0 : i32
    %c0_i32_0 = arith.constant 0 : i32
    %c0_i32_1 = arith.constant 0 : i32
    %c0_i32_2 = arith.constant 0 : i32
    return %arg1, %c0_i32, %c0_i32_0, %c0_i32_1 : i32, i32, i32, i32
  }
  func.func @transform_8(%arg0: i32, %arg1: i32) -> (i32, i32, i32, i32) {
    %c0_i32 = arith.constant 0 : i32
    %c0_i32_0 = arith.constant 0 : i32
    %c0_i32_1 = arith.constant 0 : i32
    %c0_i32_2 = arith.constant 0 : i32
    return %arg1, %c0_i32, %c0_i32_0, %c0_i32_1 : i32, i32, i32, i32
  }
  func.func @transform_9(%arg0: i32, %arg1: i32) -> (i32, i32, i32) {
    %c0_i32 = arith.constant 0 : i32
    %c0_i32_0 = arith.constant 0 : i32
    %c0_i32_1 = arith.constant 0 : i32
    return %arg1, %c0_i32, %c0_i32_0 : i32, i32, i32
  }
  func.func @transform_10(%arg0: i32, %arg1: i32) -> (i32, i32, i32) {
    %c0_i32 = arith.constant 0 : i32
    %c0_i32_0 = arith.constant 0 : i32
    %c0_i32_1 = arith.constant 0 : i32
    return %arg0, %c0_i32, %c0_i32_0 : i32, i32, i32
  }
}

</mosaic_0001>

<llo_original>
// kernel: tpu_custom_call.1
$region0: #{tpu_custom_call.1}
  #allocation0 [shape = 'u32[]', space=smem, size = 0x4, offset = 0x4, fixed_abs, tag = 'smem constant byte address 0x4 - core index']
  #allocation1 [shape = 'u32[72,128]{1,0:T(1,128)}', space=vmem, size = 0x9000, scoped, tag = 'internal scratch']
  #allocation2 [shape = 'f32[16,32]{1,0:T(8,128)}', space=vmem, size = 0x2000, scoped, tag = 'scratch operand']
  %s0 = inlined_call_operand.vmem [shape: f32[2,2,8,16], index: 0, kind: input, shape index: {}]
  %s1 = inlined_call_operand.vmem [shape: f32[2,32], index: 1, kind: input, shape index: {}]
  %s2 = inlined_call_operand.vmem [shape: bf16[16,32], index: 2, kind: input, shape index: {}]
  %s3 = inlined_call_operand.vmem [shape: bf16[2,32,96], index: 3, kind: input, shape index: {}]
  %s4 = inlined_call_operand.vmem [shape: f32[2,1,96], index: 4, kind: input, shape index: {}]
  %s5 = inlined_call_operand.vmem [shape: bf16[2,32,32], index: 5, kind: input, shape index: {}]
  %s6 = inlined_call_operand.vmem [shape: bf16[2,4,32,512], index: 6, kind: input, shape index: {}]
  %s7 = inlined_call_operand.vmem [shape: f32[2,4,1,512], index: 7, kind: input, shape index: {}]
  %s8 = inlined_call_operand.vmem [shape: bf16[2,4,512,32], index: 8, kind: input, shape index: {}]
  %s9 = inlined_call_operand.vmem [shape: f32[2,8,32], index: 9, kind: input, shape index: {}]
  %s10 = inlined_call_operand.hbm [shape: f32[2,2,32], index: 10, kind: output, shape index: {}]
  %s11 = sld [smem:[#allocation0]]
  $region81: #{tpu_custom_call.1} parent=0
    _
  %s13 = ssub.s32 1, %s11
  %s14 = scalar_select 0, %s13, %s11
  $region1: #{tpu_custom_call.1} parent=0
    #allocation3 [shape = 'u8[2048]{0}', space=vmem, size = 0x800, scoped, tag = 'output window, operand 0']
    #allocation4 [shape = 's32[2]{0}', space=sflag, size = 0x8, scoped, tag = 'scoped memory for tpu_custom_call.1']
    %15 = vsyncpa [#allocation4], 0
    %s16 = scalar_lea.sflag [#allocation4], 1
    %17 = vsyncpa %s16, 0
    loop: start=0, step=1, limit=6
    $region2: #{tpu_custom_call.1} parent=1 // loop_pre_header
      _
    $region3: #{tpu_custom_call.1} parent=1 // loop_header
      %s19 = sphi 0, %s23
      %p20 = scmp.ge.s32.totalorder %s19, 6
      %s26 = sphi 0, %s38
      %s27 = sphi 0, %s34
      %s28 = sphi 0, %s26
      %s29 = sphi 0, %s27
      %s30 = sphi 0, %s28
      %s31 = sphi 0, %s29
      %s41 = sphi 0, %s43
      %s44 = sphi 0, %s41
      %s45 = sphi 0, %s44
      %s61 = sphi 0, %s45
      %s65 = sphi 0, %s65
      %s67 = sphi 0, %s65
      %s68 = sphi 0, %s67
      %s82 = sphi 0, %s68
      %s86 = sphi 0, %s86
      %s88 = sphi 0, %s86
      %s89 = sphi 0, %s88
      %s103 = sphi 0, %s89
      %s109 = sphi 0, %s111
      %s112 = sphi 0, %s109
      %s113 = sphi 0, %s112
      %s129 = sphi 0, %s113
      %s135 = sphi 0, %s137
      %s138 = sphi 0, %s135
      %s139 = sphi 0, %s138
      %s155 = sphi 0, %s139
      %s161 = sphi 0, %s163
      %s164 = sphi 0, %s161
      %s165 = sphi 0, %s164
      %s181 = sphi 0, %s165
      %s187 = sphi 0, %s189
      %s190 = sphi 0, %s187
      %s191 = sphi 0, %s190
      %s207 = sphi 0, %s191
      %s213 = sphi 0, %s215
      %s216 = sphi 0, %s213
      %s217 = sphi 0, %s216
      %s233 = sphi 0, %s217
      %s239 = sphi 0, %s241
      %s242 = sphi 0, %s239
      %s243 = sphi 0, %s242
      %s259 = sphi 0, %s243
      %s265 = sphi 0, %s267
      %s268 = sphi 0, %s265
      %s269 = sphi 0, %s268
      %s285 = sphi 0, %s269
      %s291 = sphi 0, %s293
      %s294 = sphi 0, %s291
      %s295 = sphi 0, %s294
      %s311 = sphi 0, %s295
    $region4: #{tpu_custom_call.1} parent=1 // loop_header_branch
      %22 = sbr.rel (%p20) target = $region8
    $region5: #{tpu_custom_call.1} parent=1 // loop_body
      %s24 = ssub.s32 %s19, 1
      %s25 = ssub.s32 %s19, 2
      %s32 = sadd.s32 1, %s27
      %p33 = scmp.ge.s32.totalorder %s32, 2
      %s34 = scalar_select %p33, 0, %s32
      %s35 = sadd.s32 1, %s26
      %s36 = scalar_select %p33, %s35, %s26
      %p37 = scmp.ge.s32.totalorder %s36, 2
      %s38 = scalar_select %p37, 0, %s36
      %s39 = ssub.s32 %s26, %s38
      %p40 = scmp.eq.s32.totalorder %s39, 0
      %s42 = sadd.s32 %s41, 1
      %s43 = scalar_select %p40, %s41, %s42
      %p46 = pneg %p40
      %p47 = scmp.eq.s32.totalorder %s19, 3
      %p48 = por %p46, %p47
      %p49 = scmp.ne.s32.totalorder %s41, %s44
      %p50 = scmp.eq.s32.totalorder %s19, 0
      %p51 = por %p49, %p50
      %p52 = scmp.ne.s32.totalorder %s41, %s44
      %p53 = scmp.eq.s32.totalorder %s24, 3
      %p54 = por %p52, %p53
      %p55 = scmp.ne.s32.totalorder %s44, %s45
      %p56 = scmp.eq.s32.totalorder %s24, 0
      %p57 = por %p55, %p56
      %p58 = scmp.ne.s32.totalorder %s44, %s45
      %p59 = scmp.eq.s32.totalorder %s25, 3
      %p60 = por %p58, %p59
      %p62 = scmp.ne.s32.totalorder %s45, %s61
      %p63 = scmp.eq.s32.totalorder %s25, 0
      %p64 = por %p62, %p63
      %s66 = sadd.s32 %s65, 1
      %p69 = scmp.eq.s32.totalorder %s19, 3
      %p70 = scmp.ne.s32.totalorder %s65, %s67
      %p71 = scmp.eq.s32.totalorder %s19, 0
      %p72 = por %p70, %p71
      %p73 = scmp.ne.s32.totalorder %s65, %s67
      %p74 = scmp.eq.s32.totalorder %s24, 3
      %p75 = por %p73, %p74
      %p76 = scmp.ne.s32.totalorder %s67, %s68
      %p77 = scmp.eq.s32.totalorder %s24, 0
      %p78 = por %p76, %p77
      %p79 = scmp.ne.s32.totalorder %s67, %s68
      %p80 = scmp.eq.s32.totalorder %s25, 3
      %p81 = por %p79, %p80
      %p83 = scmp.ne.s32.totalorder %s68, %s82
      %p84 = scmp.eq.s32.totalorder %s25, 0
      %p85 = por %p83, %p84
      %s87 = sadd.s32 %s86, 1
      %p90 = scmp.eq.s32.totalorder %s19, 3
      %p91 = scmp.ne.s32.totalorder %s86, %s88
      %p92 = scmp.eq.s32.totalorder %s19, 0
      %p93 = por %p91, %p92
      %p94 = scmp.ne.s32.totalorder %s86, %s88
      %p95 = scmp.eq.s32.totalorder %s24, 3
      %p96 = por %p94, %p95
      %p97 = scmp.ne.s32.totalorder %s88, %s89
      %p98 = scmp.eq.s32.totalorder %s24, 0
      %p99 = por %p97, %p98
      %p100 = scmp.ne.s32.totalorder %s88, %s89
      %p101 = scmp.eq.s32.totalorder %s25, 3
      %p102 = por %p100, %p101
      %p104 = scmp.ne.s32.totalorder %s89, %s103
      %p105 = scmp.eq.s32.totalorder %s25, 0
      %p106 = por %p104, %p105
      %s107 = ssub.s32 %s27, %s34
      %p108 = scmp.eq.s32.totalorder %s107, 0
      %s110 = sadd.s32 %s109, 1
      %s111 = scalar_select %p108, %s109, %s110
      %p114 = pneg %p108
      %p115 = scmp.eq.s32.totalorder %s19, 3
      %p116 = por %p114, %p115
      %p117 = scmp.ne.s32.totalorder %s109, %s112
      %p118 = scmp.eq.s32.totalorder %s19, 0
      %p119 = por %p117, %p118
      %p120 = scmp.ne.s32.totalorder %s109, %s112
      %p121 = scmp.eq.s32.totalorder %s24, 3
      %p122 = por %p120, %p121
      %p123 = scmp.ne.s32.totalorder %s112, %s113
      %p124 = scmp.eq.s32.totalorder %s24, 0
      %p125 = por %p123, %p124
      %p126 = scmp.ne.s32.totalorder %s112, %s113
      %p127 = scmp.eq.s32.totalorder %s25, 3
      %p128 = por %p126, %p127
      %p130 = scmp.ne.s32.totalorder %s113, %s129
      %p131 = scmp.eq.s32.totalorder %s25, 0
      %p132 = por %p130, %p131
      %s133 = ssub.s32 %s27, %s34
      %p134 = scmp.eq.s32.totalorder %s133, 0
      %s136 = sadd.s32 %s135, 1
      %s137 = scalar_select %p134, %s135, %s136
      %p140 = pneg %p134
      %p141 = scmp.eq.s32.totalorder %s19, 3
      %p142 = por %p140, %p141
      %p143 = scmp.ne.s32.totalorder %s135, %s138
      %p144 = scmp.eq.s32.totalorder %s19, 0
      %p145 = por %p143, %p144
      %p146 = scmp.ne.s32.totalorder %s135, %s138
      %p147 = scmp.eq.s32.totalorder %s24, 3
      %p148 = por %p146, %p147
      %p149 = scmp.ne.s32.totalorder %s138, %s139
      %p150 = scmp.eq.s32.totalorder %s24, 0
      %p151 = por %p149, %p150
      %p152 = scmp.ne.s32.totalorder %s138, %s139
      %p153 = scmp.eq.s32.totalorder %s25, 3
      %p154 = por %p152, %p153
      %p156 = scmp.ne.s32.totalorder %s139, %s155
      %p157 = scmp.eq.s32.totalorder %s25, 0
      %p158 = por %p156, %p157
      %s159 = ssub.s32 %s27, %s34
      %p160 = scmp.eq.s32.totalorder %s159, 0
      %s162 = sadd.s32 %s161, 1
      %s163 = scalar_select %p160, %s161, %s162
      %p166 = pneg %p160
      %p167 = scmp.eq.s32.totalorder %s19, 3
      %p168 = por %p166, %p167
      %p169 = scmp.ne.s32.totalorder %s161, %s164
      %p170 = scmp.eq.s32.totalorder %s19, 0
      %p171 = por %p169, %p170
      %p172 = scmp.ne.s32.totalorder %s161, %s164
      %p173 = scmp.eq.s32.totalorder %s24, 3
      %p174 = por %p172, %p173
      %p175 = scmp.ne.s32.totalorder %s164, %s165
      %p176 = scmp.eq.s32.totalorder %s24, 0
      %p177 = por %p175, %p176
      %p178 = scmp.ne.s32.totalorder %s164, %s165
      %p179 = scmp.eq.s32.totalorder %s25, 3
      %p180 = por %p178, %p179
      %p182 = scmp.ne.s32.totalorder %s165, %s181
      %p183 = scmp.eq.s32.totalorder %s25, 0
      %p184 = por %p182, %p183
      %s185 = ssub.s32 %s27, %s34
      %p186 = scmp.eq.s32.totalorder %s185, 0
      %s188 = sadd.s32 %s187, 1
      %s189 = scalar_select %p186, %s187, %s188
      %p192 = pneg %p186
      %p193 = scmp.eq.s32.totalorder %s19, 3
      %p194 = por %p192, %p193
      %p195 = scmp.ne.s32.totalorder %s187, %s190
      %p196 = scmp.eq.s32.totalorder %s19, 0
      %p197 = por %p195, %p196
      %p198 = scmp.ne.s32.totalorder %s187, %s190
      %p199 = scmp.eq.s32.totalorder %s24, 3
      %p200 = por %p198, %p199
      %p201 = scmp.ne.s32.totalorder %s190, %s191
      %p202 = scmp.eq.s32.totalorder %s24, 0
      %p203 = por %p201, %p202
      %p204 = scmp.ne.s32.totalorder %s190, %s191
      %p205 = scmp.eq.s32.totalorder %s25, 3
      %p206 = por %p204, %p205
      %p208 = scmp.ne.s32.totalorder %s191, %s207
      %p209 = scmp.eq.s32.totalorder %s25, 0
      %p210 = por %p208, %p209
      %s211 = ssub.s32 %s27, %s34
      %p212 = scmp.eq.s32.totalorder %s211, 0
      %s214 = sadd.s32 %s213, 1
      %s215 = scalar_select %p212, %s213, %s214
      %p218 = pneg %p212
      %p219 = scmp.eq.s32.totalorder %s19, 3
      %p220 = por %p218, %p219
      %p221 = scmp.ne.s32.totalorder %s213, %s216
      %p222 = scmp.eq.s32.totalorder %s19, 0
      %p223 = por %p221, %p222
      %p224 = scmp.ne.s32.totalorder %s213, %s216
      %p225 = scmp.eq.s32.totalorder %s24, 3
      %p226 = por %p224, %p225
      %p227 = scmp.ne.s32.totalorder %s216, %s217
      %p228 = scmp.eq.s32.totalorder %s24, 0
      %p229 = por %p227, %p228
      %p230 = scmp.ne.s32.totalorder %s216, %s217
      %p231 = scmp.eq.s32.totalorder %s25, 3
      %p232 = por %p230, %p231
      %p234 = scmp.ne.s32.totalorder %s217, %s233
      %p235 = scmp.eq.s32.totalorder %s25, 0
      %p236 = por %p234, %p235
      %s237 = ssub.s32 %s27, %s34
      %p238 = scmp.eq.s32.totalorder %s237, 0
      %s240 = sadd.s32 %s239, 1
      %s241 = scalar_select %p238, %s239, %s240
      %p244 = pneg %p238
      %p245 = scmp.eq.s32.totalorder %s19, 3
      %p246 = por %p244, %p245
      %p247 = scmp.ne.s32.totalorder %s239, %s242
      %p248 = scmp.eq.s32.totalorder %s19, 0
      %p249 = por %p247, %p248
      %p250 = scmp.ne.s32.totalorder %s239, %s242
      %p251 = scmp.eq.s32.totalorder %s24, 3
      %p252 = por %p250, %p251
      %p253 = scmp.ne.s32.totalorder %s242, %s243
      %p254 = scmp.eq.s32.totalorder %s24, 0
      %p255 = por %p253, %p254
      %p256 = scmp.ne.s32.totalorder %s242, %s243
      %p257 = scmp.eq.s32.totalorder %s25, 3
      %p258 = por %p256, %p257
      %p260 = scmp.ne.s32.totalorder %s243, %s259
      %p261 = scmp.eq.s32.totalorder %s25, 0
      %p262 = por %p260, %p261
      %s263 = ssub.s32 %s27, %s34
      %p264 = scmp.eq.s32.totalorder %s263, 0
      %s266 = sadd.s32 %s265, 1
      %s267 = scalar_select %p264, %s265, %s266
      %p270 = pneg %p264
      %p271 = scmp.eq.s32.totalorder %s19, 3
      %p272 = por %p270, %p271
      %p273 = scmp.ne.s32.totalorder %s265, %s268
      %p274 = scmp.eq.s32.totalorder %s19, 0
      %p275 = por %p273, %p274
      %p276 = scmp.ne.s32.totalorder %s265, %s268
      %p277 = scmp.eq.s32.totalorder %s24, 3
      %p278 = por %p276, %p277
      %p279 = scmp.ne.s32.totalorder %s268, %s269
      %p280 = scmp.eq.s32.totalorder %s24, 0
      %p281 = por %p279, %p280
      %p282 = scmp.ne.s32.totalorder %s268, %s269
      %p283 = scmp.eq.s32.totalorder %s25, 3
      %p284 = por %p282, %p283
      %p286 = scmp.ne.s32.totalorder %s269, %s285
      %p287 = scmp.eq.s32.totalorder %s25, 0
      %p288 = por %p286, %p287
      %s289 = ssub.s32 %s26, %s38
      %p290 = scmp.eq.s32.totalorder %s289, 0
      %s292 = sadd.s32 %s291, 1
      %s293 = scalar_select %p290, %s291, %s292
      %p296 = pneg %p290
      %p297 = scmp.eq.s32.totalorder %s19, 3
      %p298 = por %p296, %p297
      %p299 = scmp.ne.s32.totalorder %s291, %s294
      %p300 = scmp.eq.s32.totalorder %s19, 0
      %p301 = por %p299, %p300
      %p302 = scmp.ne.s32.totalorder %s291, %s294
      %p303 = scmp.eq.s32.totalorder %s24, 3
      %p304 = por %p302, %p303
      %p305 = scmp.ne.s32.totalorder %s294, %s295
      %p306 = scmp.eq.s32.totalorder %s24, 0
      %p307 = por %p305, %p306
      %p308 = scmp.ne.s32.totalorder %s294, %s295
      %p309 = scmp.eq.s32.totalorder %s25, 3
      %p310 = por %p308, %p309
      %p312 = scmp.ne.s32.totalorder %s295, %s311
      %p313 = scmp.eq.s32.totalorder %s25, 0
      %p314 = por %p312, %p313
      %p315 = scmp.le.s32.totalorder 1, %s19
      %p316 = scmp.lt.s32.totalorder %s19, 5
      %p317 = pnand %p315, %p316
      %p318 = pneg %p317
      // Predicated region
      $region9: #{tpu_custom_call.1} parent=5 // pred_check
        _
      $region10: #{tpu_custom_call.1} parent=5 // pred_check_branch
        %320 = sbr.rel (%p317) target = $region12
      $region11: #{tpu_custom_call.1} parent=5 // pred_region
        %s321 = ssub.s32 %s19, 1
        // Predicated region
        $region13: #{tpu_custom_call.1} parent=11 // pred_check
          %p322 = pneg %p78
        $region14: #{tpu_custom_call.1} parent=11 // pred_check_branch
          %324 = sbr.rel (%p322) target = $region16
        $region15: #{tpu_custom_call.1} parent=11 // pred_region
          _
        $region16: #{tpu_custom_call.1} parent=11 // pred_fallthru
          _
        // Predicated region
        $region17: #{tpu_custom_call.1} parent=11 // pred_check
          %p325 = pneg %p99
        $region18: #{tpu_custom_call.1} parent=11 // pred_check_branch
          %327 = sbr.rel (%p325) target = $region20
        $region19: #{tpu_custom_call.1} parent=11 // pred_region
          _
        $region20: #{tpu_custom_call.1} parent=11 // pred_fallthru
          _
      $region12: #{tpu_custom_call.1} parent=5 // pred_fallthru
        _
      %p328 = scmp.lt.s32.totalorder %s19, 4
      // Predicated region
      $region21: #{tpu_custom_call.1} parent=5 // pred_check
        %p329 = pneg %p328
      $region22: #{tpu_custom_call.1} parent=5 // pred_check_branch
        %331 = sbr.rel (%p329) target = $region24
      $region23: #{tpu_custom_call.1} parent=5 // pred_region
        // Predicated region
        $region25: #{tpu_custom_call.1} parent=23 // pred_check
          %p332 = pneg %p51
        $region26: #{tpu_custom_call.1} parent=23 // pred_check_branch
          %334 = sbr.rel (%p332) target = $region28
        $region27: #{tpu_custom_call.1} parent=23 // pred_region
          %p335 = scmp.lt.s32.totalorder %s26, 1
          %s336 = scalar_select %p335, %s26, 1
          %s337 = smul.addr %s336, 2
          %s338 = smul.addr %s337, 8
          %s339 = scalar_lea.vmem %s0, %s338
        $region28: #{tpu_custom_call.1} parent=23 // pred_fallthru
          _
        // Predicated region
        $region29: #{tpu_custom_call.1} parent=23 // pred_check
          %p340 = pneg %p119
        $region30: #{tpu_custom_call.1} parent=23 // pred_check_branch
          %342 = sbr.rel (%p340) target = $region32
        $region31: #{tpu_custom_call.1} parent=23 // pred_region
          %p343 = scmp.lt.s32.totalorder %s27, 1
          %s344 = scalar_select %p343, %s27, 1
          %s345 = smul.addr %s344, 4
          %s346 = smul.addr %s345, 4
          %s347 = scalar_lea.vmem %s3, %s346
        $region32: #{tpu_custom_call.1} parent=23 // pred_fallthru
          _
        // Predicated region
        $region33: #{tpu_custom_call.1} parent=23 // pred_check
          %p348 = pneg %p145
        $region34: #{tpu_custom_call.1} parent=23 // pred_check_branch
          %350 = sbr.rel (%p348) target = $region36
        $region35: #{tpu_custom_call.1} parent=23 // pred_region
          %p351 = scmp.lt.s32.totalorder %s27, 1
          %s352 = scalar_select %p351, %s27, 1
          %s353 = scalar_lea.vmem %s4, %s352
        $region36: #{tpu_custom_call.1} parent=23 // pred_fallthru
          _
        // Predicated region
        $region37: #{tpu_custom_call.1} parent=23 // pred_check
          %p354 = pneg %p171
        $region38: #{tpu_custom_call.1} parent=23 // pred_check_branch
          %356 = sbr.rel (%p354) target = $region40
        $region39: #{tpu_custom_call.1} parent=23 // pred_region
          %p357 = scmp.lt.s32.totalorder %s27, 1
          %s358 = scalar_select %p357, %s27, 1
          %s359 = smul.addr %s358, 4
          %s360 = smul.addr %s359, 4
          %s361 = scalar_lea.vmem %s5, %s360
        $region40: #{tpu_custom_call.1} parent=23 // pred_fallthru
          _
        // Predicated region
        $region41: #{tpu_custom_call.1} parent=23 // pred_check
          %p362 = pneg %p197
        $region42: #{tpu_custom_call.1} parent=23 // pred_check_branch
          %364 = sbr.rel (%p362) target = $region44
        $region43: #{tpu_custom_call.1} parent=23 // pred_region
          %p365 = scmp.lt.s32.totalorder %s27, 1
          %s366 = scalar_select %p365, %s27, 1
          %s367 = smul.addr %s366, 64
          %s368 = smul.addr %s367, 4
          %s369 = scalar_lea.vmem %s6, %s368
        $region44: #{tpu_custom_call.1} parent=23 // pred_fallthru
          _
        // Predicated region
        $region45: #{tpu_custom_call.1} parent=23 // pred_check
          %p370 = pneg %p223
        $region46: #{tpu_custom_call.1} parent=23 // pred_check_branch
          %372 = sbr.rel (%p370) target = $region48
        $region47: #{tpu_custom_call.1} parent=23 // pred_region
          %p373 = scmp.lt.s32.totalorder %s27, 1
          %s374 = scalar_select %p373, %s27, 1
          %s375 = smul.addr %s374, 16
          %s376 = scalar_lea.vmem %s7, %s375
        $region48: #{tpu_custom_call.1} parent=23 // pred_fallthru
          _
        // Predicated region
        $region49: #{tpu_custom_call.1} parent=23 // pred_check
          %p377 = pneg %p249
        $region50: #{tpu_custom_call.1} parent=23 // pred_check_branch
          %379 = sbr.rel (%p377) target = $region52
        $region51: #{tpu_custom_call.1} parent=23 // pred_region
          %p380 = scmp.lt.s32.totalorder %s27, 1
          %s381 = scalar_select %p380, %s27, 1
          %s382 = smul.addr %s381, 256
          %s383 = smul.addr %s382, 4
          %s384 = scalar_lea.vmem %s8, %s383
        $region52: #{tpu_custom_call.1} parent=23 // pred_fallthru
          _
        // Predicated region
        $region53: #{tpu_custom_call.1} parent=23 // pred_check
          %p385 = pneg %p275
        $region54: #{tpu_custom_call.1} parent=23 // pred_check_branch
          %387 = sbr.rel (%p385) target = $region56
        $region55: #{tpu_custom_call.1} parent=23 // pred_region
          %p388 = scmp.lt.s32.totalorder %s27, 1
          %s389 = scalar_select %p388, %s27, 1
          %s390 = smul.addr %s389, 8
          %s391 = scalar_lea.vmem %s9, %s390
        $region56: #{tpu_custom_call.1} parent=23 // pred_fallthru
          _
      $region24: #{tpu_custom_call.1} parent=5 // pred_fallthru
        _
      %p392 = scmp.le.s32.totalorder 1, %s19
      %p393 = scmp.lt.s32.totalorder %s19, 5
      %p394 = pnand %p392, %p393
      %p395 = pneg %p394
      // Predicated region
      $region57: #{tpu_custom_call.1} parent=5 // pred_check
        _
      $region58: #{tpu_custom_call.1} parent=5 // pred_check_branch
        %397 = sbr.rel (%p394) target = $region60
      $region59: #{tpu_custom_call.1} parent=5 // pred_region
        %s398 = ssub.s32 %s19, 1
        %p399 = scmp.lt.s32.totalorder %s28, 1
        %s400 = scalar_select %p399, %s28, 1
        %s401 = smul.addr %s400, 2
        %s402 = smul.addr %s401, 8
        %s403 = scalar_lea.vmem %s0, %s402
        %p404 = pneg %p57
        %p405 = pneg %p54
        %p406 = pneg %p78
        %p407 = pneg %p75
        %p408 = pneg %p99
        %p409 = pneg %p96
        %p410 = scmp.lt.s32.totalorder %s29, 1
        %s411 = scalar_select %p410, %s29, 1
        %s412 = smul.addr %s411, 4
        %s413 = smul.addr %s412, 4
        %s414 = scalar_lea.vmem %s3, %s413
        %p415 = pneg %p125
        %p416 = pneg %p122
        %p417 = scmp.lt.s32.totalorder %s29, 1
        %s418 = scalar_select %p417, %s29, 1
        %s419 = scalar_lea.vmem %s4, %s418
        %p420 = pneg %p151
        %p421 = pneg %p148
        %p422 = scmp.lt.s32.totalorder %s29, 1
        %s423 = scalar_select %p422, %s29, 1
        %s424 = smul.addr %s423, 4
        %s425 = smul.addr %s424, 4
        %s426 = scalar_lea.vmem %s5, %s425
        %p427 = pneg %p177
        %p428 = pneg %p174
        %p429 = scmp.lt.s32.totalorder %s29, 1
        %s430 = scalar_select %p429, %s29, 1
        %s431 = smul.addr %s430, 64
        %s432 = smul.addr %s431, 4
        %s433 = scalar_lea.vmem %s6, %s432
        %p434 = pneg %p203
        %p435 = pneg %p200
        %p436 = scmp.lt.s32.totalorder %s29, 1
        %s437 = scalar_select %p436, %s29, 1
        %s438 = smul.addr %s437, 16
        %s439 = scalar_lea.vmem %s7, %s438
        %p440 = pneg %p229
        %p441 = pneg %p226
        %p442 = scmp.lt.s32.totalorder %s29, 1
        %s443 = scalar_select %p442, %s29, 1
        %s444 = smul.addr %s443, 256
        %s445 = smul.addr %s444, 4
        %s446 = scalar_lea.vmem %s8, %s445
        %p447 = pneg %p255
        %p448 = pneg %p252
        %p449 = scmp.lt.s32.totalorder %s29, 1
        %s450 = scalar_select %p449, %s29, 1
        %s451 = smul.addr %s450, 8
        %s452 = scalar_lea.vmem %s9, %s451
        %p453 = pneg %p281
        %p454 = pneg %p278
        %p455 = pneg %p307
        %p456 = pneg %p304
        %s457 = sand.u32 %s294, 1
        %s458 = scalar_lea.sflag [#allocation4], %s457
        %s459 = sand.u32 %s294, 1
        %s460 = smul.addr %s459, 2
        %s461 = scalar_lea.vmem [#allocation3], %s460
        %p462 = scmp.lt.s32.totalorder %s28, 1
        %s463 = scalar_select %p462, %s28, 1
        %s464 = smul.addr %s463, 2
        %s465 = smul.addr %s464, 8
        %s466 = scalar_lea.vmem %s0, %s465
        %p467 = scmp.lt.s32.totalorder %s29, 1
        %s468 = scalar_select %p467, %s29, 1
        %s469 = smul.addr %s468, 4
        %s470 = smul.addr %s469, 4
        %s471 = scalar_lea.vmem %s3, %s470
        %p472 = scmp.lt.s32.totalorder %s29, 1
        %s473 = scalar_select %p472, %s29, 1
        %s474 = scalar_lea.vmem %s4, %s473
        %p475 = scmp.lt.s32.totalorder %s29, 1
        %s476 = scalar_select %p475, %s29, 1
        %s477 = smul.addr %s476, 4
        %s478 = smul.addr %s477, 4
        %s479 = scalar_lea.vmem %s5, %s478
        %p480 = scmp.lt.s32.totalorder %s29, 1
        %s481 = scalar_select %p480, %s29, 1
        %s482 = smul.addr %s481, 64
        %s483 = smul.addr %s482, 4
        %s484 = scalar_lea.vmem %s6, %s483
        %p485 = scmp.lt.s32.totalorder %s29, 1
        %s486 = scalar_select %p485, %s29, 1
        %s487 = smul.addr %s486, 16
        %s488 = scalar_lea.vmem %s7, %s487
        %p489 = scmp.lt.s32.totalorder %s29, 1
        %s490 = scalar_select %p489, %s29, 1
        %s491 = smul.addr %s490, 256
        %s492 = smul.addr %s491, 4
        %s493 = scalar_lea.vmem %s8, %s492
        %p494 = scmp.lt.s32.totalorder %s29, 1
        %s495 = scalar_select %p494, %s29, 1
        %s496 = smul.addr %s495, 8
        %s497 = scalar_lea.vmem %s9, %s496
        %p499 = scmp.eq.s32.totalorder %s29, 0
        // Predicated region
        $region61: #{tpu_custom_call.1} parent=59 // pred_check
          %p500 = pneg %p499
        $region62: #{tpu_custom_call.1} parent=59 // pred_check_branch
          %502 = sbr.rel (%p500) target = $region64
        $region63: #{tpu_custom_call.1} parent=59 // pred_region
          %v503 = vld [vmem:[%s466] sm:$0xff]
          %v504 = vld [vmem:[%s466 + $0x8] sm:$0xff]
          %v505 = vpack.c.bf16 %v503, %v503
          %v506 = vpack.c.bf16 %v504, %v504
          %v507 = vld [vmem:[%s2] sm:$0xf]
          %v508 = vld [vmem:[%s2 + $0x4] sm:$0xf]
          %v511 = vunpack.c.l.b16 %v505
          %v512 = vunpack.c.l.b16 %v506
          %v513 = vpack.c.b16 %v512, %v511
          %v516 = vunpack.c.l.b16 %v507
          %v517 = vunpack.c.l.b16 %v508
          %v518 = vpack.c.b16 %v517, %v516
          %vm520 = vcmask 130048
          %v522 = vsel %vm520, %v513, 0
          %524 = vmatpush.bf16.msra.mxu0 0
          %525 = vmatpush.bf16.msra.mxu0 0
          %526 = vmatpush.bf16.msra.mxu0 0
          %527 = vmatpush.bf16.msra.mxu0 0
          %528 = vmatpush.bf16.msra.mxu0 0
          %529 = vmatpush.bf16.msra.mxu0 0
          %530 = vmatpush.bf16.msra.mxu0 0
          %531 = vmatpush.bf16.msra.mxu0 %v518
          %532 = vmatmul.bf16.gmra.mxu0 %v522
          %v533 = vpop.f32.mrf.mxu0
          %v534 = vadd.f32 0.0, %v533
          %v535 = vpop.f32.mrf.mxu0
          %v536 = vadd.f32 0.0, %v535
          %537 = vdwg.mxu0
          %v538 = vld [vmem:[%s1] sm:$0x3]
          %v540 = vrot.slane %v538, 1
          %v541 = vperm.slane %v538, 0
          %v542 = vperm.slane %v540, 0
          %v545 = vadd.f32 %v534, %v541
          %v546 = vadd.f32 %v536, %v542
          %vm547 = vcmask 261120
          %548 = vst.msk [vmem:[#allocation2] sm:$0xff] %vm547, %v545
          %549 = vst.msk [vmem:[#allocation2 + $0x8] sm:$0xff] %vm547, %v546
        $region64: #{tpu_custom_call.1} parent=59 // pred_fallthru
          _
        %v550 = vld [vmem:[#allocation2] sm:$0xff]
        %v551 = vld [vmem:[#allocation2 + $0x8] sm:$0xff]
        %v552 = vld [vmem:[%s497] sm:$0xff]
        %v553 = vpack.c.bf16 %v551, %v550
        %v554 = vld [vmem:[%s471] sm:$0xf]
        %v555 = vld [vmem:[%s471 + $0x4] sm:$0xf]
        %v556 = vld [vmem:[%s471 + $0x8] sm:$0xf]
        %v557 = vld [vmem:[%s471 + $0xc] sm:$0xf]
        %v558 = vld [vmem:[%s474] sm:$0x1]
        %v560 = vperm.slane %v558, 0
        %v566 = vunpack.c.l.b16 %v554
        %v567 = vunpack.c.l.b16 %v555
        %v568 = vunpack.c.l.b16 %v556
        %v569 = vunpack.c.l.b16 %v557
        %v570 = vpack.c.b16 %v567, %v566
        %v571 = vpack.c.b16 %v569, %v568
        %vm574 = vcmask 261120
        %v576 = vsel %vm574, %v553, 0
        %578 = vmatpush.bf16.msra.mxu0 0
        %579 = vmatpush.bf16.msra.mxu0 0
        %580 = vmatpush.bf16.msra.mxu0 0
        %581 = vmatpush.bf16.msra.mxu0 0
        %582 = vmatpush.bf16.msra.mxu0 0
        %583 = vmatpush.bf16.msra.mxu0 0
        %584 = vmatpush.bf16.msra.mxu0 %v571
        %585 = vmatpush.bf16.msra.mxu0 %v570
        %586 = vmatmul.bf16.gmra.mxu0 %v576
        %v587 = vpop.f32.mrf.mxu0
        %v588 = vadd.f32 %v560, %v587
        %v589 = vpop.f32.mrf.mxu0
        %v590 = vadd.f32 %v560, %v589
        %591 = vdwg.mxu0
        %v592 = vld [vmem:[%s479] sm:$0xf]
        %v593 = vld [vmem:[%s479 + $0x4] sm:$0xf]
        %v594 = vld [vmem:[%s479 + $0x8] sm:$0xf]
        %v595 = vld [vmem:[%s479 + $0xc] sm:$0xf]
        %v596 = vrot.slane %v588, 4
        %vm597 = vcmask 1047556
        %v598 = vsel %vm597, 0.0, %v596
        %v600 = vunpack.c.l.s4 1983009808
        %v601 = vunpack.c.0.s8 %v600
        %v602 = vperm.slane %v588, %v601
        %v604 = vunpack.c.l.s4 1983009808
        %v605 = vunpack.c.0.s8 %v604
        %v606 = vperm.slane %v598, %v605
        %v607 = vrot.slane %v590, 4
        %v608 = vsel %vm597, 0.0, %v607
        %v610 = vunpack.c.l.s4 1983009808
        %v611 = vunpack.c.0.s8 %v610
        %v612 = vperm.slane %v590, %v611
        %v614 = vunpack.c.l.s4 1983009808
        %v615 = vunpack.c.0.s8 %v614
        %v616 = vperm.slane %v608, %v615
        %v617 = vrot.slane %v612, 4
        %v618 = vsel %vm597, %v617, %v602
        %v619 = vrot.slane %v602, 4
        %v620 = vsel %vm597, %v612, %v619
        %v622 = vunpack.c.l.s4 1934713408
        %v623 = vunpack.c.0.s8 %v622
        %v624 = vperm.slane %v618, %v623
        %v626 = vunpack.c.l.s4 1934713408
        %v627 = vunpack.c.0.s8 %v626
        %v628 = vperm.slane %v620, %v627
        %v629 = vrot.slane %v616, 4
        %v630 = vsel %vm597, %v629, %v606
        %v631 = vrot.slane %v606, 4
        %v632 = vsel %vm597, %v616, %v631
        %v634 = vunpack.c.l.s4 1934713408
        %v635 = vunpack.c.0.s8 %v634
        %v636 = vperm.slane %v630, %v635
        %v638 = vunpack.c.l.s4 1934713408
        %v639 = vunpack.c.0.s8 %v638
        %v640 = vperm.slane %v632, %v639
        %v641 = vrot.slane %v624, 4
        %v642 = vsel %vm597, 0.0, %v641
        %v643 = vrot.slane %v628, 4
        %v644 = vsel %vm597, 0.0, %v643
        %v645 = vrot.slane %v636, 4
        %v646 = vsel %vm597, 0.0, %v645
        %v647 = vrot.slane %v640, 4
        %v648 = vsel %vm597, 0.0, %v647
        %651 = vrot.lane.b32.xlu0 %v588, 96
        %v652 = vpop.permute.xlu0 %651
        %653 = vrot.lane.b32.xlu0 %v590, 96
        %v654 = vpop.permute.xlu0 %653
        %657 = vxpose.xlu0.b32.start [1/16] %v652, 128
        %658 = vxpose.xlu0.b32.cont [2/16] 0.0, 128
        %659 = vxpose.xlu0.b32.cont [3/16] 0.0, 128
        %660 = vxpose.xlu0.b32.cont [4/16] 0.0, 128
        %661 = vxpose.xlu0.b32.cont [5/16] 0.0, 128
        %662 = vxpose.xlu0.b32.cont [6/16] 0.0, 128
        %663 = vxpose.xlu0.b32.cont [7/16] 0.0, 128
        %664 = vxpose.xlu0.b32.cont [8/16] 0.0, 128
        %665 = vxpose.xlu0.b32.cont [9/16] 0.0, 128
        %666 = vxpose.xlu0.b32.cont [10/16] 0.0, 128
        %667 = vxpose.xlu0.b32.cont [11/16] 0.0, 128
        %668 = vxpose.xlu0.b32.cont [12/16] 0.0, 128
        %669 = vxpose.xlu0.b32.cont [13/16] 0.0, 128
        %670 = vxpose.xlu0.b32.cont [14/16] 0.0, 128
        %671 = vxpose.xlu0.b32.cont [15/16] 0.0, 128
        %672 = vxpose.xlu0.b32.end [16/16] 0.0, 128
        %v673 = vpop.trf.xlu0
        %v674 = vpop.trf.xlu0
        %v675 = vpop.trf.xlu0
        %v676 = vpop.trf.xlu0
        %v677 = vpop.trf.xlu0
        %v678 = vpop.trf.xlu0
        %v679 = vpop.trf.xlu0
        %v680 = vpop.trf.xlu0
        %v681 = vpop.trf.xlu0
        %v682 = vpop.trf.xlu0
        %v683 = vpop.trf.xlu0
        %v684 = vpop.trf.xlu0
        %v685 = vpop.trf.xlu0
        %v686 = vpop.trf.xlu0
        %v687 = vpop.trf.xlu0
        %v688 = vpop.trf.xlu0
        %689 = vxpose.xlu0.b32.start [1/16] %v654, 128
        %690 = vxpose.xlu0.b32.cont [2/16] 0.0, 128
        %691 = vxpose.xlu0.b32.cont [3/16] 0.0, 128
        %692 = vxpose.xlu0.b32.cont [4/16] 0.0, 128
        %693 = vxpose.xlu0.b32.cont [5/16] 0.0, 128
        %694 = vxpose.xlu0.b32.cont [6/16] 0.0, 128
        %695 = vxpose.xlu0.b32.cont [7/16] 0.0, 128
        %696 = vxpose.xlu0.b32.cont [8/16] 0.0, 128
        %697 = vxpose.xlu0.b32.cont [9/16] 0.0, 128
        %698 = vxpose.xlu0.b32.cont [10/16] 0.0, 128
        %699 = vxpose.xlu0.b32.cont [11/16] 0.0, 128
        %700 = vxpose.xlu0.b32.cont [12/16] 0.0, 128
        %701 = vxpose.xlu0.b32.cont [13/16] 0.0, 128
        %702 = vxpose.xlu0.b32.cont [14/16] 0.0, 128
        %703 = vxpose.xlu0.b32.cont [15/16] 0.0, 128
        %704 = vxpose.xlu0.b32.end [16/16] 0.0, 128
        %v705 = vpop.trf.xlu0
        %v706 = vpop.trf.xlu0
        %v707 = vpop.trf.xlu0
        %v708 = vpop.trf.xlu0
        %v709 = vpop.trf.xlu0
        %v710 = vpop.trf.xlu0
        %v711 = vpop.trf.xlu0
        %v712 = vpop.trf.xlu0
        %v713 = vpop.trf.xlu0
        %v714 = vpop.trf.xlu0
        %v715 = vpop.trf.xlu0
        %v716 = vpop.trf.xlu0
        %v717 = vpop.trf.xlu0
        %v718 = vpop.trf.xlu0
        %v719 = vpop.trf.xlu0
        %v720 = vpop.trf.xlu0
        %v721 = vrot.slane %v673, 4
        %v722 = vsel %vm597, 0.0, %v721
        %v724 = vunpack.c.l.s4 1983009808
        %v725 = vunpack.c.0.s8 %v724
        %v726 = vperm.slane %v673, %v725
        %v728 = vunpack.c.l.s4 1983009808
        %v729 = vunpack.c.0.s8 %v728
        %v730 = vperm.slane %v722, %v729
        %v731 = vrot.slane %v705, 4
        %v732 = vsel %vm597, 0.0, %v731
        %v734 = vunpack.c.l.s4 1983009808
        %v735 = vunpack.c.0.s8 %v734
        %v736 = vperm.slane %v705, %v735
        %v738 = vunpack.c.l.s4 1983009808
        %v739 = vunpack.c.0.s8 %v738
        %v740 = vperm.slane %v732, %v739
        %v741 = vrot.slane %v736, 4
        %v742 = vsel %vm597, %v741, %v726
        %v743 = vrot.slane %v726, 4
        %v744 = vsel %vm597, %v736, %v743
        %v746 = vunpack.c.l.s4 1934713408
        %v747 = vunpack.c.0.s8 %v746
        %v748 = vperm.slane %v742, %v747
        %v750 = vunpack.c.l.s4 1934713408
        %v751 = vunpack.c.0.s8 %v750
        %v752 = vperm.slane %v744, %v751
        %v753 = vrot.slane %v740, 4
        %v754 = vsel %vm597, %v753, %v730
        %v755 = vrot.slane %v730, 4
        %v756 = vsel %vm597, %v740, %v755
        %v758 = vunpack.c.l.s4 1934713408
        %v759 = vunpack.c.0.s8 %v758
        %v760 = vperm.slane %v754, %v759
        %v762 = vunpack.c.l.s4 1934713408
        %v763 = vunpack.c.0.s8 %v762
        %v764 = vperm.slane %v756, %v763
        %v765 = vrot.slane %v748, 4
        %v766 = vsel %vm597, 0.0, %v765
        %v767 = vrot.slane %v752, 4
        %v768 = vsel %vm597, 0.0, %v767
        %v769 = vrot.slane %v760, 4
        %v770 = vsel %vm597, 0.0, %v769
        %v771 = vrot.slane %v764, 4
        %v772 = vsel %vm597, 0.0, %v771
        %773 = vxpose.xlu0.b32.start [1/16] %v748, 128
        %774 = vxpose.xlu0.b32.cont [2/16] 0.0, 128
        %775 = vxpose.xlu0.b32.cont [3/16] 0.0, 128
        %776 = vxpose.xlu0.b32.cont [4/16] 0.0, 128
        %777 = vxpose.xlu0.b32.cont [5/16] 0.0, 128
        %778 = vxpose.xlu0.b32.cont [6/16] 0.0, 128
        %779 = vxpose.xlu0.b32.cont [7/16] 0.0, 128
        %780 = vxpose.xlu0.b32.cont [8/16] 0.0, 128
        %781 = vxpose.xlu0.b32.cont [9/16] 0.0, 128
        %782 = vxpose.xlu0.b32.cont [10/16] 0.0, 128
        %783 = vxpose.xlu0.b32.cont [11/16] 0.0, 128
        %784 = vxpose.xlu0.b32.cont [12/16] 0.0, 128
        %785 = vxpose.xlu0.b32.cont [13/16] 0.0, 128
        %786 = vxpose.xlu0.b32.cont [14/16] 0.0, 128
        %787 = vxpose.xlu0.b32.cont [15/16] 0.0, 128
        %788 = vxpose.xlu0.b32.end [16/16] 0.0, 128
        %v789 = vpop.trf.xlu0
        %v790 = vpop.trf.xlu0
        %v791 = vpop.trf.xlu0
        %v792 = vpop.trf.xlu0
        %v793 = vpop.trf.xlu0
        %v794 = vpop.trf.xlu0
        %v795 = vpop.trf.xlu0
        %v796 = vpop.trf.xlu0
        %v797 = vpop.trf.xlu0
        %v798 = vpop.trf.xlu0
        %v799 = vpop.trf.xlu0
        %v800 = vpop.trf.xlu0
        %v801 = vpop.trf.xlu0
        %v802 = vpop.trf.xlu0
        %v803 = vpop.trf.xlu0
        %v804 = vpop.trf.xlu0
        %805 = vxpose.xlu0.b32.start [1/16] %v766, 128
        %806 = vxpose.xlu0.b32.cont [2/16] 0.0, 128
        %807 = vxpose.xlu0.b32.cont [3/16] 0.0, 128
        %808 = vxpose.xlu0.b32.cont [4/16] 0.0, 128
        %809 = vxpose.xlu0.b32.cont [5/16] 0.0, 128
        %810 = vxpose.xlu0.b32.cont [6/16] 0.0, 128
        %811 = vxpose.xlu0.b32.cont [7/16] 0.0, 128
        %812 = vxpose.xlu0.b32.cont [8/16] 0.0, 128
        %813 = vxpose.xlu0.b32.cont [9/16] 0.0, 128
        %814 = vxpose.xlu0.b32.cont [10/16] 0.0, 128
        %815 = vxpose.xlu0.b32.cont [11/16] 0.0, 128
        %816 = vxpose.xlu0.b32.cont [12/16] 0.0, 128
        %817 = vxpose.xlu0.b32.cont [13/16] 0.0, 128
        %818 = vxpose.xlu0.b32.cont [14/16] 0.0, 128
        %819 = vxpose.xlu0.b32.cont [15/16] 0.0, 128
        %820 = vxpose.xlu0.b32.end [16/16] 0.0, 128
        %v821 = vpop.trf.xlu0
        %v822 = vpop.trf.xlu0
        %v823 = vpop.trf.xlu0
        %v824 = vpop.trf.xlu0
        %v825 = vpop.trf.xlu0
        %v826 = vpop.trf.xlu0
        %v827 = vpop.trf.xlu0
        %v828 = vpop.trf.xlu0
        %v829 = vpop.trf.xlu0
        %v830 = vpop.trf.xlu0
        %v831 = vpop.trf.xlu0
        %v832 = vpop.trf.xlu0
        %v833 = vpop.trf.xlu0
        %v834 = vpop.trf.xlu0
        %v835 = vpop.trf.xlu0
        %v836 = vpop.trf.xlu0
        %837 = vxpose.xlu0.b32.start [1/16] %v752, 128
        %838 = vxpose.xlu0.b32.cont [2/16] 0.0, 128
        %839 = vxpose.xlu0.b32.cont [3/16] 0.0, 128
        %840 = vxpose.xlu0.b32.cont [4/16] 0.0, 128
        %841 = vxpose.xlu0.b32.cont [5/16] 0.0, 128
        %842 = vxpose.xlu0.b32.cont [6/16] 0.0, 128
        %843 = vxpose.xlu0.b32.cont [7/16] 0.0, 128
        %844 = vxpose.xlu0.b32.cont [8/16] 0.0, 128
        %845 = vxpose.xlu0.b32.cont [9/16] 0.0, 128
        %846 = vxpose.xlu0.b32.cont [10/16] 0.0, 128
        %847 = vxpose.xlu0.b32.cont [11/16] 0.0, 128
        %848 = vxpose.xlu0.b32.cont [12/16] 0.0, 128
        %849 = vxpose.xlu0.b32.cont [13/16] 0.0, 128
        %850 = vxpose.xlu0.b32.cont [14/16] 0.0, 128
        %851 = vxpose.xlu0.b32.cont [15/16] 0.0, 128
        %852 = vxpose.xlu0.b32.end [16/16] 0.0, 128
        %v853 = vpop.trf.xlu0
        %v854 = vpop.trf.xlu0
        %v855 = vpop.trf.xlu0
        %v856 = vpop.trf.xlu0
        %v857 = vpop.trf.xlu0
        %v858 = vpop.trf.xlu0
        %v859 = vpop.trf.xlu0
        %v860 = vpop.trf.xlu0
        %v861 = vpop.trf.xlu0
        %v862 = vpop.trf.xlu0
        %v863 = vpop.trf.xlu0
        %v864 = vpop.trf.xlu0
        %v865 = vpop.trf.xlu0
        %v866 = vpop.trf.xlu0
        %v867 = vpop.trf.xlu0
        %v868 = vpop.trf.xlu0
        %869 = vxpose.xlu0.b32.start [1/16] %v768, 128
        %870 = vxpose.xlu0.b32.cont [2/16] 0.0, 128
        %871 = vxpose.xlu0.b32.cont [3/16] 0.0, 128
        %872 = vxpose.xlu0.b32.cont [4/16] 0.0, 128
        %873 = vxpose.xlu0.b32.cont [5/16] 0.0, 128
        %874 = vxpose.xlu0.b32.cont [6/16] 0.0, 128
        %875 = vxpose.xlu0.b32.cont [7/16] 0.0, 128
        %876 = vxpose.xlu0.b32.cont [8/16] 0.0, 128
        %877 = vxpose.xlu0.b32.cont [9/16] 0.0, 128
        %878 = vxpose.xlu0.b32.cont [10/16] 0.0, 128
        %879 = vxpose.xlu0.b32.cont [11/16] 0.0, 128
        %880 = vxpose.xlu0.b32.cont [12/16] 0.0, 128
        %881 = vxpose.xlu0.b32.cont [13/16] 0.0, 128
        %882 = vxpose.xlu0.b32.cont [14/16] 0.0, 128
        %883 = vxpose.xlu0.b32.cont [15/16] 0.0, 128
        %884 = vxpose.xlu0.b32.end [16/16] 0.0, 128
        %v885 = vpop.trf.xlu0
        %v886 = vpop.trf.xlu0
        %v887 = vpop.trf.xlu0
        %v888 = vpop.trf.xlu0
        %v889 = vpop.trf.xlu0
        %v890 = vpop.trf.xlu0
        %v891 = vpop.trf.xlu0
        %v892 = vpop.trf.xlu0
        %v893 = vpop.trf.xlu0
        %v894 = vpop.trf.xlu0
        %v895 = vpop.trf.xlu0
        %v896 = vpop.trf.xlu0
        %v897 = vpop.trf.xlu0
        %v898 = vpop.trf.xlu0
        %v899 = vpop.trf.xlu0
        %v900 = vpop.trf.xlu0
        %901 = vxpose.xlu0.b32.start [1/16] %v760, 128
        %902 = vxpose.xlu0.b32.cont [2/16] 0.0, 128
        %903 = vxpose.xlu0.b32.cont [3/16] 0.0, 128
        %904 = vxpose.xlu0.b32.cont [4/16] 0.0, 128
        %905 = vxpose.xlu0.b32.cont [5/16] 0.0, 128
        %906 = vxpose.xlu0.b32.cont [6/16] 0.0, 128
        %907 = vxpose.xlu0.b32.cont [7/16] 0.0, 128
        %908 = vxpose.xlu0.b32.cont [8/16] 0.0, 128
        %909 = vxpose.xlu0.b32.cont [9/16] 0.0, 128
        %910 = vxpose.xlu0.b32.cont [10/16] 0.0, 128
        %911 = vxpose.xlu0.b32.cont [11/16] 0.0, 128
        %912 = vxpose.xlu0.b32.cont [12/16] 0.0, 128
        %913 = vxpose.xlu0.b32.cont [13/16] 0.0, 128
        %914 = vxpose.xlu0.b32.cont [14/16] 0.0, 128
        %915 = vxpose.xlu0.b32.cont [15/16] 0.0, 128
        %916 = vxpose.xlu0.b32.end [16/16] 0.0, 128
        %v917 = vpop.trf.xlu0
        %v918 = vpop.trf.xlu0
        %v919 = vpop.trf.xlu0
        %v920 = vpop.trf.xlu0
        %v921 = vpop.trf.xlu0
        %v922 = vpop.trf.xlu0
        %v923 = vpop.trf.xlu0
        %v924 = vpop.trf.xlu0
        %v925 = vpop.trf.xlu0
        %v926 = vpop.trf.xlu0
        %v927 = vpop.trf.xlu0
        %v928 = vpop.trf.xlu0
        %v929 = vpop.trf.xlu0
        %v930 = vpop.trf.xlu0
        %v931 = vpop.trf.xlu0
        %v932 = vpop.trf.xlu0
        %933 = vxpose.xlu0.b32.start [1/16] %v770, 128
        %934 = vxpose.xlu0.b32.cont [2/16] 0.0, 128
        %935 = vxpose.xlu0.b32.cont [3/16] 0.0, 128
        %936 = vxpose.xlu0.b32.cont [4/16] 0.0, 128
        %937 = vxpose.xlu0.b32.cont [5/16] 0.0, 128
        %938 = vxpose.xlu0.b32.cont [6/16] 0.0, 128
        %939 = vxpose.xlu0.b32.cont [7/16] 0.0, 128
        %940 = vxpose.xlu0.b32.cont [8/16] 0.0, 128
        %941 = vxpose.xlu0.b32.cont [9/16] 0.0, 128
        %942 = vxpose.xlu0.b32.cont [10/16] 0.0, 128
        %943 = vxpose.xlu0.b32.cont [11/16] 0.0, 128
        %944 = vxpose.xlu0.b32.cont [12/16] 0.0, 128
        %945 = vxpose.xlu0.b32.cont [13/16] 0.0, 128
        %946 = vxpose.xlu0.b32.cont [14/16] 0.0, 128
        %947 = vxpose.xlu0.b32.cont [15/16] 0.0, 128
        %948 = vxpose.xlu0.b32.end [16/16] 0.0, 128
        %v949 = vpop.trf.xlu0
        %v950 = vpop.trf.xlu0
        %v951 = vpop.trf.xlu0
        %v952 = vpop.trf.xlu0
        %v953 = vpop.trf.xlu0
        %v954 = vpop.trf.xlu0
        %v955 = vpop.trf.xlu0
        %v956 = vpop.trf.xlu0
        %v957 = vpop.trf.xlu0
        %v958 = vpop.trf.xlu0
        %v959 = vpop.trf.xlu0
        %v960 = vpop.trf.xlu0
        %v961 = vpop.trf.xlu0
        %v962 = vpop.trf.xlu0
        %v963 = vpop.trf.xlu0
        %v964 = vpop.trf.xlu0
        %965 = vxpose.xlu0.b32.start [1/16] %v764, 128
        %966 = vxpose.xlu0.b32.cont [2/16] 0.0, 128
        %967 = vxpose.xlu0.b32.cont [3/16] 0.0, 128
        %968 = vxpose.xlu0.b32.cont [4/16] 0.0, 128
        %969 = vxpose.xlu0.b32.cont [5/16] 0.0, 128
        %970 = vxpose.xlu0.b32.cont [6/16] 0.0, 128
        %971 = vxpose.xlu0.b32.cont [7/16] 0.0, 128
        %972 = vxpose.xlu0.b32.cont [8/16] 0.0, 128
        %973 = vxpose.xlu0.b32.cont [9/16] 0.0, 128
        %974 = vxpose.xlu0.b32.cont [10/16] 0.0, 128
        %975 = vxpose.xlu0.b32.cont [11/16] 0.0, 128
        %976 = vxpose.xlu0.b32.cont [12/16] 0.0, 128
        %977 = vxpose.xlu0.b32.cont [13/16] 0.0, 128
        %978 = vxpose.xlu0.b32.cont [14/16] 0.0, 128
        %979 = vxpose.xlu0.b32.cont [15/16] 0.0, 128
        %980 = vxpose.xlu0.b32.end [16/16] 0.0, 128
        %v981 = vpop.trf.xlu0
        %v982 = vpop.trf.xlu0
        %v983 = vpop.trf.xlu0
        %v984 = vpop.trf.xlu0
        %v985 = vpop.trf.xlu0
        %v986 = vpop.trf.xlu0
        %v987 = vpop.trf.xlu0
        %v988 = vpop.trf.xlu0
        %v989 = vpop.trf.xlu0
        %v990 = vpop.trf.xlu0
        %v991 = vpop.trf.xlu0
        %v992 = vpop.trf.xlu0
        %v993 = vpop.trf.xlu0
        %v994 = vpop.trf.xlu0
        %v995 = vpop.trf.xlu0
        %v996 = vpop.trf.xlu0
        %997 = vxpose.xlu0.b32.start [1/16] %v772, 128
        %998 = vxpose.xlu0.b32.cont [2/16] 0.0, 128
        %999 = vxpose.xlu0.b32.cont [3/16] 0.0, 128
        %1000 = vxpose.xlu0.b32.cont [4/16] 0.0, 128
        %1001 = vxpose.xlu0.b32.cont [5/16] 0.0, 128
        %1002 = vxpose.xlu0.b32.cont [6/16] 0.0, 128
        %1003 = vxpose.xlu0.b32.cont [7/16] 0.0, 128
        %1004 = vxpose.xlu0.b32.cont [8/16] 0.0, 128
        %1005 = vxpose.xlu0.b32.cont [9/16] 0.0, 128
        %1006 = vxpose.xlu0.b32.cont [10/16] 0.0, 128
        %1007 = vxpose.xlu0.b32.cont [11/16] 0.0, 128
        %1008 = vxpose.xlu0.b32.cont [12/16] 0.0, 128
        %1009 = vxpose.xlu0.b32.cont [13/16] 0.0, 128
        %1010 = vxpose.xlu0.b32.cont [14/16] 0.0, 128
        %1011 = vxpose.xlu0.b32.cont [15/16] 0.0, 128
        %1012 = vxpose.xlu0.b32.end [16/16] 0.0, 128
        %v1013 = vpop.trf.xlu0
        %v1014 = vpop.trf.xlu0
        %v1015 = vpop.trf.xlu0
        %v1016 = vpop.trf.xlu0
        %v1017 = vpop.trf.xlu0
        %v1018 = vpop.trf.xlu0
        %v1019 = vpop.trf.xlu0
        %v1020 = vpop.trf.xlu0
        %v1021 = vpop.trf.xlu0
        %v1022 = vpop.trf.xlu0
        %v1023 = vpop.trf.xlu0
        %v1024 = vpop.trf.xlu0
        %v1025 = vpop.trf.xlu0
        %v1026 = vpop.trf.xlu0
        %v1027 = vpop.trf.xlu0
        %v1028 = vpop.trf.xlu0
        %v1029 = vrot.slane %v853, 4
        %v1030 = vsel %vm597, %v1029, %v789
        %v1031 = vrot.slane %v789, 4
        %v1032 = vsel %vm597, %v853, %v1031
        %v1034 = vunpack.c.l.s4 1983009808
        %v1035 = vunpack.c.0.s8 %v1034
        %v1036 = vperm.slane %v1030, %v1035
        %v1038 = vunpack.c.l.s4 1983009808
        %v1039 = vunpack.c.0.s8 %v1038
        %v1040 = vperm.slane %v1032, %v1039
        %v1041 = vrot.slane %v885, 4
        %v1042 = vsel %vm597, %v1041, %v821
        %v1043 = vrot.slane %v821, 4
        %v1044 = vsel %vm597, %v885, %v1043
        %v1046 = vunpack.c.l.s4 1983009808
        %v1047 = vunpack.c.0.s8 %v1046
        %v1048 = vperm.slane %v1042, %v1047
        %v1050 = vunpack.c.l.s4 1983009808
        %v1051 = vunpack.c.0.s8 %v1050
        %v1052 = vperm.slane %v1044, %v1051
        %v1053 = vrot.slane %v981, 4
        %v1054 = vsel %vm597, %v1053, %v917
        %v1055 = vrot.slane %v917, 4
        %v1056 = vsel %vm597, %v981, %v1055
        %v1058 = vunpack.c.l.s4 1983009808
        %v1059 = vunpack.c.0.s8 %v1058
        %v1060 = vperm.slane %v1054, %v1059
        %v1062 = vunpack.c.l.s4 1983009808
        %v1063 = vunpack.c.0.s8 %v1062
        %v1064 = vperm.slane %v1056, %v1063
        %v1065 = vrot.slane %v1013, 4
        %v1066 = vsel %vm597, %v1065, %v949
        %v1067 = vrot.slane %v949, 4
        %v1068 = vsel %vm597, %v1013, %v1067
        %v1070 = vunpack.c.l.s4 1983009808
        %v1071 = vunpack.c.0.s8 %v1070
        %v1072 = vperm.slane %v1066, %v1071
        %v1074 = vunpack.c.l.s4 1983009808
        %v1075 = vunpack.c.0.s8 %v1074
        %v1076 = vperm.slane %v1068, %v1075
        %v1077 = vrot.slane %v1048, 4
        %v1078 = vsel %vm597, %v1077, %v1036
        %v1079 = vrot.slane %v1036, 4
        %v1080 = vsel %vm597, %v1048, %v1079
        %v1082 = vunpack.c.l.s4 1934713408
        %v1083 = vunpack.c.0.s8 %v1082
        %v1084 = vperm.slane %v1078, %v1083
        %v1086 = vunpack.c.l.s4 1934713408
        %v1087 = vunpack.c.0.s8 %v1086
        %v1088 = vperm.slane %v1080, %v1087
        %v1089 = vrot.slane %v1052, 4
        %v1090 = vsel %vm597, %v1089, %v1040
        %v1091 = vrot.slane %v1040, 4
        %v1092 = vsel %vm597, %v1052, %v1091
        %v1094 = vunpack.c.l.s4 1934713408
        %v1095 = vunpack.c.0.s8 %v1094
        %v1096 = vperm.slane %v1090, %v1095
        %v1098 = vunpack.c.l.s4 1934713408
        %v1099 = vunpack.c.0.s8 %v1098
        %v1100 = vperm.slane %v1092, %v1099
        %v1101 = vrot.slane %v1072, 4
        %v1102 = vsel %vm597, %v1101, %v1060
        %v1103 = vrot.slane %v1060, 4
        %v1104 = vsel %vm597, %v1072, %v1103
        %v1106 = vunpack.c.l.s4 1934713408
        %v1107 = vunpack.c.0.s8 %v1106
        %v1108 = vperm.slane %v1102, %v1107
        %v1110 = vunpack.c.l.s4 1934713408
        %v1111 = vunpack.c.0.s8 %v1110
        %v1112 = vperm.slane %v1104, %v1111
        %v1113 = vrot.slane %v1076, 4
        %v1114 = vsel %vm597, %v1113, %v1064
        %v1115 = vrot.slane %v1064, 4
        %v1116 = vsel %vm597, %v1076, %v1115
        %v1118 = vunpack.c.l.s4 1934713408
        %v1119 = vunpack.c.0.s8 %v1118
        %v1120 = vperm.slane %v1114, %v1119
        %v1122 = vunpack.c.l.s4 1934713408
        %v1123 = vunpack.c.0.s8 %v1122
        %v1124 = vperm.slane %v1116, %v1123
        %v1125 = vrot.slane %v1108, 4
        %v1126 = vsel %vm597, %v1125, %v1084
        %v1127 = vrot.slane %v1084, 4
        %v1128 = vsel %vm597, %v1108, %v1127
        %v1129 = vrot.slane %v1112, 4
        %v1130 = vsel %vm597, %v1129, %v1088
        %v1131 = vrot.slane %v1088, 4
        %v1132 = vsel %vm597, %v1112, %v1131
        %v1133 = vrot.slane %v1120, 4
        %v1134 = vsel %vm597, %v1133, %v1096
        %v1135 = vrot.slane %v1096, 4
        %v1136 = vsel %vm597, %v1120, %v1135
        %v1137 = vrot.slane %v1124, 4
        %v1138 = vsel %vm597, %v1137, %v1100
        %v1139 = vrot.slane %v1100, 4
        %v1140 = vsel %vm597, %v1124, %v1139
        %vm1141 = vcmask 64512
        %v1143 = vsel %vm1141, %v624, 0
        %1145 = vmatpush.msra.mxu0 0.0
        %1146 = vmatpush.msra.mxu0 0.0
        %1147 = vmatpush.msra.mxu0 0.0
        %1148 = vmatpush.msra.mxu0 0.0
        %1149 = vmatpush.msra.mxu0 0.0
        %1150 = vmatpush.msra.mxu0 0.0
        %1151 = vmatpush.msra.mxu0 0.0
        %1152 = vmatpush.msra.mxu0 0.0
        %1153 = vmatpush.msra.mxu0 0.0
        %1154 = vmatpush.msra.mxu0 0.0
        %1155 = vmatpush.msra.mxu0 0.0
        %1156 = vmatpush.msra.mxu0 0.0
        %1157 = vmatpush.msra.mxu0 0.0
        %1158 = vmatpush.msra.mxu0 0.0
        %1159 = vmatpush.msra.mxu0 0.0
        %1160 = vmatpush.msra.mxu0 %v1126
        %1161 = vmatmul.f32.gmra.mxu0 %v1143
        %v1162 = vpop.f32.mrf.mxu0
        %v1163 = vadd.f32 0.0, %v1162
        %1164 = vdwg.mxu0
        %v1166 = vsel %vm1141, %v642, 0
        %1168 = vmatpush.msra.mxu0 0.0
        %1169 = vmatpush.msra.mxu0 0.0
        %1170 = vmatpush.msra.mxu0 0.0
        %1171 = vmatpush.msra.mxu0 0.0
        %1172 = vmatpush.msra.mxu0 0.0
        %1173 = vmatpush.msra.mxu0 0.0
        %1174 = vmatpush.msra.mxu0 0.0
        %1175 = vmatpush.msra.mxu0 0.0
        %1176 = vmatpush.msra.mxu0 0.0
        %1177 = vmatpush.msra.mxu0 0.0
        %1178 = vmatpush.msra.mxu0 0.0
        %1179 = vmatpush.msra.mxu0 0.0
        %1180 = vmatpush.msra.mxu0 0.0
        %1181 = vmatpush.msra.mxu0 0.0
        %1182 = vmatpush.msra.mxu0 0.0
        %1183 = vmatpush.msra.mxu0 %v1128
        %1184 = vmatmul.f32.gmra.mxu0 %v1166
        %v1185 = vpop.f32.mrf.mxu0
        %v1186 = vadd.f32 0.0, %v1185
        %1187 = vdwg.mxu0
        %v1189 = vsel %vm1141, %v628, 0
        %1191 = vmatpush.msra.mxu0 0.0
        %1192 = vmatpush.msra.mxu0 0.0
        %1193 = vmatpush.msra.mxu0 0.0
        %1194 = vmatpush.msra.mxu0 0.0
        %1195 = vmatpush.msra.mxu0 0.0
        %1196 = vmatpush.msra.mxu0 0.0
        %1197 = vmatpush.msra.mxu0 0.0
        %1198 = vmatpush.msra.mxu0 0.0
        %1199 = vmatpush.msra.mxu0 0.0
        %1200 = vmatpush.msra.mxu0 0.0
        %1201 = vmatpush.msra.mxu0 0.0
        %1202 = vmatpush.msra.mxu0 0.0
        %1203 = vmatpush.msra.mxu0 0.0
        %1204 = vmatpush.msra.mxu0 0.0
        %1205 = vmatpush.msra.mxu0 0.0
        %1206 = vmatpush.msra.mxu0 %v1130
        %1207 = vmatmul.f32.gmra.mxu0 %v1189
        %v1208 = vpop.f32.mrf.mxu0
        %v1209 = vadd.f32 0.0, %v1208
        %1210 = vdwg.mxu0
        %v1212 = vsel %vm1141, %v644, 0
        %1214 = vmatpush.msra.mxu0 0.0
        %1215 = vmatpush.msra.mxu0 0.0
        %1216 = vmatpush.msra.mxu0 0.0
        %1217 = vmatpush.msra.mxu0 0.0
        %1218 = vmatpush.msra.mxu0 0.0
        %1219 = vmatpush.msra.mxu0 0.0
        %1220 = vmatpush.msra.mxu0 0.0
        %1221 = vmatpush.msra.mxu0 0.0
        %1222 = vmatpush.msra.mxu0 0.0
        %1223 = vmatpush.msra.mxu0 0.0
        %1224 = vmatpush.msra.mxu0 0.0
        %1225 = vmatpush.msra.mxu0 0.0
        %1226 = vmatpush.msra.mxu0 0.0
        %1227 = vmatpush.msra.mxu0 0.0
        %1228 = vmatpush.msra.mxu0 0.0
        %1229 = vmatpush.msra.mxu0 %v1132
        %1230 = vmatmul.f32.gmra.mxu0 %v1212
        %v1231 = vpop.f32.mrf.mxu0
        %v1232 = vadd.f32 0.0, %v1231
        %1233 = vdwg.mxu0
        %v1235 = vsel %vm1141, %v636, 0
        %1237 = vmatpush.msra.mxu0 0.0
        %1238 = vmatpush.msra.mxu0 0.0
        %1239 = vmatpush.msra.mxu0 0.0
        %1240 = vmatpush.msra.mxu0 0.0
        %1241 = vmatpush.msra.mxu0 0.0
        %1242 = vmatpush.msra.mxu0 0.0
        %1243 = vmatpush.msra.mxu0 0.0
        %1244 = vmatpush.msra.mxu0 0.0
        %1245 = vmatpush.msra.mxu0 0.0
        %1246 = vmatpush.msra.mxu0 0.0
        %1247 = vmatpush.msra.mxu0 0.0
        %1248 = vmatpush.msra.mxu0 0.0
        %1249 = vmatpush.msra.mxu0 0.0
        %1250 = vmatpush.msra.mxu0 0.0
        %1251 = vmatpush.msra.mxu0 0.0
        %1252 = vmatpush.msra.mxu0 %v1134
        %1253 = vmatmul.f32.gmra.mxu0 %v1235
        %v1254 = vpop.f32.mrf.mxu0
        %v1255 = vadd.f32 0.0, %v1254
        %1256 = vdwg.mxu0
        %v1258 = vsel %vm1141, %v646, 0
        %1260 = vmatpush.msra.mxu0 0.0
        %1261 = vmatpush.msra.mxu0 0.0
        %1262 = vmatpush.msra.mxu0 0.0
        %1263 = vmatpush.msra.mxu0 0.0
        %1264 = vmatpush.msra.mxu0 0.0
        %1265 = vmatpush.msra.mxu0 0.0
        %1266 = vmatpush.msra.mxu0 0.0
        %1267 = vmatpush.msra.mxu0 0.0
        %1268 = vmatpush.msra.mxu0 0.0
        %1269 = vmatpush.msra.mxu0 0.0
        %1270 = vmatpush.msra.mxu0 0.0
        %1271 = vmatpush.msra.mxu0 0.0
        %1272 = vmatpush.msra.mxu0 0.0
        %1273 = vmatpush.msra.mxu0 0.0
        %1274 = vmatpush.msra.mxu0 0.0
        %1275 = vmatpush.msra.mxu0 %v1136
        %1276 = vmatmul.f32.gmra.mxu0 %v1258
        %v1277 = vpop.f32.mrf.mxu0
        %v1278 = vadd.f32 0.0, %v1277
        %1279 = vdwg.mxu0
        %v1281 = vsel %vm1141, %v640, 0
        %1283 = vmatpush.msra.mxu0 0.0
        %1284 = vmatpush.msra.mxu0 0.0
        %1285 = vmatpush.msra.mxu0 0.0
        %1286 = vmatpush.msra.mxu0 0.0
        %1287 = vmatpush.msra.mxu0 0.0
        %1288 = vmatpush.msra.mxu0 0.0
        %1289 = vmatpush.msra.mxu0 0.0
        %1290 = vmatpush.msra.mxu0 0.0
        %1291 = vmatpush.msra.mxu0 0.0
        %1292 = vmatpush.msra.mxu0 0.0
        %1293 = vmatpush.msra.mxu0 0.0
        %1294 = vmatpush.msra.mxu0 0.0
        %1295 = vmatpush.msra.mxu0 0.0
        %1296 = vmatpush.msra.mxu0 0.0
        %1297 = vmatpush.msra.mxu0 0.0
        %1298 = vmatpush.msra.mxu0 %v1138
        %1299 = vmatmul.f32.gmra.mxu0 %v1281
        %v1300 = vpop.f32.mrf.mxu0
        %v1301 = vadd.f32 0.0, %v1300
        %1302 = vdwg.mxu0
        %v1304 = vsel %vm1141, %v648, 0
        %1306 = vmatpush.msra.mxu0 0.0
        %1307 = vmatpush.msra.mxu0 0.0
        %1308 = vmatpush.msra.mxu0 0.0
        %1309 = vmatpush.msra.mxu0 0.0
        %1310 = vmatpush.msra.mxu0 0.0
        %1311 = vmatpush.msra.mxu0 0.0
        %1312 = vmatpush.msra.mxu0 0.0
        %1313 = vmatpush.msra.mxu0 0.0
        %1314 = vmatpush.msra.mxu0 0.0
        %1315 = vmatpush.msra.mxu0 0.0
        %1316 = vmatpush.msra.mxu0 0.0
        %1317 = vmatpush.msra.mxu0 0.0
        %1318 = vmatpush.msra.mxu0 0.0
        %1319 = vmatpush.msra.mxu0 0.0
        %1320 = vmatpush.msra.mxu0 0.0
        %1321 = vmatpush.msra.mxu0 %v1140
        %1322 = vmatmul.f32.gmra.mxu0 %v1304
        %v1323 = vpop.f32.mrf.mxu0
        %v1324 = vadd.f32 0.0, %v1323
        %1325 = vdwg.mxu0
        %vm1326 = vcmask 9216
        %v1327 = vsel %vm1326, %v1163, -inf
        %1328 = vmax.xlane.f32.xlu0 %v1327
        %v1329 = vpop.xlane.xlu0 %1328
        %v1330 = vsel %vm1326, %v1186, -inf
        %1331 = vmax.xlane.f32.xlu0 %v1330
        %v1332 = vpop.xlane.xlu0 %1331
        %v1333 = vsel %vm1326, %v1209, -inf
        %1334 = vmax.xlane.f32.xlu0 %v1333
        %v1335 = vpop.xlane.xlu0 %1334
        %v1336 = vsel %vm1326, %v1232, -inf
        %1337 = vmax.xlane.f32.xlu0 %v1336
        %v1338 = vpop.xlane.xlu0 %1337
        %v1339 = vsel %vm1326, %v1255, -inf
        %1340 = vmax.xlane.f32.xlu0 %v1339
        %v1341 = vpop.xlane.xlu0 %1340
        %v1342 = vsel %vm1326, %v1278, -inf
        %1343 = vmax.xlane.f32.xlu0 %v1342
        %v1344 = vpop.xlane.xlu0 %1343
        %v1345 = vsel %vm1326, %v1301, -inf
        %1346 = vmax.xlane.f32.xlu0 %v1345
        %v1347 = vpop.xlane.xlu0 %1346
        %v1348 = vsel %vm1326, %v1324, -inf
        %1349 = vmax.xlane.f32.xlu0 %v1348
        %v1350 = vpop.xlane.xlu0 %1349
        %v1351 = vsub.f32 %v1163, %v1329
        %v1352 = vsub.f32 %v1186, %v1332
        %v1353 = vsub.f32 %v1209, %v1335
        %v1354 = vsub.f32 %v1232, %v1338
        %v1355 = vsub.f32 %v1255, %v1341
        %v1356 = vsub.f32 %v1278, %v1344
        %v1357 = vsub.f32 %v1301, %v1347
        %v1358 = vsub.f32 %v1324, %v1350
        %v1359 = vmul.f32 %v1351, 1.442695
        %v1360 = vpow.pop %v1359
        %v1361 = vmul.f32 %v1352, 1.442695
        %v1362 = vpow.pop %v1361
        %v1363 = vmul.f32 %v1353, 1.442695
        %v1364 = vpow.pop %v1363
        %v1365 = vmul.f32 %v1354, 1.442695
        %v1366 = vpow.pop %v1365
        %v1367 = vmul.f32 %v1355, 1.442695
        %v1368 = vpow.pop %v1367
        %v1369 = vmul.f32 %v1356, 1.442695
        %v1370 = vpow.pop %v1369
        %v1371 = vmul.f32 %v1357, 1.442695
        %v1372 = vpow.pop %v1371
        %v1373 = vmul.f32 %v1358, 1.442695
        %v1374 = vpow.pop %v1373
        %v1375 = vsel %vm1326, %v1360, 0.0
        %1376 = vadd.xlane.f32.xlu0 %v1375
        %v1377 = vpop.xlane.xlu0 %1376
        %v1378 = vsel %vm1326, %v1362, 0.0
        %1379 = vadd.xlane.f32.xlu0 %v1378
        %v1380 = vpop.xlane.xlu0 %1379
        %v1381 = vsel %vm1326, %v1364, 0.0
        %1382 = vadd.xlane.f32.xlu0 %v1381
        %v1383 = vpop.xlane.xlu0 %1382
        %v1384 = vsel %vm1326, %v1366, 0.0
        %1385 = vadd.xlane.f32.xlu0 %v1384
        %v1386 = vpop.xlane.xlu0 %1385
        %v1387 = vsel %vm1326, %v1368, 0.0
        %1388 = vadd.xlane.f32.xlu0 %v1387
        %v1389 = vpop.xlane.xlu0 %1388
        %v1390 = vsel %vm1326, %v1370, 0.0
        %1391 = vadd.xlane.f32.xlu0 %v1390
        %v1392 = vpop.xlane.xlu0 %1391
        %v1393 = vsel %vm1326, %v1372, 0.0
        %1394 = vadd.xlane.f32.xlu0 %v1393
        %v1395 = vpop.xlane.xlu0 %1394
        %v1396 = vsel %vm1326, %v1374, 0.0
        %1397 = vadd.xlane.f32.xlu0 %v1396
        %v1398 = vpop.xlane.xlu0 %1397
        %v1399 = vrcp.pop %v1377
        %v1400 = vmul.f32 %v1377, %v1399
        %v1401 = vsub.f32 1.0, %v1400
        %v1402 = vmul.f32 %v1399, %v1401
        %v1403 = vadd.f32 %v1399, %v1402
        %vm1404 = vweird.f32 %v1377
        %vm1405 = vweird.f32 %v1399
        %vm1406 = vmor %vm1404, %vm1405
        %v1407 = vsel %vm1406, %v1399, %v1403
        %v1408 = vand.u32 2147483647, %v1377
        %vm1409 = vcmp.eq.f32.partialorder %v1408, 8.507059e+37
        %v1410 = vand.u32 %v1377, 2147483648
        %v1411 = vor.u32 1.1754944e-38, %v1410
        %v1412 = vsel %vm1409, %v1411, %v1407
        %v1413 = vmul.f32 %v1360, %v1412
        %v1414 = vrcp.pop %v1380
        %v1415 = vmul.f32 %v1380, %v1414
        %v1416 = vsub.f32 1.0, %v1415
        %v1417 = vmul.f32 %v1414, %v1416
        %v1418 = vadd.f32 %v1414, %v1417
        %vm1419 = vweird.f32 %v1380
        %vm1420 = vweird.f32 %v1414
        %vm1421 = vmor %vm1419, %vm1420
        %v1422 = vsel %vm1421, %v1414, %v1418
        %v1423 = vand.u32 2147483647, %v1380
        %vm1424 = vcmp.eq.f32.partialorder %v1423, 8.507059e+37
        %v1425 = vand.u32 %v1380, 2147483648
        %v1426 = vor.u32 1.1754944e-38, %v1425
        %v1427 = vsel %vm1424, %v1426, %v1422
        %v1428 = vmul.f32 %v1362, %v1427
        %v1429 = vrcp.pop %v1383
        %v1430 = vmul.f32 %v1383, %v1429
        %v1431 = vsub.f32 1.0, %v1430
        %v1432 = vmul.f32 %v1429, %v1431
        %v1433 = vadd.f32 %v1429, %v1432
        %vm1434 = vweird.f32 %v1383
        %vm1435 = vweird.f32 %v1429
        %vm1436 = vmor %vm1434, %vm1435
        %v1437 = vsel %vm1436, %v1429, %v1433
        %v1438 = vand.u32 2147483647, %v1383
        %vm1439 = vcmp.eq.f32.partialorder %v1438, 8.507059e+37
        %v1440 = vand.u32 %v1383, 2147483648
        %v1441 = vor.u32 1.1754944e-38, %v1440
        %v1442 = vsel %vm1439, %v1441, %v1437
        %v1443 = vmul.f32 %v1364, %v1442
        %v1444 = vrcp.pop %v1386
        %v1445 = vmul.f32 %v1386, %v1444
        %v1446 = vsub.f32 1.0, %v1445
        %v1447 = vmul.f32 %v1444, %v1446
        %v1448 = vadd.f32 %v1444, %v1447
        %vm1449 = vweird.f32 %v1386
        %vm1450 = vweird.f32 %v1444
        %vm1451 = vmor %vm1449, %vm1450
        %v1452 = vsel %vm1451, %v1444, %v1448
        %v1453 = vand.u32 2147483647, %v1386
        %vm1454 = vcmp.eq.f32.partialorder %v1453, 8.507059e+37
        %v1455 = vand.u32 %v1386, 2147483648
        %v1456 = vor.u32 1.1754944e-38, %v1455
        %v1457 = vsel %vm1454, %v1456, %v1452
        %v1458 = vmul.f32 %v1366, %v1457
        %v1459 = vrcp.pop %v1389
        %v1460 = vmul.f32 %v1389, %v1459
        %v1461 = vsub.f32 1.0, %v1460
        %v1462 = vmul.f32 %v1459, %v1461
        %v1463 = vadd.f32 %v1459, %v1462
        %vm1464 = vweird.f32 %v1389
        %vm1465 = vweird.f32 %v1459
        %vm1466 = vmor %vm1464, %vm1465
        %v1467 = vsel %vm1466, %v1459, %v1463
        %v1468 = vand.u32 2147483647, %v1389
        %vm1469 = vcmp.eq.f32.partialorder %v1468, 8.507059e+37
        %v1470 = vand.u32 %v1389, 2147483648
        %v1471 = vor.u32 1.1754944e-38, %v1470
        %v1472 = vsel %vm1469, %v1471, %v1467
        %v1473 = vmul.f32 %v1368, %v1472
        %v1474 = vrcp.pop %v1392
        %v1475 = vmul.f32 %v1392, %v1474
        %v1476 = vsub.f32 1.0, %v1475
        %v1477 = vmul.f32 %v1474, %v1476
        %v1478 = vadd.f32 %v1474, %v1477
        %vm1479 = vweird.f32 %v1392
        %vm1480 = vweird.f32 %v1474
        %vm1481 = vmor %vm1479, %vm1480
        %v1482 = vsel %vm1481, %v1474, %v1478
        %v1483 = vand.u32 2147483647, %v1392
        %vm1484 = vcmp.eq.f32.partialorder %v1483, 8.507059e+37
        %v1485 = vand.u32 %v1392, 2147483648
        %v1486 = vor.u32 1.1754944e-38, %v1485
        %v1487 = vsel %vm1484, %v1486, %v1482
        %v1488 = vmul.f32 %v1370, %v1487
        %v1489 = vrcp.pop %v1395
        %v1490 = vmul.f32 %v1395, %v1489
        %v1491 = vsub.f32 1.0, %v1490
        %v1492 = vmul.f32 %v1489, %v1491
        %v1493 = vadd.f32 %v1489, %v1492
        %vm1494 = vweird.f32 %v1395
        %vm1495 = vweird.f32 %v1489
        %vm1496 = vmor %vm1494, %vm1495
        %v1497 = vsel %vm1496, %v1489, %v1493
        %v1498 = vand.u32 2147483647, %v1395
        %vm1499 = vcmp.eq.f32.partialorder %v1498, 8.507059e+37
        %v1500 = vand.u32 %v1395, 2147483648
        %v1501 = vor.u32 1.1754944e-38, %v1500
        %v1502 = vsel %vm1499, %v1501, %v1497
        %v1503 = vmul.f32 %v1372, %v1502
        %v1504 = vrcp.pop %v1398
        %v1505 = vmul.f32 %v1398, %v1504
        %v1506 = vsub.f32 1.0, %v1505
        %v1507 = vmul.f32 %v1504, %v1506
        %v1508 = vadd.f32 %v1504, %v1507
        %vm1509 = vweird.f32 %v1398
        %vm1510 = vweird.f32 %v1504
        %vm1511 = vmor %vm1509, %vm1510
        %v1512 = vsel %vm1511, %v1504, %v1508
        %v1513 = vand.u32 2147483647, %v1398
        %vm1514 = vcmp.eq.f32.partialorder %v1513, 8.507059e+37
        %v1515 = vand.u32 %v1398, 2147483648
        %v1516 = vor.u32 1.1754944e-38, %v1515
        %v1517 = vsel %vm1514, %v1516, %v1512
        %v1518 = vmul.f32 %v1374, %v1517
        %1519 = vrot.lane.b32.xlu0 %v588, 64
        %v1520 = vpop.permute.xlu0 %1519
        %1521 = vrot.lane.b32.xlu0 %v590, 64
        %v1522 = vpop.permute.xlu0 %1521
        %v1525 = vrot.slane %v1520, 4
        %v1526 = vsel %vm597, 0.0, %v1525
        %v1528 = vunpack.c.l.s4 1983009808
        %v1529 = vunpack.c.0.s8 %v1528
        %v1530 = vperm.slane %v1520, %v1529
        %v1532 = vunpack.c.l.s4 1983009808
        %v1533 = vunpack.c.0.s8 %v1532
        %v1534 = vperm.slane %v1526, %v1533
        %v1535 = vrot.slane %v1522, 4
        %v1536 = vsel %vm597, 0.0, %v1535
        %v1538 = vunpack.c.l.s4 1983009808
        %v1539 = vunpack.c.0.s8 %v1538
        %v1540 = vperm.slane %v1522, %v1539
        %v1542 = vunpack.c.l.s4 1983009808
        %v1543 = vunpack.c.0.s8 %v1542
        %v1544 = vperm.slane %v1536, %v1543
        %v1545 = vrot.slane %v1540, 4
        %v1546 = vsel %vm597, %v1545, %v1530
        %v1547 = vrot.slane %v1530, 4
        %v1548 = vsel %vm597, %v1540, %v1547
        %v1550 = vunpack.c.l.s4 1934713408
        %v1551 = vunpack.c.0.s8 %v1550
        %v1552 = vperm.slane %v1546, %v1551
        %v1554 = vunpack.c.l.s4 1934713408
        %v1555 = vunpack.c.0.s8 %v1554
        %v1556 = vperm.slane %v1548, %v1555
        %v1557 = vrot.slane %v1544, 4
        %v1558 = vsel %vm597, %v1557, %v1534
        %v1559 = vrot.slane %v1534, 4
        %v1560 = vsel %vm597, %v1544, %v1559
        %v1562 = vunpack.c.l.s4 1934713408
        %v1563 = vunpack.c.0.s8 %v1562
        %v1564 = vperm.slane %v1558, %v1563
        %v1566 = vunpack.c.l.s4 1934713408
        %v1567 = vunpack.c.0.s8 %v1566
        %v1568 = vperm.slane %v1560, %v1567
        %v1569 = vrot.slane %v1552, 4
        %v1570 = vsel %vm597, 0.0, %v1569
        %v1571 = vrot.slane %v1556, 4
        %v1572 = vsel %vm597, 0.0, %v1571
        %v1573 = vrot.slane %v1564, 4
        %v1574 = vsel %vm597, 0.0, %v1573
        %v1575 = vrot.slane %v1568, 4
        %v1576 = vsel %vm597, 0.0, %v1575
        %vm1577 = vcmask 15360
        %v1579 = vsel %vm1577, %v1413, 0
        %vm1581 = vcmask 1041408
        %v1583 = vsel %vm1581, %v1552, 0
        %1585 = vmatpush.msra.mxu0 0.0
        %1586 = vmatpush.msra.mxu0 0.0
        %1587 = vmatpush.msra.mxu0 0.0
        %1588 = vmatpush.msra.mxu0 0.0
        %1589 = vmatpush.msra.mxu0 0.0
        %1590 = vmatpush.msra.mxu0 0.0
        %1591 = vmatpush.msra.mxu0 0.0
        %1592 = vmatpush.msra.mxu0 0.0
        %1593 = vmatpush.msra.mxu0 0.0
        %1594 = vmatpush.msra.mxu0 0.0
        %1595 = vmatpush.msra.mxu0 0.0
        %1596 = vmatpush.msra.mxu0 0.0
        %1597 = vmatpush.msra.mxu0 0.0
        %1598 = vmatpush.msra.mxu0 0.0
        %1599 = vmatpush.msra.mxu0 0.0
        %1600 = vmatpush.msra.mxu0 %v1583
        %1601 = vmatmul.f32.gmra.mxu0 %v1579
        %v1602 = vpop.f32.mrf.mxu0
        %v1603 = vadd.f32 0.0, %v1602
        %1604 = vdwg.mxu0
        %v1606 = vsel %vm1577, %v1428, 0
        %v1609 = vsel %vm1581, %v1570, 0
        %1611 = vmatpush.msra.mxu0 0.0
        %1612 = vmatpush.msra.mxu0 0.0
        %1613 = vmatpush.msra.mxu0 0.0
        %1614 = vmatpush.msra.mxu0 0.0
        %1615 = vmatpush.msra.mxu0 0.0
        %1616 = vmatpush.msra.mxu0 0.0
        %1617 = vmatpush.msra.mxu0 0.0
        %1618 = vmatpush.msra.mxu0 0.0
        %1619 = vmatpush.msra.mxu0 0.0
        %1620 = vmatpush.msra.mxu0 0.0
        %1621 = vmatpush.msra.mxu0 0.0
        %1622 = vmatpush.msra.mxu0 0.0
        %1623 = vmatpush.msra.mxu0 0.0
        %1624 = vmatpush.msra.mxu0 0.0
        %1625 = vmatpush.msra.mxu0 0.0
        %1626 = vmatpush.msra.mxu0 %v1609
        %1627 = vmatmul.f32.gmra.mxu0 %v1606
        %v1628 = vpop.f32.mrf.mxu0
        %v1629 = vadd.f32 0.0, %v1628
        %1630 = vdwg.mxu0
        %v1632 = vsel %vm1577, %v1443, 0
        %v1635 = vsel %vm1581, %v1556, 0
        %1637 = vmatpush.msra.mxu0 0.0
        %1638 = vmatpush.msra.mxu0 0.0
        %1639 = vmatpush.msra.mxu0 0.0
        %1640 = vmatpush.msra.mxu0 0.0
        %1641 = vmatpush.msra.mxu0 0.0
        %1642 = vmatpush.msra.mxu0 0.0
        %1643 = vmatpush.msra.mxu0 0.0
        %1644 = vmatpush.msra.mxu0 0.0
        %1645 = vmatpush.msra.mxu0 0.0
        %1646 = vmatpush.msra.mxu0 0.0
        %1647 = vmatpush.msra.mxu0 0.0
        %1648 = vmatpush.msra.mxu0 0.0
        %1649 = vmatpush.msra.mxu0 0.0
        %1650 = vmatpush.msra.mxu0 0.0
        %1651 = vmatpush.msra.mxu0 0.0
        %1652 = vmatpush.msra.mxu0 %v1635
        %1653 = vmatmul.f32.gmra.mxu0 %v1632
        %v1654 = vpop.f32.mrf.mxu0
        %v1655 = vadd.f32 0.0, %v1654
        %1656 = vdwg.mxu0
        %v1658 = vsel %vm1577, %v1458, 0
        %v1661 = vsel %vm1581, %v1572, 0
        %1663 = vmatpush.msra.mxu0 0.0
        %1664 = vmatpush.msra.mxu0 0.0
        %1665 = vmatpush.msra.mxu0 0.0
        %1666 = vmatpush.msra.mxu0 0.0
        %1667 = vmatpush.msra.mxu0 0.0
        %1668 = vmatpush.msra.mxu0 0.0
        %1669 = vmatpush.msra.mxu0 0.0
        %1670 = vmatpush.msra.mxu0 0.0
        %1671 = vmatpush.msra.mxu0 0.0
        %1672 = vmatpush.msra.mxu0 0.0
        %1673 = vmatpush.msra.mxu0 0.0
        %1674 = vmatpush.msra.mxu0 0.0
        %1675 = vmatpush.msra.mxu0 0.0
        %1676 = vmatpush.msra.mxu0 0.0
        %1677 = vmatpush.msra.mxu0 0.0
        %1678 = vmatpush.msra.mxu0 %v1661
        %1679 = vmatmul.f32.gmra.mxu0 %v1658
        %v1680 = vpop.f32.mrf.mxu0
        %v1681 = vadd.f32 0.0, %v1680
        %1682 = vdwg.mxu0
        %v1684 = vsel %vm1577, %v1473, 0
        %v1687 = vsel %vm1581, %v1564, 0
        %1689 = vmatpush.msra.mxu0 0.0
        %1690 = vmatpush.msra.mxu0 0.0
        %1691 = vmatpush.msra.mxu0 0.0
        %1692 = vmatpush.msra.mxu0 0.0
        %1693 = vmatpush.msra.mxu0 0.0
        %1694 = vmatpush.msra.mxu0 0.0
        %1695 = vmatpush.msra.mxu0 0.0
        %1696 = vmatpush.msra.mxu0 0.0
        %1697 = vmatpush.msra.mxu0 0.0
        %1698 = vmatpush.msra.mxu0 0.0
        %1699 = vmatpush.msra.mxu0 0.0
        %1700 = vmatpush.msra.mxu0 0.0
        %1701 = vmatpush.msra.mxu0 0.0
        %1702 = vmatpush.msra.mxu0 0.0
        %1703 = vmatpush.msra.mxu0 0.0
        %1704 = vmatpush.msra.mxu0 %v1687
        %1705 = vmatmul.f32.gmra.mxu0 %v1684
        %v1706 = vpop.f32.mrf.mxu0
        %v1707 = vadd.f32 0.0, %v1706
        %1708 = vdwg.mxu0
        %v1710 = vsel %vm1577, %v1488, 0
        %v1713 = vsel %vm1581, %v1574, 0
        %1715 = vmatpush.msra.mxu0 0.0
        %1716 = vmatpush.msra.mxu0 0.0
        %1717 = vmatpush.msra.mxu0 0.0
        %1718 = vmatpush.msra.mxu0 0.0
        %1719 = vmatpush.msra.mxu0 0.0
        %1720 = vmatpush.msra.mxu0 0.0
        %1721 = vmatpush.msra.mxu0 0.0
        %1722 = vmatpush.msra.mxu0 0.0
        %1723 = vmatpush.msra.mxu0 0.0
        %1724 = vmatpush.msra.mxu0 0.0
        %1725 = vmatpush.msra.mxu0 0.0
        %1726 = vmatpush.msra.mxu0 0.0
        %1727 = vmatpush.msra.mxu0 0.0
        %1728 = vmatpush.msra.mxu0 0.0
        %1729 = vmatpush.msra.mxu0 0.0
        %1730 = vmatpush.msra.mxu0 %v1713
        %1731 = vmatmul.f32.gmra.mxu0 %v1710
        %v1732 = vpop.f32.mrf.mxu0
        %v1733 = vadd.f32 0.0, %v1732
        %1734 = vdwg.mxu0
        %v1736 = vsel %vm1577, %v1503, 0
        %v1739 = vsel %vm1581, %v1568, 0
        %1741 = vmatpush.msra.mxu0 0.0
        %1742 = vmatpush.msra.mxu0 0.0
        %1743 = vmatpush.msra.mxu0 0.0
        %1744 = vmatpush.msra.mxu0 0.0
        %1745 = vmatpush.msra.mxu0 0.0
        %1746 = vmatpush.msra.mxu0 0.0
        %1747 = vmatpush.msra.mxu0 0.0
        %1748 = vmatpush.msra.mxu0 0.0
        %1749 = vmatpush.msra.mxu0 0.0
        %1750 = vmatpush.msra.mxu0 0.0
        %1751 = vmatpush.msra.mxu0 0.0
        %1752 = vmatpush.msra.mxu0 0.0
        %1753 = vmatpush.msra.mxu0 0.0
        %1754 = vmatpush.msra.mxu0 0.0
        %1755 = vmatpush.msra.mxu0 0.0
        %1756 = vmatpush.msra.mxu0 %v1739
        %1757 = vmatmul.f32.gmra.mxu0 %v1736
        %v1758 = vpop.f32.mrf.mxu0
        %v1759 = vadd.f32 0.0, %v1758
        %1760 = vdwg.mxu0
        %v1762 = vsel %vm1577, %v1518, 0
        %v1765 = vsel %vm1581, %v1576, 0
        %1767 = vmatpush.msra.mxu0 0.0
        %1768 = vmatpush.msra.mxu0 0.0
        %1769 = vmatpush.msra.mxu0 0.0
        %1770 = vmatpush.msra.mxu0 0.0
        %1771 = vmatpush.msra.mxu0 0.0
        %1772 = vmatpush.msra.mxu0 0.0
        %1773 = vmatpush.msra.mxu0 0.0
        %1774 = vmatpush.msra.mxu0 0.0
        %1775 = vmatpush.msra.mxu0 0.0
        %1776 = vmatpush.msra.mxu0 0.0
        %1777 = vmatpush.msra.mxu0 0.0
        %1778 = vmatpush.msra.mxu0 0.0
        %1779 = vmatpush.msra.mxu0 0.0
        %1780 = vmatpush.msra.mxu0 0.0
        %1781 = vmatpush.msra.mxu0 0.0
        %1782 = vmatpush.msra.mxu0 %v1765
        %1783 = vmatmul.f32.gmra.mxu0 %v1762
        %v1784 = vpop.f32.mrf.mxu0
        %v1785 = vadd.f32 0.0, %v1784
        %1786 = vdwg.mxu0
        %v1787 = vpack.c.bf16 %v1603, %v1603
        %v1788 = vpack.c.bf16 %v1629, %v1629
        %v1789 = vpack.c.bf16 %v1655, %v1655
        %v1790 = vpack.c.bf16 %v1681, %v1681
        %v1791 = vpack.c.bf16 %v1707, %v1707
        %v1792 = vpack.c.bf16 %v1733, %v1733
        %v1793 = vpack.c.bf16 %v1759, %v1759
        %v1794 = vpack.c.bf16 %v1785, %v1785
        %1795 = vrot.lane.b32.xlu0 %v588, 120
        %v1796 = vpop.permute.xlu0 %1795
        %1797 = vrot.lane.b32.xlu0 %v590, 120
        %v1798 = vpop.permute.xlu0 %1797
        %v1801 = vrot.slane %v1796, 4
        %v1802 = vsel %vm597, 0.0, %v1801
        %v1804 = vunpack.c.l.s4 1983009808
        %v1805 = vunpack.c.0.s8 %v1804
        %v1806 = vperm.slane %v1796, %v1805
        %v1808 = vunpack.c.l.s4 1983009808
        %v1809 = vunpack.c.0.s8 %v1808
        %v1810 = vperm.slane %v1802, %v1809
        %v1811 = vrot.slane %v1798, 4
        %v1812 = vsel %vm597, 0.0, %v1811
        %v1814 = vunpack.c.l.s4 1983009808
        %v1815 = vunpack.c.0.s8 %v1814
        %v1816 = vperm.slane %v1798, %v1815
        %v1818 = vunpack.c.l.s4 1983009808
        %v1819 = vunpack.c.0.s8 %v1818
        %v1820 = vperm.slane %v1812, %v1819
        %v1821 = vrot.slane %v1816, 4
        %v1822 = vsel %vm597, %v1821, %v1806
        %v1823 = vrot.slane %v1806, 4
        %v1824 = vsel %vm597, %v1816, %v1823
        %v1826 = vunpack.c.l.s4 1934713408
        %v1827 = vunpack.c.0.s8 %v1826
        %v1828 = vperm.slane %v1822, %v1827
        %v1830 = vunpack.c.l.s4 1934713408
        %v1831 = vunpack.c.0.s8 %v1830
        %v1832 = vperm.slane %v1824, %v1831
        %v1833 = vrot.slane %v1820, 4
        %v1834 = vsel %vm597, %v1833, %v1810
        %v1835 = vrot.slane %v1810, 4
        %v1836 = vsel %vm597, %v1820, %v1835
        %v1838 = vunpack.c.l.s4 1934713408
        %v1839 = vunpack.c.0.s8 %v1838
        %v1840 = vperm.slane %v1834, %v1839
        %v1842 = vunpack.c.l.s4 1934713408
        %v1843 = vunpack.c.0.s8 %v1842
        %v1844 = vperm.slane %v1836, %v1843
        %v1845 = vrot.slane %v1828, 4
        %v1846 = vsel %vm597, 0.0, %v1845
        %v1847 = vrot.slane %v1832, 4
        %v1848 = vsel %vm597, 0.0, %v1847
        %v1849 = vrot.slane %v1840, 4
        %v1850 = vsel %vm597, 0.0, %v1849
        %v1851 = vrot.slane %v1844, 4
        %v1852 = vsel %vm597, 0.0, %v1851
        %1853 = vrot.lane.b32.xlu0 %v588, 88
        %v1854 = vpop.permute.xlu0 %1853
        %1855 = vrot.lane.b32.xlu0 %v590, 88
        %v1856 = vpop.permute.xlu0 %1855
        %1859 = vxpose.xlu0.b32.start [1/16] %v1854, 128
        %1860 = vxpose.xlu0.b32.cont [2/16] 0.0, 128
        %1861 = vxpose.xlu0.b32.cont [3/16] 0.0, 128
        %1862 = vxpose.xlu0.b32.cont [4/16] 0.0, 128
        %1863 = vxpose.xlu0.b32.cont [5/16] 0.0, 128
        %1864 = vxpose.xlu0.b32.cont [6/16] 0.0, 128
        %1865 = vxpose.xlu0.b32.cont [7/16] 0.0, 128
        %1866 = vxpose.xlu0.b32.cont [8/16] 0.0, 128
        %1867 = vxpose.xlu0.b32.cont [9/16] 0.0, 128
        %1868 = vxpose.xlu0.b32.cont [10/16] 0.0, 128
        %1869 = vxpose.xlu0.b32.cont [11/16] 0.0, 128
        %1870 = vxpose.xlu0.b32.cont [12/16] 0.0, 128
        %1871 = vxpose.xlu0.b32.cont [13/16] 0.0, 128
        %1872 = vxpose.xlu0.b32.cont [14/16] 0.0, 128
        %1873 = vxpose.xlu0.b32.cont [15/16] 0.0, 128
        %1874 = vxpose.xlu0.b32.end [16/16] 0.0, 128
        %v1875 = vpop.trf.xlu0
        %v1876 = vpop.trf.xlu0
        %v1877 = vpop.trf.xlu0
        %v1878 = vpop.trf.xlu0
        %v1879 = vpop.trf.xlu0
        %v1880 = vpop.trf.xlu0
        %v1881 = vpop.trf.xlu0
        %v1882 = vpop.trf.xlu0
        %v1883 = vpop.trf.xlu0
        %v1884 = vpop.trf.xlu0
        %v1885 = vpop.trf.xlu0
        %v1886 = vpop.trf.xlu0
        %v1887 = vpop.trf.xlu0
        %v1888 = vpop.trf.xlu0
        %v1889 = vpop.trf.xlu0
        %v1890 = vpop.trf.xlu0
        %1891 = vxpose.xlu0.b32.start [1/16] %v1856, 128
        %1892 = vxpose.xlu0.b32.cont [2/16] 0.0, 128
        %1893 = vxpose.xlu0.b32.cont [3/16] 0.0, 128
        %1894 = vxpose.xlu0.b32.cont [4/16] 0.0, 128
        %1895 = vxpose.xlu0.b32.cont [5/16] 0.0, 128
        %1896 = vxpose.xlu0.b32.cont [6/16] 0.0, 128
        %1897 = vxpose.xlu0.b32.cont [7/16] 0.0, 128
        %1898 = vxpose.xlu0.b32.cont [8/16] 0.0, 128
        %1899 = vxpose.xlu0.b32.cont [9/16] 0.0, 128
        %1900 = vxpose.xlu0.b32.cont [10/16] 0.0, 128
        %1901 = vxpose.xlu0.b32.cont [11/16] 0.0, 128
        %1902 = vxpose.xlu0.b32.cont [12/16] 0.0, 128
        %1903 = vxpose.xlu0.b32.cont [13/16] 0.0, 128
        %1904 = vxpose.xlu0.b32.cont [14/16] 0.0, 128
        %1905 = vxpose.xlu0.b32.cont [15/16] 0.0, 128
        %1906 = vxpose.xlu0.b32.end [16/16] 0.0, 128
        %v1907 = vpop.trf.xlu0
        %v1908 = vpop.trf.xlu0
        %v1909 = vpop.trf.xlu0
        %v1910 = vpop.trf.xlu0
        %v1911 = vpop.trf.xlu0
        %v1912 = vpop.trf.xlu0
        %v1913 = vpop.trf.xlu0
        %v1914 = vpop.trf.xlu0
        %v1915 = vpop.trf.xlu0
        %v1916 = vpop.trf.xlu0
        %v1917 = vpop.trf.xlu0
        %v1918 = vpop.trf.xlu0
        %v1919 = vpop.trf.xlu0
        %v1920 = vpop.trf.xlu0
        %v1921 = vpop.trf.xlu0
        %v1922 = vpop.trf.xlu0
        %v1923 = vrot.slane %v1875, 4
        %v1924 = vsel %vm597, 0.0, %v1923
        %v1926 = vunpack.c.l.s4 1983009808
        %v1927 = vunpack.c.0.s8 %v1926
        %v1928 = vperm.slane %v1875, %v1927
        %v1930 = vunpack.c.l.s4 1983009808
        %v1931 = vunpack.c.0.s8 %v1930
        %v1932 = vperm.slane %v1924, %v1931
        %v1933 = vrot.slane %v1907, 4
        %v1934 = vsel %vm597, 0.0, %v1933
        %v1936 = vunpack.c.l.s4 1983009808
        %v1937 = vunpack.c.0.s8 %v1936
        %v1938 = vperm.slane %v1907, %v1937
        %v1940 = vunpack.c.l.s4 1983009808
        %v1941 = vunpack.c.0.s8 %v1940
        %v1942 = vperm.slane %v1934, %v1941
        %v1943 = vrot.slane %v1938, 4
        %v1944 = vsel %vm597, %v1943, %v1928
        %v1945 = vrot.slane %v1928, 4
        %v1946 = vsel %vm597, %v1938, %v1945
        %v1948 = vunpack.c.l.s4 1934713408
        %v1949 = vunpack.c.0.s8 %v1948
        %v1950 = vperm.slane %v1944, %v1949
        %v1952 = vunpack.c.l.s4 1934713408
        %v1953 = vunpack.c.0.s8 %v1952
        %v1954 = vperm.slane %v1946, %v1953
        %v1955 = vrot.slane %v1942, 4
        %v1956 = vsel %vm597, %v1955, %v1932
        %v1957 = vrot.slane %v1932, 4
        %v1958 = vsel %vm597, %v1942, %v1957
        %v1960 = vunpack.c.l.s4 1934713408
        %v1961 = vunpack.c.0.s8 %v1960
        %v1962 = vperm.slane %v1956, %v1961
        %v1964 = vunpack.c.l.s4 1934713408
        %v1965 = vunpack.c.0.s8 %v1964
        %v1966 = vperm.slane %v1958, %v1965
        %v1967 = vrot.slane %v1950, 4
        %v1968 = vsel %vm597, 0.0, %v1967
        %v1969 = vrot.slane %v1954, 4
        %v1970 = vsel %vm597, 0.0, %v1969
        %v1971 = vrot.slane %v1962, 4
        %v1972 = vsel %vm597, 0.0, %v1971
        %v1973 = vrot.slane %v1966, 4
        %v1974 = vsel %vm597, 0.0, %v1973
        %1975 = vxpose.xlu0.b32.start [1/16] %v1950, 128
        %1976 = vxpose.xlu0.b32.cont [2/16] 0.0, 128
        %1977 = vxpose.xlu0.b32.cont [3/16] 0.0, 128
        %1978 = vxpose.xlu0.b32.cont [4/16] 0.0, 128
        %1979 = vxpose.xlu0.b32.cont [5/16] 0.0, 128
        %1980 = vxpose.xlu0.b32.cont [6/16] 0.0, 128
        %1981 = vxpose.xlu0.b32.cont [7/16] 0.0, 128
        %1982 = vxpose.xlu0.b32.cont [8/16] 0.0, 128
        %1983 = vxpose.xlu0.b32.cont [9/16] 0.0, 128
        %1984 = vxpose.xlu0.b32.cont [10/16] 0.0, 128
        %1985 = vxpose.xlu0.b32.cont [11/16] 0.0, 128
        %1986 = vxpose.xlu0.b32.cont [12/16] 0.0, 128
        %1987 = vxpose.xlu0.b32.cont [13/16] 0.0, 128
        %1988 = vxpose.xlu0.b32.cont [14/16] 0.0, 128
        %1989 = vxpose.xlu0.b32.cont [15/16] 0.0, 128
        %1990 = vxpose.xlu0.b32.end [16/16] 0.0, 128
        %v1991 = vpop.trf.xlu0
        %v1992 = vpop.trf.xlu0
        %v1993 = vpop.trf.xlu0
        %v1994 = vpop.trf.xlu0
        %v1995 = vpop.trf.xlu0
        %v1996 = vpop.trf.xlu0
        %v1997 = vpop.trf.xlu0
        %v1998 = vpop.trf.xlu0
        %v1999 = vpop.trf.xlu0
        %v2000 = vpop.trf.xlu0
        %v2001 = vpop.trf.xlu0
        %v2002 = vpop.trf.xlu0
        %v2003 = vpop.trf.xlu0
        %v2004 = vpop.trf.xlu0
        %v2005 = vpop.trf.xlu0
        %v2006 = vpop.trf.xlu0
        %2007 = vxpose.xlu0.b32.start [1/16] %v1968, 128
        %2008 = vxpose.xlu0.b32.cont [2/16] 0.0, 128
        %2009 = vxpose.xlu0.b32.cont [3/16] 0.0, 128
        %2010 = vxpose.xlu0.b32.cont [4/16] 0.0, 128
        %2011 = vxpose.xlu0.b32.cont [5/16] 0.0, 128
        %2012 = vxpose.xlu0.b32.cont [6/16] 0.0, 128
        %2013 = vxpose.xlu0.b32.cont [7/16] 0.0, 128
        %2014 = vxpose.xlu0.b32.cont [8/16] 0.0, 128
        %2015 = vxpose.xlu0.b32.cont [9/16] 0.0, 128
        %2016 = vxpose.xlu0.b32.cont [10/16] 0.0, 128
        %2017 = vxpose.xlu0.b32.cont [11/16] 0.0, 128
        %2018 = vxpose.xlu0.b32.cont [12/16] 0.0, 128
        %2019 = vxpose.xlu0.b32.cont [13/16] 0.0, 128
        %2020 = vxpose.xlu0.b32.cont [14/16] 0.0, 128
        %2021 = vxpose.xlu0.b32.cont [15/16] 0.0, 128
        %2022 = vxpose.xlu0.b32.end [16/16] 0.0, 128
        %v2023 = vpop.trf.xlu0
        %v2024 = vpop.trf.xlu0
        %v2025 = vpop.trf.xlu0
        %v2026 = vpop.trf.xlu0
        %v2027 = vpop.trf.xlu0
        %v2028 = vpop.trf.xlu0
        %v2029 = vpop.trf.xlu0
        %v2030 = vpop.trf.xlu0
        %v2031 = vpop.trf.xlu0
        %v2032 = vpop.trf.xlu0
        %v2033 = vpop.trf.xlu0
        %v2034 = vpop.trf.xlu0
        %v2035 = vpop.trf.xlu0
        %v2036 = vpop.trf.xlu0
        %v2037 = vpop.trf.xlu0
        %v2038 = vpop.trf.xlu0
        %2039 = vxpose.xlu0.b32.start [1/16] %v1954, 128
        %2040 = vxpose.xlu0.b32.cont [2/16] 0.0, 128
        %2041 = vxpose.xlu0.b32.cont [3/16] 0.0, 128
        %2042 = vxpose.xlu0.b32.cont [4/16] 0.0, 128
        %2043 = vxpose.xlu0.b32.cont [5/16] 0.0, 128
        %2044 = vxpose.xlu0.b32.cont [6/16] 0.0, 128
        %2045 = vxpose.xlu0.b32.cont [7/16] 0.0, 128
        %2046 = vxpose.xlu0.b32.cont [8/16] 0.0, 128
        %2047 = vxpose.xlu0.b32.cont [9/16] 0.0, 128
        %2048 = vxpose.xlu0.b32.cont [10/16] 0.0, 128
        %2049 = vxpose.xlu0.b32.cont [11/16] 0.0, 128
        %2050 = vxpose.xlu0.b32.cont [12/16] 0.0, 128
        %2051 = vxpose.xlu0.b32.cont [13/16] 0.0, 128
        %2052 = vxpose.xlu0.b32.cont [14/16] 0.0, 128
        %2053 = vxpose.xlu0.b32.cont [15/16] 0.0, 128
        %2054 = vxpose.xlu0.b32.end [16/16] 0.0, 128
        %v2055 = vpop.trf.xlu0
        %v2056 = vpop.trf.xlu0
        %v2057 = vpop.trf.xlu0
        %v2058 = vpop.trf.xlu0
        %v2059 = vpop.trf.xlu0
        %v2060 = vpop.trf.xlu0
        %v2061 = vpop.trf.xlu0
        %v2062 = vpop.trf.xlu0
        %v2063 = vpop.trf.xlu0
        %v2064 = vpop.trf.xlu0
        %v2065 = vpop.trf.xlu0
        %v2066 = vpop.trf.xlu0
        %v2067 = vpop.trf.xlu0
        %v2068 = vpop.trf.xlu0
        %v2069 = vpop.trf.xlu0
        %v2070 = vpop.trf.xlu0
        %2071 = vxpose.xlu0.b32.start [1/16] %v1970, 128
        %2072 = vxpose.xlu0.b32.cont [2/16] 0.0, 128
        %2073 = vxpose.xlu0.b32.cont [3/16] 0.0, 128
        %2074 = vxpose.xlu0.b32.cont [4/16] 0.0, 128
        %2075 = vxpose.xlu0.b32.cont [5/16] 0.0, 128
        %2076 = vxpose.xlu0.b32.cont [6/16] 0.0, 128
        %2077 = vxpose.xlu0.b32.cont [7/16] 0.0, 128
        %2078 = vxpose.xlu0.b32.cont [8/16] 0.0, 128
        %2079 = vxpose.xlu0.b32.cont [9/16] 0.0, 128
        %2080 = vxpose.xlu0.b32.cont [10/16] 0.0, 128
        %2081 = vxpose.xlu0.b32.cont [11/16] 0.0, 128
        %2082 = vxpose.xlu0.b32.cont [12/16] 0.0, 128
        %2083 = vxpose.xlu0.b32.cont [13/16] 0.0, 128
        %2084 = vxpose.xlu0.b32.cont [14/16] 0.0, 128
        %2085 = vxpose.xlu0.b32.cont [15/16] 0.0, 128
        %2086 = vxpose.xlu0.b32.end [16/16] 0.0, 128
        %v2087 = vpop.trf.xlu0
        %v2088 = vpop.trf.xlu0
        %v2089 = vpop.trf.xlu0
        %v2090 = vpop.trf.xlu0
        %v2091 = vpop.trf.xlu0
        %v2092 = vpop.trf.xlu0
        %v2093 = vpop.trf.xlu0
        %v2094 = vpop.trf.xlu0
        %v2095 = vpop.trf.xlu0
        %v2096 = vpop.trf.xlu0
        %v2097 = vpop.trf.xlu0
        %v2098 = vpop.trf.xlu0
        %v2099 = vpop.trf.xlu0
        %v2100 = vpop.trf.xlu0
        %v2101 = vpop.trf.xlu0
        %v2102 = vpop.trf.xlu0
        %2103 = vxpose.xlu0.b32.start [1/16] %v1962, 128
        %2104 = vxpose.xlu0.b32.cont [2/16] 0.0, 128
        %2105 = vxpose.xlu0.b32.cont [3/16] 0.0, 128
        %2106 = vxpose.xlu0.b32.cont [4/16] 0.0, 128
        %2107 = vxpose.xlu0.b32.cont [5/16] 0.0, 128
        %2108 = vxpose.xlu0.b32.cont [6/16] 0.0, 128
        %2109 = vxpose.xlu0.b32.cont [7/16] 0.0, 128
        %2110 = vxpose.xlu0.b32.cont [8/16] 0.0, 128
        %2111 = vxpose.xlu0.b32.cont [9/16] 0.0, 128
        %2112 = vxpose.xlu0.b32.cont [10/16] 0.0, 128
        %2113 = vxpose.xlu0.b32.cont [11/16] 0.0, 128
        %2114 = vxpose.xlu0.b32.cont [12/16] 0.0, 128
        %2115 = vxpose.xlu0.b32.cont [13/16] 0.0, 128
        %2116 = vxpose.xlu0.b32.cont [14/16] 0.0, 128
        %2117 = vxpose.xlu0.b32.cont [15/16] 0.0, 128
        %2118 = vxpose.xlu0.b32.end [16/16] 0.0, 128
        %v2119 = vpop.trf.xlu0
        %v2120 = vpop.trf.xlu0
        %v2121 = vpop.trf.xlu0
        %v2122 = vpop.trf.xlu0
        %v2123 = vpop.trf.xlu0
        %v2124 = vpop.trf.xlu0
        %v2125 = vpop.trf.xlu0
        %v2126 = vpop.trf.xlu0
        %v2127 = vpop.trf.xlu0
        %v2128 = vpop.trf.xlu0
        %v2129 = vpop.trf.xlu0
        %v2130 = vpop.trf.xlu0
        %v2131 = vpop.trf.xlu0
        %v2132 = vpop.trf.xlu0
        %v2133 = vpop.trf.xlu0
        %v2134 = vpop.trf.xlu0
        %2135 = vxpose.xlu0.b32.start [1/16] %v1972, 128
        %2136 = vxpose.xlu0.b32.cont [2/16] 0.0, 128
        %2137 = vxpose.xlu0.b32.cont [3/16] 0.0, 128
        %2138 = vxpose.xlu0.b32.cont [4/16] 0.0, 128
        %2139 = vxpose.xlu0.b32.cont [5/16] 0.0, 128
        %2140 = vxpose.xlu0.b32.cont [6/16] 0.0, 128
        %2141 = vxpose.xlu0.b32.cont [7/16] 0.0, 128
        %2142 = vxpose.xlu0.b32.cont [8/16] 0.0, 128
        %2143 = vxpose.xlu0.b32.cont [9/16] 0.0, 128
        %2144 = vxpose.xlu0.b32.cont [10/16] 0.0, 128
        %2145 = vxpose.xlu0.b32.cont [11/16] 0.0, 128
        %2146 = vxpose.xlu0.b32.cont [12/16] 0.0, 128
        %2147 = vxpose.xlu0.b32.cont [13/16] 0.0, 128
        %2148 = vxpose.xlu0.b32.cont [14/16] 0.0, 128
        %2149 = vxpose.xlu0.b32.cont [15/16] 0.0, 128
        %2150 = vxpose.xlu0.b32.end [16/16] 0.0, 128
        %v2151 = vpop.trf.xlu0
        %v2152 = vpop.trf.xlu0
        %v2153 = vpop.trf.xlu0
        %v2154 = vpop.trf.xlu0
        %v2155 = vpop.trf.xlu0
        %v2156 = vpop.trf.xlu0
        %v2157 = vpop.trf.xlu0
        %v2158 = vpop.trf.xlu0
        %v2159 = vpop.trf.xlu0
        %v2160 = vpop.trf.xlu0
        %v2161 = vpop.trf.xlu0
        %v2162 = vpop.trf.xlu0
        %v2163 = vpop.trf.xlu0
        %v2164 = vpop.trf.xlu0
        %v2165 = vpop.trf.xlu0
        %v2166 = vpop.trf.xlu0
        %2167 = vxpose.xlu0.b32.start [1/16] %v1966, 128
        %2168 = vxpose.xlu0.b32.cont [2/16] 0.0, 128
        %2169 = vxpose.xlu0.b32.cont [3/16] 0.0, 128
        %2170 = vxpose.xlu0.b32.cont [4/16] 0.0, 128
        %2171 = vxpose.xlu0.b32.cont [5/16] 0.0, 128
        %2172 = vxpose.xlu0.b32.cont [6/16] 0.0, 128
        %2173 = vxpose.xlu0.b32.cont [7/16] 0.0, 128
        %2174 = vxpose.xlu0.b32.cont [8/16] 0.0, 128
        %2175 = vxpose.xlu0.b32.cont [9/16] 0.0, 128
        %2176 = vxpose.xlu0.b32.cont [10/16] 0.0, 128
        %2177 = vxpose.xlu0.b32.cont [11/16] 0.0, 128
        %2178 = vxpose.xlu0.b32.cont [12/16] 0.0, 128
        %2179 = vxpose.xlu0.b32.cont [13/16] 0.0, 128
        %2180 = vxpose.xlu0.b32.cont [14/16] 0.0, 128
        %2181 = vxpose.xlu0.b32.cont [15/16] 0.0, 128
        %2182 = vxpose.xlu0.b32.end [16/16] 0.0, 128
        %v2183 = vpop.trf.xlu0
        %v2184 = vpop.trf.xlu0
        %v2185 = vpop.trf.xlu0
        %v2186 = vpop.trf.xlu0
        %v2187 = vpop.trf.xlu0
        %v2188 = vpop.trf.xlu0
        %v2189 = vpop.trf.xlu0
        %v2190 = vpop.trf.xlu0
        %v2191 = vpop.trf.xlu0
        %v2192 = vpop.trf.xlu0
        %v2193 = vpop.trf.xlu0
        %v2194 = vpop.trf.xlu0
        %v2195 = vpop.trf.xlu0
        %v2196 = vpop.trf.xlu0
        %v2197 = vpop.trf.xlu0
        %v2198 = vpop.trf.xlu0
        %2199 = vxpose.xlu0.b32.start [1/16] %v1974, 128
        %2200 = vxpose.xlu0.b32.cont [2/16] 0.0, 128
        %2201 = vxpose.xlu0.b32.cont [3/16] 0.0, 128
        %2202 = vxpose.xlu0.b32.cont [4/16] 0.0, 128
        %2203 = vxpose.xlu0.b32.cont [5/16] 0.0, 128
        %2204 = vxpose.xlu0.b32.cont [6/16] 0.0, 128
        %2205 = vxpose.xlu0.b32.cont [7/16] 0.0, 128
        %2206 = vxpose.xlu0.b32.cont [8/16] 0.0, 128
        %2207 = vxpose.xlu0.b32.cont [9/16] 0.0, 128
        %2208 = vxpose.xlu0.b32.cont [10/16] 0.0, 128
        %2209 = vxpose.xlu0.b32.cont [11/16] 0.0, 128
        %2210 = vxpose.xlu0.b32.cont [12/16] 0.0, 128
        %2211 = vxpose.xlu0.b32.cont [13/16] 0.0, 128
        %2212 = vxpose.xlu0.b32.cont [14/16] 0.0, 128
        %2213 = vxpose.xlu0.b32.cont [15/16] 0.0, 128
        %2214 = vxpose.xlu0.b32.end [16/16] 0.0, 128
        %v2215 = vpop.trf.xlu0
        %v2216 = vpop.trf.xlu0
        %v2217 = vpop.trf.xlu0
        %v2218 = vpop.trf.xlu0
        %v2219 = vpop.trf.xlu0
        %v2220 = vpop.trf.xlu0
        %v2221 = vpop.trf.xlu0
        %v2222 = vpop.trf.xlu0
        %v2223 = vpop.trf.xlu0
        %v2224 = vpop.trf.xlu0
        %v2225 = vpop.trf.xlu0
        %v2226 = vpop.trf.xlu0
        %v2227 = vpop.trf.xlu0
        %v2228 = vpop.trf.xlu0
        %v2229 = vpop.trf.xlu0
        %v2230 = vpop.trf.xlu0
        %v2231 = vrot.slane %v2055, 4
        %v2232 = vsel %vm597, %v2231, %v1991
        %v2233 = vrot.slane %v1991, 4
        %v2234 = vsel %vm597, %v2055, %v2233
        %v2236 = vunpack.c.l.s4 1983009808
        %v2237 = vunpack.c.0.s8 %v2236
        %v2238 = vperm.slane %v2232, %v2237
        %v2240 = vunpack.c.l.s4 1983009808
        %v2241 = vunpack.c.0.s8 %v2240
        %v2242 = vperm.slane %v2234, %v2241
        %v2243 = vrot.slane %v2087, 4
        %v2244 = vsel %vm597, %v2243, %v2023
        %v2245 = vrot.slane %v2023, 4
        %v2246 = vsel %vm597, %v2087, %v2245
        %v2248 = vunpack.c.l.s4 1983009808
        %v2249 = vunpack.c.0.s8 %v2248
        %v2250 = vperm.slane %v2244, %v2249
        %v2252 = vunpack.c.l.s4 1983009808
        %v2253 = vunpack.c.0.s8 %v2252
        %v2254 = vperm.slane %v2246, %v2253
        %v2255 = vrot.slane %v2183, 4
        %v2256 = vsel %vm597, %v2255, %v2119
        %v2257 = vrot.slane %v2119, 4
        %v2258 = vsel %vm597, %v2183, %v2257
        %v2260 = vunpack.c.l.s4 1983009808
        %v2261 = vunpack.c.0.s8 %v2260
        %v2262 = vperm.slane %v2256, %v2261
        %v2264 = vunpack.c.l.s4 1983009808
        %v2265 = vunpack.c.0.s8 %v2264
        %v2266 = vperm.slane %v2258, %v2265
        %v2267 = vrot.slane %v2215, 4
        %v2268 = vsel %vm597, %v2267, %v2151
        %v2269 = vrot.slane %v2151, 4
        %v2270 = vsel %vm597, %v2215, %v2269
        %v2272 = vunpack.c.l.s4 1983009808
        %v2273 = vunpack.c.0.s8 %v2272
        %v2274 = vperm.slane %v2268, %v2273
        %v2276 = vunpack.c.l.s4 1983009808
        %v2277 = vunpack.c.0.s8 %v2276
        %v2278 = vperm.slane %v2270, %v2277
        %v2279 = vrot.slane %v2250, 4
        %v2280 = vsel %vm597, %v2279, %v2238
        %v2281 = vrot.slane %v2238, 4
        %v2282 = vsel %vm597, %v2250, %v2281
        %v2284 = vunpack.c.l.s4 1934713408
        %v2285 = vunpack.c.0.s8 %v2284
        %v2286 = vperm.slane %v2280, %v2285
        %v2288 = vunpack.c.l.s4 1934713408
        %v2289 = vunpack.c.0.s8 %v2288
        %v2290 = vperm.slane %v2282, %v2289
        %v2291 = vrot.slane %v2254, 4
        %v2292 = vsel %vm597, %v2291, %v2242
        %v2293 = vrot.slane %v2242, 4
        %v2294 = vsel %vm597, %v2254, %v2293
        %v2296 = vunpack.c.l.s4 1934713408
        %v2297 = vunpack.c.0.s8 %v2296
        %v2298 = vperm.slane %v2292, %v2297
        %v2300 = vunpack.c.l.s4 1934713408
        %v2301 = vunpack.c.0.s8 %v2300
        %v2302 = vperm.slane %v2294, %v2301
        %v2303 = vrot.slane %v2274, 4
        %v2304 = vsel %vm597, %v2303, %v2262
        %v2305 = vrot.slane %v2262, 4
        %v2306 = vsel %vm597, %v2274, %v2305
        %v2308 = vunpack.c.l.s4 1934713408
        %v2309 = vunpack.c.0.s8 %v2308
        %v2310 = vperm.slane %v2304, %v2309
        %v2312 = vunpack.c.l.s4 1934713408
        %v2313 = vunpack.c.0.s8 %v2312
        %v2314 = vperm.slane %v2306, %v2313
        %v2315 = vrot.slane %v2278, 4
        %v2316 = vsel %vm597, %v2315, %v2266
        %v2317 = vrot.slane %v2266, 4
        %v2318 = vsel %vm597, %v2278, %v2317
        %v2320 = vunpack.c.l.s4 1934713408
        %v2321 = vunpack.c.0.s8 %v2320
        %v2322 = vperm.slane %v2316, %v2321
        %v2324 = vunpack.c.l.s4 1934713408
        %v2325 = vunpack.c.0.s8 %v2324
        %v2326 = vperm.slane %v2318, %v2325
        %v2327 = vrot.slane %v2310, 4
        %v2328 = vsel %vm597, %v2327, %v2286
        %v2329 = vrot.slane %v2286, 4
        %v2330 = vsel %vm597, %v2310, %v2329
        %v2331 = vrot.slane %v2314, 4
        %v2332 = vsel %vm597, %v2331, %v2290
        %v2333 = vrot.slane %v2290, 4
        %v2334 = vsel %vm597, %v2314, %v2333
        %v2335 = vrot.slane %v2322, 4
        %v2336 = vsel %vm597, %v2335, %v2298
        %v2337 = vrot.slane %v2298, 4
        %v2338 = vsel %vm597, %v2322, %v2337
        %v2339 = vrot.slane %v2326, 4
        %v2340 = vsel %vm597, %v2339, %v2302
        %v2341 = vrot.slane %v2302, 4
        %v2342 = vsel %vm597, %v2326, %v2341
        %v2344 = vsel %vm1141, %v1828, 0
        %2346 = vmatpush.msra.mxu0 0.0
        %2347 = vmatpush.msra.mxu0 0.0
        %2348 = vmatpush.msra.mxu0 0.0
        %2349 = vmatpush.msra.mxu0 0.0
        %2350 = vmatpush.msra.mxu0 0.0
        %2351 = vmatpush.msra.mxu0 0.0
        %2352 = vmatpush.msra.mxu0 0.0
        %2353 = vmatpush.msra.mxu0 0.0
        %2354 = vmatpush.msra.mxu0 0.0
        %2355 = vmatpush.msra.mxu0 0.0
        %2356 = vmatpush.msra.mxu0 0.0
        %2357 = vmatpush.msra.mxu0 0.0
        %2358 = vmatpush.msra.mxu0 0.0
        %2359 = vmatpush.msra.mxu0 0.0
        %2360 = vmatpush.msra.mxu0 0.0
        %2361 = vmatpush.msra.mxu0 %v2328
        %2362 = vmatmul.f32.gmra.mxu0 %v2344
        %v2363 = vpop.f32.mrf.mxu0
        %v2364 = vadd.f32 0.0, %v2363
        %2365 = vdwg.mxu0
        %v2367 = vsel %vm1141, %v1846, 0
        %2369 = vmatpush.msra.mxu0 0.0
        %2370 = vmatpush.msra.mxu0 0.0
        %2371 = vmatpush.msra.mxu0 0.0
        %2372 = vmatpush.msra.mxu0 0.0
        %2373 = vmatpush.msra.mxu0 0.0
        %2374 = vmatpush.msra.mxu0 0.0
        %2375 = vmatpush.msra.mxu0 0.0
        %2376 = vmatpush.msra.mxu0 0.0
        %2377 = vmatpush.msra.mxu0 0.0
        %2378 = vmatpush.msra.mxu0 0.0
        %2379 = vmatpush.msra.mxu0 0.0
        %2380 = vmatpush.msra.mxu0 0.0
        %2381 = vmatpush.msra.mxu0 0.0
        %2382 = vmatpush.msra.mxu0 0.0
        %2383 = vmatpush.msra.mxu0 0.0
        %2384 = vmatpush.msra.mxu0 %v2330
        %2385 = vmatmul.f32.gmra.mxu0 %v2367
        %v2386 = vpop.f32.mrf.mxu0
        %v2387 = vadd.f32 0.0, %v2386
        %2388 = vdwg.mxu0
        %v2390 = vsel %vm1141, %v1832, 0
        %2392 = vmatpush.msra.mxu0 0.0
        %2393 = vmatpush.msra.mxu0 0.0
        %2394 = vmatpush.msra.mxu0 0.0
        %2395 = vmatpush.msra.mxu0 0.0
        %2396 = vmatpush.msra.mxu0 0.0
        %2397 = vmatpush.msra.mxu0 0.0
        %2398 = vmatpush.msra.mxu0 0.0
        %2399 = vmatpush.msra.mxu0 0.0
        %2400 = vmatpush.msra.mxu0 0.0
        %2401 = vmatpush.msra.mxu0 0.0
        %2402 = vmatpush.msra.mxu0 0.0
        %2403 = vmatpush.msra.mxu0 0.0
        %2404 = vmatpush.msra.mxu0 0.0
        %2405 = vmatpush.msra.mxu0 0.0
        %2406 = vmatpush.msra.mxu0 0.0
        %2407 = vmatpush.msra.mxu0 %v2332
        %2408 = vmatmul.f32.gmra.mxu0 %v2390
        %v2409 = vpop.f32.mrf.mxu0
        %v2410 = vadd.f32 0.0, %v2409
        %2411 = vdwg.mxu0
        %v2413 = vsel %vm1141, %v1848, 0
        %2415 = vmatpush.msra.mxu0 0.0
        %2416 = vmatpush.msra.mxu0 0.0
        %2417 = vmatpush.msra.mxu0 0.0
        %2418 = vmatpush.msra.mxu0 0.0
        %2419 = vmatpush.msra.mxu0 0.0
        %2420 = vmatpush.msra.mxu0 0.0
        %2421 = vmatpush.msra.mxu0 0.0
        %2422 = vmatpush.msra.mxu0 0.0
        %2423 = vmatpush.msra.mxu0 0.0
        %2424 = vmatpush.msra.mxu0 0.0
        %2425 = vmatpush.msra.mxu0 0.0
        %2426 = vmatpush.msra.mxu0 0.0
        %2427 = vmatpush.msra.mxu0 0.0
        %2428 = vmatpush.msra.mxu0 0.0
        %2429 = vmatpush.msra.mxu0 0.0
        %2430 = vmatpush.msra.mxu0 %v2334
        %2431 = vmatmul.f32.gmra.mxu0 %v2413
        %v2432 = vpop.f32.mrf.mxu0
        %v2433 = vadd.f32 0.0, %v2432
        %2434 = vdwg.mxu0
        %v2436 = vsel %vm1141, %v1840, 0
        %2438 = vmatpush.msra.mxu0 0.0
        %2439 = vmatpush.msra.mxu0 0.0
        %2440 = vmatpush.msra.mxu0 0.0
        %2441 = vmatpush.msra.mxu0 0.0
        %2442 = vmatpush.msra.mxu0 0.0
        %2443 = vmatpush.msra.mxu0 0.0
        %2444 = vmatpush.msra.mxu0 0.0
        %2445 = vmatpush.msra.mxu0 0.0
        %2446 = vmatpush.msra.mxu0 0.0
        %2447 = vmatpush.msra.mxu0 0.0
        %2448 = vmatpush.msra.mxu0 0.0
        %2449 = vmatpush.msra.mxu0 0.0
        %2450 = vmatpush.msra.mxu0 0.0
        %2451 = vmatpush.msra.mxu0 0.0
        %2452 = vmatpush.msra.mxu0 0.0
        %2453 = vmatpush.msra.mxu0 %v2336
        %2454 = vmatmul.f32.gmra.mxu0 %v2436
        %v2455 = vpop.f32.mrf.mxu0
        %v2456 = vadd.f32 0.0, %v2455
        %2457 = vdwg.mxu0
        %v2459 = vsel %vm1141, %v1850, 0
        %2461 = vmatpush.msra.mxu0 0.0
        %2462 = vmatpush.msra.mxu0 0.0
        %2463 = vmatpush.msra.mxu0 0.0
        %2464 = vmatpush.msra.mxu0 0.0
        %2465 = vmatpush.msra.mxu0 0.0
        %2466 = vmatpush.msra.mxu0 0.0
        %2467 = vmatpush.msra.mxu0 0.0
        %2468 = vmatpush.msra.mxu0 0.0
        %2469 = vmatpush.msra.mxu0 0.0
        %2470 = vmatpush.msra.mxu0 0.0
        %2471 = vmatpush.msra.mxu0 0.0
        %2472 = vmatpush.msra.mxu0 0.0
        %2473 = vmatpush.msra.mxu0 0.0
        %2474 = vmatpush.msra.mxu0 0.0
        %2475 = vmatpush.msra.mxu0 0.0
        %2476 = vmatpush.msra.mxu0 %v2338
        %2477 = vmatmul.f32.gmra.mxu0 %v2459
        %v2478 = vpop.f32.mrf.mxu0
        %v2479 = vadd.f32 0.0, %v2478
        %2480 = vdwg.mxu0
        %v2482 = vsel %vm1141, %v1844, 0
        %2484 = vmatpush.msra.mxu0 0.0
        %2485 = vmatpush.msra.mxu0 0.0
        %2486 = vmatpush.msra.mxu0 0.0
        %2487 = vmatpush.msra.mxu0 0.0
        %2488 = vmatpush.msra.mxu0 0.0
        %2489 = vmatpush.msra.mxu0 0.0
        %2490 = vmatpush.msra.mxu0 0.0
        %2491 = vmatpush.msra.mxu0 0.0
        %2492 = vmatpush.msra.mxu0 0.0
        %2493 = vmatpush.msra.mxu0 0.0
        %2494 = vmatpush.msra.mxu0 0.0
        %2495 = vmatpush.msra.mxu0 0.0
        %2496 = vmatpush.msra.mxu0 0.0
        %2497 = vmatpush.msra.mxu0 0.0
        %2498 = vmatpush.msra.mxu0 0.0
        %2499 = vmatpush.msra.mxu0 %v2340
        %2500 = vmatmul.f32.gmra.mxu0 %v2482
        %v2501 = vpop.f32.mrf.mxu0
        %v2502 = vadd.f32 0.0, %v2501
        %2503 = vdwg.mxu0
        %v2505 = vsel %vm1141, %v1852, 0
        %2507 = vmatpush.msra.mxu0 0.0
        %2508 = vmatpush.msra.mxu0 0.0
        %2509 = vmatpush.msra.mxu0 0.0
        %2510 = vmatpush.msra.mxu0 0.0
        %2511 = vmatpush.msra.mxu0 0.0
        %2512 = vmatpush.msra.mxu0 0.0
        %2513 = vmatpush.msra.mxu0 0.0
        %2514 = vmatpush.msra.mxu0 0.0
        %2515 = vmatpush.msra.mxu0 0.0
        %2516 = vmatpush.msra.mxu0 0.0
        %2517 = vmatpush.msra.mxu0 0.0
        %2518 = vmatpush.msra.mxu0 0.0
        %2519 = vmatpush.msra.mxu0 0.0
        %2520 = vmatpush.msra.mxu0 0.0
        %2521 = vmatpush.msra.mxu0 0.0
        %2522 = vmatpush.msra.mxu0 %v2342
        %2523 = vmatmul.f32.gmra.mxu0 %v2505
        %v2524 = vpop.f32.mrf.mxu0
        %v2525 = vadd.f32 0.0, %v2524
        %2526 = vdwg.mxu0
        %v2527 = vsel %vm1326, %v2364, -inf
        %2528 = vmax.xlane.f32.xlu0 %v2527
        %v2529 = vpop.xlane.xlu0 %2528
        %v2530 = vsel %vm1326, %v2387, -inf
        %2531 = vmax.xlane.f32.xlu0 %v2530
        %v2532 = vpop.xlane.xlu0 %2531
        %v2533 = vsel %vm1326, %v2410, -inf
        %2534 = vmax.xlane.f32.xlu0 %v2533
        %v2535 = vpop.xlane.xlu0 %2534
        %v2536 = vsel %vm1326, %v2433, -inf
        %2537 = vmax.xlane.f32.xlu0 %v2536
        %v2538 = vpop.xlane.xlu0 %2537
        %v2539 = vsel %vm1326, %v2456, -inf
        %2540 = vmax.xlane.f32.xlu0 %v2539
        %v2541 = vpop.xlane.xlu0 %2540
        %v2542 = vsel %vm1326, %v2479, -inf
        %2543 = vmax.xlane.f32.xlu0 %v2542
        %v2544 = vpop.xlane.xlu0 %2543
        %v2545 = vsel %vm1326, %v2502, -inf
        %2546 = vmax.xlane.f32.xlu0 %v2545
        %v2547 = vpop.xlane.xlu0 %2546
        %v2548 = vsel %vm1326, %v2525, -inf
        %2549 = vmax.xlane.f32.xlu0 %v2548
        %v2550 = vpop.xlane.xlu0 %2549
        %v2551 = vsub.f32 %v2364, %v2529
        %v2552 = vsub.f32 %v2387, %v2532
        %v2553 = vsub.f32 %v2410, %v2535
        %v2554 = vsub.f32 %v2433, %v2538
        %v2555 = vsub.f32 %v2456, %v2541
        %v2556 = vsub.f32 %v2479, %v2544
        %v2557 = vsub.f32 %v2502, %v2547
        %v2558 = vsub.f32 %v2525, %v2550
        %v2559 = vmul.f32 %v2551, 1.442695
        %v2560 = vpow.pop %v2559
        %v2561 = vmul.f32 %v2552, 1.442695
        %v2562 = vpow.pop %v2561
        %v2563 = vmul.f32 %v2553, 1.442695
        %v2564 = vpow.pop %v2563
        %v2565 = vmul.f32 %v2554, 1.442695
        %v2566 = vpow.pop %v2565
        %v2567 = vmul.f32 %v2555, 1.442695
        %v2568 = vpow.pop %v2567
        %v2569 = vmul.f32 %v2556, 1.442695
        %v2570 = vpow.pop %v2569
        %v2571 = vmul.f32 %v2557, 1.442695
        %v2572 = vpow.pop %v2571
        %v2573 = vmul.f32 %v2558, 1.442695
        %v2574 = vpow.pop %v2573
        %v2575 = vsel %vm1326, %v2560, 0.0
        %2576 = vadd.xlane.f32.xlu0 %v2575
        %v2577 = vpop.xlane.xlu0 %2576
        %v2578 = vsel %vm1326, %v2562, 0.0
        %2579 = vadd.xlane.f32.xlu0 %v2578
        %v2580 = vpop.xlane.xlu0 %2579
        %v2581 = vsel %vm1326, %v2564, 0.0
        %2582 = vadd.xlane.f32.xlu0 %v2581
        %v2583 = vpop.xlane.xlu0 %2582
        %v2584 = vsel %vm1326, %v2566, 0.0
        %2585 = vadd.xlane.f32.xlu0 %v2584
        %v2586 = vpop.xlane.xlu0 %2585
        %v2587 = vsel %vm1326, %v2568, 0.0
        %2588 = vadd.xlane.f32.xlu0 %v2587
        %v2589 = vpop.xlane.xlu0 %2588
        %v2590 = vsel %vm1326, %v2570, 0.0
        %2591 = vadd.xlane.f32.xlu0 %v2590
        %v2592 = vpop.xlane.xlu0 %2591
        %v2593 = vsel %vm1326, %v2572, 0.0
        %2594 = vadd.xlane.f32.xlu0 %v2593
        %v2595 = vpop.xlane.xlu0 %2594
        %v2596 = vsel %vm1326, %v2574, 0.0
        %2597 = vadd.xlane.f32.xlu0 %v2596
        %v2598 = vpop.xlane.xlu0 %2597
        %v2599 = vrcp.pop %v2577
        %v2600 = vmul.f32 %v2577, %v2599
        %v2601 = vsub.f32 1.0, %v2600
        %v2602 = vmul.f32 %v2599, %v2601
        %v2603 = vadd.f32 %v2599, %v2602
        %vm2604 = vweird.f32 %v2577
        %vm2605 = vweird.f32 %v2599
        %vm2606 = vmor %vm2604, %vm2605
        %v2607 = vsel %vm2606, %v2599, %v2603
        %v2608 = vand.u32 2147483647, %v2577
        %vm2609 = vcmp.eq.f32.partialorder %v2608, 8.507059e+37
        %v2610 = vand.u32 %v2577, 2147483648
        %v2611 = vor.u32 1.1754944e-38, %v2610
        %v2612 = vsel %vm2609, %v2611, %v2607
        %v2613 = vmul.f32 %v2560, %v2612
        %v2614 = vrcp.pop %v2580
        %v2615 = vmul.f32 %v2580, %v2614
        %v2616 = vsub.f32 1.0, %v2615
        %v2617 = vmul.f32 %v2614, %v2616
        %v2618 = vadd.f32 %v2614, %v2617
        %vm2619 = vweird.f32 %v2580
        %vm2620 = vweird.f32 %v2614
        %vm2621 = vmor %vm2619, %vm2620
        %v2622 = vsel %vm2621, %v2614, %v2618
        %v2623 = vand.u32 2147483647, %v2580
        %vm2624 = vcmp.eq.f32.partialorder %v2623, 8.507059e+37
        %v2625 = vand.u32 %v2580, 2147483648
        %v2626 = vor.u32 1.1754944e-38, %v2625
        %v2627 = vsel %vm2624, %v2626, %v2622
        %v2628 = vmul.f32 %v2562, %v2627
        %v2629 = vrcp.pop %v2583
        %v2630 = vmul.f32 %v2583, %v2629
        %v2631 = vsub.f32 1.0, %v2630
        %v2632 = vmul.f32 %v2629, %v2631
        %v2633 = vadd.f32 %v2629, %v2632
        %vm2634 = vweird.f32 %v2583
        %vm2635 = vweird.f32 %v2629
        %vm2636 = vmor %vm2634, %vm2635
        %v2637 = vsel %vm2636, %v2629, %v2633
        %v2638 = vand.u32 2147483647, %v2583
        %vm2639 = vcmp.eq.f32.partialorder %v2638, 8.507059e+37
        %v2640 = vand.u32 %v2583, 2147483648
        %v2641 = vor.u32 1.1754944e-38, %v2640
        %v2642 = vsel %vm2639, %v2641, %v2637
        %v2643 = vmul.f32 %v2564, %v2642
        %v2644 = vrcp.pop %v2586
        %v2645 = vmul.f32 %v2586, %v2644
        %v2646 = vsub.f32 1.0, %v2645
        %v2647 = vmul.f32 %v2644, %v2646
        %v2648 = vadd.f32 %v2644, %v2647
        %vm2649 = vweird.f32 %v2586
        %vm2650 = vweird.f32 %v2644
        %vm2651 = vmor %vm2649, %vm2650
        %v2652 = vsel %vm2651, %v2644, %v2648
        %v2653 = vand.u32 2147483647, %v2586
        %vm2654 = vcmp.eq.f32.partialorder %v2653, 8.507059e+37
        %v2655 = vand.u32 %v2586, 2147483648
        %v2656 = vor.u32 1.1754944e-38, %v2655
        %v2657 = vsel %vm2654, %v2656, %v2652
        %v2658 = vmul.f32 %v2566, %v2657
        %v2659 = vrcp.pop %v2589
        %v2660 = vmul.f32 %v2589, %v2659
        %v2661 = vsub.f32 1.0, %v2660
        %v2662 = vmul.f32 %v2659, %v2661
        %v2663 = vadd.f32 %v2659, %v2662
        %vm2664 = vweird.f32 %v2589
        %vm2665 = vweird.f32 %v2659
        %vm2666 = vmor %vm2664, %vm2665
        %v2667 = vsel %vm2666, %v2659, %v2663
        %v2668 = vand.u32 2147483647, %v2589
        %vm2669 = vcmp.eq.f32.partialorder %v2668, 8.507059e+37
        %v2670 = vand.u32 %v2589, 2147483648
        %v2671 = vor.u32 1.1754944e-38, %v2670
        %v2672 = vsel %vm2669, %v2671, %v2667
        %v2673 = vmul.f32 %v2568, %v2672
        %v2674 = vrcp.pop %v2592
        %v2675 = vmul.f32 %v2592, %v2674
        %v2676 = vsub.f32 1.0, %v2675
        %v2677 = vmul.f32 %v2674, %v2676
        %v2678 = vadd.f32 %v2674, %v2677
        %vm2679 = vweird.f32 %v2592
        %vm2680 = vweird.f32 %v2674
        %vm2681 = vmor %vm2679, %vm2680
        %v2682 = vsel %vm2681, %v2674, %v2678
        %v2683 = vand.u32 2147483647, %v2592
        %vm2684 = vcmp.eq.f32.partialorder %v2683, 8.507059e+37
        %v2685 = vand.u32 %v2592, 2147483648
        %v2686 = vor.u32 1.1754944e-38, %v2685
        %v2687 = vsel %vm2684, %v2686, %v2682
        %v2688 = vmul.f32 %v2570, %v2687
        %v2689 = vrcp.pop %v2595
        %v2690 = vmul.f32 %v2595, %v2689
        %v2691 = vsub.f32 1.0, %v2690
        %v2692 = vmul.f32 %v2689, %v2691
        %v2693 = vadd.f32 %v2689, %v2692
        %vm2694 = vweird.f32 %v2595
        %vm2695 = vweird.f32 %v2689
        %vm2696 = vmor %vm2694, %vm2695
        %v2697 = vsel %vm2696, %v2689, %v2693
        %v2698 = vand.u32 2147483647, %v2595
        %vm2699 = vcmp.eq.f32.partialorder %v2698, 8.507059e+37
        %v2700 = vand.u32 %v2595, 2147483648
        %v2701 = vor.u32 1.1754944e-38, %v2700
        %v2702 = vsel %vm2699, %v2701, %v2697
        %v2703 = vmul.f32 %v2572, %v2702
        %v2704 = vrcp.pop %v2598
        %v2705 = vmul.f32 %v2598, %v2704
        %v2706 = vsub.f32 1.0, %v2705
        %v2707 = vmul.f32 %v2704, %v2706
        %v2708 = vadd.f32 %v2704, %v2707
        %vm2709 = vweird.f32 %v2598
        %vm2710 = vweird.f32 %v2704
        %vm2711 = vmor %vm2709, %vm2710
        %v2712 = vsel %vm2711, %v2704, %v2708
        %v2713 = vand.u32 2147483647, %v2598
        %vm2714 = vcmp.eq.f32.partialorder %v2713, 8.507059e+37
        %v2715 = vand.u32 %v2598, 2147483648
        %v2716 = vor.u32 1.1754944e-38, %v2715
        %v2717 = vsel %vm2714, %v2716, %v2712
        %v2718 = vmul.f32 %v2574, %v2717
        %2719 = vrot.lane.b32.xlu0 %v588, 56
        %v2720 = vpop.permute.xlu0 %2719
        %2721 = vrot.lane.b32.xlu0 %v590, 56
        %v2722 = vpop.permute.xlu0 %2721
        %v2725 = vrot.slane %v2720, 4
        %v2726 = vsel %vm597, 0.0, %v2725
        %v2728 = vunpack.c.l.s4 1983009808
        %v2729 = vunpack.c.0.s8 %v2728
        %v2730 = vperm.slane %v2720, %v2729
        %v2732 = vunpack.c.l.s4 1983009808
        %v2733 = vunpack.c.0.s8 %v2732
        %v2734 = vperm.slane %v2726, %v2733
        %v2735 = vrot.slane %v2722, 4
        %v2736 = vsel %vm597, 0.0, %v2735
        %v2738 = vunpack.c.l.s4 1983009808
        %v2739 = vunpack.c.0.s8 %v2738
        %v2740 = vperm.slane %v2722, %v2739
        %v2742 = vunpack.c.l.s4 1983009808
        %v2743 = vunpack.c.0.s8 %v2742
        %v2744 = vperm.slane %v2736, %v2743
        %v2745 = vrot.slane %v2740, 4
        %v2746 = vsel %vm597, %v2745, %v2730
        %v2747 = vrot.slane %v2730, 4
        %v2748 = vsel %vm597, %v2740, %v2747
        %v2750 = vunpack.c.l.s4 1934713408
        %v2751 = vunpack.c.0.s8 %v2750
        %v2752 = vperm.slane %v2746, %v2751
        %v2754 = vunpack.c.l.s4 1934713408
        %v2755 = vunpack.c.0.s8 %v2754
        %v2756 = vperm.slane %v2748, %v2755
        %v2757 = vrot.slane %v2744, 4
        %v2758 = vsel %vm597, %v2757, %v2734
        %v2759 = vrot.slane %v2734, 4
        %v2760 = vsel %vm597, %v2744, %v2759
        %v2762 = vunpack.c.l.s4 1934713408
        %v2763 = vunpack.c.0.s8 %v2762
        %v2764 = vperm.slane %v2758, %v2763
        %v2766 = vunpack.c.l.s4 1934713408
        %v2767 = vunpack.c.0.s8 %v2766
        %v2768 = vperm.slane %v2760, %v2767
        %v2769 = vrot.slane %v2752, 4
        %v2770 = vsel %vm597, 0.0, %v2769
        %v2771 = vrot.slane %v2756, 4
        %v2772 = vsel %vm597, 0.0, %v2771
        %v2773 = vrot.slane %v2764, 4
        %v2774 = vsel %vm597, 0.0, %v2773
        %v2775 = vrot.slane %v2768, 4
        %v2776 = vsel %vm597, 0.0, %v2775
        %v2778 = vsel %vm1577, %v2613, 0
        %v2781 = vsel %vm1581, %v2752, 0
        %2783 = vmatpush.msra.mxu0 0.0
        %2784 = vmatpush.msra.mxu0 0.0
        %2785 = vmatpush.msra.mxu0 0.0
        %2786 = vmatpush.msra.mxu0 0.0
        %2787 = vmatpush.msra.mxu0 0.0
        %2788 = vmatpush.msra.mxu0 0.0
        %2789 = vmatpush.msra.mxu0 0.0
        %2790 = vmatpush.msra.mxu0 0.0
        %2791 = vmatpush.msra.mxu0 0.0
        %2792 = vmatpush.msra.mxu0 0.0
        %2793 = vmatpush.msra.mxu0 0.0
        %2794 = vmatpush.msra.mxu0 0.0
        %2795 = vmatpush.msra.mxu0 0.0
        %2796 = vmatpush.msra.mxu0 0.0
        %2797 = vmatpush.msra.mxu0 0.0
        %2798 = vmatpush.msra.mxu0 %v2781
        %2799 = vmatmul.f32.gmra.mxu0 %v2778
        %v2800 = vpop.f32.mrf.mxu0
        %v2801 = vadd.f32 0.0, %v2800
        %2802 = vdwg.mxu0
        %v2804 = vsel %vm1577, %v2628, 0
        %v2807 = vsel %vm1581, %v2770, 0
        %2809 = vmatpush.msra.mxu0 0.0
        %2810 = vmatpush.msra.mxu0 0.0
        %2811 = vmatpush.msra.mxu0 0.0
        %2812 = vmatpush.msra.mxu0 0.0
        %2813 = vmatpush.msra.mxu0 0.0
        %2814 = vmatpush.msra.mxu0 0.0
        %2815 = vmatpush.msra.mxu0 0.0
        %2816 = vmatpush.msra.mxu0 0.0
        %2817 = vmatpush.msra.mxu0 0.0
        %2818 = vmatpush.msra.mxu0 0.0
        %2819 = vmatpush.msra.mxu0 0.0
        %2820 = vmatpush.msra.mxu0 0.0
        %2821 = vmatpush.msra.mxu0 0.0
        %2822 = vmatpush.msra.mxu0 0.0
        %2823 = vmatpush.msra.mxu0 0.0
        %2824 = vmatpush.msra.mxu0 %v2807
        %2825 = vmatmul.f32.gmra.mxu0 %v2804
        %v2826 = vpop.f32.mrf.mxu0
        %v2827 = vadd.f32 0.0, %v2826
        %2828 = vdwg.mxu0
        %v2830 = vsel %vm1577, %v2643, 0
        %v2833 = vsel %vm1581, %v2756, 0
        %2835 = vmatpush.msra.mxu0 0.0
        %2836 = vmatpush.msra.mxu0 0.0
        %2837 = vmatpush.msra.mxu0 0.0
        %2838 = vmatpush.msra.mxu0 0.0
        %2839 = vmatpush.msra.mxu0 0.0
        %2840 = vmatpush.msra.mxu0 0.0
        %2841 = vmatpush.msra.mxu0 0.0
        %2842 = vmatpush.msra.mxu0 0.0
        %2843 = vmatpush.msra.mxu0 0.0
        %2844 = vmatpush.msra.mxu0 0.0
        %2845 = vmatpush.msra.mxu0 0.0
        %2846 = vmatpush.msra.mxu0 0.0
        %2847 = vmatpush.msra.mxu0 0.0
        %2848 = vmatpush.msra.mxu0 0.0
        %2849 = vmatpush.msra.mxu0 0.0
        %2850 = vmatpush.msra.mxu0 %v2833
        %2851 = vmatmul.f32.gmra.mxu0 %v2830
        %v2852 = vpop.f32.mrf.mxu0
        %v2853 = vadd.f32 0.0, %v2852
        %2854 = vdwg.mxu0
        %v2856 = vsel %vm1577, %v2658, 0
        %v2859 = vsel %vm1581, %v2772, 0
        %2861 = vmatpush.msra.mxu0 0.0
        %2862 = vmatpush.msra.mxu0 0.0
        %2863 = vmatpush.msra.mxu0 0.0
        %2864 = vmatpush.msra.mxu0 0.0
        %2865 = vmatpush.msra.mxu0 0.0
        %2866 = vmatpush.msra.mxu0 0.0
        %2867 = vmatpush.msra.mxu0 0.0
        %2868 = vmatpush.msra.mxu0 0.0
        %2869 = vmatpush.msra.mxu0 0.0
        %2870 = vmatpush.msra.mxu0 0.0
        %2871 = vmatpush.msra.mxu0 0.0
        %2872 = vmatpush.msra.mxu0 0.0
        %2873 = vmatpush.msra.mxu0 0.0
        %2874 = vmatpush.msra.mxu0 0.0
        %2875 = vmatpush.msra.mxu0 0.0
        %2876 = vmatpush.msra.mxu0 %v2859
        %2877 = vmatmul.f32.gmra.mxu0 %v2856
        %v2878 = vpop.f32.mrf.mxu0
        %v2879 = vadd.f32 0.0, %v2878
        %2880 = vdwg.mxu0
        %v2882 = vsel %vm1577, %v2673, 0
        %v2885 = vsel %vm1581, %v2764, 0
        %2887 = vmatpush.msra.mxu0 0.0
        %2888 = vmatpush.msra.mxu0 0.0
        %2889 = vmatpush.msra.mxu0 0.0
        %2890 = vmatpush.msra.mxu0 0.0
        %2891 = vmatpush.msra.mxu0 0.0
        %2892 = vmatpush.msra.mxu0 0.0
        %2893 = vmatpush.msra.mxu0 0.0
        %2894 = vmatpush.msra.mxu0 0.0
        %2895 = vmatpush.msra.mxu0 0.0
        %2896 = vmatpush.msra.mxu0 0.0
        %2897 = vmatpush.msra.mxu0 0.0
        %2898 = vmatpush.msra.mxu0 0.0
        %2899 = vmatpush.msra.mxu0 0.0
        %2900 = vmatpush.msra.mxu0 0.0
        %2901 = vmatpush.msra.mxu0 0.0
        %2902 = vmatpush.msra.mxu0 %v2885
        %2903 = vmatmul.f32.gmra.mxu0 %v2882
        %v2904 = vpop.f32.mrf.mxu0
        %v2905 = vadd.f32 0.0, %v2904
        %2906 = vdwg.mxu0
        %v2908 = vsel %vm1577, %v2688, 0
        %v2911 = vsel %vm1581, %v2774, 0
        %2913 = vmatpush.msra.mxu0 0.0
        %2914 = vmatpush.msra.mxu0 0.0
        %2915 = vmatpush.msra.mxu0 0.0
        %2916 = vmatpush.msra.mxu0 0.0
        %2917 = vmatpush.msra.mxu0 0.0
        %2918 = vmatpush.msra.mxu0 0.0
        %2919 = vmatpush.msra.mxu0 0.0
        %2920 = vmatpush.msra.mxu0 0.0
        %2921 = vmatpush.msra.mxu0 0.0
        %2922 = vmatpush.msra.mxu0 0.0
        %2923 = vmatpush.msra.mxu0 0.0
        %2924 = vmatpush.msra.mxu0 0.0
        %2925 = vmatpush.msra.mxu0 0.0
        %2926 = vmatpush.msra.mxu0 0.0
        %2927 = vmatpush.msra.mxu0 0.0
        %2928 = vmatpush.msra.mxu0 %v2911
        %2929 = vmatmul.f32.gmra.mxu0 %v2908
        %v2930 = vpop.f32.mrf.mxu0
        %v2931 = vadd.f32 0.0, %v2930
        %2932 = vdwg.mxu0
        %v2934 = vsel %vm1577, %v2703, 0
        %v2937 = vsel %vm1581, %v2768, 0
        %2939 = vmatpush.msra.mxu0 0.0
        %2940 = vmatpush.msra.mxu0 0.0
        %2941 = vmatpush.msra.mxu0 0.0
        %2942 = vmatpush.msra.mxu0 0.0
        %2943 = vmatpush.msra.mxu0 0.0
        %2944 = vmatpush.msra.mxu0 0.0
        %2945 = vmatpush.msra.mxu0 0.0
        %2946 = vmatpush.msra.mxu0 0.0
        %2947 = vmatpush.msra.mxu0 0.0
        %2948 = vmatpush.msra.mxu0 0.0
        %2949 = vmatpush.msra.mxu0 0.0
        %2950 = vmatpush.msra.mxu0 0.0
        %2951 = vmatpush.msra.mxu0 0.0
        %2952 = vmatpush.msra.mxu0 0.0
        %2953 = vmatpush.msra.mxu0 0.0
        %2954 = vmatpush.msra.mxu0 %v2937
        %2955 = vmatmul.f32.gmra.mxu0 %v2934
        %v2956 = vpop.f32.mrf.mxu0
        %v2957 = vadd.f32 0.0, %v2956
        %2958 = vdwg.mxu0
        %v2960 = vsel %vm1577, %v2718, 0
        %v2963 = vsel %vm1581, %v2776, 0
        %2965 = vmatpush.msra.mxu0 0.0
        %2966 = vmatpush.msra.mxu0 0.0
        %2967 = vmatpush.msra.mxu0 0.0
        %2968 = vmatpush.msra.mxu0 0.0
        %2969 = vmatpush.msra.mxu0 0.0
        %2970 = vmatpush.msra.mxu0 0.0
        %2971 = vmatpush.msra.mxu0 0.0
        %2972 = vmatpush.msra.mxu0 0.0
        %2973 = vmatpush.msra.mxu0 0.0
        %2974 = vmatpush.msra.mxu0 0.0
        %2975 = vmatpush.msra.mxu0 0.0
        %2976 = vmatpush.msra.mxu0 0.0
        %2977 = vmatpush.msra.mxu0 0.0
        %2978 = vmatpush.msra.mxu0 0.0
        %2979 = vmatpush.msra.mxu0 0.0
        %2980 = vmatpush.msra.mxu0 %v2963
        %2981 = vmatmul.f32.gmra.mxu0 %v2960
        %v2982 = vpop.f32.mrf.mxu0
        %v2983 = vadd.f32 0.0, %v2982
        %2984 = vdwg.mxu0
        %v2985 = vpack.c.bf16 %v2801, %v2801
        %v2986 = vpack.c.bf16 %v2827, %v2827
        %v2987 = vpack.c.bf16 %v2853, %v2853
        %v2988 = vpack.c.bf16 %v2879, %v2879
        %v2989 = vpack.c.bf16 %v2905, %v2905
        %v2990 = vpack.c.bf16 %v2931, %v2931
        %v2991 = vpack.c.bf16 %v2957, %v2957
        %v2992 = vpack.c.bf16 %v2983, %v2983
        %2994 = vst [vmem:[#allocation1] ss:$9 sm:$0xff] %v2985
        %s2996 = scalar_lea.vmem [#allocation1], 1
        %2997 = vst [vmem:[%s2996] ss:$9 sm:$0xff] %v2986
        %s2999 = scalar_lea.vmem [#allocation1], 2
        %3000 = vst [vmem:[%s2999] ss:$9 sm:$0xff] %v2987
        %s3002 = scalar_lea.vmem [#allocation1], 3
        %3003 = vst [vmem:[%s3002] ss:$9 sm:$0xff] %v2988
        %s3005 = scalar_lea.vmem [#allocation1], 4
        %3006 = vst [vmem:[%s3005] ss:$9 sm:$0xff] %v2989
        %s3008 = scalar_lea.vmem [#allocation1], 5
        %3009 = vst [vmem:[%s3008] ss:$9 sm:$0xff] %v2990
        %s3011 = scalar_lea.vmem [#allocation1], 6
        %3012 = vst [vmem:[%s3011] ss:$9 sm:$0xff] %v2991
        %s3014 = scalar_lea.vmem [#allocation1], 7
        %3015 = vst [vmem:[%s3014] ss:$9 sm:$0xff] %v2992
        %v3016 = vld [vmem:[#allocation1] sm:$0xff]
        %v3017 = vsel %vm1141, %v3016, 0
        %vm3019 = vcmask 1043456
        %v3021 = vsel %vm3019, %v593, 0
        %3023 = vmatpush.bf16.msra.mxu0 0
        %3024 = vmatpush.bf16.msra.mxu0 0
        %3025 = vmatpush.bf16.msra.mxu0 0
        %3026 = vmatpush.bf16.msra.mxu0 0
        %3027 = vmatpush.bf16.msra.mxu0 0
        %3028 = vmatpush.bf16.msra.mxu0 0
        %3029 = vmatpush.bf16.msra.mxu0 0
        %3030 = vmatpush.bf16.msra.mxu0 %v3021
        %3031 = vmatmul.bf16.gmra.mxu0 %v3017
        %v3032 = vpop.f32.mrf.mxu0
        %v3033 = vadd.f32 0.0, %v3032
        %v3034 = vpop.f32.mrf.mxu0
        %v3035 = vadd.f32 0.0, %v3034
        %3036 = vdwg.mxu0
        %3038 = vst [vmem:[#allocation1] ss:$9 sm:$0xff] %v1787
        %s3040 = scalar_lea.vmem [#allocation1], 1
        %3041 = vst [vmem:[%s3040] ss:$9 sm:$0xff] %v1788
        %s3043 = scalar_lea.vmem [#allocation1], 2
        %3044 = vst [vmem:[%s3043] ss:$9 sm:$0xff] %v1789
        %s3046 = scalar_lea.vmem [#allocation1], 3
        %3047 = vst [vmem:[%s3046] ss:$9 sm:$0xff] %v1790
        %s3049 = scalar_lea.vmem [#allocation1], 4
        %3050 = vst [vmem:[%s3049] ss:$9 sm:$0xff] %v1791
        %s3052 = scalar_lea.vmem [#allocation1], 5
        %3053 = vst [vmem:[%s3052] ss:$9 sm:$0xff] %v1792
        %s3055 = scalar_lea.vmem [#allocation1], 6
        %3056 = vst [vmem:[%s3055] ss:$9 sm:$0xff] %v1793
        %s3058 = scalar_lea.vmem [#allocation1], 7
        %3059 = vst [vmem:[%s3058] ss:$9 sm:$0xff] %v1794
        %v3060 = vld [vmem:[#allocation1] sm:$0xff]
        %v3061 = vsel %vm1141, %v3060, 0
        %v3064 = vsel %vm3019, %v592, 0
        %3066 = vmatpush.bf16.msra.mxu0 0
        %3067 = vmatpush.bf16.msra.mxu0 0
        %3068 = vmatpush.bf16.msra.mxu0 0
        %3069 = vmatpush.bf16.msra.mxu0 0
        %3070 = vmatpush.bf16.msra.mxu0 0
        %3071 = vmatpush.bf16.msra.mxu0 0
        %3072 = vmatpush.bf16.msra.mxu0 0
        %3073 = vmatpush.bf16.msra.mxu0 %v3064
        %3074 = vmatmul.bf16.gmra.mxu0 %v3061
        %v3075 = vpop.f32.mrf.mxu0
        %v3076 = vadd.f32 %v3033, %v3075
        %v3077 = vpop.f32.mrf.mxu0
        %v3078 = vadd.f32 %v3035, %v3077
        %3079 = vdwg.mxu0
        %v3082 = vrot.slane %v3076, 2
        %v3083 = vrot.slane %v3076, 4
        %v3084 = vrot.slane %v3076, 6
        %v3085 = vrot.slane %v3078, 2
        %v3086 = vrot.slane %v3078, 4
        %v3087 = vrot.slane %v3078, 6
        %3094 = vrot.lane.b32.xlu0 %v588, 112
        %v3095 = vpop.permute.xlu0 %3094
        %3096 = vrot.lane.b32.xlu0 %v590, 112
        %v3097 = vpop.permute.xlu0 %3096
        %v3100 = vrot.slane %v3095, 4
        %v3101 = vsel %vm597, 0.0, %v3100
        %v3103 = vunpack.c.l.s4 1983009808
        %v3104 = vunpack.c.0.s8 %v3103
        %v3105 = vperm.slane %v3095, %v3104
        %v3107 = vunpack.c.l.s4 1983009808
        %v3108 = vunpack.c.0.s8 %v3107
        %v3109 = vperm.slane %v3101, %v3108
        %v3110 = vrot.slane %v3097, 4
        %v3111 = vsel %vm597, 0.0, %v3110
        %v3113 = vunpack.c.l.s4 1983009808
        %v3114 = vunpack.c.0.s8 %v3113
        %v3115 = vperm.slane %v3097, %v3114
        %v3117 = vunpack.c.l.s4 1983009808
        %v3118 = vunpack.c.0.s8 %v3117
        %v3119 = vperm.slane %v3111, %v3118
        %v3120 = vrot.slane %v3115, 4
        %v3121 = vsel %vm597, %v3120, %v3105
        %v3122 = vrot.slane %v3105, 4
        %v3123 = vsel %vm597, %v3115, %v3122
        %v3125 = vunpack.c.l.s4 1934713408
        %v3126 = vunpack.c.0.s8 %v3125
        %v3127 = vperm.slane %v3121, %v3126
        %v3129 = vunpack.c.l.s4 1934713408
        %v3130 = vunpack.c.0.s8 %v3129
        %v3131 = vperm.slane %v3123, %v3130
        %v3132 = vrot.slane %v3119, 4
        %v3133 = vsel %vm597, %v3132, %v3109
        %v3134 = vrot.slane %v3109, 4
        %v3135 = vsel %vm597, %v3119, %v3134
        %v3137 = vunpack.c.l.s4 1934713408
        %v3138 = vunpack.c.0.s8 %v3137
        %v3139 = vperm.slane %v3133, %v3138
        %v3141 = vunpack.c.l.s4 1934713408
        %v3142 = vunpack.c.0.s8 %v3141
        %v3143 = vperm.slane %v3135, %v3142
        %v3144 = vrot.slane %v3127, 4
        %v3145 = vsel %vm597, 0.0, %v3144
        %v3146 = vrot.slane %v3131, 4
        %v3147 = vsel %vm597, 0.0, %v3146
        %v3148 = vrot.slane %v3139, 4
        %v3149 = vsel %vm597, 0.0, %v3148
        %v3150 = vrot.slane %v3143, 4
        %v3151 = vsel %vm597, 0.0, %v3150
        %3152 = vrot.lane.b32.xlu0 %v588, 80
        %v3153 = vpop.permute.xlu0 %3152
        %3154 = vrot.lane.b32.xlu0 %v590, 80
        %v3155 = vpop.permute.xlu0 %3154
        %3158 = vxpose.xlu0.b32.start [1/16] %v3153, 128
        %3159 = vxpose.xlu0.b32.cont [2/16] 0.0, 128
        %3160 = vxpose.xlu0.b32.cont [3/16] 0.0, 128
        %3161 = vxpose.xlu0.b32.cont [4/16] 0.0, 128
        %3162 = vxpose.xlu0.b32.cont [5/16] 0.0, 128
        %3163 = vxpose.xlu0.b32.cont [6/16] 0.0, 128
        %3164 = vxpose.xlu0.b32.cont [7/16] 0.0, 128
        %3165 = vxpose.xlu0.b32.cont [8/16] 0.0, 128
        %3166 = vxpose.xlu0.b32.cont [9/16] 0.0, 128
        %3167 = vxpose.xlu0.b32.cont [10/16] 0.0, 128
        %3168 = vxpose.xlu0.b32.cont [11/16] 0.0, 128
        %3169 = vxpose.xlu0.b32.cont [12/16] 0.0, 128
        %3170 = vxpose.xlu0.b32.cont [13/16] 0.0, 128
        %3171 = vxpose.xlu0.b32.cont [14/16] 0.0, 128
        %3172 = vxpose.xlu0.b32.cont [15/16] 0.0, 128
        %3173 = vxpose.xlu0.b32.end [16/16] 0.0, 128
        %v3174 = vpop.trf.xlu0
        %v3175 = vpop.trf.xlu0
        %v3176 = vpop.trf.xlu0
        %v3177 = vpop.trf.xlu0
        %v3178 = vpop.trf.xlu0
        %v3179 = vpop.trf.xlu0
        %v3180 = vpop.trf.xlu0
        %v3181 = vpop.trf.xlu0
        %v3182 = vpop.trf.xlu0
        %v3183 = vpop.trf.xlu0
        %v3184 = vpop.trf.xlu0
        %v3185 = vpop.trf.xlu0
        %v3186 = vpop.trf.xlu0
        %v3187 = vpop.trf.xlu0
        %v3188 = vpop.trf.xlu0
        %v3189 = vpop.trf.xlu0
        %3190 = vxpose.xlu0.b32.start [1/16] %v3155, 128
        %3191 = vxpose.xlu0.b32.cont [2/16] 0.0, 128
        %3192 = vxpose.xlu0.b32.cont [3/16] 0.0, 128
        %3193 = vxpose.xlu0.b32.cont [4/16] 0.0, 128
        %3194 = vxpose.xlu0.b32.cont [5/16] 0.0, 128
        %3195 = vxpose.xlu0.b32.cont [6/16] 0.0, 128
        %3196 = vxpose.xlu0.b32.cont [7/16] 0.0, 128
        %3197 = vxpose.xlu0.b32.cont [8/16] 0.0, 128
        %3198 = vxpose.xlu0.b32.cont [9/16] 0.0, 128
        %3199 = vxpose.xlu0.b32.cont [10/16] 0.0, 128
        %3200 = vxpose.xlu0.b32.cont [11/16] 0.0, 128
        %3201 = vxpose.xlu0.b32.cont [12/16] 0.0, 128
        %3202 = vxpose.xlu0.b32.cont [13/16] 0.0, 128
        %3203 = vxpose.xlu0.b32.cont [14/16] 0.0, 128
        %3204 = vxpose.xlu0.b32.cont [15/16] 0.0, 128
        %3205 = vxpose.xlu0.b32.end [16/16] 0.0, 128
        %v3206 = vpop.trf.xlu0
        %v3207 = vpop.trf.xlu0
        %v3208 = vpop.trf.xlu0
        %v3209 = vpop.trf.xlu0
        %v3210 = vpop.trf.xlu0
        %v3211 = vpop.trf.xlu0
        %v3212 = vpop.trf.xlu0
        %v3213 = vpop.trf.xlu0
        %v3214 = vpop.trf.xlu0
        %v3215 = vpop.trf.xlu0
        %v3216 = vpop.trf.xlu0
        %v3217 = vpop.trf.xlu0
        %v3218 = vpop.trf.xlu0
        %v3219 = vpop.trf.xlu0
        %v3220 = vpop.trf.xlu0
        %v3221 = vpop.trf.xlu0
        %v3222 = vrot.slane %v3174, 4
        %v3223 = vsel %vm597, 0.0, %v3222
        %v3225 = vunpack.c.l.s4 1983009808
        %v3226 = vunpack.c.0.s8 %v3225
        %v3227 = vperm.slane %v3174, %v3226
        %v3229 = vunpack.c.l.s4 1983009808
        %v3230 = vunpack.c.0.s8 %v3229
        %v3231 = vperm.slane %v3223, %v3230
        %v3232 = vrot.slane %v3206, 4
        %v3233 = vsel %vm597, 0.0, %v3232
        %v3235 = vunpack.c.l.s4 1983009808
        %v3236 = vunpack.c.0.s8 %v3235
        %v3237 = vperm.slane %v3206, %v3236
        %v3239 = vunpack.c.l.s4 1983009808
        %v3240 = vunpack.c.0.s8 %v3239
        %v3241 = vperm.slane %v3233, %v3240
        %v3242 = vrot.slane %v3237, 4
        %v3243 = vsel %vm597, %v3242, %v3227
        %v3244 = vrot.slane %v3227, 4
        %v3245 = vsel %vm597, %v3237, %v3244
        %v3247 = vunpack.c.l.s4 1934713408
        %v3248 = vunpack.c.0.s8 %v3247
        %v3249 = vperm.slane %v3243, %v3248
        %v3251 = vunpack.c.l.s4 1934713408
        %v3252 = vunpack.c.0.s8 %v3251
        %v3253 = vperm.slane %v3245, %v3252
        %v3254 = vrot.slane %v3241, 4
        %v3255 = vsel %vm597, %v3254, %v3231
        %v3256 = vrot.slane %v3231, 4
        %v3257 = vsel %vm597, %v3241, %v3256
        %v3259 = vunpack.c.l.s4 1934713408
        %v3260 = vunpack.c.0.s8 %v3259
        %v3261 = vperm.slane %v3255, %v3260
        %v3263 = vunpack.c.l.s4 1934713408
        %v3264 = vunpack.c.0.s8 %v3263
        %v3265 = vperm.slane %v3257, %v3264
        %v3266 = vrot.slane %v3249, 4
        %v3267 = vsel %vm597, 0.0, %v3266
        %v3268 = vrot.slane %v3253, 4
        %v3269 = vsel %vm597, 0.0, %v3268
        %v3270 = vrot.slane %v3261, 4
        %v3271 = vsel %vm597, 0.0, %v3270
        %v3272 = vrot.slane %v3265, 4
        %v3273 = vsel %vm597, 0.0, %v3272
        %3274 = vxpose.xlu0.b32.start [1/16] %v3249, 128
        %3275 = vxpose.xlu0.b32.cont [2/16] 0.0, 128
        %3276 = vxpose.xlu0.b32.cont [3/16] 0.0, 128
        %3277 = vxpose.xlu0.b32.cont [4/16] 0.0, 128
        %3278 = vxpose.xlu0.b32.cont [5/16] 0.0, 128
        %3279 = vxpose.xlu0.b32.cont [6/16] 0.0, 128
        %3280 = vxpose.xlu0.b32.cont [7/16] 0.0, 128
        %3281 = vxpose.xlu0.b32.cont [8/16] 0.0, 128
        %3282 = vxpose.xlu0.b32.cont [9/16] 0.0, 128
        %3283 = vxpose.xlu0.b32.cont [10/16] 0.0, 128
        %3284 = vxpose.xlu0.b32.cont [11/16] 0.0, 128
        %3285 = vxpose.xlu0.b32.cont [12/16] 0.0, 128
        %3286 = vxpose.xlu0.b32.cont [13/16] 0.0, 128
        %3287 = vxpose.xlu0.b32.cont [14/16] 0.0, 128
        %3288 = vxpose.xlu0.b32.cont [15/16] 0.0, 128
        %3289 = vxpose.xlu0.b32.end [16/16] 0.0, 128
        %v3290 = vpop.trf.xlu0
        %v3291 = vpop.trf.xlu0
        %v3292 = vpop.trf.xlu0
        %v3293 = vpop.trf.xlu0
        %v3294 = vpop.trf.xlu0
        %v3295 = vpop.trf.xlu0
        %v3296 = vpop.trf.xlu0
        %v3297 = vpop.trf.xlu0
        %v3298 = vpop.trf.xlu0
        %v3299 = vpop.trf.xlu0
        %v3300 = vpop.trf.xlu0
        %v3301 = vpop.trf.xlu0
        %v3302 = vpop.trf.xlu0
        %v3303 = vpop.trf.xlu0
        %v3304 = vpop.trf.xlu0
        %v3305 = vpop.trf.xlu0
        %3306 = vxpose.xlu0.b32.start [1/16] %v3267, 128
        %3307 = vxpose.xlu0.b32.cont [2/16] 0.0, 128
        %3308 = vxpose.xlu0.b32.cont [3/16] 0.0, 128
        %3309 = vxpose.xlu0.b32.cont [4/16] 0.0, 128
        %3310 = vxpose.xlu0.b32.cont [5/16] 0.0, 128
        %3311 = vxpose.xlu0.b32.cont [6/16] 0.0, 128
        %3312 = vxpose.xlu0.b32.cont [7/16] 0.0, 128
        %3313 = vxpose.xlu0.b32.cont [8/16] 0.0, 128
        %3314 = vxpose.xlu0.b32.cont [9/16] 0.0, 128
        %3315 = vxpose.xlu0.b32.cont [10/16] 0.0, 128
        %3316 = vxpose.xlu0.b32.cont [11/16] 0.0, 128
        %3317 = vxpose.xlu0.b32.cont [12/16] 0.0, 128
        %3318 = vxpose.xlu0.b32.cont [13/16] 0.0, 128
        %3319 = vxpose.xlu0.b32.cont [14/16] 0.0, 128
        %3320 = vxpose.xlu0.b32.cont [15/16] 0.0, 128
        %3321 = vxpose.xlu0.b32.end [16/16] 0.0, 128
        %v3322 = vpop.trf.xlu0
        %v3323 = vpop.trf.xlu0
        %v3324 = vpop.trf.xlu0
        %v3325 = vpop.trf.xlu0
        %v3326 = vpop.trf.xlu0
        %v3327 = vpop.trf.xlu0
        %v3328 = vpop.trf.xlu0
        %v3329 = vpop.trf.xlu0
        %v3330 = vpop.trf.xlu0
        %v3331 = vpop.trf.xlu0
        %v3332 = vpop.trf.xlu0
        %v3333 = vpop.trf.xlu0
        %v3334 = vpop.trf.xlu0
        %v3335 = vpop.trf.xlu0
        %v3336 = vpop.trf.xlu0
        %v3337 = vpop.trf.xlu0
        %3338 = vxpose.xlu0.b32.start [1/16] %v3253, 128
        %3339 = vxpose.xlu0.b32.cont [2/16] 0.0, 128
        %3340 = vxpose.xlu0.b32.cont [3/16] 0.0, 128
        %3341 = vxpose.xlu0.b32.cont [4/16] 0.0, 128
        %3342 = vxpose.xlu0.b32.cont [5/16] 0.0, 128
        %3343 = vxpose.xlu0.b32.cont [6/16] 0.0, 128
        %3344 = vxpose.xlu0.b32.cont [7/16] 0.0, 128
        %3345 = vxpose.xlu0.b32.cont [8/16] 0.0, 128
        %3346 = vxpose.xlu0.b32.cont [9/16] 0.0, 128
        %3347 = vxpose.xlu0.b32.cont [10/16] 0.0, 128
        %3348 = vxpose.xlu0.b32.cont [11/16] 0.0, 128
        %3349 = vxpose.xlu0.b32.cont [12/16] 0.0, 128
        %3350 = vxpose.xlu0.b32.cont [13/16] 0.0, 128
        %3351 = vxpose.xlu0.b32.cont [14/16] 0.0, 128
        %3352 = vxpose.xlu0.b32.cont [15/16] 0.0, 128
        %3353 = vxpose.xlu0.b32.end [16/16] 0.0, 128
        %v3354 = vpop.trf.xlu0
        %v3355 = vpop.trf.xlu0
        %v3356 = vpop.trf.xlu0
        %v3357 = vpop.trf.xlu0
        %v3358 = vpop.trf.xlu0
        %v3359 = vpop.trf.xlu0
        %v3360 = vpop.trf.xlu0
        %v3361 = vpop.trf.xlu0
        %v3362 = vpop.trf.xlu0
        %v3363 = vpop.trf.xlu0
        %v3364 = vpop.trf.xlu0
        %v3365 = vpop.trf.xlu0
        %v3366 = vpop.trf.xlu0
        %v3367 = vpop.trf.xlu0
        %v3368 = vpop.trf.xlu0
        %v3369 = vpop.trf.xlu0
        %3370 = vxpose.xlu0.b32.start [1/16] %v3269, 128
        %3371 = vxpose.xlu0.b32.cont [2/16] 0.0, 128
        %3372 = vxpose.xlu0.b32.cont [3/16] 0.0, 128
        %3373 = vxpose.xlu0.b32.cont [4/16] 0.0, 128
        %3374 = vxpose.xlu0.b32.cont [5/16] 0.0, 128
        %3375 = vxpose.xlu0.b32.cont [6/16] 0.0, 128
        %3376 = vxpose.xlu0.b32.cont [7/16] 0.0, 128
        %3377 = vxpose.xlu0.b32.cont [8/16] 0.0, 128
        %3378 = vxpose.xlu0.b32.cont [9/16] 0.0, 128
        %3379 = vxpose.xlu0.b32.cont [10/16] 0.0, 128
        %3380 = vxpose.xlu0.b32.cont [11/16] 0.0, 128
        %3381 = vxpose.xlu0.b32.cont [12/16] 0.0, 128
        %3382 = vxpose.xlu0.b32.cont [13/16] 0.0, 128
        %3383 = vxpose.xlu0.b32.cont [14/16] 0.0, 128
        %3384 = vxpose.xlu0.b32.cont [15/16] 0.0, 128
        %3385 = vxpose.xlu0.b32.end [16/16] 0.0, 128
        %v3386 = vpop.trf.xlu0
        %v3387 = vpop.trf.xlu0
        %v3388 = vpop.trf.xlu0
        %v3389 = vpop.trf.xlu0
        %v3390 = vpop.trf.xlu0
        %v3391 = vpop.trf.xlu0
        %v3392 = vpop.trf.xlu0
        %v3393 = vpop.trf.xlu0
        %v3394 = vpop.trf.xlu0
        %v3395 = vpop.trf.xlu0
        %v3396 = vpop.trf.xlu0
        %v3397 = vpop.trf.xlu0
        %v3398 = vpop.trf.xlu0
        %v3399 = vpop.trf.xlu0
        %v3400 = vpop.trf.xlu0
        %v3401 = vpop.trf.xlu0
        %3402 = vxpose.xlu0.b32.start [1/16] %v3261, 128
        %3403 = vxpose.xlu0.b32.cont [2/16] 0.0, 128
        %3404 = vxpose.xlu0.b32.cont [3/16] 0.0, 128
        %3405 = vxpose.xlu0.b32.cont [4/16] 0.0, 128
        %3406 = vxpose.xlu0.b32.cont [5/16] 0.0, 128
        %3407 = vxpose.xlu0.b32.cont [6/16] 0.0, 128
        %3408 = vxpose.xlu0.b32.cont [7/16] 0.0, 128
        %3409 = vxpose.xlu0.b32.cont [8/16] 0.0, 128
        %3410 = vxpose.xlu0.b32.cont [9/16] 0.0, 128
        %3411 = vxpose.xlu0.b32.cont [10/16] 0.0, 128
        %3412 = vxpose.xlu0.b32.cont [11/16] 0.0, 128
        %3413 = vxpose.xlu0.b32.cont [12/16] 0.0, 128
        %3414 = vxpose.xlu0.b32.cont [13/16] 0.0, 128
        %3415 = vxpose.xlu0.b32.cont [14/16] 0.0, 128
        %3416 = vxpose.xlu0.b32.cont [15/16] 0.0, 128
        %3417 = vxpose.xlu0.b32.end [16/16] 0.0, 128
        %v3418 = vpop.trf.xlu0
        %v3419 = vpop.trf.xlu0
        %v3420 = vpop.trf.xlu0
        %v3421 = vpop.trf.xlu0
        %v3422 = vpop.trf.xlu0
        %v3423 = vpop.trf.xlu0
        %v3424 = vpop.trf.xlu0
        %v3425 = vpop.trf.xlu0
        %v3426 = vpop.trf.xlu0
        %v3427 = vpop.trf.xlu0
        %v3428 = vpop.trf.xlu0
        %v3429 = vpop.trf.xlu0
        %v3430 = vpop.trf.xlu0
        %v3431 = vpop.trf.xlu0
        %v3432 = vpop.trf.xlu0
        %v3433 = vpop.trf.xlu0
        %3434 = vxpose.xlu0.b32.start [1/16] %v3271, 128
        %3435 = vxpose.xlu0.b32.cont [2/16] 0.0, 128
        %3436 = vxpose.xlu0.b32.cont [3/16] 0.0, 128
        %3437 = vxpose.xlu0.b32.cont [4/16] 0.0, 128
        %3438 = vxpose.xlu0.b32.cont [5/16] 0.0, 128
        %3439 = vxpose.xlu0.b32.cont [6/16] 0.0, 128
        %3440 = vxpose.xlu0.b32.cont [7/16] 0.0, 128
        %3441 = vxpose.xlu0.b32.cont [8/16] 0.0, 128
        %3442 = vxpose.xlu0.b32.cont [9/16] 0.0, 128
        %3443 = vxpose.xlu0.b32.cont [10/16] 0.0, 128
        %3444 = vxpose.xlu0.b32.cont [11/16] 0.0, 128
        %3445 = vxpose.xlu0.b32.cont [12/16] 0.0, 128
        %3446 = vxpose.xlu0.b32.cont [13/16] 0.0, 128
        %3447 = vxpose.xlu0.b32.cont [14/16] 0.0, 128
        %3448 = vxpose.xlu0.b32.cont [15/16] 0.0, 128
        %3449 = vxpose.xlu0.b32.end [16/16] 0.0, 128
        %v3450 = vpop.trf.xlu0
        %v3451 = vpop.trf.xlu0
        %v3452 = vpop.trf.xlu0
        %v3453 = vpop.trf.xlu0
        %v3454 = vpop.trf.xlu0
        %v3455 = vpop.trf.xlu0
        %v3456 = vpop.trf.xlu0
        %v3457 = vpop.trf.xlu0
        %v3458 = vpop.trf.xlu0
        %v3459 = vpop.trf.xlu0
        %v3460 = vpop.trf.xlu0
        %v3461 = vpop.trf.xlu0
        %v3462 = vpop.trf.xlu0
        %v3463 = vpop.trf.xlu0
        %v3464 = vpop.trf.xlu0
        %v3465 = vpop.trf.xlu0
        %3466 = vxpose.xlu0.b32.start [1/16] %v3265, 128
        %3467 = vxpose.xlu0.b32.cont [2/16] 0.0, 128
        %3468 = vxpose.xlu0.b32.cont [3/16] 0.0, 128
        %3469 = vxpose.xlu0.b32.cont [4/16] 0.0, 128
        %3470 = vxpose.xlu0.b32.cont [5/16] 0.0, 128
        %3471 = vxpose.xlu0.b32.cont [6/16] 0.0, 128
        %3472 = vxpose.xlu0.b32.cont [7/16] 0.0, 128
        %3473 = vxpose.xlu0.b32.cont [8/16] 0.0, 128
        %3474 = vxpose.xlu0.b32.cont [9/16] 0.0, 128
        %3475 = vxpose.xlu0.b32.cont [10/16] 0.0, 128
        %3476 = vxpose.xlu0.b32.cont [11/16] 0.0, 128
        %3477 = vxpose.xlu0.b32.cont [12/16] 0.0, 128
        %3478 = vxpose.xlu0.b32.cont [13/16] 0.0, 128
        %3479 = vxpose.xlu0.b32.cont [14/16] 0.0, 128
        %3480 = vxpose.xlu0.b32.cont [15/16] 0.0, 128
        %3481 = vxpose.xlu0.b32.end [16/16] 0.0, 128
        %v3482 = vpop.trf.xlu0
        %v3483 = vpop.trf.xlu0
        %v3484 = vpop.trf.xlu0
        %v3485 = vpop.trf.xlu0
        %v3486 = vpop.trf.xlu0
        %v3487 = vpop.trf.xlu0
        %v3488 = vpop.trf.xlu0
        %v3489 = vpop.trf.xlu0
        %v3490 = vpop.trf.xlu0
        %v3491 = vpop.trf.xlu0
        %v3492 = vpop.trf.xlu0
        %v3493 = vpop.trf.xlu0
        %v3494 = vpop.trf.xlu0
        %v3495 = vpop.trf.xlu0
        %v3496 = vpop.trf.xlu0
        %v3497 = vpop.trf.xlu0
        %3498 = vxpose.xlu0.b32.start [1/16] %v3273, 128
        %3499 = vxpose.xlu0.b32.cont [2/16] 0.0, 128
        %3500 = vxpose.xlu0.b32.cont [3/16] 0.0, 128
        %3501 = vxpose.xlu0.b32.cont [4/16] 0.0, 128
        %3502 = vxpose.xlu0.b32.cont [5/16] 0.0, 128
        %3503 = vxpose.xlu0.b32.cont [6/16] 0.0, 128
        %3504 = vxpose.xlu0.b32.cont [7/16] 0.0, 128
        %3505 = vxpose.xlu0.b32.cont [8/16] 0.0, 128
        %3506 = vxpose.xlu0.b32.cont [9/16] 0.0, 128
        %3507 = vxpose.xlu0.b32.cont [10/16] 0.0, 128
        %3508 = vxpose.xlu0.b32.cont [11/16] 0.0, 128
        %3509 = vxpose.xlu0.b32.cont [12/16] 0.0, 128
        %3510 = vxpose.xlu0.b32.cont [13/16] 0.0, 128
        %3511 = vxpose.xlu0.b32.cont [14/16] 0.0, 128
        %3512 = vxpose.xlu0.b32.cont [15/16] 0.0, 128
        %3513 = vxpose.xlu0.b32.end [16/16] 0.0, 128
        %v3514 = vpop.trf.xlu0
        %v3515 = vpop.trf.xlu0
        %v3516 = vpop.trf.xlu0
        %v3517 = vpop.trf.xlu0
        %v3518 = vpop.trf.xlu0
        %v3519 = vpop.trf.xlu0
        %v3520 = vpop.trf.xlu0
        %v3521 = vpop.trf.xlu0
        %v3522 = vpop.trf.xlu0
        %v3523 = vpop.trf.xlu0
        %v3524 = vpop.trf.xlu0
        %v3525 = vpop.trf.xlu0
        %v3526 = vpop.trf.xlu0
        %v3527 = vpop.trf.xlu0
        %v3528 = vpop.trf.xlu0
        %v3529 = vpop.trf.xlu0
        %v3530 = vrot.slane %v3354, 4
        %v3531 = vsel %vm597, %v3530, %v3290
        %v3532 = vrot.slane %v3290, 4
        %v3533 = vsel %vm597, %v3354, %v3532
        %v3535 = vunpack.c.l.s4 1983009808
        %v3536 = vunpack.c.0.s8 %v3535
        %v3537 = vperm.slane %v3531, %v3536
        %v3539 = vunpack.c.l.s4 1983009808
        %v3540 = vunpack.c.0.s8 %v3539
        %v3541 = vperm.slane %v3533, %v3540
        %v3542 = vrot.slane %v3386, 4
        %v3543 = vsel %vm597, %v3542, %v3322
        %v3544 = vrot.slane %v3322, 4
        %v3545 = vsel %vm597, %v3386, %v3544
        %v3547 = vunpack.c.l.s4 1983009808
        %v3548 = vunpack.c.0.s8 %v3547
        %v3549 = vperm.slane %v3543, %v3548
        %v3551 = vunpack.c.l.s4 1983009808
        %v3552 = vunpack.c.0.s8 %v3551
        %v3553 = vperm.slane %v3545, %v3552
        %v3554 = vrot.slane %v3482, 4
        %v3555 = vsel %vm597, %v3554, %v3418
        %v3556 = vrot.slane %v3418, 4
        %v3557 = vsel %vm597, %v3482, %v3556
        %v3559 = vunpack.c.l.s4 1983009808
        %v3560 = vunpack.c.0.s8 %v3559
        %v3561 = vperm.slane %v3555, %v3560
        %v3563 = vunpack.c.l.s4 1983009808
        %v3564 = vunpack.c.0.s8 %v3563
        %v3565 = vperm.slane %v3557, %v3564
        %v3566 = vrot.slane %v3514, 4
        %v3567 = vsel %vm597, %v3566, %v3450
        %v3568 = vrot.slane %v3450, 4
        %v3569 = vsel %vm597, %v3514, %v3568
        %v3571 = vunpack.c.l.s4 1983009808
        %v3572 = vunpack.c.0.s8 %v3571
        %v3573 = vperm.slane %v3567, %v3572
        %v3575 = vunpack.c.l.s4 1983009808
        %v3576 = vunpack.c.0.s8 %v3575
        %v3577 = vperm.slane %v3569, %v3576
        %v3578 = vrot.slane %v3549, 4
        %v3579 = vsel %vm597, %v3578, %v3537
        %v3580 = vrot.slane %v3537, 4
        %v3581 = vsel %vm597, %v3549, %v3580
        %v3583 = vunpack.c.l.s4 1934713408
        %v3584 = vunpack.c.0.s8 %v3583
        %v3585 = vperm.slane %v3579, %v3584
        %v3587 = vunpack.c.l.s4 1934713408
        %v3588 = vunpack.c.0.s8 %v3587
        %v3589 = vperm.slane %v3581, %v3588
        %v3590 = vrot.slane %v3553, 4
        %v3591 = vsel %vm597, %v3590, %v3541
        %v3592 = vrot.slane %v3541, 4
        %v3593 = vsel %vm597, %v3553, %v3592
        %v3595 = vunpack.c.l.s4 1934713408
        %v3596 = vunpack.c.0.s8 %v3595
        %v3597 = vperm.slane %v3591, %v3596
        %v3599 = vunpack.c.l.s4 1934713408
        %v3600 = vunpack.c.0.s8 %v3599
        %v3601 = vperm.slane %v3593, %v3600
        %v3602 = vrot.slane %v3573, 4
        %v3603 = vsel %vm597, %v3602, %v3561
        %v3604 = vrot.slane %v3561, 4
        %v3605 = vsel %vm597, %v3573, %v3604
        %v3607 = vunpack.c.l.s4 1934713408
        %v3608 = vunpack.c.0.s8 %v3607
        %v3609 = vperm.slane %v3603, %v3608
        %v3611 = vunpack.c.l.s4 1934713408
        %v3612 = vunpack.c.0.s8 %v3611
        %v3613 = vperm.slane %v3605, %v3612
        %v3614 = vrot.slane %v3577, 4
        %v3615 = vsel %vm597, %v3614, %v3565
        %v3616 = vrot.slane %v3565, 4
        %v3617 = vsel %vm597, %v3577, %v3616
        %v3619 = vunpack.c.l.s4 1934713408
        %v3620 = vunpack.c.0.s8 %v3619
        %v3621 = vperm.slane %v3615, %v3620
        %v3623 = vunpack.c.l.s4 1934713408
        %v3624 = vunpack.c.0.s8 %v3623
        %v3625 = vperm.slane %v3617, %v3624
        %v3626 = vrot.slane %v3609, 4
        %v3627 = vsel %vm597, %v3626, %v3585
        %v3628 = vrot.slane %v3585, 4
        %v3629 = vsel %vm597, %v3609, %v3628
        %v3630 = vrot.slane %v3613, 4
        %v3631 = vsel %vm597, %v3630, %v3589
        %v3632 = vrot.slane %v3589, 4
        %v3633 = vsel %vm597, %v3613, %v3632
        %v3634 = vrot.slane %v3621, 4
        %v3635 = vsel %vm597, %v3634, %v3597
        %v3636 = vrot.slane %v3597, 4
        %v3637 = vsel %vm597, %v3621, %v3636
        %v3638 = vrot.slane %v3625, 4
        %v3639 = vsel %vm597, %v3638, %v3601
        %v3640 = vrot.slane %v3601, 4
        %v3641 = vsel %vm597, %v3625, %v3640
        %v3643 = vsel %vm1141, %v3127, 0
        %3645 = vmatpush.msra.mxu0 0.0
        %3646 = vmatpush.msra.mxu0 0.0
        %3647 = vmatpush.msra.mxu0 0.0
        %3648 = vmatpush.msra.mxu0 0.0
        %3649 = vmatpush.msra.mxu0 0.0
        %3650 = vmatpush.msra.mxu0 0.0
        %3651 = vmatpush.msra.mxu0 0.0
        %3652 = vmatpush.msra.mxu0 0.0
        %3653 = vmatpush.msra.mxu0 0.0
        %3654 = vmatpush.msra.mxu0 0.0
        %3655 = vmatpush.msra.mxu0 0.0
        %3656 = vmatpush.msra.mxu0 0.0
        %3657 = vmatpush.msra.mxu0 0.0
        %3658 = vmatpush.msra.mxu0 0.0
        %3659 = vmatpush.msra.mxu0 0.0
        %3660 = vmatpush.msra.mxu0 %v3627
        %3661 = vmatmul.f32.gmra.mxu0 %v3643
        %v3662 = vpop.f32.mrf.mxu0
        %v3663 = vadd.f32 0.0, %v3662
        %3664 = vdwg.mxu0
        %v3666 = vsel %vm1141, %v3145, 0
        %3668 = vmatpush.msra.mxu0 0.0
        %3669 = vmatpush.msra.mxu0 0.0
        %3670 = vmatpush.msra.mxu0 0.0
        %3671 = vmatpush.msra.mxu0 0.0
        %3672 = vmatpush.msra.mxu0 0.0
        %3673 = vmatpush.msra.mxu0 0.0
        %3674 = vmatpush.msra.mxu0 0.0
        %3675 = vmatpush.msra.mxu0 0.0
        %3676 = vmatpush.msra.mxu0 0.0
        %3677 = vmatpush.msra.mxu0 0.0
        %3678 = vmatpush.msra.mxu0 0.0
        %3679 = vmatpush.msra.mxu0 0.0
        %3680 = vmatpush.msra.mxu0 0.0
        %3681 = vmatpush.msra.mxu0 0.0
        %3682 = vmatpush.msra.mxu0 0.0
        %3683 = vmatpush.msra.mxu0 %v3629
        %3684 = vmatmul.f32.gmra.mxu0 %v3666
        %v3685 = vpop.f32.mrf.mxu0
        %v3686 = vadd.f32 0.0, %v3685
        %3687 = vdwg.mxu0
        %v3689 = vsel %vm1141, %v3131, 0
        %3691 = vmatpush.msra.mxu0 0.0
        %3692 = vmatpush.msra.mxu0 0.0
        %3693 = vmatpush.msra.mxu0 0.0
        %3694 = vmatpush.msra.mxu0 0.0
        %3695 = vmatpush.msra.mxu0 0.0
        %3696 = vmatpush.msra.mxu0 0.0
        %3697 = vmatpush.msra.mxu0 0.0
        %3698 = vmatpush.msra.mxu0 0.0
        %3699 = vmatpush.msra.mxu0 0.0
        %3700 = vmatpush.msra.mxu0 0.0
        %3701 = vmatpush.msra.mxu0 0.0
        %3702 = vmatpush.msra.mxu0 0.0
        %3703 = vmatpush.msra.mxu0 0.0
        %3704 = vmatpush.msra.mxu0 0.0
        %3705 = vmatpush.msra.mxu0 0.0
        %3706 = vmatpush.msra.mxu0 %v3631
        %3707 = vmatmul.f32.gmra.mxu0 %v3689
        %v3708 = vpop.f32.mrf.mxu0
        %v3709 = vadd.f32 0.0, %v3708
        %3710 = vdwg.mxu0
        %v3712 = vsel %vm1141, %v3147, 0
        %3714 = vmatpush.msra.mxu0 0.0
        %3715 = vmatpush.msra.mxu0 0.0
        %3716 = vmatpush.msra.mxu0 0.0
        %3717 = vmatpush.msra.mxu0 0.0
        %3718 = vmatpush.msra.mxu0 0.0
        %3719 = vmatpush.msra.mxu0 0.0
        %3720 = vmatpush.msra.mxu0 0.0
        %3721 = vmatpush.msra.mxu0 0.0
        %3722 = vmatpush.msra.mxu0 0.0
        %3723 = vmatpush.msra.mxu0 0.0
        %3724 = vmatpush.msra.mxu0 0.0
        %3725 = vmatpush.msra.mxu0 0.0
        %3726 = vmatpush.msra.mxu0 0.0
        %3727 = vmatpush.msra.mxu0 0.0
        %3728 = vmatpush.msra.mxu0 0.0
        %3729 = vmatpush.msra.mxu0 %v3633
        %3730 = vmatmul.f32.gmra.mxu0 %v3712
        %v3731 = vpop.f32.mrf.mxu0
        %v3732 = vadd.f32 0.0, %v3731
        %3733 = vdwg.mxu0
        %v3735 = vsel %vm1141, %v3139, 0
        %3737 = vmatpush.msra.mxu0 0.0
        %3738 = vmatpush.msra.mxu0 0.0
        %3739 = vmatpush.msra.mxu0 0.0
        %3740 = vmatpush.msra.mxu0 0.0
        %3741 = vmatpush.msra.mxu0 0.0
        %3742 = vmatpush.msra.mxu0 0.0
        %3743 = vmatpush.msra.mxu0 0.0
        %3744 = vmatpush.msra.mxu0 0.0
        %3745 = vmatpush.msra.mxu0 0.0
        %3746 = vmatpush.msra.mxu0 0.0
        %3747 = vmatpush.msra.mxu0 0.0
        %3748 = vmatpush.msra.mxu0 0.0
        %3749 = vmatpush.msra.mxu0 0.0
        %3750 = vmatpush.msra.mxu0 0.0
        %3751 = vmatpush.msra.mxu0 0.0
        %3752 = vmatpush.msra.mxu0 %v3635
        %3753 = vmatmul.f32.gmra.mxu0 %v3735
        %v3754 = vpop.f32.mrf.mxu0
        %v3755 = vadd.f32 0.0, %v3754
        %3756 = vdwg.mxu0
        %v3758 = vsel %vm1141, %v3149, 0
        %3760 = vmatpush.msra.mxu0 0.0
        %3761 = vmatpush.msra.mxu0 0.0
        %3762 = vmatpush.msra.mxu0 0.0
        %3763 = vmatpush.msra.mxu0 0.0
        %3764 = vmatpush.msra.mxu0 0.0
        %3765 = vmatpush.msra.mxu0 0.0
        %3766 = vmatpush.msra.mxu0 0.0
        %3767 = vmatpush.msra.mxu0 0.0
        %3768 = vmatpush.msra.mxu0 0.0
        %3769 = vmatpush.msra.mxu0 0.0
        %3770 = vmatpush.msra.mxu0 0.0
        %3771 = vmatpush.msra.mxu0 0.0
        %3772 = vmatpush.msra.mxu0 0.0
        %3773 = vmatpush.msra.mxu0 0.0
        %3774 = vmatpush.msra.mxu0 0.0
        %3775 = vmatpush.msra.mxu0 %v3637
        %3776 = vmatmul.f32.gmra.mxu0 %v3758
        %v3777 = vpop.f32.mrf.mxu0
        %v3778 = vadd.f32 0.0, %v3777
        %3779 = vdwg.mxu0
        %v3781 = vsel %vm1141, %v3143, 0
        %3783 = vmatpush.msra.mxu0 0.0
        %3784 = vmatpush.msra.mxu0 0.0
        %3785 = vmatpush.msra.mxu0 0.0
        %3786 = vmatpush.msra.mxu0 0.0
        %3787 = vmatpush.msra.mxu0 0.0
        %3788 = vmatpush.msra.mxu0 0.0
        %3789 = vmatpush.msra.mxu0 0.0
        %3790 = vmatpush.msra.mxu0 0.0
        %3791 = vmatpush.msra.mxu0 0.0
        %3792 = vmatpush.msra.mxu0 0.0
        %3793 = vmatpush.msra.mxu0 0.0
        %3794 = vmatpush.msra.mxu0 0.0
        %3795 = vmatpush.msra.mxu0 0.0
        %3796 = vmatpush.msra.mxu0 0.0
        %3797 = vmatpush.msra.mxu0 0.0
        %3798 = vmatpush.msra.mxu0 %v3639
        %3799 = vmatmul.f32.gmra.mxu0 %v3781
        %v3800 = vpop.f32.mrf.mxu0
        %v3801 = vadd.f32 0.0, %v3800
        %3802 = vdwg.mxu0
        %v3804 = vsel %vm1141, %v3151, 0
        %3806 = vmatpush.msra.mxu0 0.0
        %3807 = vmatpush.msra.mxu0 0.0
        %3808 = vmatpush.msra.mxu0 0.0
        %3809 = vmatpush.msra.mxu0 0.0
        %3810 = vmatpush.msra.mxu0 0.0
        %3811 = vmatpush.msra.mxu0 0.0
        %3812 = vmatpush.msra.mxu0 0.0
        %3813 = vmatpush.msra.mxu0 0.0
        %3814 = vmatpush.msra.mxu0 0.0
        %3815 = vmatpush.msra.mxu0 0.0
        %3816 = vmatpush.msra.mxu0 0.0
        %3817 = vmatpush.msra.mxu0 0.0
        %3818 = vmatpush.msra.mxu0 0.0
        %3819 = vmatpush.msra.mxu0 0.0
        %3820 = vmatpush.msra.mxu0 0.0
        %3821 = vmatpush.msra.mxu0 %v3641
        %3822 = vmatmul.f32.gmra.mxu0 %v3804
        %v3823 = vpop.f32.mrf.mxu0
        %v3824 = vadd.f32 0.0, %v3823
        %3825 = vdwg.mxu0
        %v3826 = vsel %vm1326, %v3663, -inf
        %3827 = vmax.xlane.f32.xlu0 %v3826
        %v3828 = vpop.xlane.xlu0 %3827
        %v3829 = vsel %vm1326, %v3686, -inf
        %3830 = vmax.xlane.f32.xlu0 %v3829
        %v3831 = vpop.xlane.xlu0 %3830
        %v3832 = vsel %vm1326, %v3709, -inf
        %3833 = vmax.xlane.f32.xlu0 %v3832
        %v3834 = vpop.xlane.xlu0 %3833
        %v3835 = vsel %vm1326, %v3732, -inf
        %3836 = vmax.xlane.f32.xlu0 %v3835
        %v3837 = vpop.xlane.xlu0 %3836
        %v3838 = vsel %vm1326, %v3755, -inf
        %3839 = vmax.xlane.f32.xlu0 %v3838
        %v3840 = vpop.xlane.xlu0 %3839
        %v3841 = vsel %vm1326, %v3778, -inf
        %3842 = vmax.xlane.f32.xlu0 %v3841
        %v3843 = vpop.xlane.xlu0 %3842
        %v3844 = vsel %vm1326, %v3801, -inf
        %3845 = vmax.xlane.f32.xlu0 %v3844
        %v3846 = vpop.xlane.xlu0 %3845
        %v3847 = vsel %vm1326, %v3824, -inf
        %3848 = vmax.xlane.f32.xlu0 %v3847
        %v3849 = vpop.xlane.xlu0 %3848
        %v3850 = vsub.f32 %v3663, %v3828
        %v3851 = vsub.f32 %v3686, %v3831
        %v3852 = vsub.f32 %v3709, %v3834
        %v3853 = vsub.f32 %v3732, %v3837
        %v3854 = vsub.f32 %v3755, %v3840
        %v3855 = vsub.f32 %v3778, %v3843
        %v3856 = vsub.f32 %v3801, %v3846
        %v3857 = vsub.f32 %v3824, %v3849
        %v3858 = vmul.f32 %v3850, 1.442695
        %v3859 = vpow.pop %v3858
        %v3860 = vmul.f32 %v3851, 1.442695
        %v3861 = vpow.pop %v3860
        %v3862 = vmul.f32 %v3852, 1.442695
        %v3863 = vpow.pop %v3862
        %v3864 = vmul.f32 %v3853, 1.442695
        %v3865 = vpow.pop %v3864
        %v3866 = vmul.f32 %v3854, 1.442695
        %v3867 = vpow.pop %v3866
        %v3868 = vmul.f32 %v3855, 1.442695
        %v3869 = vpow.pop %v3868
        %v3870 = vmul.f32 %v3856, 1.442695
        %v3871 = vpow.pop %v3870
        %v3872 = vmul.f32 %v3857, 1.442695
        %v3873 = vpow.pop %v3872
        %v3874 = vsel %vm1326, %v3859, 0.0
        %3875 = vadd.xlane.f32.xlu0 %v3874
        %v3876 = vpop.xlane.xlu0 %3875
        %v3877 = vsel %vm1326, %v3861, 0.0
        %3878 = vadd.xlane.f32.xlu0 %v3877
        %v3879 = vpop.xlane.xlu0 %3878
        %v3880 = vsel %vm1326, %v3863, 0.0
        %3881 = vadd.xlane.f32.xlu0 %v3880
        %v3882 = vpop.xlane.xlu0 %3881
        %v3883 = vsel %vm1326, %v3865, 0.0
        %3884 = vadd.xlane.f32.xlu0 %v3883
        %v3885 = vpop.xlane.xlu0 %3884
        %v3886 = vsel %vm1326, %v3867, 0.0
        %3887 = vadd.xlane.f32.xlu0 %v3886
        %v3888 = vpop.xlane.xlu0 %3887
        %v3889 = vsel %vm1326, %v3869, 0.0
        %3890 = vadd.xlane.f32.xlu0 %v3889
        %v3891 = vpop.xlane.xlu0 %3890
        %v3892 = vsel %vm1326, %v3871, 0.0
        %3893 = vadd.xlane.f32.xlu0 %v3892
        %v3894 = vpop.xlane.xlu0 %3893
        %v3895 = vsel %vm1326, %v3873, 0.0
        %3896 = vadd.xlane.f32.xlu0 %v3895
        %v3897 = vpop.xlane.xlu0 %3896
        %v3898 = vrcp.pop %v3876
        %v3899 = vmul.f32 %v3876, %v3898
        %v3900 = vsub.f32 1.0, %v3899
        %v3901 = vmul.f32 %v3898, %v3900
        %v3902 = vadd.f32 %v3898, %v3901
        %vm3903 = vweird.f32 %v3876
        %vm3904 = vweird.f32 %v3898
        %vm3905 = vmor %vm3903, %vm3904
        %v3906 = vsel %vm3905, %v3898, %v3902
        %v3907 = vand.u32 2147483647, %v3876
        %vm3908 = vcmp.eq.f32.partialorder %v3907, 8.507059e+37
        %v3909 = vand.u32 %v3876, 2147483648
        %v3910 = vor.u32 1.1754944e-38, %v3909
        %v3911 = vsel %vm3908, %v3910, %v3906
        %v3912 = vmul.f32 %v3859, %v3911
        %v3913 = vrcp.pop %v3879
        %v3914 = vmul.f32 %v3879, %v3913
        %v3915 = vsub.f32 1.0, %v3914
        %v3916 = vmul.f32 %v3913, %v3915
        %v3917 = vadd.f32 %v3913, %v3916
        %vm3918 = vweird.f32 %v3879
        %vm3919 = vweird.f32 %v3913
        %vm3920 = vmor %vm3918, %vm3919
        %v3921 = vsel %vm3920, %v3913, %v3917
        %v3922 = vand.u32 2147483647, %v3879
        %vm3923 = vcmp.eq.f32.partialorder %v3922, 8.507059e+37
        %v3924 = vand.u32 %v3879, 2147483648
        %v3925 = vor.u32 1.1754944e-38, %v3924
        %v3926 = vsel %vm3923, %v3925, %v3921
        %v3927 = vmul.f32 %v3861, %v3926
        %v3928 = vrcp.pop %v3882
        %v3929 = vmul.f32 %v3882, %v3928
        %v3930 = vsub.f32 1.0, %v3929
        %v3931 = vmul.f32 %v3928, %v3930
        %v3932 = vadd.f32 %v3928, %v3931
        %vm3933 = vweird.f32 %v3882
        %vm3934 = vweird.f32 %v3928
        %vm3935 = vmor %vm3933, %vm3934
        %v3936 = vsel %vm3935, %v3928, %v3932
        %v3937 = vand.u32 2147483647, %v3882
        %vm3938 = vcmp.eq.f32.partialorder %v3937, 8.507059e+37
        %v3939 = vand.u32 %v3882, 2147483648
        %v3940 = vor.u32 1.1754944e-38, %v3939
        %v3941 = vsel %vm3938, %v3940, %v3936
        %v3942 = vmul.f32 %v3863, %v3941
        %v3943 = vrcp.pop %v3885
        %v3944 = vmul.f32 %v3885, %v3943
        %v3945 = vsub.f32 1.0, %v3944
        %v3946 = vmul.f32 %v3943, %v3945
        %v3947 = vadd.f32 %v3943, %v3946
        %vm3948 = vweird.f32 %v3885
        %vm3949 = vweird.f32 %v3943
        %vm3950 = vmor %vm3948, %vm3949
        %v3951 = vsel %vm3950, %v3943, %v3947
        %v3952 = vand.u32 2147483647, %v3885
        %vm3953 = vcmp.eq.f32.partialorder %v3952, 8.507059e+37
        %v3954 = vand.u32 %v3885, 2147483648
        %v3955 = vor.u32 1.1754944e-38, %v3954
        %v3956 = vsel %vm3953, %v3955, %v3951
        %v3957 = vmul.f32 %v3865, %v3956
        %v3958 = vrcp.pop %v3888
        %v3959 = vmul.f32 %v3888, %v3958
        %v3960 = vsub.f32 1.0, %v3959
        %v3961 = vmul.f32 %v3958, %v3960
        %v3962 = vadd.f32 %v3958, %v3961
        %vm3963 = vweird.f32 %v3888
        %vm3964 = vweird.f32 %v3958
        %vm3965 = vmor %vm3963, %vm3964
        %v3966 = vsel %vm3965, %v3958, %v3962
        %v3967 = vand.u32 2147483647, %v3888
        %vm3968 = vcmp.eq.f32.partialorder %v3967, 8.507059e+37
        %v3969 = vand.u32 %v3888, 2147483648
        %v3970 = vor.u32 1.1754944e-38, %v3969
        %v3971 = vsel %vm3968, %v3970, %v3966
        %v3972 = vmul.f32 %v3867, %v3971
        %v3973 = vrcp.pop %v3891
        %v3974 = vmul.f32 %v3891, %v3973
        %v3975 = vsub.f32 1.0, %v3974
        %v3976 = vmul.f32 %v3973, %v3975
        %v3977 = vadd.f32 %v3973, %v3976
        %vm3978 = vweird.f32 %v3891
        %vm3979 = vweird.f32 %v3973
        %vm3980 = vmor %vm3978, %vm3979
        %v3981 = vsel %vm3980, %v3973, %v3977
        %v3982 = vand.u32 2147483647, %v3891
        %vm3983 = vcmp.eq.f32.partialorder %v3982, 8.507059e+37
        %v3984 = vand.u32 %v3891, 2147483648
        %v3985 = vor.u32 1.1754944e-38, %v3984
        %v3986 = vsel %vm3983, %v3985, %v3981
        %v3987 = vmul.f32 %v3869, %v3986
        %v3988 = vrcp.pop %v3894
        %v3989 = vmul.f32 %v3894, %v3988
        %v3990 = vsub.f32 1.0, %v3989
        %v3991 = vmul.f32 %v3988, %v3990
        %v3992 = vadd.f32 %v3988, %v3991
        %vm3993 = vweird.f32 %v3894
        %vm3994 = vweird.f32 %v3988
        %vm3995 = vmor %vm3993, %vm3994
        %v3996 = vsel %vm3995, %v3988, %v3992
        %v3997 = vand.u32 2147483647, %v3894
        %vm3998 = vcmp.eq.f32.partialorder %v3997, 8.507059e+37
        %v3999 = vand.u32 %v3894, 2147483648
        %v4000 = vor.u32 1.1754944e-38, %v3999
        %v4001 = vsel %vm3998, %v4000, %v3996
        %v4002 = vmul.f32 %v3871, %v4001
        %v4003 = vrcp.pop %v3897
        %v4004 = vmul.f32 %v3897, %v4003
        %v4005 = vsub.f32 1.0, %v4004
        %v4006 = vmul.f32 %v4003, %v4005
        %v4007 = vadd.f32 %v4003, %v4006
        %vm4008 = vweird.f32 %v3897
        %vm4009 = vweird.f32 %v4003
        %vm4010 = vmor %vm4008, %vm4009
        %v4011 = vsel %vm4010, %v4003, %v4007
        %v4012 = vand.u32 2147483647, %v3897
        %vm4013 = vcmp.eq.f32.partialorder %v4012, 8.507059e+37
        %v4014 = vand.u32 %v3897, 2147483648
        %v4015 = vor.u32 1.1754944e-38, %v4014
        %v4016 = vsel %vm4013, %v4015, %v4011
        %v4017 = vmul.f32 %v3873, %v4016
        %4018 = vrot.lane.b32.xlu0 %v588, 48
        %v4019 = vpop.permute.xlu0 %4018
        %4020 = vrot.lane.b32.xlu0 %v590, 48
        %v4021 = vpop.permute.xlu0 %4020
        %v4024 = vrot.slane %v4019, 4
        %v4025 = vsel %vm597, 0.0, %v4024
        %v4027 = vunpack.c.l.s4 1983009808
        %v4028 = vunpack.c.0.s8 %v4027
        %v4029 = vperm.slane %v4019, %v4028
        %v4031 = vunpack.c.l.s4 1983009808
        %v4032 = vunpack.c.0.s8 %v4031
        %v4033 = vperm.slane %v4025, %v4032
        %v4034 = vrot.slane %v4021, 4
        %v4035 = vsel %vm597, 0.0, %v4034
        %v4037 = vunpack.c.l.s4 1983009808
        %v4038 = vunpack.c.0.s8 %v4037
        %v4039 = vperm.slane %v4021, %v4038
        %v4041 = vunpack.c.l.s4 1983009808
        %v4042 = vunpack.c.0.s8 %v4041
        %v4043 = vperm.slane %v4035, %v4042
        %v4044 = vrot.slane %v4039, 4
        %v4045 = vsel %vm597, %v4044, %v4029
        %v4046 = vrot.slane %v4029, 4
        %v4047 = vsel %vm597, %v4039, %v4046
        %v4049 = vunpack.c.l.s4 1934713408
        %v4050 = vunpack.c.0.s8 %v4049
        %v4051 = vperm.slane %v4045, %v4050
        %v4053 = vunpack.c.l.s4 1934713408
        %v4054 = vunpack.c.0.s8 %v4053
        %v4055 = vperm.slane %v4047, %v4054
        %v4056 = vrot.slane %v4043, 4
        %v4057 = vsel %vm597, %v4056, %v4033
        %v4058 = vrot.slane %v4033, 4
        %v4059 = vsel %vm597, %v4043, %v4058
        %v4061 = vunpack.c.l.s4 1934713408
        %v4062 = vunpack.c.0.s8 %v4061
        %v4063 = vperm.slane %v4057, %v4062
        %v4065 = vunpack.c.l.s4 1934713408
        %v4066 = vunpack.c.0.s8 %v4065
        %v4067 = vperm.slane %v4059, %v4066
        %v4068 = vrot.slane %v4051, 4
        %v4069 = vsel %vm597, 0.0, %v4068
        %v4070 = vrot.slane %v4055, 4
        %v4071 = vsel %vm597, 0.0, %v4070
        %v4072 = vrot.slane %v4063, 4
        %v4073 = vsel %vm597, 0.0, %v4072
        %v4074 = vrot.slane %v4067, 4
        %v4075 = vsel %vm597, 0.0, %v4074
        %v4077 = vsel %vm1577, %v3912, 0
        %v4080 = vsel %vm1581, %v4051, 0
        %4082 = vmatpush.msra.mxu0 0.0
        %4083 = vmatpush.msra.mxu0 0.0
        %4084 = vmatpush.msra.mxu0 0.0
        %4085 = vmatpush.msra.mxu0 0.0
        %4086 = vmatpush.msra.mxu0 0.0
        %4087 = vmatpush.msra.mxu0 0.0
        %4088 = vmatpush.msra.mxu0 0.0
        %4089 = vmatpush.msra.mxu0 0.0
        %4090 = vmatpush.msra.mxu0 0.0
        %4091 = vmatpush.msra.mxu0 0.0
        %4092 = vmatpush.msra.mxu0 0.0
        %4093 = vmatpush.msra.mxu0 0.0
        %4094 = vmatpush.msra.mxu0 0.0
        %4095 = vmatpush.msra.mxu0 0.0
        %4096 = vmatpush.msra.mxu0 0.0
        %4097 = vmatpush.msra.mxu0 %v4080
        %4098 = vmatmul.f32.gmra.mxu0 %v4077
        %v4099 = vpop.f32.mrf.mxu0
        %v4100 = vadd.f32 0.0, %v4099
        %4101 = vdwg.mxu0
        %v4103 = vsel %vm1577, %v3927, 0
        %v4106 = vsel %vm1581, %v4069, 0
        %4108 = vmatpush.msra.mxu0 0.0
        %4109 = vmatpush.msra.mxu0 0.0
        %4110 = vmatpush.msra.mxu0 0.0
        %4111 = vmatpush.msra.mxu0 0.0
        %4112 = vmatpush.msra.mxu0 0.0
        %4113 = vmatpush.msra.mxu0 0.0
        %4114 = vmatpush.msra.mxu0 0.0
        %4115 = vmatpush.msra.mxu0 0.0
        %4116 = vmatpush.msra.mxu0 0.0
        %4117 = vmatpush.msra.mxu0 0.0
        %4118 = vmatpush.msra.mxu0 0.0
        %4119 = vmatpush.msra.mxu0 0.0
        %4120 = vmatpush.msra.mxu0 0.0
        %4121 = vmatpush.msra.mxu0 0.0
        %4122 = vmatpush.msra.mxu0 0.0
        %4123 = vmatpush.msra.mxu0 %v4106
        %4124 = vmatmul.f32.gmra.mxu0 %v4103
        %v4125 = vpop.f32.mrf.mxu0
        %v4126 = vadd.f32 0.0, %v4125
        %4127 = vdwg.mxu0
        %v4129 = vsel %vm1577, %v3942, 0
        %v4132 = vsel %vm1581, %v4055, 0
        %4134 = vmatpush.msra.mxu0 0.0
        %4135 = vmatpush.msra.mxu0 0.0
        %4136 = vmatpush.msra.mxu0 0.0
        %4137 = vmatpush.msra.mxu0 0.0
        %4138 = vmatpush.msra.mxu0 0.0
        %4139 = vmatpush.msra.mxu0 0.0
        %4140 = vmatpush.msra.mxu0 0.0
        %4141 = vmatpush.msra.mxu0 0.0
        %4142 = vmatpush.msra.mxu0 0.0
        %4143 = vmatpush.msra.mxu0 0.0
        %4144 = vmatpush.msra.mxu0 0.0
        %4145 = vmatpush.msra.mxu0 0.0
        %4146 = vmatpush.msra.mxu0 0.0
        %4147 = vmatpush.msra.mxu0 0.0
        %4148 = vmatpush.msra.mxu0 0.0
        %4149 = vmatpush.msra.mxu0 %v4132
        %4150 = vmatmul.f32.gmra.mxu0 %v4129
        %v4151 = vpop.f32.mrf.mxu0
        %v4152 = vadd.f32 0.0, %v4151
        %4153 = vdwg.mxu0
        %v4155 = vsel %vm1577, %v3957, 0
        %v4158 = vsel %vm1581, %v4071, 0
        %4160 = vmatpush.msra.mxu0 0.0
        %4161 = vmatpush.msra.mxu0 0.0
        %4162 = vmatpush.msra.mxu0 0.0
        %4163 = vmatpush.msra.mxu0 0.0
        %4164 = vmatpush.msra.mxu0 0.0
        %4165 = vmatpush.msra.mxu0 0.0
        %4166 = vmatpush.msra.mxu0 0.0
        %4167 = vmatpush.msra.mxu0 0.0
        %4168 = vmatpush.msra.mxu0 0.0
        %4169 = vmatpush.msra.mxu0 0.0
        %4170 = vmatpush.msra.mxu0 0.0
        %4171 = vmatpush.msra.mxu0 0.0
        %4172 = vmatpush.msra.mxu0 0.0
        %4173 = vmatpush.msra.mxu0 0.0
        %4174 = vmatpush.msra.mxu0 0.0
        %4175 = vmatpush.msra.mxu0 %v4158
        %4176 = vmatmul.f32.gmra.mxu0 %v4155
        %v4177 = vpop.f32.mrf.mxu0
        %v4178 = vadd.f32 0.0, %v4177
        %4179 = vdwg.mxu0
        %v4181 = vsel %vm1577, %v3972, 0
        %v4184 = vsel %vm1581, %v4063, 0
        %4186 = vmatpush.msra.mxu0 0.0
        %4187 = vmatpush.msra.mxu0 0.0
        %4188 = vmatpush.msra.mxu0 0.0
        %4189 = vmatpush.msra.mxu0 0.0
        %4190 = vmatpush.msra.mxu0 0.0
        %4191 = vmatpush.msra.mxu0 0.0
        %4192 = vmatpush.msra.mxu0 0.0
        %4193 = vmatpush.msra.mxu0 0.0
        %4194 = vmatpush.msra.mxu0 0.0
        %4195 = vmatpush.msra.mxu0 0.0
        %4196 = vmatpush.msra.mxu0 0.0
        %4197 = vmatpush.msra.mxu0 0.0
        %4198 = vmatpush.msra.mxu0 0.0
        %4199 = vmatpush.msra.mxu0 0.0
        %4200 = vmatpush.msra.mxu0 0.0
        %4201 = vmatpush.msra.mxu0 %v4184
        %4202 = vmatmul.f32.gmra.mxu0 %v4181
        %v4203 = vpop.f32.mrf.mxu0
        %v4204 = vadd.f32 0.0, %v4203
        %4205 = vdwg.mxu0
        %v4207 = vsel %vm1577, %v3987, 0
        %v4210 = vsel %vm1581, %v4073, 0
        %4212 = vmatpush.msra.mxu0 0.0
        %4213 = vmatpush.msra.mxu0 0.0
        %4214 = vmatpush.msra.mxu0 0.0
        %4215 = vmatpush.msra.mxu0 0.0
        %4216 = vmatpush.msra.mxu0 0.0
        %4217 = vmatpush.msra.mxu0 0.0
        %4218 = vmatpush.msra.mxu0 0.0
        %4219 = vmatpush.msra.mxu0 0.0
        %4220 = vmatpush.msra.mxu0 0.0
        %4221 = vmatpush.msra.mxu0 0.0
        %4222 = vmatpush.msra.mxu0 0.0
        %4223 = vmatpush.msra.mxu0 0.0
        %4224 = vmatpush.msra.mxu0 0.0
        %4225 = vmatpush.msra.mxu0 0.0
        %4226 = vmatpush.msra.mxu0 0.0
        %4227 = vmatpush.msra.mxu0 %v4210
        %4228 = vmatmul.f32.gmra.mxu0 %v4207
        %v4229 = vpop.f32.mrf.mxu0
        %v4230 = vadd.f32 0.0, %v4229
        %4231 = vdwg.mxu0
        %v4233 = vsel %vm1577, %v4002, 0
        %v4236 = vsel %vm1581, %v4067, 0
        %4238 = vmatpush.msra.mxu0 0.0
        %4239 = vmatpush.msra.mxu0 0.0
        %4240 = vmatpush.msra.mxu0 0.0
        %4241 = vmatpush.msra.mxu0 0.0
        %4242 = vmatpush.msra.mxu0 0.0
        %4243 = vmatpush.msra.mxu0 0.0
        %4244 = vmatpush.msra.mxu0 0.0
        %4245 = vmatpush.msra.mxu0 0.0
        %4246 = vmatpush.msra.mxu0 0.0
        %4247 = vmatpush.msra.mxu0 0.0
        %4248 = vmatpush.msra.mxu0 0.0
        %4249 = vmatpush.msra.mxu0 0.0
        %4250 = vmatpush.msra.mxu0 0.0
        %4251 = vmatpush.msra.mxu0 0.0
        %4252 = vmatpush.msra.mxu0 0.0
        %4253 = vmatpush.msra.mxu0 %v4236
        %4254 = vmatmul.f32.gmra.mxu0 %v4233
        %v4255 = vpop.f32.mrf.mxu0
        %v4256 = vadd.f32 0.0, %v4255
        %4257 = vdwg.mxu0
        %v4259 = vsel %vm1577, %v4017, 0
        %v4262 = vsel %vm1581, %v4075, 0
        %4264 = vmatpush.msra.mxu0 0.0
        %4265 = vmatpush.msra.mxu0 0.0
        %4266 = vmatpush.msra.mxu0 0.0
        %4267 = vmatpush.msra.mxu0 0.0
        %4268 = vmatpush.msra.mxu0 0.0
        %4269 = vmatpush.msra.mxu0 0.0
        %4270 = vmatpush.msra.mxu0 0.0
        %4271 = vmatpush.msra.mxu0 0.0
        %4272 = vmatpush.msra.mxu0 0.0
        %4273 = vmatpush.msra.mxu0 0.0
        %4274 = vmatpush.msra.mxu0 0.0
        %4275 = vmatpush.msra.mxu0 0.0
        %4276 = vmatpush.msra.mxu0 0.0
        %4277 = vmatpush.msra.mxu0 0.0
        %4278 = vmatpush.msra.mxu0 0.0
        %4279 = vmatpush.msra.mxu0 %v4262
        %4280 = vmatmul.f32.gmra.mxu0 %v4259
        %v4281 = vpop.f32.mrf.mxu0
        %v4282 = vadd.f32 0.0, %v4281
        %4283 = vdwg.mxu0
        %v4284 = vpack.c.bf16 %v4100, %v4100
        %v4285 = vpack.c.bf16 %v4126, %v4126
        %v4286 = vpack.c.bf16 %v4152, %v4152
        %v4287 = vpack.c.bf16 %v4178, %v4178
        %v4288 = vpack.c.bf16 %v4204, %v4204
        %v4289 = vpack.c.bf16 %v4230, %v4230
        %v4290 = vpack.c.bf16 %v4256, %v4256
        %v4291 = vpack.c.bf16 %v4282, %v4282
        %4293 = vst [vmem:[#allocation1] ss:$9 sm:$0xff] %v4284
        %s4295 = scalar_lea.vmem [#allocation1], 1
        %4296 = vst [vmem:[%s4295] ss:$9 sm:$0xff] %v4285
        %s4298 = scalar_lea.vmem [#allocation1], 2
        %4299 = vst [vmem:[%s4298] ss:$9 sm:$0xff] %v4286
        %s4301 = scalar_lea.vmem [#allocation1], 3
        %4302 = vst [vmem:[%s4301] ss:$9 sm:$0xff] %v4287
        %s4304 = scalar_lea.vmem [#allocation1], 4
        %4305 = vst [vmem:[%s4304] ss:$9 sm:$0xff] %v4288
        %s4307 = scalar_lea.vmem [#allocation1], 5
        %4308 = vst [vmem:[%s4307] ss:$9 sm:$0xff] %v4289
        %s4310 = scalar_lea.vmem [#allocation1], 6
        %4311 = vst [vmem:[%s4310] ss:$9 sm:$0xff] %v4290
        %s4313 = scalar_lea.vmem [#allocation1], 7
        %4314 = vst [vmem:[%s4313] ss:$9 sm:$0xff] %v4291
        %v4315 = vld [vmem:[#allocation1] sm:$0xff]
        %v4316 = vsel %vm1141, %v4315, 0
        %v4319 = vsel %vm3019, %v594, 0
        %4321 = vmatpush.bf16.msra.mxu0 0
        %4322 = vmatpush.bf16.msra.mxu0 0
        %4323 = vmatpush.bf16.msra.mxu0 0
        %4324 = vmatpush.bf16.msra.mxu0 0
        %4325 = vmatpush.bf16.msra.mxu0 0
        %4326 = vmatpush.bf16.msra.mxu0 0
        %4327 = vmatpush.bf16.msra.mxu0 0
        %4328 = vmatpush.bf16.msra.mxu0 %v4319
        %4329 = vmatmul.bf16.gmra.mxu0 %v4316
        %v4330 = vpop.f32.mrf.mxu0
        %v4331 = vadd.f32 0.0, %v4330
        %v4332 = vpop.f32.mrf.mxu0
        %v4333 = vadd.f32 0.0, %v4332
        %4334 = vdwg.mxu0
        %v4337 = vrot.slane %v4331, 2
        %v4338 = vrot.slane %v4331, 4
        %v4339 = vrot.slane %v4331, 6
        %v4340 = vrot.slane %v4333, 2
        %v4341 = vrot.slane %v4333, 4
        %v4342 = vrot.slane %v4333, 6
        %v4349 = vadd.f32 %v3076, %v4331
        %v4350 = vadd.f32 %v3082, %v4337
        %v4351 = vadd.f32 %v3083, %v4338
        %v4352 = vadd.f32 %v3084, %v4339
        %v4353 = vadd.f32 %v3078, %v4333
        %v4354 = vadd.f32 %v3085, %v4340
        %v4355 = vadd.f32 %v3086, %v4341
        %v4356 = vadd.f32 %v3087, %v4342
        %4357 = vrot.lane.b32.xlu0 %v588, 104
        %v4358 = vpop.permute.xlu0 %4357
        %4359 = vrot.lane.b32.xlu0 %v590, 104
        %v4360 = vpop.permute.xlu0 %4359
        %v4363 = vrot.slane %v4358, 4
        %v4364 = vsel %vm597, 0.0, %v4363
        %v4366 = vunpack.c.l.s4 1983009808
        %v4367 = vunpack.c.0.s8 %v4366
        %v4368 = vperm.slane %v4358, %v4367
        %v4370 = vunpack.c.l.s4 1983009808
        %v4371 = vunpack.c.0.s8 %v4370
        %v4372 = vperm.slane %v4364, %v4371
        %v4373 = vrot.slane %v4360, 4
        %v4374 = vsel %vm597, 0.0, %v4373
        %v4376 = vunpack.c.l.s4 1983009808
        %v4377 = vunpack.c.0.s8 %v4376
        %v4378 = vperm.slane %v4360, %v4377
        %v4380 = vunpack.c.l.s4 1983009808
        %v4381 = vunpack.c.0.s8 %v4380
        %v4382 = vperm.slane %v4374, %v4381
        %v4383 = vrot.slane %v4378, 4
        %v4384 = vsel %vm597, %v4383, %v4368
        %v4385 = vrot.slane %v4368, 4
        %v4386 = vsel %vm597, %v4378, %v4385
        %v4388 = vunpack.c.l.s4 1934713408
        %v4389 = vunpack.c.0.s8 %v4388
        %v4390 = vperm.slane %v4384, %v4389
        %v4392 = vunpack.c.l.s4 1934713408
        %v4393 = vunpack.c.0.s8 %v4392
        %v4394 = vperm.slane %v4386, %v4393
        %v4395 = vrot.slane %v4382, 4
        %v4396 = vsel %vm597, %v4395, %v4372
        %v4397 = vrot.slane %v4372, 4
        %v4398 = vsel %vm597, %v4382, %v4397
        %v4400 = vunpack.c.l.s4 1934713408
        %v4401 = vunpack.c.0.s8 %v4400
        %v4402 = vperm.slane %v4396, %v4401
        %v4404 = vunpack.c.l.s4 1934713408
        %v4405 = vunpack.c.0.s8 %v4404
        %v4406 = vperm.slane %v4398, %v4405
        %v4407 = vrot.slane %v4390, 4
        %v4408 = vsel %vm597, 0.0, %v4407
        %v4409 = vrot.slane %v4394, 4
        %v4410 = vsel %vm597, 0.0, %v4409
        %v4411 = vrot.slane %v4402, 4
        %v4412 = vsel %vm597, 0.0, %v4411
        %v4413 = vrot.slane %v4406, 4
        %v4414 = vsel %vm597, 0.0, %v4413
        %4415 = vrot.lane.b32.xlu0 %v588, 72
        %v4416 = vpop.permute.xlu0 %4415
        %4417 = vrot.lane.b32.xlu0 %v590, 72
        %v4418 = vpop.permute.xlu0 %4417
        %4421 = vxpose.xlu0.b32.start [1/16] %v4416, 128
        %4422 = vxpose.xlu0.b32.cont [2/16] 0.0, 128
        %4423 = vxpose.xlu0.b32.cont [3/16] 0.0, 128
        %4424 = vxpose.xlu0.b32.cont [4/16] 0.0, 128
        %4425 = vxpose.xlu0.b32.cont [5/16] 0.0, 128
        %4426 = vxpose.xlu0.b32.cont [6/16] 0.0, 128
        %4427 = vxpose.xlu0.b32.cont [7/16] 0.0, 128
        %4428 = vxpose.xlu0.b32.cont [8/16] 0.0, 128
        %4429 = vxpose.xlu0.b32.cont [9/16] 0.0, 128
        %4430 = vxpose.xlu0.b32.cont [10/16] 0.0, 128
        %4431 = vxpose.xlu0.b32.cont [11/16] 0.0, 128
        %4432 = vxpose.xlu0.b32.cont [12/16] 0.0, 128
        %4433 = vxpose.xlu0.b32.cont [13/16] 0.0, 128
        %4434 = vxpose.xlu0.b32.cont [14/16] 0.0, 128
        %4435 = vxpose.xlu0.b32.cont [15/16] 0.0, 128
        %4436 = vxpose.xlu0.b32.end [16/16] 0.0, 128
        %v4437 = vpop.trf.xlu0
        %v4438 = vpop.trf.xlu0
        %v4439 = vpop.trf.xlu0
        %v4440 = vpop.trf.xlu0
        %v4441 = vpop.trf.xlu0
        %v4442 = vpop.trf.xlu0
        %v4443 = vpop.trf.xlu0
        %v4444 = vpop.trf.xlu0
        %v4445 = vpop.trf.xlu0
        %v4446 = vpop.trf.xlu0
        %v4447 = vpop.trf.xlu0
        %v4448 = vpop.trf.xlu0
        %v4449 = vpop.trf.xlu0
        %v4450 = vpop.trf.xlu0
        %v4451 = vpop.trf.xlu0
        %v4452 = vpop.trf.xlu0
        %4453 = vxpose.xlu0.b32.start [1/16] %v4418, 128
        %4454 = vxpose.xlu0.b32.cont [2/16] 0.0, 128
        %4455 = vxpose.xlu0.b32.cont [3/16] 0.0, 128
        %4456 = vxpose.xlu0.b32.cont [4/16] 0.0, 128
        %4457 = vxpose.xlu0.b32.cont [5/16] 0.0, 128
        %4458 = vxpose.xlu0.b32.cont [6/16] 0.0, 128
        %4459 = vxpose.xlu0.b32.cont [7/16] 0.0, 128
        %4460 = vxpose.xlu0.b32.cont [8/16] 0.0, 128
        %4461 = vxpose.xlu0.b32.cont [9/16] 0.0, 128
        %4462 = vxpose.xlu0.b32.cont [10/16] 0.0, 128
        %4463 = vxpose.xlu0.b32.cont [11/16] 0.0, 128
        %4464 = vxpose.xlu0.b32.cont [12/16] 0.0, 128
        %4465 = vxpose.xlu0.b32.cont [13/16] 0.0, 128
        %4466 = vxpose.xlu0.b32.cont [14/16] 0.0, 128
        %4467 = vxpose.xlu0.b32.cont [15/16] 0.0, 128
        %4468 = vxpose.xlu0.b32.end [16/16] 0.0, 128
        %v4469 = vpop.trf.xlu0
        %v4470 = vpop.trf.xlu0
        %v4471 = vpop.trf.xlu0
        %v4472 = vpop.trf.xlu0
        %v4473 = vpop.trf.xlu0
        %v4474 = vpop.trf.xlu0
        %v4475 = vpop.trf.xlu0
        %v4476 = vpop.trf.xlu0
        %v4477 = vpop.trf.xlu0
        %v4478 = vpop.trf.xlu0
        %v4479 = vpop.trf.xlu0
        %v4480 = vpop.trf.xlu0
        %v4481 = vpop.trf.xlu0
        %v4482 = vpop.trf.xlu0
        %v4483 = vpop.trf.xlu0
        %v4484 = vpop.trf.xlu0
        %v4485 = vrot.slane %v4437, 4
        %v4486 = vsel %vm597, 0.0, %v4485
        %v4488 = vunpack.c.l.s4 1983009808
        %v4489 = vunpack.c.0.s8 %v4488
        %v4490 = vperm.slane %v4437, %v4489
        %v4492 = vunpack.c.l.s4 1983009808
        %v4493 = vunpack.c.0.s8 %v4492
        %v4494 = vperm.slane %v4486, %v4493
        %v4495 = vrot.slane %v4469, 4
        %v4496 = vsel %vm597, 0.0, %v4495
        %v4498 = vunpack.c.l.s4 1983009808
        %v4499 = vunpack.c.0.s8 %v4498
        %v4500 = vperm.slane %v4469, %v4499
        %v4502 = vunpack.c.l.s4 1983009808
        %v4503 = vunpack.c.0.s8 %v4502
        %v4504 = vperm.slane %v4496, %v4503
        %v4505 = vrot.slane %v4500, 4
        %v4506 = vsel %vm597, %v4505, %v4490
        %v4507 = vrot.slane %v4490, 4
        %v4508 = vsel %vm597, %v4500, %v4507
        %v4510 = vunpack.c.l.s4 1934713408
        %v4511 = vunpack.c.0.s8 %v4510
        %v4512 = vperm.slane %v4506, %v4511
        %v4514 = vunpack.c.l.s4 1934713408
        %v4515 = vunpack.c.0.s8 %v4514
        %v4516 = vperm.slane %v4508, %v4515
        %v4517 = vrot.slane %v4504, 4
        %v4518 = vsel %vm597, %v4517, %v4494
        %v4519 = vrot.slane %v4494, 4
        %v4520 = vsel %vm597, %v4504, %v4519
        %v4522 = vunpack.c.l.s4 1934713408
        %v4523 = vunpack.c.0.s8 %v4522
        %v4524 = vperm.slane %v4518, %v4523
        %v4526 = vunpack.c.l.s4 1934713408
        %v4527 = vunpack.c.0.s8 %v4526
        %v4528 = vperm.slane %v4520, %v4527
        %v4529 = vrot.slane %v4512, 4
        %v4530 = vsel %vm597, 0.0, %v4529
        %v4531 = vrot.slane %v4516, 4
        %v4532 = vsel %vm597, 0.0, %v4531
        %v4533 = vrot.slane %v4524, 4
        %v4534 = vsel %vm597, 0.0, %v4533
        %v4535 = vrot.slane %v4528, 4
        %v4536 = vsel %vm597, 0.0, %v4535
        %4537 = vxpose.xlu0.b32.start [1/16] %v4512, 128
        %4538 = vxpose.xlu0.b32.cont [2/16] 0.0, 128
        %4539 = vxpose.xlu0.b32.cont [3/16] 0.0, 128
        %4540 = vxpose.xlu0.b32.cont [4/16] 0.0, 128
        %4541 = vxpose.xlu0.b32.cont [5/16] 0.0, 128
        %4542 = vxpose.xlu0.b32.cont [6/16] 0.0, 128
        %4543 = vxpose.xlu0.b32.cont [7/16] 0.0, 128
        %4544 = vxpose.xlu0.b32.cont [8/16] 0.0, 128
        %4545 = vxpose.xlu0.b32.cont [9/16] 0.0, 128
        %4546 = vxpose.xlu0.b32.cont [10/16] 0.0, 128
        %4547 = vxpose.xlu0.b32.cont [11/16] 0.0, 128
        %4548 = vxpose.xlu0.b32.cont [12/16] 0.0, 128
        %4549 = vxpose.xlu0.b32.cont [13/16] 0.0, 128
        %4550 = vxpose.xlu0.b32.cont [14/16] 0.0, 128
        %4551 = vxpose.xlu0.b32.cont [15/16] 0.0, 128
        %4552 = vxpose.xlu0.b32.end [16/16] 0.0, 128
        %v4553 = vpop.trf.xlu0
        %v4554 = vpop.trf.xlu0
        %v4555 = vpop.trf.xlu0
        %v4556 = vpop.trf.xlu0
        %v4557 = vpop.trf.xlu0
        %v4558 = vpop.trf.xlu0
        %v4559 = vpop.trf.xlu0
        %v4560 = vpop.trf.xlu0
        %v4561 = vpop.trf.xlu0
        %v4562 = vpop.trf.xlu0
        %v4563 = vpop.trf.xlu0
        %v4564 = vpop.trf.xlu0
        %v4565 = vpop.trf.xlu0
        %v4566 = vpop.trf.xlu0
        %v4567 = vpop.trf.xlu0
        %v4568 = vpop.trf.xlu0
        %4569 = vxpose.xlu0.b32.start [1/16] %v4530, 128
        %4570 = vxpose.xlu0.b32.cont [2/16] 0.0, 128
        %4571 = vxpose.xlu0.b32.cont [3/16] 0.0, 128
        %4572 = vxpose.xlu0.b32.cont [4/16] 0.0, 128
        %4573 = vxpose.xlu0.b32.cont [5/16] 0.0, 128
        %4574 = vxpose.xlu0.b32.cont [6/16] 0.0, 128
        %4575 = vxpose.xlu0.b32.cont [7/16] 0.0, 128
        %4576 = vxpose.xlu0.b32.cont [8/16] 0.0, 128
        %4577 = vxpose.xlu0.b32.cont [9/16] 0.0, 128
        %4578 = vxpose.xlu0.b32.cont [10/16] 0.0, 128
        %4579 = vxpose.xlu0.b32.cont [11/16] 0.0, 128
        %4580 = vxpose.xlu0.b32.cont [12/16] 0.0, 128
        %4581 = vxpose.xlu0.b32.cont [13/16] 0.0, 128
        %4582 = vxpose.xlu0.b32.cont [14/16] 0.0, 128
        %4583 = vxpose.xlu0.b32.cont [15/16] 0.0, 128
        %4584 = vxpose.xlu0.b32.end [16/16] 0.0, 128
        %v4585 = vpop.trf.xlu0
        %v4586 = vpop.trf.xlu0
        %v4587 = vpop.trf.xlu0
        %v4588 = vpop.trf.xlu0
        %v4589 = vpop.trf.xlu0
        %v4590 = vpop.trf.xlu0
        %v4591 = vpop.trf.xlu0
        %v4592 = vpop.trf.xlu0
        %v4593 = vpop.trf.xlu0
        %v4594 = vpop.trf.xlu0
        %v4595 = vpop.trf.xlu0
        %v4596 = vpop.trf.xlu0
        %v4597 = vpop.trf.xlu0
        %v4598 = vpop.trf.xlu0
        %v4599 = vpop.trf.xlu0
        %v4600 = vpop.trf.xlu0
        %4601 = vxpose.xlu0.b32.start [1/16] %v4516, 128
        %4602 = vxpose.xlu0.b32.cont [2/16] 0.0, 128
        %4603 = vxpose.xlu0.b32.cont [3/16] 0.0, 128
        %4604 = vxpose.xlu0.b32.cont [4/16] 0.0, 128
        %4605 = vxpose.xlu0.b32.cont [5/16] 0.0, 128
        %4606 = vxpose.xlu0.b32.cont [6/16] 0.0, 128
        %4607 = vxpose.xlu0.b32.cont [7/16] 0.0, 128
        %4608 = vxpose.xlu0.b32.cont [8/16] 0.0, 128
        %4609 = vxpose.xlu0.b32.cont [9/16] 0.0, 128
        %4610 = vxpose.xlu0.b32.cont [10/16] 0.0, 128
        %4611 = vxpose.xlu0.b32.cont [11/16] 0.0, 128
        %4612 = vxpose.xlu0.b32.cont [12/16] 0.0, 128
        %4613 = vxpose.xlu0.b32.cont [13/16] 0.0, 128
        %4614 = vxpose.xlu0.b32.cont [14/16] 0.0, 128
        %4615 = vxpose.xlu0.b32.cont [15/16] 0.0, 128
        %4616 = vxpose.xlu0.b32.end [16/16] 0.0, 128
        %v4617 = vpop.trf.xlu0
        %v4618 = vpop.trf.xlu0
        %v4619 = vpop.trf.xlu0
        %v4620 = vpop.trf.xlu0
        %v4621 = vpop.trf.xlu0
        %v4622 = vpop.trf.xlu0
        %v4623 = vpop.trf.xlu0
        %v4624 = vpop.trf.xlu0
        %v4625 = vpop.trf.xlu0
        %v4626 = vpop.trf.xlu0
        %v4627 = vpop.trf.xlu0
        %v4628 = vpop.trf.xlu0
        %v4629 = vpop.trf.xlu0
        %v4630 = vpop.trf.xlu0
        %v4631 = vpop.trf.xlu0
        %v4632 = vpop.trf.xlu0
        %4633 = vxpose.xlu0.b32.start [1/16] %v4532, 128
        %4634 = vxpose.xlu0.b32.cont [2/16] 0.0, 128
        %4635 = vxpose.xlu0.b32.cont [3/16] 0.0, 128
        %4636 = vxpose.xlu0.b32.cont [4/16] 0.0, 128
        %4637 = vxpose.xlu0.b32.cont [5/16] 0.0, 128
        %4638 = vxpose.xlu0.b32.cont [6/16] 0.0, 128
        %4639 = vxpose.xlu0.b32.cont [7/16] 0.0, 128
        %4640 = vxpose.xlu0.b32.cont [8/16] 0.0, 128
        %4641 = vxpose.xlu0.b32.cont [9/16] 0.0, 128
        %4642 = vxpose.xlu0.b32.cont [10/16] 0.0, 128
        %4643 = vxpose.xlu0.b32.cont [11/16] 0.0, 128
        %4644 = vxpose.xlu0.b32.cont [12/16] 0.0, 128
        %4645 = vxpose.xlu0.b32.cont [13/16] 0.0, 128
        %4646 = vxpose.xlu0.b32.cont [14/16] 0.0, 128
        %4647 = vxpose.xlu0.b32.cont [15/16] 0.0, 128
        %4648 = vxpose.xlu0.b32.end [16/16] 0.0, 128
        %v4649 = vpop.trf.xlu0
        %v4650 = vpop.trf.xlu0
        %v4651 = vpop.trf.xlu0
        %v4652 = vpop.trf.xlu0
        %v4653 = vpop.trf.xlu0
        %v4654 = vpop.trf.xlu0
        %v4655 = vpop.trf.xlu0
        %v4656 = vpop.trf.xlu0
        %v4657 = vpop.trf.xlu0
        %v4658 = vpop.trf.xlu0
        %v4659 = vpop.trf.xlu0
        %v4660 = vpop.trf.xlu0
        %v4661 = vpop.trf.xlu0
        %v4662 = vpop.trf.xlu0
        %v4663 = vpop.trf.xlu0
        %v4664 = vpop.trf.xlu0
        %4665 = vxpose.xlu0.b32.start [1/16] %v4524, 128
        %4666 = vxpose.xlu0.b32.cont [2/16] 0.0, 128
        %4667 = vxpose.xlu0.b32.cont [3/16] 0.0, 128
        %4668 = vxpose.xlu0.b32.cont [4/16] 0.0, 128
        %4669 = vxpose.xlu0.b32.cont [5/16] 0.0, 128
        %4670 = vxpose.xlu0.b32.cont [6/16] 0.0, 128
        %4671 = vxpose.xlu0.b32.cont [7/16] 0.0, 128
        %4672 = vxpose.xlu0.b32.cont [8/16] 0.0, 128
        %4673 = vxpose.xlu0.b32.cont [9/16] 0.0, 128
        %4674 = vxpose.xlu0.b32.cont [10/16] 0.0, 128
        %4675 = vxpose.xlu0.b32.cont [11/16] 0.0, 128
        %4676 = vxpose.xlu0.b32.cont [12/16] 0.0, 128
        %4677 = vxpose.xlu0.b32.cont [13/16] 0.0, 128
        %4678 = vxpose.xlu0.b32.cont [14/16] 0.0, 128
        %4679 = vxpose.xlu0.b32.cont [15/16] 0.0, 128
        %4680 = vxpose.xlu0.b32.end [16/16] 0.0, 128
        %v4681 = vpop.trf.xlu0
        %v4682 = vpop.trf.xlu0
        %v4683 = vpop.trf.xlu0
        %v4684 = vpop.trf.xlu0
        %v4685 = vpop.trf.xlu0
        %v4686 = vpop.trf.xlu0
        %v4687 = vpop.trf.xlu0
        %v4688 = vpop.trf.xlu0
        %v4689 = vpop.trf.xlu0
        %v4690 = vpop.trf.xlu0
        %v4691 = vpop.trf.xlu0
        %v4692 = vpop.trf.xlu0
        %v4693 = vpop.trf.xlu0
        %v4694 = vpop.trf.xlu0
        %v4695 = vpop.trf.xlu0
        %v4696 = vpop.trf.xlu0
        %4697 = vxpose.xlu0.b32.start [1/16] %v4534, 128
        %4698 = vxpose.xlu0.b32.cont [2/16] 0.0, 128
        %4699 = vxpose.xlu0.b32.cont [3/16] 0.0, 128
        %4700 = vxpose.xlu0.b32.cont [4/16] 0.0, 128
        %4701 = vxpose.xlu0.b32.cont [5/16] 0.0, 128
        %4702 = vxpose.xlu0.b32.cont [6/16] 0.0, 128
        %4703 = vxpose.xlu0.b32.cont [7/16] 0.0, 128
        %4704 = vxpose.xlu0.b32.cont [8/16] 0.0, 128
        %4705 = vxpose.xlu0.b32.cont [9/16] 0.0, 128
        %4706 = vxpose.xlu0.b32.cont [10/16] 0.0, 128
        %4707 = vxpose.xlu0.b32.cont [11/16] 0.0, 128
        %4708 = vxpose.xlu0.b32.cont [12/16] 0.0, 128
        %4709 = vxpose.xlu0.b32.cont [13/16] 0.0, 128
        %4710 = vxpose.xlu0.b32.cont [14/16] 0.0, 128
        %4711 = vxpose.xlu0.b32.cont [15/16] 0.0, 128
        %4712 = vxpose.xlu0.b32.end [16/16] 0.0, 128
        %v4713 = vpop.trf.xlu0
        %v4714 = vpop.trf.xlu0
        %v4715 = vpop.trf.xlu0
        %v4716 = vpop.trf.xlu0
        %v4717 = vpop.trf.xlu0
        %v4718 = vpop.trf.xlu0
        %v4719 = vpop.trf.xlu0
        %v4720 = vpop.trf.xlu0
        %v4721 = vpop.trf.xlu0
        %v4722 = vpop.trf.xlu0
        %v4723 = vpop.trf.xlu0
        %v4724 = vpop.trf.xlu0
        %v4725 = vpop.trf.xlu0
        %v4726 = vpop.trf.xlu0
        %v4727 = vpop.trf.xlu0
        %v4728 = vpop.trf.xlu0
        %4729 = vxpose.xlu0.b32.start [1/16] %v4528, 128
        %4730 = vxpose.xlu0.b32.cont [2/16] 0.0, 128
        %4731 = vxpose.xlu0.b32.cont [3/16] 0.0, 128
        %4732 = vxpose.xlu0.b32.cont [4/16] 0.0, 128
        %4733 = vxpose.xlu0.b32.cont [5/16] 0.0, 128
        %4734 = vxpose.xlu0.b32.cont [6/16] 0.0, 128
        %4735 = vxpose.xlu0.b32.cont [7/16] 0.0, 128
        %4736 = vxpose.xlu0.b32.cont [8/16] 0.0, 128
        %4737 = vxpose.xlu0.b32.cont [9/16] 0.0, 128
        %4738 = vxpose.xlu0.b32.cont [10/16] 0.0, 128
        %4739 = vxpose.xlu0.b32.cont [11/16] 0.0, 128
        %4740 = vxpose.xlu0.b32.cont [12/16] 0.0, 128
        %4741 = vxpose.xlu0.b32.cont [13/16] 0.0, 128
        %4742 = vxpose.xlu0.b32.cont [14/16] 0.0, 128
        %4743 = vxpose.xlu0.b32.cont [15/16] 0.0, 128
        %4744 = vxpose.xlu0.b32.end [16/16] 0.0, 128
        %v4745 = vpop.trf.xlu0
        %v4746 = vpop.trf.xlu0
        %v4747 = vpop.trf.xlu0
        %v4748 = vpop.trf.xlu0
        %v4749 = vpop.trf.xlu0
        %v4750 = vpop.trf.xlu0
        %v4751 = vpop.trf.xlu0
        %v4752 = vpop.trf.xlu0
        %v4753 = vpop.trf.xlu0
        %v4754 = vpop.trf.xlu0
        %v4755 = vpop.trf.xlu0
        %v4756 = vpop.trf.xlu0
        %v4757 = vpop.trf.xlu0
        %v4758 = vpop.trf.xlu0
        %v4759 = vpop.trf.xlu0
        %v4760 = vpop.trf.xlu0
        %4761 = vxpose.xlu0.b32.start [1/16] %v4536, 128
        %4762 = vxpose.xlu0.b32.cont [2/16] 0.0, 128
        %4763 = vxpose.xlu0.b32.cont [3/16] 0.0, 128
        %4764 = vxpose.xlu0.b32.cont [4/16] 0.0, 128
        %4765 = vxpose.xlu0.b32.cont [5/16] 0.0, 128
        %4766 = vxpose.xlu0.b32.cont [6/16] 0.0, 128
        %4767 = vxpose.xlu0.b32.cont [7/16] 0.0, 128
        %4768 = vxpose.xlu0.b32.cont [8/16] 0.0, 128
        %4769 = vxpose.xlu0.b32.cont [9/16] 0.0, 128
        %4770 = vxpose.xlu0.b32.cont [10/16] 0.0, 128
        %4771 = vxpose.xlu0.b32.cont [11/16] 0.0, 128
        %4772 = vxpose.xlu0.b32.cont [12/16] 0.0, 128
        %4773 = vxpose.xlu0.b32.cont [13/16] 0.0, 128
        %4774 = vxpose.xlu0.b32.cont [14/16] 0.0, 128
        %4775 = vxpose.xlu0.b32.cont [15/16] 0.0, 128
        %4776 = vxpose.xlu0.b32.end [16/16] 0.0, 128
        %v4777 = vpop.trf.xlu0
        %v4778 = vpop.trf.xlu0
        %v4779 = vpop.trf.xlu0
        %v4780 = vpop.trf.xlu0
        %v4781 = vpop.trf.xlu0
        %v4782 = vpop.trf.xlu0
        %v4783 = vpop.trf.xlu0
        %v4784 = vpop.trf.xlu0
        %v4785 = vpop.trf.xlu0
        %v4786 = vpop.trf.xlu0
        %v4787 = vpop.trf.xlu0
        %v4788 = vpop.trf.xlu0
        %v4789 = vpop.trf.xlu0
        %v4790 = vpop.trf.xlu0
        %v4791 = vpop.trf.xlu0
        %v4792 = vpop.trf.xlu0
        %v4793 = vrot.slane %v4617, 4
        %v4794 = vsel %vm597, %v4793, %v4553
        %v4795 = vrot.slane %v4553, 4
        %v4796 = vsel %vm597, %v4617, %v4795
        %v4798 = vunpack.c.l.s4 1983009808
        %v4799 = vunpack.c.0.s8 %v4798
        %v4800 = vperm.slane %v4794, %v4799
        %v4802 = vunpack.c.l.s4 1983009808
        %v4803 = vunpack.c.0.s8 %v4802
        %v4804 = vperm.slane %v4796, %v4803
        %v4805 = vrot.slane %v4649, 4
        %v4806 = vsel %vm597, %v4805, %v4585
        %v4807 = vrot.slane %v4585, 4
        %v4808 = vsel %vm597, %v4649, %v4807
        %v4810 = vunpack.c.l.s4 1983009808
        %v4811 = vunpack.c.0.s8 %v4810
        %v4812 = vperm.slane %v4806, %v4811
        %v4814 = vunpack.c.l.s4 1983009808
        %v4815 = vunpack.c.0.s8 %v4814
        %v4816 = vperm.slane %v4808, %v4815
        %v4817 = vrot.slane %v4745, 4
        %v4818 = vsel %vm597, %v4817, %v4681
        %v4819 = vrot.slane %v4681, 4
        %v4820 = vsel %vm597, %v4745, %v4819
        %v4822 = vunpack.c.l.s4 1983009808
        %v4823 = vunpack.c.0.s8 %v4822
        %v4824 = vperm.slane %v4818, %v4823
        %v4826 = vunpack.c.l.s4 1983009808
        %v4827 = vunpack.c.0.s8 %v4826
        %v4828 = vperm.slane %v4820, %v4827
        %v4829 = vrot.slane %v4777, 4
        %v4830 = vsel %vm597, %v4829, %v4713
        %v4831 = vrot.slane %v4713, 4
        %v4832 = vsel %vm597, %v4777, %v4831
        %v4834 = vunpack.c.l.s4 1983009808
        %v4835 = vunpack.c.0.s8 %v4834
        %v4836 = vperm.slane %v4830, %v4835
        %v4838 = vunpack.c.l.s4 1983009808
        %v4839 = vunpack.c.0.s8 %v4838
        %v4840 = vperm.slane %v4832, %v4839
        %v4841 = vrot.slane %v4812, 4
        %v4842 = vsel %vm597, %v4841, %v4800
        %v4843 = vrot.slane %v4800, 4
        %v4844 = vsel %vm597, %v4812, %v4843
        %v4846 = vunpack.c.l.s4 1934713408
        %v4847 = vunpack.c.0.s8 %v4846
        %v4848 = vperm.slane %v4842, %v4847
        %v4850 = vunpack.c.l.s4 1934713408
        %v4851 = vunpack.c.0.s8 %v4850
        %v4852 = vperm.slane %v4844, %v4851
        %v4853 = vrot.slane %v4816, 4
        %v4854 = vsel %vm597, %v4853, %v4804
        %v4855 = vrot.slane %v4804, 4
        %v4856 = vsel %vm597, %v4816, %v4855
        %v4858 = vunpack.c.l.s4 1934713408
        %v4859 = vunpack.c.0.s8 %v4858
        %v4860 = vperm.slane %v4854, %v4859
        %v4862 = vunpack.c.l.s4 1934713408
        %v4863 = vunpack.c.0.s8 %v4862
        %v4864 = vperm.slane %v4856, %v4863
        %v4865 = vrot.slane %v4836, 4
        %v4866 = vsel %vm597, %v4865, %v4824
        %v4867 = vrot.slane %v4824, 4
        %v4868 = vsel %vm597, %v4836, %v4867
        %v4870 = vunpack.c.l.s4 1934713408
        %v4871 = vunpack.c.0.s8 %v4870
        %v4872 = vperm.slane %v4866, %v4871
        %v4874 = vunpack.c.l.s4 1934713408
        %v4875 = vunpack.c.0.s8 %v4874
        %v4876 = vperm.slane %v4868, %v4875
        %v4877 = vrot.slane %v4840, 4
        %v4878 = vsel %vm597, %v4877, %v4828
        %v4879 = vrot.slane %v4828, 4
        %v4880 = vsel %vm597, %v4840, %v4879
        %v4882 = vunpack.c.l.s4 1934713408
        %v4883 = vunpack.c.0.s8 %v4882
        %v4884 = vperm.slane %v4878, %v4883
        %v4886 = vunpack.c.l.s4 1934713408
        %v4887 = vunpack.c.0.s8 %v4886
        %v4888 = vperm.slane %v4880, %v4887
        %v4889 = vrot.slane %v4872, 4
        %v4890 = vsel %vm597, %v4889, %v4848
        %v4891 = vrot.slane %v4848, 4
        %v4892 = vsel %vm597, %v4872, %v4891
        %v4893 = vrot.slane %v4876, 4
        %v4894 = vsel %vm597, %v4893, %v4852
        %v4895 = vrot.slane %v4852, 4
        %v4896 = vsel %vm597, %v4876, %v4895
        %v4897 = vrot.slane %v4884, 4
        %v4898 = vsel %vm597, %v4897, %v4860
        %v4899 = vrot.slane %v4860, 4
        %v4900 = vsel %vm597, %v4884, %v4899
        %v4901 = vrot.slane %v4888, 4
        %v4902 = vsel %vm597, %v4901, %v4864
        %v4903 = vrot.slane %v4864, 4
        %v4904 = vsel %vm597, %v4888, %v4903
        %v4906 = vsel %vm1141, %v4390, 0
        %4908 = vmatpush.msra.mxu0 0.0
        %4909 = vmatpush.msra.mxu0 0.0
        %4910 = vmatpush.msra.mxu0 0.0
        %4911 = vmatpush.msra.mxu0 0.0
        %4912 = vmatpush.msra.mxu0 0.0
        %4913 = vmatpush.msra.mxu0 0.0
        %4914 = vmatpush.msra.mxu0 0.0
        %4915 = vmatpush.msra.mxu0 0.0
        %4916 = vmatpush.msra.mxu0 0.0
        %4917 = vmatpush.msra.mxu0 0.0
        %4918 = vmatpush.msra.mxu0 0.0
        %4919 = vmatpush.msra.mxu0 0.0
        %4920 = vmatpush.msra.mxu0 0.0
        %4921 = vmatpush.msra.mxu0 0.0
        %4922 = vmatpush.msra.mxu0 0.0
        %4923 = vmatpush.msra.mxu0 %v4890
        %4924 = vmatmul.f32.gmra.mxu0 %v4906
        %v4925 = vpop.f32.mrf.mxu0
        %v4926 = vadd.f32 0.0, %v4925
        %4927 = vdwg.mxu0
        %v4929 = vsel %vm1141, %v4408, 0
        %4931 = vmatpush.msra.mxu0 0.0
        %4932 = vmatpush.msra.mxu0 0.0
        %4933 = vmatpush.msra.mxu0 0.0
        %4934 = vmatpush.msra.mxu0 0.0
        %4935 = vmatpush.msra.mxu0 0.0
        %4936 = vmatpush.msra.mxu0 0.0
        %4937 = vmatpush.msra.mxu0 0.0
        %4938 = vmatpush.msra.mxu0 0.0
        %4939 = vmatpush.msra.mxu0 0.0
        %4940 = vmatpush.msra.mxu0 0.0
        %4941 = vmatpush.msra.mxu0 0.0
        %4942 = vmatpush.msra.mxu0 0.0
        %4943 = vmatpush.msra.mxu0 0.0
        %4944 = vmatpush.msra.mxu0 0.0
        %4945 = vmatpush.msra.mxu0 0.0
        %4946 = vmatpush.msra.mxu0 %v4892
        %4947 = vmatmul.f32.gmra.mxu0 %v4929
        %v4948 = vpop.f32.mrf.mxu0
        %v4949 = vadd.f32 0.0, %v4948
        %4950 = vdwg.mxu0
        %v4952 = vsel %vm1141, %v4394, 0
        %4954 = vmatpush.msra.mxu0 0.0
        %4955 = vmatpush.msra.mxu0 0.0
        %4956 = vmatpush.msra.mxu0 0.0
        %4957 = vmatpush.msra.mxu0 0.0
        %4958 = vmatpush.msra.mxu0 0.0
        %4959 = vmatpush.msra.mxu0 0.0
        %4960 = vmatpush.msra.mxu0 0.0
        %4961 = vmatpush.msra.mxu0 0.0
        %4962 = vmatpush.msra.mxu0 0.0
        %4963 = vmatpush.msra.mxu0 0.0
        %4964 = vmatpush.msra.mxu0 0.0
        %4965 = vmatpush.msra.mxu0 0.0
        %4966 = vmatpush.msra.mxu0 0.0
        %4967 = vmatpush.msra.mxu0 0.0
        %4968 = vmatpush.msra.mxu0 0.0
        %4969 = vmatpush.msra.mxu0 %v4894
        %4970 = vmatmul.f32.gmra.mxu0 %v4952
        %v4971 = vpop.f32.mrf.mxu0
        %v4972 = vadd.f32 0.0, %v4971
        %4973 = vdwg.mxu0
        %v4975 = vsel %vm1141, %v4410, 0
        %4977 = vmatpush.msra.mxu0 0.0
        %4978 = vmatpush.msra.mxu0 0.0
        %4979 = vmatpush.msra.mxu0 0.0
        %4980 = vmatpush.msra.mxu0 0.0
        %4981 = vmatpush.msra.mxu0 0.0
        %4982 = vmatpush.msra.mxu0 0.0
        %4983 = vmatpush.msra.mxu0 0.0
        %4984 = vmatpush.msra.mxu0 0.0
        %4985 = vmatpush.msra.mxu0 0.0
        %4986 = vmatpush.msra.mxu0 0.0
        %4987 = vmatpush.msra.mxu0 0.0
        %4988 = vmatpush.msra.mxu0 0.0
        %4989 = vmatpush.msra.mxu0 0.0
        %4990 = vmatpush.msra.mxu0 0.0
        %4991 = vmatpush.msra.mxu0 0.0
        %4992 = vmatpush.msra.mxu0 %v4896
        %4993 = vmatmul.f32.gmra.mxu0 %v4975
        %v4994 = vpop.f32.mrf.mxu0
        %v4995 = vadd.f32 0.0, %v4994
        %4996 = vdwg.mxu0
        %v4998 = vsel %vm1141, %v4402, 0
        %5000 = vmatpush.msra.mxu0 0.0
        %5001 = vmatpush.msra.mxu0 0.0
        %5002 = vmatpush.msra.mxu0 0.0
        %5003 = vmatpush.msra.mxu0 0.0
        %5004 = vmatpush.msra.mxu0 0.0
        %5005 = vmatpush.msra.mxu0 0.0
        %5006 = vmatpush.msra.mxu0 0.0
        %5007 = vmatpush.msra.mxu0 0.0
        %5008 = vmatpush.msra.mxu0 0.0
        %5009 = vmatpush.msra.mxu0 0.0
        %5010 = vmatpush.msra.mxu0 0.0
        %5011 = vmatpush.msra.mxu0 0.0
        %5012 = vmatpush.msra.mxu0 0.0
        %5013 = vmatpush.msra.mxu0 0.0
        %5014 = vmatpush.msra.mxu0 0.0
        %5015 = vmatpush.msra.mxu0 %v4898
        %5016 = vmatmul.f32.gmra.mxu0 %v4998
        %v5017 = vpop.f32.mrf.mxu0
        %v5018 = vadd.f32 0.0, %v5017
        %5019 = vdwg.mxu0
        %v5021 = vsel %vm1141, %v4412, 0
        %5023 = vmatpush.msra.mxu0 0.0
        %5024 = vmatpush.msra.mxu0 0.0
        %5025 = vmatpush.msra.mxu0 0.0
        %5026 = vmatpush.msra.mxu0 0.0
        %5027 = vmatpush.msra.mxu0 0.0
        %5028 = vmatpush.msra.mxu0 0.0
        %5029 = vmatpush.msra.mxu0 0.0
        %5030 = vmatpush.msra.mxu0 0.0
        %5031 = vmatpush.msra.mxu0 0.0
        %5032 = vmatpush.msra.mxu0 0.0
        %5033 = vmatpush.msra.mxu0 0.0
        %5034 = vmatpush.msra.mxu0 0.0
        %5035 = vmatpush.msra.mxu0 0.0
        %5036 = vmatpush.msra.mxu0 0.0
        %5037 = vmatpush.msra.mxu0 0.0
        %5038 = vmatpush.msra.mxu0 %v4900
        %5039 = vmatmul.f32.gmra.mxu0 %v5021
        %v5040 = vpop.f32.mrf.mxu0
        %v5041 = vadd.f32 0.0, %v5040
        %5042 = vdwg.mxu0
        %v5044 = vsel %vm1141, %v4406, 0
        %5046 = vmatpush.msra.mxu0 0.0
        %5047 = vmatpush.msra.mxu0 0.0
        %5048 = vmatpush.msra.mxu0 0.0
        %5049 = vmatpush.msra.mxu0 0.0
        %5050 = vmatpush.msra.mxu0 0.0
        %5051 = vmatpush.msra.mxu0 0.0
        %5052 = vmatpush.msra.mxu0 0.0
        %5053 = vmatpush.msra.mxu0 0.0
        %5054 = vmatpush.msra.mxu0 0.0
        %5055 = vmatpush.msra.mxu0 0.0
        %5056 = vmatpush.msra.mxu0 0.0
        %5057 = vmatpush.msra.mxu0 0.0
        %5058 = vmatpush.msra.mxu0 0.0
        %5059 = vmatpush.msra.mxu0 0.0
        %5060 = vmatpush.msra.mxu0 0.0
        %5061 = vmatpush.msra.mxu0 %v4902
        %5062 = vmatmul.f32.gmra.mxu0 %v5044
        %v5063 = vpop.f32.mrf.mxu0
        %v5064 = vadd.f32 0.0, %v5063
        %5065 = vdwg.mxu0
        %v5067 = vsel %vm1141, %v4414, 0
        %5069 = vmatpush.msra.mxu0 0.0
        %5070 = vmatpush.msra.mxu0 0.0
        %5071 = vmatpush.msra.mxu0 0.0
        %5072 = vmatpush.msra.mxu0 0.0
        %5073 = vmatpush.msra.mxu0 0.0
        %5074 = vmatpush.msra.mxu0 0.0
        %5075 = vmatpush.msra.mxu0 0.0
        %5076 = vmatpush.msra.mxu0 0.0
        %5077 = vmatpush.msra.mxu0 0.0
        %5078 = vmatpush.msra.mxu0 0.0
        %5079 = vmatpush.msra.mxu0 0.0
        %5080 = vmatpush.msra.mxu0 0.0
        %5081 = vmatpush.msra.mxu0 0.0
        %5082 = vmatpush.msra.mxu0 0.0
        %5083 = vmatpush.msra.mxu0 0.0
        %5084 = vmatpush.msra.mxu0 %v4904
        %5085 = vmatmul.f32.gmra.mxu0 %v5067
        %v5086 = vpop.f32.mrf.mxu0
        %v5087 = vadd.f32 0.0, %v5086
        %5088 = vdwg.mxu0
        %v5089 = vsel %vm1326, %v4926, -inf
        %5090 = vmax.xlane.f32.xlu0 %v5089
        %v5091 = vpop.xlane.xlu0 %5090
        %v5092 = vsel %vm1326, %v4949, -inf
        %5093 = vmax.xlane.f32.xlu0 %v5092
        %v5094 = vpop.xlane.xlu0 %5093
        %v5095 = vsel %vm1326, %v4972, -inf
        %5096 = vmax.xlane.f32.xlu0 %v5095
        %v5097 = vpop.xlane.xlu0 %5096
        %v5098 = vsel %vm1326, %v4995, -inf
        %5099 = vmax.xlane.f32.xlu0 %v5098
        %v5100 = vpop.xlane.xlu0 %5099
        %v5101 = vsel %vm1326, %v5018, -inf
        %5102 = vmax.xlane.f32.xlu0 %v5101
        %v5103 = vpop.xlane.xlu0 %5102
        %v5104 = vsel %vm1326, %v5041, -inf
        %5105 = vmax.xlane.f32.xlu0 %v5104
        %v5106 = vpop.xlane.xlu0 %5105
        %v5107 = vsel %vm1326, %v5064, -inf
        %5108 = vmax.xlane.f32.xlu0 %v5107
        %v5109 = vpop.xlane.xlu0 %5108
        %v5110 = vsel %vm1326, %v5087, -inf
        %5111 = vmax.xlane.f32.xlu0 %v5110
        %v5112 = vpop.xlane.xlu0 %5111
        %v5113 = vsub.f32 %v4926, %v5091
        %v5114 = vsub.f32 %v4949, %v5094
        %v5115 = vsub.f32 %v4972, %v5097
        %v5116 = vsub.f32 %v4995, %v5100
        %v5117 = vsub.f32 %v5018, %v5103
        %v5118 = vsub.f32 %v5041, %v5106
        %v5119 = vsub.f32 %v5064, %v5109
        %v5120 = vsub.f32 %v5087, %v5112
        %v5121 = vmul.f32 %v5113, 1.442695
        %v5122 = vpow.pop %v5121
        %v5123 = vmul.f32 %v5114, 1.442695
        %v5124 = vpow.pop %v5123
        %v5125 = vmul.f32 %v5115, 1.442695
        %v5126 = vpow.pop %v5125
        %v5127 = vmul.f32 %v5116, 1.442695
        %v5128 = vpow.pop %v5127
        %v5129 = vmul.f32 %v5117, 1.442695
        %v5130 = vpow.pop %v5129
        %v5131 = vmul.f32 %v5118, 1.442695
        %v5132 = vpow.pop %v5131
        %v5133 = vmul.f32 %v5119, 1.442695
        %v5134 = vpow.pop %v5133
        %v5135 = vmul.f32 %v5120, 1.442695
        %v5136 = vpow.pop %v5135
        %v5137 = vsel %vm1326, %v5122, 0.0
        %5138 = vadd.xlane.f32.xlu0 %v5137
        %v5139 = vpop.xlane.xlu0 %5138
        %v5140 = vsel %vm1326, %v5124, 0.0
        %5141 = vadd.xlane.f32.xlu0 %v5140
        %v5142 = vpop.xlane.xlu0 %5141
        %v5143 = vsel %vm1326, %v5126, 0.0
        %5144 = vadd.xlane.f32.xlu0 %v5143
        %v5145 = vpop.xlane.xlu0 %5144
        %v5146 = vsel %vm1326, %v5128, 0.0
        %5147 = vadd.xlane.f32.xlu0 %v5146
        %v5148 = vpop.xlane.xlu0 %5147
        %v5149 = vsel %vm1326, %v5130, 0.0
        %5150 = vadd.xlane.f32.xlu0 %v5149
        %v5151 = vpop.xlane.xlu0 %5150
        %v5152 = vsel %vm1326, %v5132, 0.0
        %5153 = vadd.xlane.f32.xlu0 %v5152
        %v5154 = vpop.xlane.xlu0 %5153
        %v5155 = vsel %vm1326, %v5134, 0.0
        %5156 = vadd.xlane.f32.xlu0 %v5155
        %v5157 = vpop.xlane.xlu0 %5156
        %v5158 = vsel %vm1326, %v5136, 0.0
        %5159 = vadd.xlane.f32.xlu0 %v5158
        %v5160 = vpop.xlane.xlu0 %5159
        %v5161 = vrcp.pop %v5139
        %v5162 = vmul.f32 %v5139, %v5161
        %v5163 = vsub.f32 1.0, %v5162
        %v5164 = vmul.f32 %v5161, %v5163
        %v5165 = vadd.f32 %v5161, %v5164
        %vm5166 = vweird.f32 %v5139
        %vm5167 = vweird.f32 %v5161
        %vm5168 = vmor %vm5166, %vm5167
        %v5169 = vsel %vm5168, %v5161, %v5165
        %v5170 = vand.u32 2147483647, %v5139
        %vm5171 = vcmp.eq.f32.partialorder %v5170, 8.507059e+37
        %v5172 = vand.u32 %v5139, 2147483648
        %v5173 = vor.u32 1.1754944e-38, %v5172
        %v5174 = vsel %vm5171, %v5173, %v5169
        %v5175 = vmul.f32 %v5122, %v5174
        %v5176 = vrcp.pop %v5142
        %v5177 = vmul.f32 %v5142, %v5176
        %v5178 = vsub.f32 1.0, %v5177
        %v5179 = vmul.f32 %v5176, %v5178
        %v5180 = vadd.f32 %v5176, %v5179
        %vm5181 = vweird.f32 %v5142
        %vm5182 = vweird.f32 %v5176
        %vm5183 = vmor %vm5181, %vm5182
        %v5184 = vsel %vm5183, %v5176, %v5180
        %v5185 = vand.u32 2147483647, %v5142
        %vm5186 = vcmp.eq.f32.partialorder %v5185, 8.507059e+37
        %v5187 = vand.u32 %v5142, 2147483648
        %v5188 = vor.u32 1.1754944e-38, %v5187
        %v5189 = vsel %vm5186, %v5188, %v5184
        %v5190 = vmul.f32 %v5124, %v5189
        %v5191 = vrcp.pop %v5145
        %v5192 = vmul.f32 %v5145, %v5191
        %v5193 = vsub.f32 1.0, %v5192
        %v5194 = vmul.f32 %v5191, %v5193
        %v5195 = vadd.f32 %v5191, %v5194
        %vm5196 = vweird.f32 %v5145
        %vm5197 = vweird.f32 %v5191
        %vm5198 = vmor %vm5196, %vm5197
        %v5199 = vsel %vm5198, %v5191, %v5195
        %v5200 = vand.u32 2147483647, %v5145
        %vm5201 = vcmp.eq.f32.partialorder %v5200, 8.507059e+37
        %v5202 = vand.u32 %v5145, 2147483648
        %v5203 = vor.u32 1.1754944e-38, %v5202
        %v5204 = vsel %vm5201, %v5203, %v5199
        %v5205 = vmul.f32 %v5126, %v5204
        %v5206 = vrcp.pop %v5148
        %v5207 = vmul.f32 %v5148, %v5206
        %v5208 = vsub.f32 1.0, %v5207
        %v5209 = vmul.f32 %v5206, %v5208
        %v5210 = vadd.f32 %v5206, %v5209
        %vm5211 = vweird.f32 %v5148
        %vm5212 = vweird.f32 %v5206
        %vm5213 = vmor %vm5211, %vm5212
        %v5214 = vsel %vm5213, %v5206, %v5210
        %v5215 = vand.u32 2147483647, %v5148
        %vm5216 = vcmp.eq.f32.partialorder %v5215, 8.507059e+37
        %v5217 = vand.u32 %v5148, 2147483648
        %v5218 = vor.u32 1.1754944e-38, %v5217
        %v5219 = vsel %vm5216, %v5218, %v5214
        %v5220 = vmul.f32 %v5128, %v5219
        %v5221 = vrcp.pop %v5151
        %v5222 = vmul.f32 %v5151, %v5221
        %v5223 = vsub.f32 1.0, %v5222
        %v5224 = vmul.f32 %v5221, %v5223
        %v5225 = vadd.f32 %v5221, %v5224
        %vm5226 = vweird.f32 %v5151
        %vm5227 = vweird.f32 %v5221
        %vm5228 = vmor %vm5226, %vm5227
        %v5229 = vsel %vm5228, %v5221, %v5225
        %v5230 = vand.u32 2147483647, %v5151
        %vm5231 = vcmp.eq.f32.partialorder %v5230, 8.507059e+37
        %v5232 = vand.u32 %v5151, 2147483648
        %v5233 = vor.u32 1.1754944e-38, %v5232
        %v5234 = vsel %vm5231, %v5233, %v5229
        %v5235 = vmul.f32 %v5130, %v5234
        %v5236 = vrcp.pop %v5154
        %v5237 = vmul.f32 %v5154, %v5236
        %v5238 = vsub.f32 1.0, %v5237
        %v5239 = vmul.f32 %v5236, %v5238
        %v5240 = vadd.f32 %v5236, %v5239
        %vm5241 = vweird.f32 %v5154
        %vm5242 = vweird.f32 %v5236
        %vm5243 = vmor %vm5241, %vm5242
        %v5244 = vsel %vm5243, %v5236, %v5240
        %v5245 = vand.u32 2147483647, %v5154
        %vm5246 = vcmp.eq.f32.partialorder %v5245, 8.507059e+37
        %v5247 = vand.u32 %v5154, 2147483648
        %v5248 = vor.u32 1.1754944e-38, %v5247
        %v5249 = vsel %vm5246, %v5248, %v5244
        %v5250 = vmul.f32 %v5132, %v5249
        %v5251 = vrcp.pop %v5157
        %v5252 = vmul.f32 %v5157, %v5251
        %v5253 = vsub.f32 1.0, %v5252
        %v5254 = vmul.f32 %v5251, %v5253
        %v5255 = vadd.f32 %v5251, %v5254
        %vm5256 = vweird.f32 %v5157
        %vm5257 = vweird.f32 %v5251
        %vm5258 = vmor %vm5256, %vm5257
        %v5259 = vsel %vm5258, %v5251, %v5255
        %v5260 = vand.u32 2147483647, %v5157
        %vm5261 = vcmp.eq.f32.partialorder %v5260, 8.507059e+37
        %v5262 = vand.u32 %v5157, 2147483648
        %v5263 = vor.u32 1.1754944e-38, %v5262
        %v5264 = vsel %vm5261, %v5263, %v5259
        %v5265 = vmul.f32 %v5134, %v5264
        %v5266 = vrcp.pop %v5160
        %v5267 = vmul.f32 %v5160, %v5266
        %v5268 = vsub.f32 1.0, %v5267
        %v5269 = vmul.f32 %v5266, %v5268
        %v5270 = vadd.f32 %v5266, %v5269
        %vm5271 = vweird.f32 %v5160
        %vm5272 = vweird.f32 %v5266
        %vm5273 = vmor %vm5271, %vm5272
        %v5274 = vsel %vm5273, %v5266, %v5270
        %v5275 = vand.u32 2147483647, %v5160
        %vm5276 = vcmp.eq.f32.partialorder %v5275, 8.507059e+37
        %v5277 = vand.u32 %v5160, 2147483648
        %v5278 = vor.u32 1.1754944e-38, %v5277
        %v5279 = vsel %vm5276, %v5278, %v5274
        %v5280 = vmul.f32 %v5136, %v5279
        %5281 = vrot.lane.b32.xlu0 %v588, 40
        %v5282 = vpop.permute.xlu0 %5281
        %5283 = vrot.lane.b32.xlu0 %v590, 40
        %v5284 = vpop.permute.xlu0 %5283
        %v5287 = vrot.slane %v5282, 4
        %v5288 = vsel %vm597, 0.0, %v5287
        %v5290 = vunpack.c.l.s4 1983009808
        %v5291 = vunpack.c.0.s8 %v5290
        %v5292 = vperm.slane %v5282, %v5291
        %v5294 = vunpack.c.l.s4 1983009808
        %v5295 = vunpack.c.0.s8 %v5294
        %v5296 = vperm.slane %v5288, %v5295
        %v5297 = vrot.slane %v5284, 4
        %v5298 = vsel %vm597, 0.0, %v5297
        %v5300 = vunpack.c.l.s4 1983009808
        %v5301 = vunpack.c.0.s8 %v5300
        %v5302 = vperm.slane %v5284, %v5301
        %v5304 = vunpack.c.l.s4 1983009808
        %v5305 = vunpack.c.0.s8 %v5304
        %v5306 = vperm.slane %v5298, %v5305
        %v5307 = vrot.slane %v5302, 4
        %v5308 = vsel %vm597, %v5307, %v5292
        %v5309 = vrot.slane %v5292, 4
        %v5310 = vsel %vm597, %v5302, %v5309
        %v5312 = vunpack.c.l.s4 1934713408
        %v5313 = vunpack.c.0.s8 %v5312
        %v5314 = vperm.slane %v5308, %v5313
        %v5316 = vunpack.c.l.s4 1934713408
        %v5317 = vunpack.c.0.s8 %v5316
        %v5318 = vperm.slane %v5310, %v5317
        %v5319 = vrot.slane %v5306, 4
        %v5320 = vsel %vm597, %v5319, %v5296
        %v5321 = vrot.slane %v5296, 4
        %v5322 = vsel %vm597, %v5306, %v5321
        %v5324 = vunpack.c.l.s4 1934713408
        %v5325 = vunpack.c.0.s8 %v5324
        %v5326 = vperm.slane %v5320, %v5325
        %v5328 = vunpack.c.l.s4 1934713408
        %v5329 = vunpack.c.0.s8 %v5328
        %v5330 = vperm.slane %v5322, %v5329
        %v5331 = vrot.slane %v5314, 4
        %v5332 = vsel %vm597, 0.0, %v5331
        %v5333 = vrot.slane %v5318, 4
        %v5334 = vsel %vm597, 0.0, %v5333
        %v5335 = vrot.slane %v5326, 4
        %v5336 = vsel %vm597, 0.0, %v5335
        %v5337 = vrot.slane %v5330, 4
        %v5338 = vsel %vm597, 0.0, %v5337
        %v5340 = vsel %vm1577, %v5175, 0
        %v5343 = vsel %vm1581, %v5314, 0
        %5345 = vmatpush.msra.mxu0 0.0
        %5346 = vmatpush.msra.mxu0 0.0
        %5347 = vmatpush.msra.mxu0 0.0
        %5348 = vmatpush.msra.mxu0 0.0
        %5349 = vmatpush.msra.mxu0 0.0
        %5350 = vmatpush.msra.mxu0 0.0
        %5351 = vmatpush.msra.mxu0 0.0
        %5352 = vmatpush.msra.mxu0 0.0
        %5353 = vmatpush.msra.mxu0 0.0
        %5354 = vmatpush.msra.mxu0 0.0
        %5355 = vmatpush.msra.mxu0 0.0
        %5356 = vmatpush.msra.mxu0 0.0
        %5357 = vmatpush.msra.mxu0 0.0
        %5358 = vmatpush.msra.mxu0 0.0
        %5359 = vmatpush.msra.mxu0 0.0
        %5360 = vmatpush.msra.mxu0 %v5343
        %5361 = vmatmul.f32.gmra.mxu0 %v5340
        %v5362 = vpop.f32.mrf.mxu0
        %v5363 = vadd.f32 0.0, %v5362
        %5364 = vdwg.mxu0
        %v5366 = vsel %vm1577, %v5190, 0
        %v5369 = vsel %vm1581, %v5332, 0
        %5371 = vmatpush.msra.mxu0 0.0
        %5372 = vmatpush.msra.mxu0 0.0
        %5373 = vmatpush.msra.mxu0 0.0
        %5374 = vmatpush.msra.mxu0 0.0
        %5375 = vmatpush.msra.mxu0 0.0
        %5376 = vmatpush.msra.mxu0 0.0
        %5377 = vmatpush.msra.mxu0 0.0
        %5378 = vmatpush.msra.mxu0 0.0
        %5379 = vmatpush.msra.mxu0 0.0
        %5380 = vmatpush.msra.mxu0 0.0
        %5381 = vmatpush.msra.mxu0 0.0
        %5382 = vmatpush.msra.mxu0 0.0
        %5383 = vmatpush.msra.mxu0 0.0
        %5384 = vmatpush.msra.mxu0 0.0
        %5385 = vmatpush.msra.mxu0 0.0
        %5386 = vmatpush.msra.mxu0 %v5369
        %5387 = vmatmul.f32.gmra.mxu0 %v5366
        %v5388 = vpop.f32.mrf.mxu0
        %v5389 = vadd.f32 0.0, %v5388
        %5390 = vdwg.mxu0
        %v5392 = vsel %vm1577, %v5205, 0
        %v5395 = vsel %vm1581, %v5318, 0
        %5397 = vmatpush.msra.mxu0 0.0
        %5398 = vmatpush.msra.mxu0 0.0
        %5399 = vmatpush.msra.mxu0 0.0
        %5400 = vmatpush.msra.mxu0 0.0
        %5401 = vmatpush.msra.mxu0 0.0
        %5402 = vmatpush.msra.mxu0 0.0
        %5403 = vmatpush.msra.mxu0 0.0
        %5404 = vmatpush.msra.mxu0 0.0
        %5405 = vmatpush.msra.mxu0 0.0
        %5406 = vmatpush.msra.mxu0 0.0
        %5407 = vmatpush.msra.mxu0 0.0
        %5408 = vmatpush.msra.mxu0 0.0
        %5409 = vmatpush.msra.mxu0 0.0
        %5410 = vmatpush.msra.mxu0 0.0
        %5411 = vmatpush.msra.mxu0 0.0
        %5412 = vmatpush.msra.mxu0 %v5395
        %5413 = vmatmul.f32.gmra.mxu0 %v5392
        %v5414 = vpop.f32.mrf.mxu0
        %v5415 = vadd.f32 0.0, %v5414
        %5416 = vdwg.mxu0
        %v5418 = vsel %vm1577, %v5220, 0
        %v5421 = vsel %vm1581, %v5334, 0
        %5423 = vmatpush.msra.mxu0 0.0
        %5424 = vmatpush.msra.mxu0 0.0
        %5425 = vmatpush.msra.mxu0 0.0
        %5426 = vmatpush.msra.mxu0 0.0
        %5427 = vmatpush.msra.mxu0 0.0
        %5428 = vmatpush.msra.mxu0 0.0
        %5429 = vmatpush.msra.mxu0 0.0
        %5430 = vmatpush.msra.mxu0 0.0
        %5431 = vmatpush.msra.mxu0 0.0
        %5432 = vmatpush.msra.mxu0 0.0
        %5433 = vmatpush.msra.mxu0 0.0
        %5434 = vmatpush.msra.mxu0 0.0
        %5435 = vmatpush.msra.mxu0 0.0
        %5436 = vmatpush.msra.mxu0 0.0
        %5437 = vmatpush.msra.mxu0 0.0
        %5438 = vmatpush.msra.mxu0 %v5421
        %5439 = vmatmul.f32.gmra.mxu0 %v5418
        %v5440 = vpop.f32.mrf.mxu0
        %v5441 = vadd.f32 0.0, %v5440
        %5442 = vdwg.mxu0
        %v5444 = vsel %vm1577, %v5235, 0
        %v5447 = vsel %vm1581, %v5326, 0
        %5449 = vmatpush.msra.mxu0 0.0
        %5450 = vmatpush.msra.mxu0 0.0
        %5451 = vmatpush.msra.mxu0 0.0
        %5452 = vmatpush.msra.mxu0 0.0
        %5453 = vmatpush.msra.mxu0 0.0
        %5454 = vmatpush.msra.mxu0 0.0
        %5455 = vmatpush.msra.mxu0 0.0
        %5456 = vmatpush.msra.mxu0 0.0
        %5457 = vmatpush.msra.mxu0 0.0
        %5458 = vmatpush.msra.mxu0 0.0
        %5459 = vmatpush.msra.mxu0 0.0
        %5460 = vmatpush.msra.mxu0 0.0
        %5461 = vmatpush.msra.mxu0 0.0
        %5462 = vmatpush.msra.mxu0 0.0
        %5463 = vmatpush.msra.mxu0 0.0
        %5464 = vmatpush.msra.mxu0 %v5447
        %5465 = vmatmul.f32.gmra.mxu0 %v5444
        %v5466 = vpop.f32.mrf.mxu0
        %v5467 = vadd.f32 0.0, %v5466
        %5468 = vdwg.mxu0
        %v5470 = vsel %vm1577, %v5250, 0
        %v5473 = vsel %vm1581, %v5336, 0
        %5475 = vmatpush.msra.mxu0 0.0
        %5476 = vmatpush.msra.mxu0 0.0
        %5477 = vmatpush.msra.mxu0 0.0
        %5478 = vmatpush.msra.mxu0 0.0
        %5479 = vmatpush.msra.mxu0 0.0
        %5480 = vmatpush.msra.mxu0 0.0
        %5481 = vmatpush.msra.mxu0 0.0
        %5482 = vmatpush.msra.mxu0 0.0
        %5483 = vmatpush.msra.mxu0 0.0
        %5484 = vmatpush.msra.mxu0 0.0
        %5485 = vmatpush.msra.mxu0 0.0
        %5486 = vmatpush.msra.mxu0 0.0
        %5487 = vmatpush.msra.mxu0 0.0
        %5488 = vmatpush.msra.mxu0 0.0
        %5489 = vmatpush.msra.mxu0 0.0
        %5490 = vmatpush.msra.mxu0 %v5473
        %5491 = vmatmul.f32.gmra.mxu0 %v5470
        %v5492 = vpop.f32.mrf.mxu0
        %v5493 = vadd.f32 0.0, %v5492
        %5494 = vdwg.mxu0
        %v5496 = vsel %vm1577, %v5265, 0
        %v5499 = vsel %vm1581, %v5330, 0
        %5501 = vmatpush.msra.mxu0 0.0
        %5502 = vmatpush.msra.mxu0 0.0
        %5503 = vmatpush.msra.mxu0 0.0
        %5504 = vmatpush.msra.mxu0 0.0
        %5505 = vmatpush.msra.mxu0 0.0
        %5506 = vmatpush.msra.mxu0 0.0
        %5507 = vmatpush.msra.mxu0 0.0
        %5508 = vmatpush.msra.mxu0 0.0
        %5509 = vmatpush.msra.mxu0 0.0
        %5510 = vmatpush.msra.mxu0 0.0
        %5511 = vmatpush.msra.mxu0 0.0
        %5512 = vmatpush.msra.mxu0 0.0
        %5513 = vmatpush.msra.mxu0 0.0
        %5514 = vmatpush.msra.mxu0 0.0
        %5515 = vmatpush.msra.mxu0 0.0
        %5516 = vmatpush.msra.mxu0 %v5499
        %5517 = vmatmul.f32.gmra.mxu0 %v5496
        %v5518 = vpop.f32.mrf.mxu0
        %v5519 = vadd.f32 0.0, %v5518
        %5520 = vdwg.mxu0
        %v5522 = vsel %vm1577, %v5280, 0
        %v5525 = vsel %vm1581, %v5338, 0
        %5527 = vmatpush.msra.mxu0 0.0
        %5528 = vmatpush.msra.mxu0 0.0
        %5529 = vmatpush.msra.mxu0 0.0
        %5530 = vmatpush.msra.mxu0 0.0
        %5531 = vmatpush.msra.mxu0 0.0
        %5532 = vmatpush.msra.mxu0 0.0
        %5533 = vmatpush.msra.mxu0 0.0
        %5534 = vmatpush.msra.mxu0 0.0
        %5535 = vmatpush.msra.mxu0 0.0
        %5536 = vmatpush.msra.mxu0 0.0
        %5537 = vmatpush.msra.mxu0 0.0
        %5538 = vmatpush.msra.mxu0 0.0
        %5539 = vmatpush.msra.mxu0 0.0
        %5540 = vmatpush.msra.mxu0 0.0
        %5541 = vmatpush.msra.mxu0 0.0
        %5542 = vmatpush.msra.mxu0 %v5525
        %5543 = vmatmul.f32.gmra.mxu0 %v5522
        %v5544 = vpop.f32.mrf.mxu0
        %v5545 = vadd.f32 0.0, %v5544
        %5546 = vdwg.mxu0
        %v5547 = vpack.c.bf16 %v5363, %v5363
        %v5548 = vpack.c.bf16 %v5389, %v5389
        %v5549 = vpack.c.bf16 %v5415, %v5415
        %v5550 = vpack.c.bf16 %v5441, %v5441
        %v5551 = vpack.c.bf16 %v5467, %v5467
        %v5552 = vpack.c.bf16 %v5493, %v5493
        %v5553 = vpack.c.bf16 %v5519, %v5519
        %v5554 = vpack.c.bf16 %v5545, %v5545
        %5556 = vst [vmem:[#allocation1] ss:$9 sm:$0xff] %v5547
        %s5558 = scalar_lea.vmem [#allocation1], 1
        %5559 = vst [vmem:[%s5558] ss:$9 sm:$0xff] %v5548
        %s5561 = scalar_lea.vmem [#allocation1], 2
        %5562 = vst [vmem:[%s5561] ss:$9 sm:$0xff] %v5549
        %s5564 = scalar_lea.vmem [#allocation1], 3
        %5565 = vst [vmem:[%s5564] ss:$9 sm:$0xff] %v5550
        %s5567 = scalar_lea.vmem [#allocation1], 4
        %5568 = vst [vmem:[%s5567] ss:$9 sm:$0xff] %v5551
        %s5570 = scalar_lea.vmem [#allocation1], 5
        %5571 = vst [vmem:[%s5570] ss:$9 sm:$0xff] %v5552
        %s5573 = scalar_lea.vmem [#allocation1], 6
        %5574 = vst [vmem:[%s5573] ss:$9 sm:$0xff] %v5553
        %s5576 = scalar_lea.vmem [#allocation1], 7
        %5577 = vst [vmem:[%s5576] ss:$9 sm:$0xff] %v5554
        %v5578 = vld [vmem:[#allocation1] sm:$0xff]
        %v5579 = vsel %vm1141, %v5578, 0
        %v5582 = vsel %vm3019, %v595, 0
        %5584 = vmatpush.bf16.msra.mxu0 0
        %5585 = vmatpush.bf16.msra.mxu0 0
        %5586 = vmatpush.bf16.msra.mxu0 0
        %5587 = vmatpush.bf16.msra.mxu0 0
        %5588 = vmatpush.bf16.msra.mxu0 0
        %5589 = vmatpush.bf16.msra.mxu0 0
        %5590 = vmatpush.bf16.msra.mxu0 0
        %5591 = vmatpush.bf16.msra.mxu0 %v5582
        %5592 = vmatmul.bf16.gmra.mxu0 %v5579
        %v5593 = vpop.f32.mrf.mxu0
        %v5594 = vadd.f32 0.0, %v5593
        %v5595 = vpop.f32.mrf.mxu0
        %v5596 = vadd.f32 0.0, %v5595
        %5597 = vdwg.mxu0
        %v5600 = vrot.slane %v5594, 2
        %v5601 = vrot.slane %v5594, 4
        %v5602 = vrot.slane %v5594, 6
        %v5603 = vrot.slane %v5596, 2
        %v5604 = vrot.slane %v5596, 4
        %v5605 = vrot.slane %v5596, 6
        %v5612 = vadd.f32 %v4349, %v5594
        %v5613 = vadd.f32 %v4350, %v5600
        %v5614 = vadd.f32 %v4351, %v5601
        %v5615 = vadd.f32 %v4352, %v5602
        %v5616 = vadd.f32 %v4353, %v5596
        %v5617 = vadd.f32 %v4354, %v5603
        %v5618 = vadd.f32 %v4355, %v5604
        %v5619 = vadd.f32 %v4356, %v5605
        %v5620 = vrot.slane %v5613, 4
        %v5621 = vsel %vm597, %v5620, %v5612
        %v5623 = vunpack.c.l.s4 1934713408
        %v5624 = vunpack.c.0.s8 %v5623
        %v5625 = vperm.slane %v5621, %v5624
        %v5626 = vrot.slane %v5625, 4
        %v5627 = vsel %vm597, 0.0, %v5626
        %v5628 = vrot.slane %v5615, 4
        %v5629 = vsel %vm597, %v5628, %v5614
        %v5631 = vunpack.c.l.s4 1934713408
        %v5632 = vunpack.c.0.s8 %v5631
        %v5633 = vperm.slane %v5629, %v5632
        %v5634 = vrot.slane %v5633, 4
        %v5635 = vsel %vm597, 0.0, %v5634
        %v5636 = vrot.slane %v5617, 4
        %v5637 = vsel %vm597, %v5636, %v5616
        %v5639 = vunpack.c.l.s4 1934713408
        %v5640 = vunpack.c.0.s8 %v5639
        %v5641 = vperm.slane %v5637, %v5640
        %v5642 = vrot.slane %v5641, 4
        %v5643 = vsel %vm597, 0.0, %v5642
        %v5644 = vrot.slane %v5619, 4
        %v5645 = vsel %vm597, %v5644, %v5618
        %v5647 = vunpack.c.l.s4 1934713408
        %v5648 = vunpack.c.0.s8 %v5647
        %v5649 = vperm.slane %v5645, %v5648
        %v5650 = vrot.slane %v5649, 4
        %v5651 = vsel %vm597, 0.0, %v5650
        %v5652 = vperm.slane %v552, 0
        %v5654 = vrot.slane %v5652, 2
        %v5655 = vrot.slane %v5652, 4
        %v5656 = vrot.slane %v5652, 6
        %v5660 = vadd.f32 %v5625, %v5652
        %v5661 = vadd.f32 %v5633, %v5654
        %v5662 = vadd.f32 %v5641, %v5655
        %v5663 = vadd.f32 %v5649, %v5656
        %v5664 = vadd.f32 %v5627, %v5652
        %v5665 = vadd.f32 %v5635, %v5654
        %v5666 = vadd.f32 %v5643, %v5655
        %v5667 = vadd.f32 %v5651, %v5656
        %5676 = vst [vmem:[#allocation1] ss:$4 sm:$0xff] %v5660
        %s5677 = scalar_lea.vmem [#allocation1], 1
        %5678 = vst [vmem:[%s5677] ss:$4 sm:$0xff] %v5661
        %s5679 = scalar_lea.vmem [#allocation1], 2
        %5680 = vst [vmem:[%s5679] ss:$4 sm:$0xff] %v5662
        %s5681 = scalar_lea.vmem [#allocation1], 3
        %5682 = vst [vmem:[%s5681] ss:$4 sm:$0xff] %v5663
        %s5683 = scalar_lea.vmem [#allocation1], 32
        %5684 = vst [vmem:[%s5683] ss:$4 sm:$0xff] %v5664
        %s5685 = scalar_lea.vmem [#allocation1], 33
        %5686 = vst [vmem:[%s5685] ss:$4 sm:$0xff] %v5665
        %s5687 = scalar_lea.vmem [#allocation1], 34
        %5688 = vst [vmem:[%s5687] ss:$4 sm:$0xff] %v5666
        %s5689 = scalar_lea.vmem [#allocation1], 35
        %5690 = vst [vmem:[%s5689] ss:$4 sm:$0xff] %v5667
        %v5691 = vld.sshfl [vmem:[#allocation1] sm:$0xff pattern:$0x73625140]
        %v5692 = vld.sshfl [vmem:[#allocation1 + $0x20] sm:$0xff pattern:$0x73625140]
        %v5695 = vadd.f32 %v550, %v5691
        %v5696 = vadd.f32 %v551, %v5692
        %v5697 = vsel %vm574, %v5695, 0.0
        %5698 = vadd.xlane.f32.xlu0 %v5697
        %v5699 = vpop.xlane.xlu0 %5698
        %v5700 = vsel %vm574, %v5696, 0.0
        %5701 = vadd.xlane.f32.xlu0 %v5700
        %v5702 = vpop.xlane.xlu0 %5701
        %v5703 = vrcp.pop 32.0
        %v5704 = vmul.f32 32.0, %v5703
        %v5705 = vsub.f32 1.0, %v5704
        %v5706 = vmul.f32 %v5703, %v5705
        %v5707 = vadd.f32 %v5703, %v5706
        %vm5708 = vweird.f32 %v5703
        %v5709 = vsel %vm5708, %v5703, %v5707
        %v5710 = vmul.f32 %v5699, %v5709
        %v5711 = vmul.f32 %v5702, %v5709
        %v5712 = vsub.f32 %v5695, %v5710
        %v5713 = vsub.f32 %v5696, %v5711
        %v5714 = vmul.f32 %v5712, %v5712
        %v5715 = vmul.f32 %v5713, %v5713
        %v5716 = vsel %vm574, %v5714, 0.0
        %5717 = vadd.xlane.f32.xlu0 %v5716
        %v5718 = vpop.xlane.xlu0 %5717
        %v5719 = vsel %vm574, %v5715, 0.0
        %5720 = vadd.xlane.f32.xlu0 %v5719
        %v5721 = vpop.xlane.xlu0 %5720
        %v5722 = vmul.f32 %v5718, %v5709
        %v5723 = vmul.f32 %v5721, %v5709
        %v5724 = vadd.f32 %v5722, 1e-05
        %v5725 = vadd.f32 %v5723, 1e-05
        %v5726 = vrsqrt.pop %v5724
        %v5727 = vmul.f32 %v5726, %v5724
        %v5728 = vmul.f32 %v5727, %v5726
        %v5729 = vmul.f32 0.5, %v5728
        %v5730 = vsub.f32 1.5, %v5729
        %v5731 = vmul.f32 %v5726, %v5730
        %vm5732 = vweird.f32 %v5724
        %vm5733 = vweird.f32 %v5726
        %vm5734 = vmor %vm5732, %vm5733
        %v5735 = vsel %vm5734, %v5726, %v5731
        %v5736 = vrsqrt.pop %v5725
        %v5737 = vmul.f32 %v5736, %v5725
        %v5738 = vmul.f32 %v5737, %v5736
        %v5739 = vmul.f32 0.5, %v5738
        %v5740 = vsub.f32 1.5, %v5739
        %v5741 = vmul.f32 %v5736, %v5740
        %vm5742 = vweird.f32 %v5725
        %vm5743 = vweird.f32 %v5736
        %vm5744 = vmor %vm5742, %vm5743
        %v5745 = vsel %vm5744, %v5736, %v5741
        %v5746 = vmul.f32 %v5712, %v5735
        %v5747 = vmul.f32 %v5713, %v5745
        %v5748 = vperm.slane %v552, 2
        %v5749 = vmul.f32 %v5746, %v5748
        %v5750 = vmul.f32 %v5747, %v5748
        %v5751 = vperm.slane %v552, 3
        %v5752 = vadd.f32 %v5749, %v5751
        %v5753 = vadd.f32 %v5750, %v5751
        %v5754 = vpack.c.bf16 %v5753, %v5752
        %v5755 = vld [vmem:[%s484] sm:$0xff]
        %v5756 = vld [vmem:[%s484 + $0x8] sm:$0xff]
        %v5757 = vld [vmem:[%s484 + $0x10] sm:$0xff]
        %v5758 = vld [vmem:[%s484 + $0x18] sm:$0xff]
        %v5759 = vld [vmem:[%s484 + $0x20] sm:$0xff]
        %v5760 = vld [vmem:[%s484 + $0x28] sm:$0xff]
        %v5761 = vld [vmem:[%s484 + $0x30] sm:$0xff]
        %v5762 = vld [vmem:[%s484 + $0x38] sm:$0xff]
        %v5763 = vld [vmem:[%s488] sm:$0xf]
        %v5765 = vperm.slane %v5763, 0
        %v5766 = vperm.slane %v5763, 1
        %v5767 = vperm.slane %v5763, 2
        %v5768 = vperm.slane %v5763, 3
        %v5781 = vunpack.c.l.b16 %v5755
        %v5782 = vunpack.c.h.b16 %v5755
        %v5783 = vunpack.c.l.b16 %v5756
        %v5784 = vunpack.c.h.b16 %v5756
        %v5785 = vunpack.c.l.b16 %v5757
        %v5786 = vunpack.c.h.b16 %v5757
        %v5787 = vunpack.c.l.b16 %v5758
        %v5788 = vunpack.c.h.b16 %v5758
        %v5789 = vunpack.c.l.b16 %v5759
        %v5790 = vunpack.c.h.b16 %v5759
        %v5791 = vunpack.c.l.b16 %v5760
        %v5792 = vunpack.c.h.b16 %v5760
        %v5793 = vunpack.c.l.b16 %v5761
        %v5794 = vunpack.c.h.b16 %v5761
        %v5795 = vunpack.c.l.b16 %v5762
        %v5796 = vunpack.c.h.b16 %v5762
        %v5797 = vpack.c.b16 %v5785, %v5781
        %v5798 = vpack.c.b16 %v5786, %v5782
        %v5799 = vpack.c.b16 %v5787, %v5783
        %v5800 = vpack.c.b16 %v5788, %v5784
        %v5801 = vpack.c.b16 %v5793, %v5789
        %v5802 = vpack.c.b16 %v5794, %v5790
        %v5803 = vpack.c.b16 %v5795, %v5791
        %v5804 = vpack.c.b16 %v5796, %v5792
        %v5814 = vsel %vm574, %v5754, 0
        %5816 = vmatpush.bf16.msra.mxu0 0
        %5817 = vmatpush.bf16.msra.mxu0 0
        %5818 = vmatpush.bf16.msra.mxu0 0
        %5819 = vmatpush.bf16.msra.mxu0 0
        %5820 = vmatpush.bf16.msra.mxu0 0
        %5821 = vmatpush.bf16.msra.mxu0 0
        %5822 = vmatpush.bf16.msra.mxu0 %v5801
        %5823 = vmatpush.bf16.msra.mxu0 %v5797
        %5824 = vmatmul.bf16.gmra.mxu0 %v5814
        %v5825 = vpop.f32.mrf.mxu0
        %v5826 = vadd.f32 %v5765, %v5825
        %v5827 = vpop.f32.mrf.mxu0
        %v5828 = vadd.f32 %v5765, %v5827
        %5829 = vdwg.mxu0
        %5830 = vmatpush.bf16.msra.mxu0 0
        %5831 = vmatpush.bf16.msra.mxu0 0
        %5832 = vmatpush.bf16.msra.mxu0 0
        %5833 = vmatpush.bf16.msra.mxu0 0
        %5834 = vmatpush.bf16.msra.mxu0 0
        %5835 = vmatpush.bf16.msra.mxu0 0
        %5836 = vmatpush.bf16.msra.mxu0 %v5802
        %5837 = vmatpush.bf16.msra.mxu0 %v5798
        %5838 = vmatmul.bf16.gmra.mxu0 %v5814
        %v5839 = vpop.f32.mrf.mxu0
        %v5840 = vadd.f32 %v5766, %v5839
        %v5841 = vpop.f32.mrf.mxu0
        %v5842 = vadd.f32 %v5766, %v5841
        %5843 = vdwg.mxu0
        %5844 = vmatpush.bf16.msra.mxu0 0
        %5845 = vmatpush.bf16.msra.mxu0 0
        %5846 = vmatpush.bf16.msra.mxu0 0
        %5847 = vmatpush.bf16.msra.mxu0 0
        %5848 = vmatpush.bf16.msra.mxu0 0
        %5849 = vmatpush.bf16.msra.mxu0 0
        %5850 = vmatpush.bf16.msra.mxu0 %v5803
        %5851 = vmatpush.bf16.msra.mxu0 %v5799
        %5852 = vmatmul.bf16.gmra.mxu0 %v5814
        %v5853 = vpop.f32.mrf.mxu0
        %v5854 = vadd.f32 %v5767, %v5853
        %v5855 = vpop.f32.mrf.mxu0
        %v5856 = vadd.f32 %v5767, %v5855
        %5857 = vdwg.mxu0
        %5858 = vmatpush.bf16.msra.mxu0 0
        %5859 = vmatpush.bf16.msra.mxu0 0
        %5860 = vmatpush.bf16.msra.mxu0 0
        %5861 = vmatpush.bf16.msra.mxu0 0
        %5862 = vmatpush.bf16.msra.mxu0 0
        %5863 = vmatpush.bf16.msra.mxu0 0
        %5864 = vmatpush.bf16.msra.mxu0 %v5804
        %5865 = vmatpush.bf16.msra.mxu0 %v5800
        %5866 = vmatmul.bf16.gmra.mxu0 %v5814
        %v5867 = vpop.f32.mrf.mxu0
        %v5868 = vadd.f32 %v5768, %v5867
        %v5869 = vpop.f32.mrf.mxu0
        %v5870 = vadd.f32 %v5768, %v5869
        %5871 = vdwg.mxu0
        %v5872 = vmax.f32 %v5826, 0.0
        %v5873 = vmax.f32 %v5840, 0.0
        %v5874 = vmax.f32 %v5854, 0.0
        %v5875 = vmax.f32 %v5868, 0.0
        %v5876 = vmax.f32 %v5828, 0.0
        %v5877 = vmax.f32 %v5842, 0.0
        %v5878 = vmax.f32 %v5856, 0.0
        %v5879 = vmax.f32 %v5870, 0.0
        %v5880 = vpack.c.bf16 %v5876, %v5872
        %v5881 = vpack.c.bf16 %v5877, %v5873
        %v5882 = vpack.c.bf16 %v5878, %v5874
        %v5883 = vpack.c.bf16 %v5879, %v5875
        %v5884 = vld [vmem:[%s493] sm:$0xf]
        %v5885 = vld [vmem:[%s493 + $0x4] sm:$0xf]
        %v5886 = vld [vmem:[%s493 + $0x8] sm:$0xf]
        %v5887 = vld [vmem:[%s493 + $0xc] sm:$0xf]
        %v5888 = vld [vmem:[%s493 + $0x10] sm:$0xf]
        %v5889 = vld [vmem:[%s493 + $0x14] sm:$0xf]
        %v5890 = vld [vmem:[%s493 + $0x18] sm:$0xf]
        %v5891 = vld [vmem:[%s493 + $0x1c] sm:$0xf]
        %v5892 = vld [vmem:[%s493 + $0x20] sm:$0xf]
        %v5893 = vld [vmem:[%s493 + $0x24] sm:$0xf]
        %v5894 = vld [vmem:[%s493 + $0x28] sm:$0xf]
        %v5895 = vld [vmem:[%s493 + $0x2c] sm:$0xf]
        %v5896 = vld [vmem:[%s493 + $0x30] sm:$0xf]
        %v5897 = vld [vmem:[%s493 + $0x34] sm:$0xf]
        %v5898 = vld [vmem:[%s493 + $0x38] sm:$0xf]
        %v5899 = vld [vmem:[%s493 + $0x3c] sm:$0xf]
        %v5900 = vld [vmem:[%s493 + $0x40] sm:$0xf]
        %v5901 = vld [vmem:[%s493 + $0x44] sm:$0xf]
        %v5902 = vld [vmem:[%s493 + $0x48] sm:$0xf]
        %v5903 = vld [vmem:[%s493 + $0x4c] sm:$0xf]
        %v5904 = vld [vmem:[%s493 + $0x50] sm:$0xf]
        %v5905 = vld [vmem:[%s493 + $0x54] sm:$0xf]
        %v5906 = vld [vmem:[%s493 + $0x58] sm:$0xf]
        %v5907 = vld [vmem:[%s493 + $0x5c] sm:$0xf]
        %v5908 = vld [vmem:[%s493 + $0x60] sm:$0xf]
        %v5909 = vld [vmem:[%s493 + $0x64] sm:$0xf]
        %v5910 = vld [vmem:[%s493 + $0x68] sm:$0xf]
        %v5911 = vld [vmem:[%s493 + $0x6c] sm:$0xf]
        %v5912 = vld [vmem:[%s493 + $0x70] sm:$0xf]
        %v5913 = vld [vmem:[%s493 + $0x74] sm:$0xf]
        %v5914 = vld [vmem:[%s493 + $0x78] sm:$0xf]
        %v5915 = vld [vmem:[%s493 + $0x7c] sm:$0xf]
        %v5916 = vld [vmem:[%s493 + $0x80] sm:$0xf]
        %v5917 = vld [vmem:[%s493 + $0x84] sm:$0xf]
        %v5918 = vld [vmem:[%s493 + $0x88] sm:$0xf]
        %v5919 = vld [vmem:[%s493 + $0x8c] sm:$0xf]
        %v5920 = vld [vmem:[%s493 + $0x90] sm:$0xf]
        %v5921 = vld [vmem:[%s493 + $0x94] sm:$0xf]
        %v5922 = vld [vmem:[%s493 + $0x98] sm:$0xf]
        %v5923 = vld [vmem:[%s493 + $0x9c] sm:$0xf]
        %v5924 = vld [vmem:[%s493 + $0xa0] sm:$0xf]
        %v5925 = vld [vmem:[%s493 + $0xa4] sm:$0xf]
        %v5926 = vld [vmem:[%s493 + $0xa8] sm:$0xf]
        %v5927 = vld [vmem:[%s493 + $0xac] sm:$0xf]
        %v5928 = vld [vmem:[%s493 + $0xb0] sm:$0xf]
        %v5929 = vld [vmem:[%s493 + $0xb4] sm:$0xf]
        %v5930 = vld [vmem:[%s493 + $0xb8] sm:$0xf]
        %v5931 = vld [vmem:[%s493 + $0xbc] sm:$0xf]
        %v5932 = vld [vmem:[%s493 + $0xc0] sm:$0xf]
        %v5933 = vld [vmem:[%s493 + $0xc4] sm:$0xf]
        %v5934 = vld [vmem:[%s493 + $0xc8] sm:$0xf]
        %v5935 = vld [vmem:[%s493 + $0xcc] sm:$0xf]
        %v5936 = vld [vmem:[%s493 + $0xd0] sm:$0xf]
        %v5937 = vld [vmem:[%s493 + $0xd4] sm:$0xf]
        %v5938 = vld [vmem:[%s493 + $0xd8] sm:$0xf]
        %v5939 = vld [vmem:[%s493 + $0xdc] sm:$0xf]
        %v5940 = vld [vmem:[%s493 + $0xe0] sm:$0xf]
        %v5941 = vld [vmem:[%s493 + $0xe4] sm:$0xf]
        %v5942 = vld [vmem:[%s493 + $0xe8] sm:$0xf]
        %v5943 = vld [vmem:[%s493 + $0xec] sm:$0xf]
        %v5944 = vld [vmem:[%s493 + $0xf0] sm:$0xf]
        %v5945 = vld [vmem:[%s493 + $0xf4] sm:$0xf]
        %v5946 = vld [vmem:[%s493 + $0xf8] sm:$0xf]
        %v5947 = vld [vmem:[%s493 + $0xfc] sm:$0xf]
        %s5948 = scalar_lea.vmem %s484, 64
        %v5949 = vld [vmem:[%s5948] sm:$0xff]
        %v5950 = vld [vmem:[%s5948 + $0x8] sm:$0xff]
        %v5951 = vld [vmem:[%s5948 + $0x10] sm:$0xff]
        %v5952 = vld [vmem:[%s5948 + $0x18] sm:$0xff]
        %v5953 = vld [vmem:[%s5948 + $0x20] sm:$0xff]
        %v5954 = vld [vmem:[%s5948 + $0x28] sm:$0xff]
        %v5955 = vld [vmem:[%s5948 + $0x30] sm:$0xff]
        %v5956 = vld [vmem:[%s5948 + $0x38] sm:$0xff]
        %s5957 = scalar_lea.vmem %s488, 4
        %v5958 = vld [vmem:[%s5957] sm:$0xf]
        %v5960 = vperm.slane %v5958, 0
        %v5961 = vperm.slane %v5958, 1
        %v5962 = vperm.slane %v5958, 2
        %v5963 = vperm.slane %v5958, 3
        %v5976 = vunpack.c.l.b16 %v5949
        %v5977 = vunpack.c.h.b16 %v5949
        %v5978 = vunpack.c.l.b16 %v5950
        %v5979 = vunpack.c.h.b16 %v5950
        %v5980 = vunpack.c.l.b16 %v5951
        %v5981 = vunpack.c.h.b16 %v5951
        %v5982 = vunpack.c.l.b16 %v5952
        %v5983 = vunpack.c.h.b16 %v5952
        %v5984 = vunpack.c.l.b16 %v5953
        %v5985 = vunpack.c.h.b16 %v5953
        %v5986 = vunpack.c.l.b16 %v5954
        %v5987 = vunpack.c.h.b16 %v5954
        %v5988 = vunpack.c.l.b16 %v5955
        %v5989 = vunpack.c.h.b16 %v5955
        %v5990 = vunpack.c.l.b16 %v5956
        %v5991 = vunpack.c.h.b16 %v5956
        %v5992 = vpack.c.b16 %v5980, %v5976
        %v5993 = vpack.c.b16 %v5981, %v5977
        %v5994 = vpack.c.b16 %v5982, %v5978
        %v5995 = vpack.c.b16 %v5983, %v5979
        %v5996 = vpack.c.b16 %v5988, %v5984
        %v5997 = vpack.c.b16 %v5989, %v5985
        %v5998 = vpack.c.b16 %v5990, %v5986
        %v5999 = vpack.c.b16 %v5991, %v5987
        %6008 = vmatpush.bf16.msra.mxu0 0
        %6009 = vmatpush.bf16.msra.mxu0 0
        %6010 = vmatpush.bf16.msra.mxu0 0
        %6011 = vmatpush.bf16.msra.mxu0 0
        %6012 = vmatpush.bf16.msra.mxu0 0
        %6013 = vmatpush.bf16.msra.mxu0 0
        %6014 = vmatpush.bf16.msra.mxu0 %v5996
        %6015 = vmatpush.bf16.msra.mxu0 %v5992
        %6016 = vmatmul.bf16.gmra.mxu0 %v5814
        %v6017 = vpop.f32.mrf.mxu0
        %v6018 = vadd.f32 %v5960, %v6017
        %v6019 = vpop.f32.mrf.mxu0
        %v6020 = vadd.f32 %v5960, %v6019
        %6021 = vdwg.mxu0
        %6022 = vmatpush.bf16.msra.mxu0 0
        %6023 = vmatpush.bf16.msra.mxu0 0
        %6024 = vmatpush.bf16.msra.mxu0 0
        %6025 = vmatpush.bf16.msra.mxu0 0
        %6026 = vmatpush.bf16.msra.mxu0 0
        %6027 = vmatpush.bf16.msra.mxu0 0
        %6028 = vmatpush.bf16.msra.mxu0 %v5997
        %6029 = vmatpush.bf16.msra.mxu0 %v5993
        %6030 = vmatmul.bf16.gmra.mxu0 %v5814
        %v6031 = vpop.f32.mrf.mxu0
        %v6032 = vadd.f32 %v5961, %v6031
        %v6033 = vpop.f32.mrf.mxu0
        %v6034 = vadd.f32 %v5961, %v6033
        %6035 = vdwg.mxu0
        %6036 = vmatpush.bf16.msra.mxu0 0
        %6037 = vmatpush.bf16.msra.mxu0 0
        %6038 = vmatpush.bf16.msra.mxu0 0
        %6039 = vmatpush.bf16.msra.mxu0 0
        %6040 = vmatpush.bf16.msra.mxu0 0
        %6041 = vmatpush.bf16.msra.mxu0 0
        %6042 = vmatpush.bf16.msra.mxu0 %v5998
        %6043 = vmatpush.bf16.msra.mxu0 %v5994
        %6044 = vmatmul.bf16.gmra.mxu0 %v5814
        %v6045 = vpop.f32.mrf.mxu0
        %v6046 = vadd.f32 %v5962, %v6045
        %v6047 = vpop.f32.mrf.mxu0
        %v6048 = vadd.f32 %v5962, %v6047
        %6049 = vdwg.mxu0
        %6050 = vmatpush.bf16.msra.mxu0 0
        %6051 = vmatpush.bf16.msra.mxu0 0
        %6052 = vmatpush.bf16.msra.mxu0 0
        %6053 = vmatpush.bf16.msra.mxu0 0
        %6054 = vmatpush.bf16.msra.mxu0 0
        %6055 = vmatpush.bf16.msra.mxu0 0
        %6056 = vmatpush.bf16.msra.mxu0 %v5999
        %6057 = vmatpush.bf16.msra.mxu0 %v5995
        %6058 = vmatmul.bf16.gmra.mxu0 %v5814
        %v6059 = vpop.f32.mrf.mxu0
        %v6060 = vadd.f32 %v5963, %v6059
        %v6061 = vpop.f32.mrf.mxu0
        %v6062 = vadd.f32 %v5963, %v6061
        %6063 = vdwg.mxu0
        %v6064 = vmax.f32 %v6018, 0.0
        %v6065 = vmax.f32 %v6032, 0.0
        %v6066 = vmax.f32 %v6046, 0.0
        %v6067 = vmax.f32 %v6060, 0.0
        %v6068 = vmax.f32 %v6020, 0.0
        %v6069 = vmax.f32 %v6034, 0.0
        %v6070 = vmax.f32 %v6048, 0.0
        %v6071 = vmax.f32 %v6062, 0.0
        %v6072 = vpack.c.bf16 %v6068, %v6064
        %v6073 = vpack.c.bf16 %v6069, %v6065
        %v6074 = vpack.c.bf16 %v6070, %v6066
        %v6075 = vpack.c.bf16 %v6071, %v6067
        %s6076 = scalar_lea.vmem %s493, 256
        %v6077 = vld [vmem:[%s6076] sm:$0xf]
        %v6078 = vld [vmem:[%s6076 + $0x4] sm:$0xf]
        %v6079 = vld [vmem:[%s6076 + $0x8] sm:$0xf]
        %v6080 = vld [vmem:[%s6076 + $0xc] sm:$0xf]
        %v6081 = vld [vmem:[%s6076 + $0x10] sm:$0xf]
        %v6082 = vld [vmem:[%s6076 + $0x14] sm:$0xf]
        %v6083 = vld [vmem:[%s6076 + $0x18] sm:$0xf]
        %v6084 = vld [vmem:[%s6076 + $0x1c] sm:$0xf]
        %v6085 = vld [vmem:[%s6076 + $0x20] sm:$0xf]
        %v6086 = vld [vmem:[%s6076 + $0x24] sm:$0xf]
        %v6087 = vld [vmem:[%s6076 + $0x28] sm:$0xf]
        %v6088 = vld [vmem:[%s6076 + $0x2c] sm:$0xf]
        %v6089 = vld [vmem:[%s6076 + $0x30] sm:$0xf]
        %v6090 = vld [vmem:[%s6076 + $0x34] sm:$0xf]
        %v6091 = vld [vmem:[%s6076 + $0x38] sm:$0xf]
        %v6092 = vld [vmem:[%s6076 + $0x3c] sm:$0xf]
        %v6093 = vld [vmem:[%s6076 + $0x40] sm:$0xf]
        %v6094 = vld [vmem:[%s6076 + $0x44] sm:$0xf]
        %v6095 = vld [vmem:[%s6076 + $0x48] sm:$0xf]
        %v6096 = vld [vmem:[%s6076 + $0x4c] sm:$0xf]
        %v6097 = vld [vmem:[%s6076 + $0x50] sm:$0xf]
        %v6098 = vld [vmem:[%s6076 + $0x54] sm:$0xf]
        %v6099 = vld [vmem:[%s6076 + $0x58] sm:$0xf]
        %v6100 = vld [vmem:[%s6076 + $0x5c] sm:$0xf]
        %v6101 = vld [vmem:[%s6076 + $0x60] sm:$0xf]
        %v6102 = vld [vmem:[%s6076 + $0x64] sm:$0xf]
        %v6103 = vld [vmem:[%s6076 + $0x68] sm:$0xf]
        %v6104 = vld [vmem:[%s6076 + $0x6c] sm:$0xf]
        %v6105 = vld [vmem:[%s6076 + $0x70] sm:$0xf]
        %v6106 = vld [vmem:[%s6076 + $0x74] sm:$0xf]
        %v6107 = vld [vmem:[%s6076 + $0x78] sm:$0xf]
        %v6108 = vld [vmem:[%s6076 + $0x7c] sm:$0xf]
        %v6109 = vld [vmem:[%s6076 + $0x80] sm:$0xf]
        %v6110 = vld [vmem:[%s6076 + $0x84] sm:$0xf]
        %v6111 = vld [vmem:[%s6076 + $0x88] sm:$0xf]
        %v6112 = vld [vmem:[%s6076 + $0x8c] sm:$0xf]
        %v6113 = vld [vmem:[%s6076 + $0x90] sm:$0xf]
        %v6114 = vld [vmem:[%s6076 + $0x94] sm:$0xf]
        %v6115 = vld [vmem:[%s6076 + $0x98] sm:$0xf]
        %v6116 = vld [vmem:[%s6076 + $0x9c] sm:$0xf]
        %v6117 = vld [vmem:[%s6076 + $0xa0] sm:$0xf]
        %v6118 = vld [vmem:[%s6076 + $0xa4] sm:$0xf]
        %v6119 = vld [vmem:[%s6076 + $0xa8] sm:$0xf]
        %v6120 = vld [vmem:[%s6076 + $0xac] sm:$0xf]
        %v6121 = vld [vmem:[%s6076 + $0xb0] sm:$0xf]
        %v6122 = vld [vmem:[%s6076 + $0xb4] sm:$0xf]
        %v6123 = vld [vmem:[%s6076 + $0xb8] sm:$0xf]
        %v6124 = vld [vmem:[%s6076 + $0xbc] sm:$0xf]
        %v6125 = vld [vmem:[%s6076 + $0xc0] sm:$0xf]
        %v6126 = vld [vmem:[%s6076 + $0xc4] sm:$0xf]
        %v6127 = vld [vmem:[%s6076 + $0xc8] sm:$0xf]
        %v6128 = vld [vmem:[%s6076 + $0xcc] sm:$0xf]
        %v6129 = vld [vmem:[%s6076 + $0xd0] sm:$0xf]
        %v6130 = vld [vmem:[%s6076 + $0xd4] sm:$0xf]
        %v6131 = vld [vmem:[%s6076 + $0xd8] sm:$0xf]
        %v6132 = vld [vmem:[%s6076 + $0xdc] sm:$0xf]
        %v6133 = vld [vmem:[%s6076 + $0xe0] sm:$0xf]
        %v6134 = vld [vmem:[%s6076 + $0xe4] sm:$0xf]
        %v6135 = vld [vmem:[%s6076 + $0xe8] sm:$0xf]
        %v6136 = vld [vmem:[%s6076 + $0xec] sm:$0xf]
        %v6137 = vld [vmem:[%s6076 + $0xf0] sm:$0xf]
        %v6138 = vld [vmem:[%s6076 + $0xf4] sm:$0xf]
        %v6139 = vld [vmem:[%s6076 + $0xf8] sm:$0xf]
        %v6140 = vld [vmem:[%s6076 + $0xfc] sm:$0xf]
        %v6205 = vunpack.c.l.b16 %v6077
        %v6206 = vunpack.c.l.b16 %v6078
        %v6207 = vunpack.c.l.b16 %v6079
        %v6208 = vunpack.c.l.b16 %v6080
        %v6209 = vunpack.c.l.b16 %v6081
        %v6210 = vunpack.c.l.b16 %v6082
        %v6211 = vunpack.c.l.b16 %v6083
        %v6212 = vunpack.c.l.b16 %v6084
        %v6213 = vunpack.c.l.b16 %v6085
        %v6214 = vunpack.c.l.b16 %v6086
        %v6215 = vunpack.c.l.b16 %v6087
        %v6216 = vunpack.c.l.b16 %v6088
        %v6217 = vunpack.c.l.b16 %v6089
        %v6218 = vunpack.c.l.b16 %v6090
        %v6219 = vunpack.c.l.b16 %v6091
        %v6220 = vunpack.c.l.b16 %v6092
        %v6221 = vunpack.c.l.b16 %v6093
        %v6222 = vunpack.c.l.b16 %v6094
        %v6223 = vunpack.c.l.b16 %v6095
        %v6224 = vunpack.c.l.b16 %v6096
        %v6225 = vunpack.c.l.b16 %v6097
        %v6226 = vunpack.c.l.b16 %v6098
        %v6227 = vunpack.c.l.b16 %v6099
        %v6228 = vunpack.c.l.b16 %v6100
        %v6229 = vunpack.c.l.b16 %v6101
        %v6230 = vunpack.c.l.b16 %v6102
        %v6231 = vunpack.c.l.b16 %v6103
        %v6232 = vunpack.c.l.b16 %v6104
        %v6233 = vunpack.c.l.b16 %v6105
        %v6234 = vunpack.c.l.b16 %v6106
        %v6235 = vunpack.c.l.b16 %v6107
        %v6236 = vunpack.c.l.b16 %v6108
        %v6237 = vunpack.c.l.b16 %v6109
        %v6238 = vunpack.c.l.b16 %v6110
        %v6239 = vunpack.c.l.b16 %v6111
        %v6240 = vunpack.c.l.b16 %v6112
        %v6241 = vunpack.c.l.b16 %v6113
        %v6242 = vunpack.c.l.b16 %v6114
        %v6243 = vunpack.c.l.b16 %v6115
        %v6244 = vunpack.c.l.b16 %v6116
        %v6245 = vunpack.c.l.b16 %v6117
        %v6246 = vunpack.c.l.b16 %v6118
        %v6247 = vunpack.c.l.b16 %v6119
        %v6248 = vunpack.c.l.b16 %v6120
        %v6249 = vunpack.c.l.b16 %v6121
        %v6250 = vunpack.c.l.b16 %v6122
        %v6251 = vunpack.c.l.b16 %v6123
        %v6252 = vunpack.c.l.b16 %v6124
        %v6253 = vunpack.c.l.b16 %v6125
        %v6254 = vunpack.c.l.b16 %v6126
        %v6255 = vunpack.c.l.b16 %v6127
        %v6256 = vunpack.c.l.b16 %v6128
        %v6257 = vunpack.c.l.b16 %v6129
        %v6258 = vunpack.c.l.b16 %v6130
        %v6259 = vunpack.c.l.b16 %v6131
        %v6260 = vunpack.c.l.b16 %v6132
        %v6261 = vunpack.c.l.b16 %v6133
        %v6262 = vunpack.c.l.b16 %v6134
        %v6263 = vunpack.c.l.b16 %v6135
        %v6264 = vunpack.c.l.b16 %v6136
        %v6265 = vunpack.c.l.b16 %v6137
        %v6266 = vunpack.c.l.b16 %v6138
        %v6267 = vunpack.c.l.b16 %v6139
        %v6268 = vunpack.c.l.b16 %v6140
        %v6269 = vpack.c.b16 %v6206, %v6205
        %v6270 = vpack.c.b16 %v6208, %v6207
        %v6271 = vpack.c.b16 %v6210, %v6209
        %v6272 = vpack.c.b16 %v6212, %v6211
        %v6273 = vpack.c.b16 %v6214, %v6213
        %v6274 = vpack.c.b16 %v6216, %v6215
        %v6275 = vpack.c.b16 %v6218, %v6217
        %v6276 = vpack.c.b16 %v6220, %v6219
        %v6277 = vpack.c.b16 %v6222, %v6221
        %v6278 = vpack.c.b16 %v6224, %v6223
        %v6279 = vpack.c.b16 %v6226, %v6225
        %v6280 = vpack.c.b16 %v6228, %v6227
        %v6281 = vpack.c.b16 %v6230, %v6229
        %v6282 = vpack.c.b16 %v6232, %v6231
        %v6283 = vpack.c.b16 %v6234, %v6233
        %v6284 = vpack.c.b16 %v6236, %v6235
        %v6285 = vpack.c.b16 %v6238, %v6237
        %v6286 = vpack.c.b16 %v6240, %v6239
        %v6287 = vpack.c.b16 %v6242, %v6241
        %v6288 = vpack.c.b16 %v6244, %v6243
        %v6289 = vpack.c.b16 %v6246, %v6245
        %v6290 = vpack.c.b16 %v6248, %v6247
        %v6291 = vpack.c.b16 %v6250, %v6249
        %v6292 = vpack.c.b16 %v6252, %v6251
        %v6293 = vpack.c.b16 %v6254, %v6253
        %v6294 = vpack.c.b16 %v6256, %v6255
        %v6295 = vpack.c.b16 %v6258, %v6257
        %v6296 = vpack.c.b16 %v6260, %v6259
        %v6297 = vpack.c.b16 %v6262, %v6261
        %v6298 = vpack.c.b16 %v6264, %v6263
        %v6299 = vpack.c.b16 %v6266, %v6265
        %v6300 = vpack.c.b16 %v6268, %v6267
        %6333 = vmatpush.bf16.msra.mxu0 %v6276
        %6334 = vmatpush.bf16.msra.mxu0 %v6275
        %6335 = vmatpush.bf16.msra.mxu0 %v6274
        %6336 = vmatpush.bf16.msra.mxu0 %v6273
        %6337 = vmatpush.bf16.msra.mxu0 %v6272
        %6338 = vmatpush.bf16.msra.mxu0 %v6271
        %6339 = vmatpush.bf16.msra.mxu0 %v6270
        %6340 = vmatpush.bf16.msra.mxu0 %v6269
        %6341 = vmatmul.bf16.gmra.mxu0 %v6072
        %v6342 = vpop.f32.mrf.mxu0
        %v6343 = vadd.f32 0.0, %v6342
        %v6344 = vpop.f32.mrf.mxu0
        %v6345 = vadd.f32 0.0, %v6344
        %6346 = vdwg.mxu0
        %6347 = vmatpush.bf16.msra.mxu0 %v6284
        %6348 = vmatpush.bf16.msra.mxu0 %v6283
        %6349 = vmatpush.bf16.msra.mxu0 %v6282
        %6350 = vmatpush.bf16.msra.mxu0 %v6281
        %6351 = vmatpush.bf16.msra.mxu0 %v6280
        %6352 = vmatpush.bf16.msra.mxu0 %v6279
        %6353 = vmatpush.bf16.msra.mxu0 %v6278
        %6354 = vmatpush.bf16.msra.mxu0 %v6277
        %6355 = vmatmul.bf16.gmra.mxu0 %v6073
        %v6356 = vpop.f32.mrf.mxu0
        %v6357 = vadd.f32 %v6343, %v6356
        %v6358 = vpop.f32.mrf.mxu0
        %v6359 = vadd.f32 %v6345, %v6358
        %6360 = vdwg.mxu0
        %6361 = vmatpush.bf16.msra.mxu0 %v6292
        %6362 = vmatpush.bf16.msra.mxu0 %v6291
        %6363 = vmatpush.bf16.msra.mxu0 %v6290
        %6364 = vmatpush.bf16.msra.mxu0 %v6289
        %6365 = vmatpush.bf16.msra.mxu0 %v6288
        %6366 = vmatpush.bf16.msra.mxu0 %v6287
        %6367 = vmatpush.bf16.msra.mxu0 %v6286
        %6368 = vmatpush.bf16.msra.mxu0 %v6285
        %6369 = vmatmul.bf16.gmra.mxu0 %v6074
        %v6370 = vpop.f32.mrf.mxu0
        %v6371 = vadd.f32 %v6357, %v6370
        %v6372 = vpop.f32.mrf.mxu0
        %v6373 = vadd.f32 %v6359, %v6372
        %6374 = vdwg.mxu0
        %6375 = vmatpush.bf16.msra.mxu0 %v6300
        %6376 = vmatpush.bf16.msra.mxu0 %v6299
        %6377 = vmatpush.bf16.msra.mxu0 %v6298
        %6378 = vmatpush.bf16.msra.mxu0 %v6297
        %6379 = vmatpush.bf16.msra.mxu0 %v6296
        %6380 = vmatpush.bf16.msra.mxu0 %v6295
        %6381 = vmatpush.bf16.msra.mxu0 %v6294
        %6382 = vmatpush.bf16.msra.mxu0 %v6293
        %6383 = vmatmul.bf16.gmra.mxu0 %v6075
        %v6384 = vpop.f32.mrf.mxu0
        %v6385 = vadd.f32 %v6371, %v6384
        %v6386 = vpop.f32.mrf.mxu0
        %v6387 = vadd.f32 %v6373, %v6386
        %6388 = vdwg.mxu0
        %v6453 = vunpack.c.l.b16 %v5884
        %v6454 = vunpack.c.l.b16 %v5885
        %v6455 = vunpack.c.l.b16 %v5886
        %v6456 = vunpack.c.l.b16 %v5887
        %v6457 = vunpack.c.l.b16 %v5888
        %v6458 = vunpack.c.l.b16 %v5889
        %v6459 = vunpack.c.l.b16 %v5890
        %v6460 = vunpack.c.l.b16 %v5891
        %v6461 = vunpack.c.l.b16 %v5892
        %v6462 = vunpack.c.l.b16 %v5893
        %v6463 = vunpack.c.l.b16 %v5894
        %v6464 = vunpack.c.l.b16 %v5895
        %v6465 = vunpack.c.l.b16 %v5896
        %v6466 = vunpack.c.l.b16 %v5897
        %v6467 = vunpack.c.l.b16 %v5898
        %v6468 = vunpack.c.l.b16 %v5899
        %v6469 = vunpack.c.l.b16 %v5900
        %v6470 = vunpack.c.l.b16 %v5901
        %v6471 = vunpack.c.l.b16 %v5902
        %v6472 = vunpack.c.l.b16 %v5903
        %v6473 = vunpack.c.l.b16 %v5904
        %v6474 = vunpack.c.l.b16 %v5905
        %v6475 = vunpack.c.l.b16 %v5906
        %v6476 = vunpack.c.l.b16 %v5907
        %v6477 = vunpack.c.l.b16 %v5908
        %v6478 = vunpack.c.l.b16 %v5909
        %v6479 = vunpack.c.l.b16 %v5910
        %v6480 = vunpack.c.l.b16 %v5911
        %v6481 = vunpack.c.l.b16 %v5912
        %v6482 = vunpack.c.l.b16 %v5913
        %v6483 = vunpack.c.l.b16 %v5914
        %v6484 = vunpack.c.l.b16 %v5915
        %v6485 = vunpack.c.l.b16 %v5916
        %v6486 = vunpack.c.l.b16 %v5917
        %v6487 = vunpack.c.l.b16 %v5918
        %v6488 = vunpack.c.l.b16 %v5919
        %v6489 = vunpack.c.l.b16 %v5920
        %v6490 = vunpack.c.l.b16 %v5921
        %v6491 = vunpack.c.l.b16 %v5922
        %v6492 = vunpack.c.l.b16 %v5923
        %v6493 = vunpack.c.l.b16 %v5924
        %v6494 = vunpack.c.l.b16 %v5925
        %v6495 = vunpack.c.l.b16 %v5926
        %v6496 = vunpack.c.l.b16 %v5927
        %v6497 = vunpack.c.l.b16 %v5928
        %v6498 = vunpack.c.l.b16 %v5929
        %v6499 = vunpack.c.l.b16 %v5930
        %v6500 = vunpack.c.l.b16 %v5931
        %v6501 = vunpack.c.l.b16 %v5932
        %v6502 = vunpack.c.l.b16 %v5933
        %v6503 = vunpack.c.l.b16 %v5934
        %v6504 = vunpack.c.l.b16 %v5935
        %v6505 = vunpack.c.l.b16 %v5936
        %v6506 = vunpack.c.l.b16 %v5937
        %v6507 = vunpack.c.l.b16 %v5938
        %v6508 = vunpack.c.l.b16 %v5939
        %v6509 = vunpack.c.l.b16 %v5940
        %v6510 = vunpack.c.l.b16 %v5941
        %v6511 = vunpack.c.l.b16 %v5942
        %v6512 = vunpack.c.l.b16 %v5943
        %v6513 = vunpack.c.l.b16 %v5944
        %v6514 = vunpack.c.l.b16 %v5945
        %v6515 = vunpack.c.l.b16 %v5946
        %v6516 = vunpack.c.l.b16 %v5947
        %v6517 = vpack.c.b16 %v6454, %v6453
        %v6518 = vpack.c.b16 %v6456, %v6455
        %v6519 = vpack.c.b16 %v6458, %v6457
        %v6520 = vpack.c.b16 %v6460, %v6459
        %v6521 = vpack.c.b16 %v6462, %v6461
        %v6522 = vpack.c.b16 %v6464, %v6463
        %v6523 = vpack.c.b16 %v6466, %v6465
        %v6524 = vpack.c.b16 %v6468, %v6467
        %v6525 = vpack.c.b16 %v6470, %v6469
        %v6526 = vpack.c.b16 %v6472, %v6471
        %v6527 = vpack.c.b16 %v6474, %v6473
        %v6528 = vpack.c.b16 %v6476, %v6475
        %v6529 = vpack.c.b16 %v6478, %v6477
        %v6530 = vpack.c.b16 %v6480, %v6479
        %v6531 = vpack.c.b16 %v6482, %v6481
        %v6532 = vpack.c.b16 %v6484, %v6483
        %v6533 = vpack.c.b16 %v6486, %v6485
        %v6534 = vpack.c.b16 %v6488, %v6487
        %v6535 = vpack.c.b16 %v6490, %v6489
        %v6536 = vpack.c.b16 %v6492, %v6491
        %v6537 = vpack.c.b16 %v6494, %v6493
        %v6538 = vpack.c.b16 %v6496, %v6495
        %v6539 = vpack.c.b16 %v6498, %v6497
        %v6540 = vpack.c.b16 %v6500, %v6499
        %v6541 = vpack.c.b16 %v6502, %v6501
        %v6542 = vpack.c.b16 %v6504, %v6503
        %v6543 = vpack.c.b16 %v6506, %v6505
        %v6544 = vpack.c.b16 %v6508, %v6507
        %v6545 = vpack.c.b16 %v6510, %v6509
        %v6546 = vpack.c.b16 %v6512, %v6511
        %v6547 = vpack.c.b16 %v6514, %v6513
        %v6548 = vpack.c.b16 %v6516, %v6515
        %6581 = vmatpush.bf16.msra.mxu0 %v6524
        %6582 = vmatpush.bf16.msra.mxu0 %v6523
        %6583 = vmatpush.bf16.msra.mxu0 %v6522
        %6584 = vmatpush.bf16.msra.mxu0 %v6521
        %6585 = vmatpush.bf16.msra.mxu0 %v6520
        %6586 = vmatpush.bf16.msra.mxu0 %v6519
        %6587 = vmatpush.bf16.msra.mxu0 %v6518
        %6588 = vmatpush.bf16.msra.mxu0 %v6517
        %6589 = vmatmul.bf16.gmra.mxu0 %v5880
        %v6590 = vpop.f32.mrf.mxu0
        %v6591 = vadd.f32 %v6385, %v6590
        %v6592 = vpop.f32.mrf.mxu0
        %v6593 = vadd.f32 %v6387, %v6592
        %6594 = vdwg.mxu0
        %6595 = vmatpush.bf16.msra.mxu0 %v6532
        %6596 = vmatpush.bf16.msra.mxu0 %v6531
        %6597 = vmatpush.bf16.msra.mxu0 %v6530
        %6598 = vmatpush.bf16.msra.mxu0 %v6529
        %6599 = vmatpush.bf16.msra.mxu0 %v6528
        %6600 = vmatpush.bf16.msra.mxu0 %v6527
        %6601 = vmatpush.bf16.msra.mxu0 %v6526
        %6602 = vmatpush.bf16.msra.mxu0 %v6525
        %6603 = vmatmul.bf16.gmra.mxu0 %v5881
        %v6604 = vpop.f32.mrf.mxu0
        %v6605 = vadd.f32 %v6591, %v6604
        %v6606 = vpop.f32.mrf.mxu0
        %v6607 = vadd.f32 %v6593, %v6606
        %6608 = vdwg.mxu0
        %6609 = vmatpush.bf16.msra.mxu0 %v6540
        %6610 = vmatpush.bf16.msra.mxu0 %v6539
        %6611 = vmatpush.bf16.msra.mxu0 %v6538
        %6612 = vmatpush.bf16.msra.mxu0 %v6537
        %6613 = vmatpush.bf16.msra.mxu0 %v6536
        %6614 = vmatpush.bf16.msra.mxu0 %v6535
        %6615 = vmatpush.bf16.msra.mxu0 %v6534
        %6616 = vmatpush.bf16.msra.mxu0 %v6533
        %6617 = vmatmul.bf16.gmra.mxu0 %v5882
        %v6618 = vpop.f32.mrf.mxu0
        %v6619 = vadd.f32 %v6605, %v6618
        %v6620 = vpop.f32.mrf.mxu0
        %v6621 = vadd.f32 %v6607, %v6620
        %6622 = vdwg.mxu0
        %6623 = vmatpush.bf16.msra.mxu0 %v6548
        %6624 = vmatpush.bf16.msra.mxu0 %v6547
        %6625 = vmatpush.bf16.msra.mxu0 %v6546
        %6626 = vmatpush.bf16.msra.mxu0 %v6545
        %6627 = vmatpush.bf16.msra.mxu0 %v6544
        %6628 = vmatpush.bf16.msra.mxu0 %v6543
        %6629 = vmatpush.bf16.msra.mxu0 %v6542
        %6630 = vmatpush.bf16.msra.mxu0 %v6541
        %6631 = vmatmul.bf16.gmra.mxu0 %v5883
        %v6632 = vpop.f32.mrf.mxu0
        %v6633 = vadd.f32 %v6619, %v6632
        %v6634 = vpop.f32.mrf.mxu0
        %v6635 = vadd.f32 %v6621, %v6634
        %6636 = vdwg.mxu0
        %s6637 = scalar_lea.vmem %s484, 128
        %v6638 = vld [vmem:[%s6637] sm:$0xff]
        %v6639 = vld [vmem:[%s6637 + $0x8] sm:$0xff]
        %v6640 = vld [vmem:[%s6637 + $0x10] sm:$0xff]
        %v6641 = vld [vmem:[%s6637 + $0x18] sm:$0xff]
        %v6642 = vld [vmem:[%s6637 + $0x20] sm:$0xff]
        %v6643 = vld [vmem:[%s6637 + $0x28] sm:$0xff]
        %v6644 = vld [vmem:[%s6637 + $0x30] sm:$0xff]
        %v6645 = vld [vmem:[%s6637 + $0x38] sm:$0xff]
        %s6646 = scalar_lea.vmem %s488, 8
        %v6647 = vld [vmem:[%s6646] sm:$0xf]
        %v6649 = vperm.slane %v6647, 0
        %v6650 = vperm.slane %v6647, 1
        %v6651 = vperm.slane %v6647, 2
        %v6652 = vperm.slane %v6647, 3
        %v6665 = vunpack.c.l.b16 %v6638
        %v6666 = vunpack.c.h.b16 %v6638
        %v6667 = vunpack.c.l.b16 %v6639
        %v6668 = vunpack.c.h.b16 %v6639
        %v6669 = vunpack.c.l.b16 %v6640
        %v6670 = vunpack.c.h.b16 %v6640
        %v6671 = vunpack.c.l.b16 %v6641
        %v6672 = vunpack.c.h.b16 %v6641
        %v6673 = vunpack.c.l.b16 %v6642
        %v6674 = vunpack.c.h.b16 %v6642
        %v6675 = vunpack.c.l.b16 %v6643
        %v6676 = vunpack.c.h.b16 %v6643
        %v6677 = vunpack.c.l.b16 %v6644
        %v6678 = vunpack.c.h.b16 %v6644
        %v6679 = vunpack.c.l.b16 %v6645
        %v6680 = vunpack.c.h.b16 %v6645
        %v6681 = vpack.c.b16 %v6669, %v6665
        %v6682 = vpack.c.b16 %v6670, %v6666
        %v6683 = vpack.c.b16 %v6671, %v6667
        %v6684 = vpack.c.b16 %v6672, %v6668
        %v6685 = vpack.c.b16 %v6677, %v6673
        %v6686 = vpack.c.b16 %v6678, %v6674
        %v6687 = vpack.c.b16 %v6679, %v6675
        %v6688 = vpack.c.b16 %v6680, %v6676
        %6697 = vmatpush.bf16.msra.mxu0 0
        %6698 = vmatpush.bf16.msra.mxu0 0
        %6699 = vmatpush.bf16.msra.mxu0 0
        %6700 = vmatpush.bf16.msra.mxu0 0
        %6701 = vmatpush.bf16.msra.mxu0 0
        %6702 = vmatpush.bf16.msra.mxu0 0
        %6703 = vmatpush.bf16.msra.mxu0 %v6685
        %6704 = vmatpush.bf16.msra.mxu0 %v6681
        %6705 = vmatmul.bf16.gmra.mxu0 %v5814
        %v6706 = vpop.f32.mrf.mxu0
        %v6707 = vadd.f32 %v6649, %v6706
        %v6708 = vpop.f32.mrf.mxu0
        %v6709 = vadd.f32 %v6649, %v6708
        %6710 = vdwg.mxu0
        %6711 = vmatpush.bf16.msra.mxu0 0
        %6712 = vmatpush.bf16.msra.mxu0 0
        %6713 = vmatpush.bf16.msra.mxu0 0
        %6714 = vmatpush.bf16.msra.mxu0 0
        %6715 = vmatpush.bf16.msra.mxu0 0
        %6716 = vmatpush.bf16.msra.mxu0 0
        %6717 = vmatpush.bf16.msra.mxu0 %v6686
        %6718 = vmatpush.bf16.msra.mxu0 %v6682
        %6719 = vmatmul.bf16.gmra.mxu0 %v5814
        %v6720 = vpop.f32.mrf.mxu0
        %v6721 = vadd.f32 %v6650, %v6720
        %v6722 = vpop.f32.mrf.mxu0
        %v6723 = vadd.f32 %v6650, %v6722
        %6724 = vdwg.mxu0
        %6725 = vmatpush.bf16.msra.mxu0 0
        %6726 = vmatpush.bf16.msra.mxu0 0
        %6727 = vmatpush.bf16.msra.mxu0 0
        %6728 = vmatpush.bf16.msra.mxu0 0
        %6729 = vmatpush.bf16.msra.mxu0 0
        %6730 = vmatpush.bf16.msra.mxu0 0
        %6731 = vmatpush.bf16.msra.mxu0 %v6687
        %6732 = vmatpush.bf16.msra.mxu0 %v6683
        %6733 = vmatmul.bf16.gmra.mxu0 %v5814
        %v6734 = vpop.f32.mrf.mxu0
        %v6735 = vadd.f32 %v6651, %v6734
        %v6736 = vpop.f32.mrf.mxu0
        %v6737 = vadd.f32 %v6651, %v6736
        %6738 = vdwg.mxu0
        %6739 = vmatpush.bf16.msra.mxu0 0
        %6740 = vmatpush.bf16.msra.mxu0 0
        %6741 = vmatpush.bf16.msra.mxu0 0
        %6742 = vmatpush.bf16.msra.mxu0 0
        %6743 = vmatpush.bf16.msra.mxu0 0
        %6744 = vmatpush.bf16.msra.mxu0 0
        %6745 = vmatpush.bf16.msra.mxu0 %v6688
        %6746 = vmatpush.bf16.msra.mxu0 %v6684
        %6747 = vmatmul.bf16.gmra.mxu0 %v5814
        %v6748 = vpop.f32.mrf.mxu0
        %v6749 = vadd.f32 %v6652, %v6748
        %v6750 = vpop.f32.mrf.mxu0
        %v6751 = vadd.f32 %v6652, %v6750
        %6752 = vdwg.mxu0
        %v6753 = vmax.f32 %v6707, 0.0
        %v6754 = vmax.f32 %v6721, 0.0
        %v6755 = vmax.f32 %v6735, 0.0
        %v6756 = vmax.f32 %v6749, 0.0
        %v6757 = vmax.f32 %v6709, 0.0
        %v6758 = vmax.f32 %v6723, 0.0
        %v6759 = vmax.f32 %v6737, 0.0
        %v6760 = vmax.f32 %v6751, 0.0
        %v6761 = vpack.c.bf16 %v6757, %v6753
        %v6762 = vpack.c.bf16 %v6758, %v6754
        %v6763 = vpack.c.bf16 %v6759, %v6755
        %v6764 = vpack.c.bf16 %v6760, %v6756
        %s6765 = scalar_lea.vmem %s493, 512
        %v6766 = vld [vmem:[%s6765] sm:$0xf]
        %v6767 = vld [vmem:[%s6765 + $0x4] sm:$0xf]
        %v6768 = vld [vmem:[%s6765 + $0x8] sm:$0xf]
        %v6769 = vld [vmem:[%s6765 + $0xc] sm:$0xf]
        %v6770 = vld [vmem:[%s6765 + $0x10] sm:$0xf]
        %v6771 = vld [vmem:[%s6765 + $0x14] sm:$0xf]
        %v6772 = vld [vmem:[%s6765 + $0x18] sm:$0xf]
        %v6773 = vld [vmem:[%s6765 + $0x1c] sm:$0xf]
        %v6774 = vld [vmem:[%s6765 + $0x20] sm:$0xf]
        %v6775 = vld [vmem:[%s6765 + $0x24] sm:$0xf]
        %v6776 = vld [vmem:[%s6765 + $0x28] sm:$0xf]
        %v6777 = vld [vmem:[%s6765 + $0x2c] sm:$0xf]
        %v6778 = vld [vmem:[%s6765 + $0x30] sm:$0xf]
        %v6779 = vld [vmem:[%s6765 + $0x34] sm:$0xf]
        %v6780 = vld [vmem:[%s6765 + $0x38] sm:$0xf]
        %v6781 = vld [vmem:[%s6765 + $0x3c] sm:$0xf]
        %v6782 = vld [vmem:[%s6765 + $0x40] sm:$0xf]
        %v6783 = vld [vmem:[%s6765 + $0x44] sm:$0xf]
        %v6784 = vld [vmem:[%s6765 + $0x48] sm:$0xf]
        %v6785 = vld [vmem:[%s6765 + $0x4c] sm:$0xf]
        %v6786 = vld [vmem:[%s6765 + $0x50] sm:$0xf]
        %v6787 = vld [vmem:[%s6765 + $0x54] sm:$0xf]
        %v6788 = vld [vmem:[%s6765 + $0x58] sm:$0xf]
        %v6789 = vld [vmem:[%s6765 + $0x5c] sm:$0xf]
        %v6790 = vld [vmem:[%s6765 + $0x60] sm:$0xf]
        %v6791 = vld [vmem:[%s6765 + $0x64] sm:$0xf]
        %v6792 = vld [vmem:[%s6765 + $0x68] sm:$0xf]
        %v6793 = vld [vmem:[%s6765 + $0x6c] sm:$0xf]
        %v6794 = vld [vmem:[%s6765 + $0x70] sm:$0xf]
        %v6795 = vld [vmem:[%s6765 + $0x74] sm:$0xf]
        %v6796 = vld [vmem:[%s6765 + $0x78] sm:$0xf]
        %v6797 = vld [vmem:[%s6765 + $0x7c] sm:$0xf]
        %v6798 = vld [vmem:[%s6765 + $0x80] sm:$0xf]
        %v6799 = vld [vmem:[%s6765 + $0x84] sm:$0xf]
        %v6800 = vld [vmem:[%s6765 + $0x88] sm:$0xf]
        %v6801 = vld [vmem:[%s6765 + $0x8c] sm:$0xf]
        %v6802 = vld [vmem:[%s6765 + $0x90] sm:$0xf]
        %v6803 = vld [vmem:[%s6765 + $0x94] sm:$0xf]
        %v6804 = vld [vmem:[%s6765 + $0x98] sm:$0xf]
        %v6805 = vld [vmem:[%s6765 + $0x9c] sm:$0xf]
        %v6806 = vld [vmem:[%s6765 + $0xa0] sm:$0xf]
        %v6807 = vld [vmem:[%s6765 + $0xa4] sm:$0xf]
        %v6808 = vld [vmem:[%s6765 + $0xa8] sm:$0xf]
        %v6809 = vld [vmem:[%s6765 + $0xac] sm:$0xf]
        %v6810 = vld [vmem:[%s6765 + $0xb0] sm:$0xf]
        %v6811 = vld [vmem:[%s6765 + $0xb4] sm:$0xf]
        %v6812 = vld [vmem:[%s6765 + $0xb8] sm:$0xf]
        %v6813 = vld [vmem:[%s6765 + $0xbc] sm:$0xf]
        %v6814 = vld [vmem:[%s6765 + $0xc0] sm:$0xf]
        %v6815 = vld [vmem:[%s6765 + $0xc4] sm:$0xf]
        %v6816 = vld [vmem:[%s6765 + $0xc8] sm:$0xf]
        %v6817 = vld [vmem:[%s6765 + $0xcc] sm:$0xf]
        %v6818 = vld [vmem:[%s6765 + $0xd0] sm:$0xf]
        %v6819 = vld [vmem:[%s6765 + $0xd4] sm:$0xf]
        %v6820 = vld [vmem:[%s6765 + $0xd8] sm:$0xf]
        %v6821 = vld [vmem:[%s6765 + $0xdc] sm:$0xf]
        %v6822 = vld [vmem:[%s6765 + $0xe0] sm:$0xf]
        %v6823 = vld [vmem:[%s6765 + $0xe4] sm:$0xf]
        %v6824 = vld [vmem:[%s6765 + $0xe8] sm:$0xf]
        %v6825 = vld [vmem:[%s6765 + $0xec] sm:$0xf]
        %v6826 = vld [vmem:[%s6765 + $0xf0] sm:$0xf]
        %v6827 = vld [vmem:[%s6765 + $0xf4] sm:$0xf]
        %v6828 = vld [vmem:[%s6765 + $0xf8] sm:$0xf]
        %v6829 = vld [vmem:[%s6765 + $0xfc] sm:$0xf]
        %v6894 = vunpack.c.l.b16 %v6766
        %v6895 = vunpack.c.l.b16 %v6767
        %v6896 = vunpack.c.l.b16 %v6768
        %v6897 = vunpack.c.l.b16 %v6769
        %v6898 = vunpack.c.l.b16 %v6770
        %v6899 = vunpack.c.l.b16 %v6771
        %v6900 = vunpack.c.l.b16 %v6772
        %v6901 = vunpack.c.l.b16 %v6773
        %v6902 = vunpack.c.l.b16 %v6774
        %v6903 = vunpack.c.l.b16 %v6775
        %v6904 = vunpack.c.l.b16 %v6776
        %v6905 = vunpack.c.l.b16 %v6777
        %v6906 = vunpack.c.l.b16 %v6778
        %v6907 = vunpack.c.l.b16 %v6779
        %v6908 = vunpack.c.l.b16 %v6780
        %v6909 = vunpack.c.l.b16 %v6781
        %v6910 = vunpack.c.l.b16 %v6782
        %v6911 = vunpack.c.l.b16 %v6783
        %v6912 = vunpack.c.l.b16 %v6784
        %v6913 = vunpack.c.l.b16 %v6785
        %v6914 = vunpack.c.l.b16 %v6786
        %v6915 = vunpack.c.l.b16 %v6787
        %v6916 = vunpack.c.l.b16 %v6788
        %v6917 = vunpack.c.l.b16 %v6789
        %v6918 = vunpack.c.l.b16 %v6790
        %v6919 = vunpack.c.l.b16 %v6791
        %v6920 = vunpack.c.l.b16 %v6792
        %v6921 = vunpack.c.l.b16 %v6793
        %v6922 = vunpack.c.l.b16 %v6794
        %v6923 = vunpack.c.l.b16 %v6795
        %v6924 = vunpack.c.l.b16 %v6796
        %v6925 = vunpack.c.l.b16 %v6797
        %v6926 = vunpack.c.l.b16 %v6798
        %v6927 = vunpack.c.l.b16 %v6799
        %v6928 = vunpack.c.l.b16 %v6800
        %v6929 = vunpack.c.l.b16 %v6801
        %v6930 = vunpack.c.l.b16 %v6802
        %v6931 = vunpack.c.l.b16 %v6803
        %v6932 = vunpack.c.l.b16 %v6804
        %v6933 = vunpack.c.l.b16 %v6805
        %v6934 = vunpack.c.l.b16 %v6806
        %v6935 = vunpack.c.l.b16 %v6807
        %v6936 = vunpack.c.l.b16 %v6808
        %v6937 = vunpack.c.l.b16 %v6809
        %v6938 = vunpack.c.l.b16 %v6810
        %v6939 = vunpack.c.l.b16 %v6811
        %v6940 = vunpack.c.l.b16 %v6812
        %v6941 = vunpack.c.l.b16 %v6813
        %v6942 = vunpack.c.l.b16 %v6814
        %v6943 = vunpack.c.l.b16 %v6815
        %v6944 = vunpack.c.l.b16 %v6816
        %v6945 = vunpack.c.l.b16 %v6817
        %v6946 = vunpack.c.l.b16 %v6818
        %v6947 = vunpack.c.l.b16 %v6819
        %v6948 = vunpack.c.l.b16 %v6820
        %v6949 = vunpack.c.l.b16 %v6821
        %v6950 = vunpack.c.l.b16 %v6822
        %v6951 = vunpack.c.l.b16 %v6823
        %v6952 = vunpack.c.l.b16 %v6824
        %v6953 = vunpack.c.l.b16 %v6825
        %v6954 = vunpack.c.l.b16 %v6826
        %v6955 = vunpack.c.l.b16 %v6827
        %v6956 = vunpack.c.l.b16 %v6828
        %v6957 = vunpack.c.l.b16 %v6829
        %v6958 = vpack.c.b16 %v6895, %v6894
        %v6959 = vpack.c.b16 %v6897, %v6896
        %v6960 = vpack.c.b16 %v6899, %v6898
        %v6961 = vpack.c.b16 %v6901, %v6900
        %v6962 = vpack.c.b16 %v6903, %v6902
        %v6963 = vpack.c.b16 %v6905, %v6904
        %v6964 = vpack.c.b16 %v6907, %v6906
        %v6965 = vpack.c.b16 %v6909, %v6908
        %v6966 = vpack.c.b16 %v6911, %v6910
        %v6967 = vpack.c.b16 %v6913, %v6912
        %v6968 = vpack.c.b16 %v6915, %v6914
        %v6969 = vpack.c.b16 %v6917, %v6916
        %v6970 = vpack.c.b16 %v6919, %v6918
        %v6971 = vpack.c.b16 %v6921, %v6920
        %v6972 = vpack.c.b16 %v6923, %v6922
        %v6973 = vpack.c.b16 %v6925, %v6924
        %v6974 = vpack.c.b16 %v6927, %v6926
        %v6975 = vpack.c.b16 %v6929, %v6928
        %v6976 = vpack.c.b16 %v6931, %v6930
        %v6977 = vpack.c.b16 %v6933, %v6932
        %v6978 = vpack.c.b16 %v6935, %v6934
        %v6979 = vpack.c.b16 %v6937, %v6936
        %v6980 = vpack.c.b16 %v6939, %v6938
        %v6981 = vpack.c.b16 %v6941, %v6940
        %v6982 = vpack.c.b16 %v6943, %v6942
        %v6983 = vpack.c.b16 %v6945, %v6944
        %v6984 = vpack.c.b16 %v6947, %v6946
        %v6985 = vpack.c.b16 %v6949, %v6948
        %v6986 = vpack.c.b16 %v6951, %v6950
        %v6987 = vpack.c.b16 %v6953, %v6952
        %v6988 = vpack.c.b16 %v6955, %v6954
        %v6989 = vpack.c.b16 %v6957, %v6956
        %7022 = vmatpush.bf16.msra.mxu0 %v6965
        %7023 = vmatpush.bf16.msra.mxu0 %v6964
        %7024 = vmatpush.bf16.msra.mxu0 %v6963
        %7025 = vmatpush.bf16.msra.mxu0 %v6962
        %7026 = vmatpush.bf16.msra.mxu0 %v6961
        %7027 = vmatpush.bf16.msra.mxu0 %v6960
        %7028 = vmatpush.bf16.msra.mxu0 %v6959
        %7029 = vmatpush.bf16.msra.mxu0 %v6958
        %7030 = vmatmul.bf16.gmra.mxu0 %v6761
        %v7031 = vpop.f32.mrf.mxu0
        %v7032 = vadd.f32 0.0, %v7031
        %v7033 = vpop.f32.mrf.mxu0
        %v7034 = vadd.f32 0.0, %v7033
        %7035 = vdwg.mxu0
        %7036 = vmatpush.bf16.msra.mxu0 %v6973
        %7037 = vmatpush.bf16.msra.mxu0 %v6972
        %7038 = vmatpush.bf16.msra.mxu0 %v6971
        %7039 = vmatpush.bf16.msra.mxu0 %v6970
        %7040 = vmatpush.bf16.msra.mxu0 %v6969
        %7041 = vmatpush.bf16.msra.mxu0 %v6968
        %7042 = vmatpush.bf16.msra.mxu0 %v6967
        %7043 = vmatpush.bf16.msra.mxu0 %v6966
        %7044 = vmatmul.bf16.gmra.mxu0 %v6762
        %v7045 = vpop.f32.mrf.mxu0
        %v7046 = vadd.f32 %v7032, %v7045
        %v7047 = vpop.f32.mrf.mxu0
        %v7048 = vadd.f32 %v7034, %v7047
        %7049 = vdwg.mxu0
        %7050 = vmatpush.bf16.msra.mxu0 %v6981
        %7051 = vmatpush.bf16.msra.mxu0 %v6980
        %7052 = vmatpush.bf16.msra.mxu0 %v6979
        %7053 = vmatpush.bf16.msra.mxu0 %v6978
        %7054 = vmatpush.bf16.msra.mxu0 %v6977
        %7055 = vmatpush.bf16.msra.mxu0 %v6976
        %7056 = vmatpush.bf16.msra.mxu0 %v6975
        %7057 = vmatpush.bf16.msra.mxu0 %v6974
        %7058 = vmatmul.bf16.gmra.mxu0 %v6763
        %v7059 = vpop.f32.mrf.mxu0
        %v7060 = vadd.f32 %v7046, %v7059
        %v7061 = vpop.f32.mrf.mxu0
        %v7062 = vadd.f32 %v7048, %v7061
        %7063 = vdwg.mxu0
        %7064 = vmatpush.bf16.msra.mxu0 %v6989
        %7065 = vmatpush.bf16.msra.mxu0 %v6988
        %7066 = vmatpush.bf16.msra.mxu0 %v6987
        %7067 = vmatpush.bf16.msra.mxu0 %v6986
        %7068 = vmatpush.bf16.msra.mxu0 %v6985
        %7069 = vmatpush.bf16.msra.mxu0 %v6984
        %7070 = vmatpush.bf16.msra.mxu0 %v6983
        %7071 = vmatpush.bf16.msra.mxu0 %v6982
        %7072 = vmatmul.bf16.gmra.mxu0 %v6764
        %v7073 = vpop.f32.mrf.mxu0
        %v7074 = vadd.f32 %v7060, %v7073
        %v7075 = vpop.f32.mrf.mxu0
        %v7076 = vadd.f32 %v7062, %v7075
        %7077 = vdwg.mxu0
        %v7078 = vadd.f32 %v6633, %v7074
        %v7079 = vadd.f32 %v6635, %v7076
        %s7080 = scalar_lea.vmem %s484, 192
        %v7081 = vld [vmem:[%s7080] sm:$0xff]
        %v7082 = vld [vmem:[%s7080 + $0x8] sm:$0xff]
        %v7083 = vld [vmem:[%s7080 + $0x10] sm:$0xff]
        %v7084 = vld [vmem:[%s7080 + $0x18] sm:$0xff]
        %v7085 = vld [vmem:[%s7080 + $0x20] sm:$0xff]
        %v7086 = vld [vmem:[%s7080 + $0x28] sm:$0xff]
        %v7087 = vld [vmem:[%s7080 + $0x30] sm:$0xff]
        %v7088 = vld [vmem:[%s7080 + $0x38] sm:$0xff]
        %s7089 = scalar_lea.vmem %s488, 12
        %v7090 = vld [vmem:[%s7089] sm:$0xf]
        %v7092 = vperm.slane %v7090, 0
        %v7093 = vperm.slane %v7090, 1
        %v7094 = vperm.slane %v7090, 2
        %v7095 = vperm.slane %v7090, 3
        %v7108 = vunpack.c.l.b16 %v7081
        %v7109 = vunpack.c.h.b16 %v7081
        %v7110 = vunpack.c.l.b16 %v7082
        %v7111 = vunpack.c.h.b16 %v7082
        %v7112 = vunpack.c.l.b16 %v7083
        %v7113 = vunpack.c.h.b16 %v7083
        %v7114 = vunpack.c.l.b16 %v7084
        %v7115 = vunpack.c.h.b16 %v7084
        %v7116 = vunpack.c.l.b16 %v7085
        %v7117 = vunpack.c.h.b16 %v7085
        %v7118 = vunpack.c.l.b16 %v7086
        %v7119 = vunpack.c.h.b16 %v7086
        %v7120 = vunpack.c.l.b16 %v7087
        %v7121 = vunpack.c.h.b16 %v7087
        %v7122 = vunpack.c.l.b16 %v7088
        %v7123 = vunpack.c.h.b16 %v7088
        %v7124 = vpack.c.b16 %v7112, %v7108
        %v7125 = vpack.c.b16 %v7113, %v7109
        %v7126 = vpack.c.b16 %v7114, %v7110
        %v7127 = vpack.c.b16 %v7115, %v7111
        %v7128 = vpack.c.b16 %v7120, %v7116
        %v7129 = vpack.c.b16 %v7121, %v7117
        %v7130 = vpack.c.b16 %v7122, %v7118
        %v7131 = vpack.c.b16 %v7123, %v7119
        %7140 = vmatpush.bf16.msra.mxu0 0
        %7141 = vmatpush.bf16.msra.mxu0 0
        %7142 = vmatpush.bf16.msra.mxu0 0
        %7143 = vmatpush.bf16.msra.mxu0 0
        %7144 = vmatpush.bf16.msra.mxu0 0
        %7145 = vmatpush.bf16.msra.mxu0 0
        %7146 = vmatpush.bf16.msra.mxu0 %v7128
        %7147 = vmatpush.bf16.msra.mxu0 %v7124
        %7148 = vmatmul.bf16.gmra.mxu0 %v5814
        %v7149 = vpop.f32.mrf.mxu0
        %v7150 = vadd.f32 %v7092, %v7149
        %v7151 = vpop.f32.mrf.mxu0
        %v7152 = vadd.f32 %v7092, %v7151
        %7153 = vdwg.mxu0
        %7154 = vmatpush.bf16.msra.mxu0 0
        %7155 = vmatpush.bf16.msra.mxu0 0
        %7156 = vmatpush.bf16.msra.mxu0 0
        %7157 = vmatpush.bf16.msra.mxu0 0
        %7158 = vmatpush.bf16.msra.mxu0 0
        %7159 = vmatpush.bf16.msra.mxu0 0
        %7160 = vmatpush.bf16.msra.mxu0 %v7129
        %7161 = vmatpush.bf16.msra.mxu0 %v7125
        %7162 = vmatmul.bf16.gmra.mxu0 %v5814
        %v7163 = vpop.f32.mrf.mxu0
        %v7164 = vadd.f32 %v7093, %v7163
        %v7165 = vpop.f32.mrf.mxu0
        %v7166 = vadd.f32 %v7093, %v7165
        %7167 = vdwg.mxu0
        %7168 = vmatpush.bf16.msra.mxu0 0
        %7169 = vmatpush.bf16.msra.mxu0 0
        %7170 = vmatpush.bf16.msra.mxu0 0
        %7171 = vmatpush.bf16.msra.mxu0 0
        %7172 = vmatpush.bf16.msra.mxu0 0
        %7173 = vmatpush.bf16.msra.mxu0 0
        %7174 = vmatpush.bf16.msra.mxu0 %v7130
        %7175 = vmatpush.bf16.msra.mxu0 %v7126
        %7176 = vmatmul.bf16.gmra.mxu0 %v5814
        %v7177 = vpop.f32.mrf.mxu0
        %v7178 = vadd.f32 %v7094, %v7177
        %v7179 = vpop.f32.mrf.mxu0
        %v7180 = vadd.f32 %v7094, %v7179
        %7181 = vdwg.mxu0
        %7182 = vmatpush.bf16.msra.mxu0 0
        %7183 = vmatpush.bf16.msra.mxu0 0
        %7184 = vmatpush.bf16.msra.mxu0 0
        %7185 = vmatpush.bf16.msra.mxu0 0
        %7186 = vmatpush.bf16.msra.mxu0 0
        %7187 = vmatpush.bf16.msra.mxu0 0
        %7188 = vmatpush.bf16.msra.mxu0 %v7131
        %7189 = vmatpush.bf16.msra.mxu0 %v7127
        %7190 = vmatmul.bf16.gmra.mxu0 %v5814
        %v7191 = vpop.f32.mrf.mxu0
        %v7192 = vadd.f32 %v7095, %v7191
        %v7193 = vpop.f32.mrf.mxu0
        %v7194 = vadd.f32 %v7095, %v7193
        %7195 = vdwg.mxu0
        %v7196 = vmax.f32 %v7150, 0.0
        %v7197 = vmax.f32 %v7164, 0.0
        %v7198 = vmax.f32 %v7178, 0.0
        %v7199 = vmax.f32 %v7192, 0.0
        %v7200 = vmax.f32 %v7152, 0.0
        %v7201 = vmax.f32 %v7166, 0.0
        %v7202 = vmax.f32 %v7180, 0.0
        %v7203 = vmax.f32 %v7194, 0.0
        %v7204 = vpack.c.bf16 %v7200, %v7196
        %v7205 = vpack.c.bf16 %v7201, %v7197
        %v7206 = vpack.c.bf16 %v7202, %v7198
        %v7207 = vpack.c.bf16 %v7203, %v7199
        %s7208 = scalar_lea.vmem %s493, 768
        %v7209 = vld [vmem:[%s7208] sm:$0xf]
        %v7210 = vld [vmem:[%s7208 + $0x4] sm:$0xf]
        %v7211 = vld [vmem:[%s7208 + $0x8] sm:$0xf]
        %v7212 = vld [vmem:[%s7208 + $0xc] sm:$0xf]
        %v7213 = vld [vmem:[%s7208 + $0x10] sm:$0xf]
        %v7214 = vld [vmem:[%s7208 + $0x14] sm:$0xf]
        %v7215 = vld [vmem:[%s7208 + $0x18] sm:$0xf]
        %v7216 = vld [vmem:[%s7208 + $0x1c] sm:$0xf]
        %v7217 = vld [vmem:[%s7208 + $0x20] sm:$0xf]
        %v7218 = vld [vmem:[%s7208 + $0x24] sm:$0xf]
        %v7219 = vld [vmem:[%s7208 + $0x28] sm:$0xf]
        %v7220 = vld [vmem:[%s7208 + $0x2c] sm:$0xf]
        %v7221 = vld [vmem:[%s7208 + $0x30] sm:$0xf]
        %v7222 = vld [vmem:[%s7208 + $0x34] sm:$0xf]
        %v7223 = vld [vmem:[%s7208 + $0x38] sm:$0xf]
        %v7224 = vld [vmem:[%s7208 + $0x3c] sm:$0xf]
        %v7225 = vld [vmem:[%s7208 + $0x40] sm:$0xf]
        %v7226 = vld [vmem:[%s7208 + $0x44] sm:$0xf]
        %v7227 = vld [vmem:[%s7208 + $0x48] sm:$0xf]
        %v7228 = vld [vmem:[%s7208 + $0x4c] sm:$0xf]
        %v7229 = vld [vmem:[%s7208 + $0x50] sm:$0xf]
        %v7230 = vld [vmem:[%s7208 + $0x54] sm:$0xf]
        %v7231 = vld [vmem:[%s7208 + $0x58] sm:$0xf]
        %v7232 = vld [vmem:[%s7208 + $0x5c] sm:$0xf]
        %v7233 = vld [vmem:[%s7208 + $0x60] sm:$0xf]
        %v7234 = vld [vmem:[%s7208 + $0x64] sm:$0xf]
        %v7235 = vld [vmem:[%s7208 + $0x68] sm:$0xf]
        %v7236 = vld [vmem:[%s7208 + $0x6c] sm:$0xf]
        %v7237 = vld [vmem:[%s7208 + $0x70] sm:$0xf]
        %v7238 = vld [vmem:[%s7208 + $0x74] sm:$0xf]
        %v7239 = vld [vmem:[%s7208 + $0x78] sm:$0xf]
        %v7240 = vld [vmem:[%s7208 + $0x7c] sm:$0xf]
        %v7241 = vld [vmem:[%s7208 + $0x80] sm:$0xf]
        %v7242 = vld [vmem:[%s7208 + $0x84] sm:$0xf]
        %v7243 = vld [vmem:[%s7208 + $0x88] sm:$0xf]
        %v7244 = vld [vmem:[%s7208 + $0x8c] sm:$0xf]
        %v7245 = vld [vmem:[%s7208 + $0x90] sm:$0xf]
        %v7246 = vld [vmem:[%s7208 + $0x94] sm:$0xf]
        %v7247 = vld [vmem:[%s7208 + $0x98] sm:$0xf]
        %v7248 = vld [vmem:[%s7208 + $0x9c] sm:$0xf]
        %v7249 = vld [vmem:[%s7208 + $0xa0] sm:$0xf]
        %v7250 = vld [vmem:[%s7208 + $0xa4] sm:$0xf]
        %v7251 = vld [vmem:[%s7208 + $0xa8] sm:$0xf]
        %v7252 = vld [vmem:[%s7208 + $0xac] sm:$0xf]
        %v7253 = vld [vmem:[%s7208 + $0xb0] sm:$0xf]
        %v7254 = vld [vmem:[%s7208 + $0xb4] sm:$0xf]
        %v7255 = vld [vmem:[%s7208 + $0xb8] sm:$0xf]
        %v7256 = vld [vmem:[%s7208 + $0xbc] sm:$0xf]
        %v7257 = vld [vmem:[%s7208 + $0xc0] sm:$0xf]
        %v7258 = vld [vmem:[%s7208 + $0xc4] sm:$0xf]
        %v7259 = vld [vmem:[%s7208 + $0xc8] sm:$0xf]
        %v7260 = vld [vmem:[%s7208 + $0xcc] sm:$0xf]
        %v7261 = vld [vmem:[%s7208 + $0xd0] sm:$0xf]
        %v7262 = vld [vmem:[%s7208 + $0xd4] sm:$0xf]
        %v7263 = vld [vmem:[%s7208 + $0xd8] sm:$0xf]
        %v7264 = vld [vmem:[%s7208 + $0xdc] sm:$0xf]
        %v7265 = vld [vmem:[%s7208 + $0xe0] sm:$0xf]
        %v7266 = vld [vmem:[%s7208 + $0xe4] sm:$0xf]
        %v7267 = vld [vmem:[%s7208 + $0xe8] sm:$0xf]
        %v7268 = vld [vmem:[%s7208 + $0xec] sm:$0xf]
        %v7269 = vld [vmem:[%s7208 + $0xf0] sm:$0xf]
        %v7270 = vld [vmem:[%s7208 + $0xf4] sm:$0xf]
        %v7271 = vld [vmem:[%s7208 + $0xf8] sm:$0xf]
        %v7272 = vld [vmem:[%s7208 + $0xfc] sm:$0xf]
        %v7337 = vunpack.c.l.b16 %v7209
        %v7338 = vunpack.c.l.b16 %v7210
        %v7339 = vunpack.c.l.b16 %v7211
        %v7340 = vunpack.c.l.b16 %v7212
        %v7341 = vunpack.c.l.b16 %v7213
        %v7342 = vunpack.c.l.b16 %v7214
        %v7343 = vunpack.c.l.b16 %v7215
        %v7344 = vunpack.c.l.b16 %v7216
        %v7345 = vunpack.c.l.b16 %v7217
        %v7346 = vunpack.c.l.b16 %v7218
        %v7347 = vunpack.c.l.b16 %v7219
        %v7348 = vunpack.c.l.b16 %v7220
        %v7349 = vunpack.c.l.b16 %v7221
        %v7350 = vunpack.c.l.b16 %v7222
        %v7351 = vunpack.c.l.b16 %v7223
        %v7352 = vunpack.c.l.b16 %v7224
        %v7353 = vunpack.c.l.b16 %v7225
        %v7354 = vunpack.c.l.b16 %v7226
        %v7355 = vunpack.c.l.b16 %v7227
        %v7356 = vunpack.c.l.b16 %v7228
        %v7357 = vunpack.c.l.b16 %v7229
        %v7358 = vunpack.c.l.b16 %v7230
        %v7359 = vunpack.c.l.b16 %v7231
        %v7360 = vunpack.c.l.b16 %v7232
        %v7361 = vunpack.c.l.b16 %v7233
        %v7362 = vunpack.c.l.b16 %v7234
        %v7363 = vunpack.c.l.b16 %v7235
        %v7364 = vunpack.c.l.b16 %v7236
        %v7365 = vunpack.c.l.b16 %v7237
        %v7366 = vunpack.c.l.b16 %v7238
        %v7367 = vunpack.c.l.b16 %v7239
        %v7368 = vunpack.c.l.b16 %v7240
        %v7369 = vunpack.c.l.b16 %v7241
        %v7370 = vunpack.c.l.b16 %v7242
        %v7371 = vunpack.c.l.b16 %v7243
        %v7372 = vunpack.c.l.b16 %v7244
        %v7373 = vunpack.c.l.b16 %v7245
        %v7374 = vunpack.c.l.b16 %v7246
        %v7375 = vunpack.c.l.b16 %v7247
        %v7376 = vunpack.c.l.b16 %v7248
        %v7377 = vunpack.c.l.b16 %v7249
        %v7378 = vunpack.c.l.b16 %v7250
        %v7379 = vunpack.c.l.b16 %v7251
        %v7380 = vunpack.c.l.b16 %v7252
        %v7381 = vunpack.c.l.b16 %v7253
        %v7382 = vunpack.c.l.b16 %v7254
        %v7383 = vunpack.c.l.b16 %v7255
        %v7384 = vunpack.c.l.b16 %v7256
        %v7385 = vunpack.c.l.b16 %v7257
        %v7386 = vunpack.c.l.b16 %v7258
        %v7387 = vunpack.c.l.b16 %v7259
        %v7388 = vunpack.c.l.b16 %v7260
        %v7389 = vunpack.c.l.b16 %v7261
        %v7390 = vunpack.c.l.b16 %v7262
        %v7391 = vunpack.c.l.b16 %v7263
        %v7392 = vunpack.c.l.b16 %v7264
        %v7393 = vunpack.c.l.b16 %v7265
        %v7394 = vunpack.c.l.b16 %v7266
        %v7395 = vunpack.c.l.b16 %v7267
        %v7396 = vunpack.c.l.b16 %v7268
        %v7397 = vunpack.c.l.b16 %v7269
        %v7398 = vunpack.c.l.b16 %v7270
        %v7399 = vunpack.c.l.b16 %v7271
        %v7400 = vunpack.c.l.b16 %v7272
        %v7401 = vpack.c.b16 %v7338, %v7337
        %v7402 = vpack.c.b16 %v7340, %v7339
        %v7403 = vpack.c.b16 %v7342, %v7341
        %v7404 = vpack.c.b16 %v7344, %v7343
        %v7405 = vpack.c.b16 %v7346, %v7345
        %v7406 = vpack.c.b16 %v7348, %v7347
        %v7407 = vpack.c.b16 %v7350, %v7349
        %v7408 = vpack.c.b16 %v7352, %v7351
        %v7409 = vpack.c.b16 %v7354, %v7353
        %v7410 = vpack.c.b16 %v7356, %v7355
        %v7411 = vpack.c.b16 %v7358, %v7357
        %v7412 = vpack.c.b16 %v7360, %v7359
        %v7413 = vpack.c.b16 %v7362, %v7361
        %v7414 = vpack.c.b16 %v7364, %v7363
        %v7415 = vpack.c.b16 %v7366, %v7365
        %v7416 = vpack.c.b16 %v7368, %v7367
        %v7417 = vpack.c.b16 %v7370, %v7369
        %v7418 = vpack.c.b16 %v7372, %v7371
        %v7419 = vpack.c.b16 %v7374, %v7373
        %v7420 = vpack.c.b16 %v7376, %v7375
        %v7421 = vpack.c.b16 %v7378, %v7377
        %v7422 = vpack.c.b16 %v7380, %v7379
        %v7423 = vpack.c.b16 %v7382, %v7381
        %v7424 = vpack.c.b16 %v7384, %v7383
        %v7425 = vpack.c.b16 %v7386, %v7385
        %v7426 = vpack.c.b16 %v7388, %v7387
        %v7427 = vpack.c.b16 %v7390, %v7389
        %v7428 = vpack.c.b16 %v7392, %v7391
        %v7429 = vpack.c.b16 %v7394, %v7393
        %v7430 = vpack.c.b16 %v7396, %v7395
        %v7431 = vpack.c.b16 %v7398, %v7397
        %v7432 = vpack.c.b16 %v7400, %v7399
        %7465 = vmatpush.bf16.msra.mxu0 %v7408
        %7466 = vmatpush.bf16.msra.mxu0 %v7407
        %7467 = vmatpush.bf16.msra.mxu0 %v7406
        %7468 = vmatpush.bf16.msra.mxu0 %v7405
        %7469 = vmatpush.bf16.msra.mxu0 %v7404
        %7470 = vmatpush.bf16.msra.mxu0 %v7403
        %7471 = vmatpush.bf16.msra.mxu0 %v7402
        %7472 = vmatpush.bf16.msra.mxu0 %v7401
        %7473 = vmatmul.bf16.gmra.mxu0 %v7204
        %v7474 = vpop.f32.mrf.mxu0
        %v7475 = vadd.f32 0.0, %v7474
        %v7476 = vpop.f32.mrf.mxu0
        %v7477 = vadd.f32 0.0, %v7476
        %7478 = vdwg.mxu0
        %7479 = vmatpush.bf16.msra.mxu0 %v7416
        %7480 = vmatpush.bf16.msra.mxu0 %v7415
        %7481 = vmatpush.bf16.msra.mxu0 %v7414
        %7482 = vmatpush.bf16.msra.mxu0 %v7413
        %7483 = vmatpush.bf16.msra.mxu0 %v7412
        %7484 = vmatpush.bf16.msra.mxu0 %v7411
        %7485 = vmatpush.bf16.msra.mxu0 %v7410
        %7486 = vmatpush.bf16.msra.mxu0 %v7409
        %7487 = vmatmul.bf16.gmra.mxu0 %v7205
        %v7488 = vpop.f32.mrf.mxu0
        %v7489 = vadd.f32 %v7475, %v7488
        %v7490 = vpop.f32.mrf.mxu0
        %v7491 = vadd.f32 %v7477, %v7490
        %7492 = vdwg.mxu0
        %7493 = vmatpush.bf16.msra.mxu0 %v7424
        %7494 = vmatpush.bf16.msra.mxu0 %v7423
        %7495 = vmatpush.bf16.msra.mxu0 %v7422
        %7496 = vmatpush.bf16.msra.mxu0 %v7421
        %7497 = vmatpush.bf16.msra.mxu0 %v7420
        %7498 = vmatpush.bf16.msra.mxu0 %v7419
        %7499 = vmatpush.bf16.msra.mxu0 %v7418
        %7500 = vmatpush.bf16.msra.mxu0 %v7417
        %7501 = vmatmul.bf16.gmra.mxu0 %v7206
        %v7502 = vpop.f32.mrf.mxu0
        %v7503 = vadd.f32 %v7489, %v7502
        %v7504 = vpop.f32.mrf.mxu0
        %v7505 = vadd.f32 %v7491, %v7504
        %7506 = vdwg.mxu0
        %7507 = vmatpush.bf16.msra.mxu0 %v7432
        %7508 = vmatpush.bf16.msra.mxu0 %v7431
        %7509 = vmatpush.bf16.msra.mxu0 %v7430
        %7510 = vmatpush.bf16.msra.mxu0 %v7429
        %7511 = vmatpush.bf16.msra.mxu0 %v7428
        %7512 = vmatpush.bf16.msra.mxu0 %v7427
        %7513 = vmatpush.bf16.msra.mxu0 %v7426
        %7514 = vmatpush.bf16.msra.mxu0 %v7425
        %7515 = vmatmul.bf16.gmra.mxu0 %v7207
        %v7516 = vpop.f32.mrf.mxu0
        %v7517 = vadd.f32 %v7503, %v7516
        %v7518 = vpop.f32.mrf.mxu0
        %v7519 = vadd.f32 %v7505, %v7518
        %7520 = vdwg.mxu0
        %v7521 = vadd.f32 %v7078, %v7517
        %v7522 = vadd.f32 %v7079, %v7519
        %v7523 = vperm.slane %v552, 1
        %v7524 = vadd.f32 %v7521, %v7523
        %v7525 = vadd.f32 %v7522, %v7523
        %v7526 = vadd.f32 %v5752, %v7524
        %v7527 = vadd.f32 %v5753, %v7525
        %v7528 = vsel %vm574, %v7526, 0.0
        %7529 = vadd.xlane.f32.xlu0 %v7528
        %v7530 = vpop.xlane.xlu0 %7529
        %v7531 = vsel %vm574, %v7527, 0.0
        %7532 = vadd.xlane.f32.xlu0 %v7531
        %v7533 = vpop.xlane.xlu0 %7532
        %v7534 = vmul.f32 %v7530, %v5709
        %v7535 = vmul.f32 %v7533, %v5709
        %v7536 = vsub.f32 %v7526, %v7534
        %v7537 = vsub.f32 %v7527, %v7535
        %v7538 = vmul.f32 %v7536, %v7536
        %v7539 = vmul.f32 %v7537, %v7537
        %v7540 = vsel %vm574, %v7538, 0.0
        %7541 = vadd.xlane.f32.xlu0 %v7540
        %v7542 = vpop.xlane.xlu0 %7541
        %v7543 = vsel %vm574, %v7539, 0.0
        %7544 = vadd.xlane.f32.xlu0 %v7543
        %v7545 = vpop.xlane.xlu0 %7544
        %v7546 = vmul.f32 %v7542, %v5709
        %v7547 = vmul.f32 %v7545, %v5709
        %v7548 = vadd.f32 %v7546, 1e-05
        %v7549 = vadd.f32 %v7547, 1e-05
        %v7550 = vrsqrt.pop %v7548
        %v7551 = vmul.f32 %v7550, %v7548
        %v7552 = vmul.f32 %v7551, %v7550
        %v7553 = vmul.f32 0.5, %v7552
        %v7554 = vsub.f32 1.5, %v7553
        %v7555 = vmul.f32 %v7550, %v7554
        %vm7556 = vweird.f32 %v7548
        %vm7557 = vweird.f32 %v7550
        %vm7558 = vmor %vm7556, %vm7557
        %v7559 = vsel %vm7558, %v7550, %v7555
        %v7560 = vrsqrt.pop %v7549
        %v7561 = vmul.f32 %v7560, %v7549
        %v7562 = vmul.f32 %v7561, %v7560
        %v7563 = vmul.f32 0.5, %v7562
        %v7564 = vsub.f32 1.5, %v7563
        %v7565 = vmul.f32 %v7560, %v7564
        %vm7566 = vweird.f32 %v7549
        %vm7567 = vweird.f32 %v7560
        %vm7568 = vmor %vm7566, %vm7567
        %v7569 = vsel %vm7568, %v7560, %v7565
        %v7570 = vmul.f32 %v7536, %v7559
        %v7571 = vmul.f32 %v7537, %v7569
        %v7572 = vperm.slane %v552, 4
        %v7573 = vmul.f32 %v7570, %v7572
        %v7574 = vmul.f32 %v7571, %v7572
        %v7575 = vperm.slane %v552, 5
        %v7576 = vadd.f32 %v7573, %v7575
        %v7577 = vadd.f32 %v7574, %v7575
        %7578 = vst.msk [vmem:[#allocation2] sm:$0xff] %vm574, %v7576
        %7579 = vst.msk [vmem:[#allocation2 + $0x8] sm:$0xff] %vm574, %v7577
        %p7580 = scmp.eq.s32.totalorder %s29, 1
        // Predicated region
        $region65: #{tpu_custom_call.1} parent=59 // pred_check
          %p7581 = pneg %p7580
        $region66: #{tpu_custom_call.1} parent=59 // pred_check_branch
          %7583 = sbr.rel (%p7581) target = $region68
        $region67: #{tpu_custom_call.1} parent=59 // pred_region
          %v7586 = vrot.slane %v7577, 7
          %vm7589 = vcmask 261127
          %7590 = vst.msk [vmem:[%s461 - $0x7] sm:$0x80] %vm7589, %v7576
          %vm7591 = vcmask 253952
          %7592 = vst.msk [vmem:[%s461 + $0x1] sm:$0x1] %vm7591, %v7586
        $region68: #{tpu_custom_call.1} parent=59 // pred_fallthru
          _
        %s7593 = sand.u32 %s294, 1
        %s7594 = scalar_lea.sflag [#allocation4], %s7593
        %s7595 = sand.u32 %s294, 1
        %s7596 = smul.addr %s7595, 2
        %s7597 = scalar_lea.vmem [#allocation3], %s7596
        // Predicated region
        $region69: #{tpu_custom_call.1} parent=59 // pred_check
          %p7598 = pneg %p304
        $region70: #{tpu_custom_call.1} parent=59 // pred_check_branch
          %7600 = sbr.rel (%p7598) target = $region72
        $region71: #{tpu_custom_call.1} parent=59 // pred_region
          %7602 = vsyncadd %s7594, 0
          %s7603 = smul.addr %s28, 2
          %s7604 = scalar_lea.hbm %s10, %s7603
          %s7606 = sshll.u32 %s7597, 4
          %s7607 = int_to_ptr.vmem [resolvable:$true] %s7606
          %s7608 = sshll.u32 %s7604, 4
          %s7609 = int_to_ptr.hbm [resolvable:$true] %s7608
          %7611 = dma.vmem_to_hbm [thread:$0]  %s7607, 32, %s7609, %s7594
        $region72: #{tpu_custom_call.1} parent=59 // pred_fallthru
          _
      $region60: #{tpu_custom_call.1} parent=5 // pred_fallthru
        _
      %p7612 = scmp.le.s32.totalorder 2, %s19
      // Predicated region
      $region73: #{tpu_custom_call.1} parent=5 // pred_check
        %p7613 = pneg %p7612
      $region74: #{tpu_custom_call.1} parent=5 // pred_check_branch
        %7615 = sbr.rel (%p7613) target = $region76
      $region75: #{tpu_custom_call.1} parent=5 // pred_region
        %s7616 = ssub.s32 %s19, 2
        // Predicated region
        $region77: #{tpu_custom_call.1} parent=75 // pred_check
          %p7617 = pneg %p310
        $region78: #{tpu_custom_call.1} parent=75 // pred_check_branch
          %7619 = sbr.rel (%p7617) target = $region80
        $region79: #{tpu_custom_call.1} parent=75 // pred_region
          %s7620 = sand.u32 %s295, 1
          %s7621 = scalar_lea.sflag [#allocation4], %s7620
          %s7622 = sand.u32 %s295, 1
          %s7623 = smul.addr %s7622, 2
          %s7624 = scalar_lea.vmem [#allocation3], %s7623
          %7626 = dma.done %s7621, 32
        $region80: #{tpu_custom_call.1} parent=75 // pred_fallthru
          _
      $region76: #{tpu_custom_call.1} parent=5 // pred_fallthru
        _
    $region6: #{tpu_custom_call.1} parent=1 // loop_footer
      %s23 = sadd.s32 1, %s19
    $region7: #{tpu_custom_call.1} parent=1 // loop_footer_branch
      %18 = sbr.rel target = $region3
    $region8: #{tpu_custom_call.1} parent=1 // loop_exit
      _
    %7627 = vsyncpa [#allocation4], 1
    %s7628 = scalar_lea.sflag [#allocation4], 1
    %7629 = vsyncpa %s7628, 1

</llo_original>
